<compile_context>
chip_gen: v5e
topology: v5e:2x2
jax: 0.10.0
libtpu: 0.0.40
codegen_flags: <defaults>
</compile_context>

<pallas_src>
import functools

import jax
import jax.numpy as jnp
from jax import lax
from jax.experimental import pallas as pl
from jax.experimental.pallas import tpu as pltpu

_VMEM_LIMIT_BYTES = 24 * 1024 * 1024   # fits v5e/v6e (128 MiB) and v7x (64 MiB)


# ---------------------------------------------------------------------------
# Pallas kernels
# ---------------------------------------------------------------------------
def _mm_bias_relu_kernel(x_ref, w_ref, b_ref, o_ref):
    """relu(x @ w + b); BN scale pre-folded into w, bias is f32."""
    acc = jnp.dot(x_ref[...], w_ref[...], preferred_element_type=jnp.float32)
    o_ref[...] = jnp.maximum(acc + b_ref[...], 0.0).astype(o_ref.dtype)


def _tap_mm_kernel(x_ref, w_ref, b_ref, o_ref, *, n_taps, tap_stride, out_rows):
    """7-tap (1x7 or 7x1) Conv + BN + ReLU with in-kernel im2col.

    x_ref: ((S+6)*T, Cin) bf16 — one image, spatially padded along the tap
           axis S and flattened S-major, so tap t is the contiguous row slice
           starting at t*T (T == tap_stride).
    w_ref: (7, Cin, Cout_pad) bf16 BN-folded taps; b_ref: (1, Cout_pad) f32.
    """
    acc = jnp.dot(x_ref[pl.ds(0, out_rows), :], w_ref[0],
                  preferred_element_type=jnp.float32)
    for t in range(1, n_taps):
        acc = acc + jnp.dot(x_ref[pl.ds(t * tap_stride, out_rows), :], w_ref[t],
                            preferred_element_type=jnp.float32)
    o_ref[...] = jnp.maximum(acc + b_ref[...], 0.0).astype(o_ref.dtype)


# ---------------------------------------------------------------------------
# Wrapper helpers (layout / parameter glue)
# ---------------------------------------------------------------------------
def _round_up(x, m):
    return ((x + m - 1) // m) * m


def _bn_scale_bias(p, eps):
    """Eval-mode BatchNorm folded into per-channel (scale, bias), f32."""
    inv_std = 1.0 / jnp.sqrt(p['var'].astype(jnp.float32) + eps)
    scale = p['gamma'].astype(jnp.float32) * inv_std
    bias = p['beta'].astype(jnp.float32) - p['mean'].astype(jnp.float32) * scale
    return scale, bias


def _matmul_bias_relu(x_rows, w_mat, bias, *, out_dtype, max_tp=1024):
    """relu(x_rows @ w_mat + bias) via a row-tiled Pallas MXU matmul.

    x_rows: (P, K) bf16; w_mat: (K, Cp) bf16 (Cp multiple of 128);
    bias: (1, Cp) f32. Returns (P_pad, Cp) in out_dtype.
    """
    P, K = x_rows.shape
    Cp = w_mat.shape[1]
    # at least 2 grid steps (v7x has 2 TensorCores sharding "parallel" axes)
    tp = min(max_tp, _round_up(max(1, (P + 1) // 2), 128))
    P_pad = _round_up(P, tp)
    x = jnp.pad(x_rows, ((0, P_pad - P), (0, 0)))

    return pl.pallas_call(
        _mm_bias_relu_kernel,
        out_shape=jax.ShapeDtypeStruct((P_pad, Cp), out_dtype),
        grid_spec=pltpu.PrefetchScalarGridSpec(
            num_scalar_prefetch=0,
            grid=(P_pad // tp,),
            in_specs=[
                pl.BlockSpec((tp, K), lambda i: (i, 0)),     # activation rows
                pl.BlockSpec((K, Cp), lambda i: (0, 0)),     # resident weights
                pl.BlockSpec((1, Cp), lambda i: (0, 0)),     # bias
            ],
            out_specs=pl.BlockSpec((tp, Cp), lambda i: (i, 0))),
        compiler_params=pltpu.CompilerParams(
            dimension_semantics=("parallel",),
            vmem_limit_bytes=_VMEM_LIMIT_BYTES),
    )(x, w_mat, bias)


def _fused_stem_1x1(x_rows_bf16, plist, *, eps):
    """The three 1x1 stem convs fused into one matmul (weights concat on Cout)."""
    mats, biases, couts = [], [], []
    for p in plist:
        w = p['w'][:, :, 0, 0]                              # (Cout, Cin)
        scale, bias = _bn_scale_bias(p, eps)
        mats.append(jnp.transpose(w).astype(jnp.float32) * scale[None, :])
        biases.append(bias)
        couts.append(w.shape[0])
    W = jnp.concatenate(mats, axis=1)
    B = jnp.concatenate(biases)
    Ctot = W.shape[1]
    Cp = _round_up(Ctot, 128)
    W = jnp.pad(W, ((0, 0), (0, Cp - Ctot))).astype(jnp.bfloat16)
    B = jnp.pad(B, (0, Cp - Ctot)).reshape(1, Cp).astype(jnp.float32)
    out = _matmul_bias_relu(x_rows_bf16, W, B, out_dtype=jnp.bfloat16)
    return out, couts                                        # (P_pad, Cp), [c0,c1,c2]


def _cbr_7tap(x4, p, span, *, eps, out_dtype):
    """7x1 (span='H') or 1x7 (span='W') Conv + BN + ReLU, in-kernel im2col.

    x4: (N, S, T, Cin_k) bf16 with the conv's 7-tap axis already at position 1
        (S). Cin_k may exceed the real Cin (carried 128-padded channels; the
        extra channels are exactly zero, so zero weight rows are appended).
    Returns (N, S, T, Cout_pad) with real channels in [:Cout], zeros beyond.
    """
    N, S, T, Cin_k = x4.shape
    w = p['w']                                               # (Cout, Cin, kh, kw)
    Cout, Cin = w.shape[0], w.shape[1]
    taps = w[:, :, :, 0] if span == 'H' else w[:, :, 0, :]   # (Cout, Cin, 7)
    taps = jnp.transpose(taps, (2, 1, 0)).astype(jnp.float32)   # (7, Cin, Cout)
    scale, bias = _bn_scale_bias(p, eps)
    taps = taps * scale[None, None, :]
    Cout_p = _round_up(Cout, 128)
    taps = jnp.pad(taps, ((0, 0), (0, Cin_k - Cin), (0, Cout_p - Cout)))
    taps = taps.astype(jnp.bfloat16)
    b = jnp.pad(bias, (0, Cout_p - Cout)).reshape(1, Cout_p).astype(jnp.float32)

    # zero-pad 3 on each side of the tap axis, flatten spatial to S-major rows
    xp = jnp.pad(x4.astype(jnp.bfloat16), ((0, 0), (3, 3), (0, 0), (0, 0)))
    rows_in = (S + 6) * T
    out_rows = S * T
    xp = xp.reshape(N, rows_in, Cin_k)

    kernel = functools.partial(_tap_mm_kernel, n_taps=7, tap_stride=T,
                               out_rows=out_rows)
    out = pl.pallas_call(
        kernel,
        out_shape=jax.ShapeDtypeStruct((N, out_rows, Cout_p), out_dtype),
        grid_spec=pltpu.PrefetchScalarGridSpec(
            num_scalar_prefetch=0,
            grid=(N,),
            in_specs=[
                pl.BlockSpec((None, rows_in, Cin_k), lambda n: (n, 0, 0)),
                pl.BlockSpec((7, Cin_k, Cout_p), lambda n: (0, 0, 0)),
                pl.BlockSpec((1, Cout_p), lambda n: (0, 0)),
            ],
            out_specs=pl.BlockSpec((None, out_rows, Cout_p), lambda n: (n, 0, 0))),
        compiler_params=pltpu.CompilerParams(
            dimension_semantics=("parallel",),
            vmem_limit_bytes=_VMEM_LIMIT_BYTES),
    )(xp, taps, b)
    return out.reshape(N, S, T, Cout_p)


def _run_7tap_chain(x4_hmajor, layers, *, eps):
    """Run a sequence of alternating 1x7 / 7x1 CBR layers.

    x4_hmajor: (N, H, W, C) bf16. `layers` = [(params, 'H'|'W'), ...] where the
    tag is the axis the 7-tap kernel slides along. Orientation (which spatial
    axis sits at position 1) is carried between layers; a single transpose is
    inserted only when consecutive layers disagree.
    Returns (N, H, W, Cout_pad_of_last) with the final layer emitted in f32.
    """
    cur = x4_hmajor
    cur_is_h = True
    n = len(layers)
    for idx, (p, span) in enumerate(layers):
        want_h = (span == 'H')
        if cur_is_h != want_h:
            cur = jnp.transpose(cur, (0, 2, 1, 3))
            cur_is_h = want_h
        out_dtype = jnp.float32 if idx == n - 1 else jnp.bfloat16
        cur = _cbr_7tap(cur, p, span, eps=eps, out_dtype=out_dtype)
    if not cur_is_h:
        cur = jnp.transpose(cur, (0, 2, 1, 3))
    return cur


def _branch3_pool_conv(x_nhwc, p, *, eps):
    """AvgPool3x3(s1, p1, count_include_pad=False) + 1x1 Conv + BN + ReLU.

    The 3x3 window sum (with the 1/valid-count scale folded in) is a cheap
    wrapper-side reduce_window; the conv runs as a single K=Cin Pallas matmul
    (no 9x weight replication, no 9x-wide patch slab).
    """
    N, H, W, Cin = x_nhwc.shape
    s = lax.reduce_window(x_nhwc.astype(jnp.float32), 0.0, lax.add,
                          (1, 3, 3, 1), (1, 1, 1, 1),
                          [(0, 0), (1, 1), (1, 1), (0, 0)])
    ih, iw = jnp.arange(H), jnp.arange(W)
    cnt_h = jnp.minimum(ih + 1, H - 1) - jnp.maximum(ih - 1, 0) + 1
    cnt_w = jnp.minimum(iw + 1, W - 1) - jnp.maximum(iw - 1, 0) + 1
    inv = 1.0 / (cnt_h[:, None] * cnt_w[None, :]).astype(jnp.float32)
    pooled = (s * inv[None, :, :, None]).astype(jnp.bfloat16)

    w = p['w'][:, :, 0, 0]                                   # (Cout, Cin)
    Cout = w.shape[0]
    scale, bias = _bn_scale_bias(p, eps)
    wm = jnp.transpose(w).astype(jnp.float32) * scale[None, :]
    Cp = _round_up(Cout, 128)
    Wm = jnp.pad(wm, ((0, 0), (0, Cp - Cout))).astype(jnp.bfloat16)
    B = jnp.pad(bias, (0, Cp - Cout)).reshape(1, Cp).astype(jnp.float32)

    out = _matmul_bias_relu(pooled.reshape(N * H * W, Cin), Wm, B,
                            out_dtype=jnp.float32)
    return out[:N * H * W, :Cout].reshape(N, H, W, Cout)


def inception_b_forward(x_nchw, params, *, eps=1e-3):
    """Full Inception_B.forward on NCHW input, returns NCHW concat output."""
    x = jnp.transpose(x_nchw, (0, 2, 3, 1))                  # NHWC, f32
    x_bf = x.astype(jnp.bfloat16)
    N, H, W, Cin = x.shape
    P = N * H * W

    # fused 1x1 stem: branch0 + branch1[0] + branch2[0] in one matmul
    stem, (c0, c1, c2) = _fused_stem_1x1(
        x_bf.reshape(P, Cin),
        [params['branch0'][0], params['branch1'][0], params['branch2'][0]],
        eps=eps)

    x0 = stem[:P, :c0].astype(jnp.float32).reshape(N, H, W, c0)

    b1_in = stem[:P, c0:c0 + c1].reshape(N, H, W, c1)
    x1p = _run_7tap_chain(b1_in,
                          [(params['branch1'][1], 'W'),      # 1x7
                           (params['branch1'][2], 'H')],     # 7x1
                          eps=eps)
    x1 = x1p[..., :params['branch1'][2]['w'].shape[0]]

    b2_in = stem[:P, c0 + c1:c0 + c1 + c2].reshape(N, H, W, c2)
    x2p = _run_7tap_chain(b2_in,
                          [(params['branch2'][1], 'H'),      # 7x1
                           (params['branch2'][2], 'W'),      # 1x7
                           (params['branch2'][3], 'H'),      # 7x1
                           (params['branch2'][4], 'W')],     # 1x7
                          eps=eps)
    x2 = x2p[..., :params['branch2'][4]['w'].shape[0]]

    x3 = _branch3_pool_conv(x_bf, params['branch3'][0], eps=eps)

    out = jnp.concatenate([x0, x1, x2, x3], axis=-1)
    return jnp.transpose(out, (0, 3, 1, 2)).astype(jnp.float32)   # NCHW


# ---------------------------------------------------------------------------
# Pure-JAX f32 reference (module semantics)
# ---------------------------------------------------------------------------
def _cbr_ref(x, p, padding, eps=1e-3):
    conv = lax.conv_general_dilated(
        x, p['w'].astype(jnp.float32), window_strides=(1, 1),
        padding=[(padding[0], padding[0]), (padding[1], padding[1])],
        dimension_numbers=("NCHW", "OIHW", "NCHW"))
    scale = p['gamma'] / jnp.sqrt(p['var'] + eps)
    shift = p['beta'] - p['mean'] * scale
    return jnp.maximum(conv * scale[None, :, None, None] + shift[None, :, None, None], 0.0)


def reference(x_nchw, params, eps=1e-3):
    x = x_nchw.astype(jnp.float32)
    x0 = _cbr_ref(x, params['branch0'][0], (0, 0), eps)
    x1 = x
    for p, pad in zip(params['branch1'], [(0, 0), (0, 3), (3, 0)]):
        x1 = _cbr_ref(x1, p, pad, eps)
    x2 = x
    for p, pad in zip(params['branch2'], [(0, 0), (3, 0), (0, 3), (3, 0), (0, 3)]):
        x2 = _cbr_ref(x2, p, pad, eps)
    pad3 = [(0, 0), (0, 0), (1, 1), (1, 1)]
    s = lax.reduce_window(x, 0.0, lax.add, (1, 1, 3, 3), (1, 1, 1, 1), pad3)
    c = lax.reduce_window(jnp.ones_like(x), 0.0, lax.add, (1, 1, 3, 3), (1, 1, 1, 1), pad3)
    x3 = _cbr_ref(s / c, params['branch3'][0], (0, 0), eps)
    return jnp.concatenate([x0, x1, x2, x3], axis=1)


# ---------------------------------------------------------------------------
# Test
# ---------------------------------------------------------------------------
def _make_conv_params(key, cin, cout, kh, kw):
    kw_, kg, kb, km, kv = jax.random.split(key, 5)
    return dict(
        w=jax.random.normal(kw_, (cout, cin, kh, kw), jnp.float32) * 0.1,
        gamma=1.0 + 0.1 * jax.random.normal(kg, (cout,), jnp.float32),
        beta=0.1 * jax.random.normal(kb, (cout,), jnp.float32),
        mean=0.1 * jax.random.normal(km, (cout,), jnp.float32),
        var=jnp.abs(jax.random.normal(kv, (cout,), jnp.float32)) + 0.5,
    )


if __name__ == "__main__":
    N, Cin, H, W = 2, 4, 16, 16
    # channel counts = int(k * ratio) with ratio = 1/32  (384,192,224,256,128)
    c384, c256, c224, c192, c128 = 12, 8, 7, 6, 4

    key = jax.random.PRNGKey(0)
    keys = iter(jax.random.split(key, 16))
    params = {
        'branch0': [_make_conv_params(next(keys), Cin, c384, 1, 1)],
        'branch1': [
            _make_conv_params(next(keys), Cin, c192, 1, 1),
            _make_conv_params(next(keys), c192, c224, 1, 7),
            _make_conv_params(next(keys), c224, c256, 7, 1),
        ],
        'branch2': [
            _make_conv_params(next(keys), Cin, c192, 1, 1),
            _make_conv_params(next(keys), c192, c192, 7, 1),
            _make_conv_params(next(keys), c192, c224, 1, 7),
            _make_conv_params(next(keys), c224, c224, 7, 1),
            _make_conv_params(next(keys), c224, c256, 1, 7),
        ],
        'branch3': [_make_conv_params(next(keys), Cin, c128, 1, 1)],
    }
    x = jax.random.normal(next(keys), (N, Cin, H, W), jnp.float32)

    fwd = jax.jit(inception_b_forward)
    out = jax.block_until_ready(fwd(x, params))
    ref = reference(x, params)

    expected_c = c384 + c256 + c256 + c128
    assert out.shape == (N, expected_c, H, W), out.shape
    err = float(jnp.max(jnp.abs(out - ref)))
    # bf16 operands / bf16 inter-layer activations with f32 accumulation
    # across up to 5 chained convs (re-validate tolerance at production K).
    assert jnp.allclose(out, ref, atol=3e-2, rtol=3e-2), err

    print("KERNEL_OK")
</pallas_src>

<mosaic_0001>
module attributes {stable_mosaic.version = 11 : i64} {
  func.func @_mm_bias_relu_kernel(%arg0: i32, %arg1: memref<256x4xbf16, #tpu.memory_space<vmem>>, %arg2: memref<4x128xbf16, #tpu.memory_space<vmem>>, %arg3: memref<1x128xf32, #tpu.memory_space<vmem>>, %arg4: memref<256x128xbf16, #tpu.memory_space<vmem>>) attributes {dimension_semantics = [#tpu.dimension_semantics<parallel>], iteration_bounds = array<i64: 2>, scalar_prefetch = 0 : i64, scratch_operands = 0 : i64, tpu.core_type = #tpu.core_type<tc>, window_params = [{transform_indices = @transform_0, window_bounds = array<i64: 256, 4>}, {pipeline_mode = #tpu.pipeline_mode<synchronous>, transform_indices = @transform_1, window_bounds = array<i64: 4, 128>}, {pipeline_mode = #tpu.pipeline_mode<synchronous>, transform_indices = @transform_2, window_bounds = array<i64: 1, 128>}, {transform_indices = @transform_3, window_bounds = array<i64: 256, 128>}]} {
    %c0 = arith.constant 0 : index
    %c0_0 = arith.constant 0 : index
    %0 = vector.load %arg1[%c0, %c0_0] : memref<256x4xbf16, #tpu.memory_space<vmem>>, vector<256x4xbf16>
    %c0_1 = arith.constant 0 : index
    %c0_2 = arith.constant 0 : index
    %1 = vector.load %arg2[%c0_1, %c0_2] : memref<4x128xbf16, #tpu.memory_space<vmem>>, vector<4x128xbf16>
    %cst = arith.constant dense<0.000000e+00> : vector<256x128xf32>
    %2 = tpu.matmul %0, %1, %cst {dimension_numbers = #tpu.dot_dimension_numbers<[1], [0], [0], [1], [0, 0, 1, 1], [], []>} : vector<256x4xbf16>, vector<4x128xbf16>, vector<256x128xf32> -> vector<256x128xf32>
    %c0_3 = arith.constant 0 : index
    %c0_4 = arith.constant 0 : index
    %3 = vector.load %arg3[%c0_3, %c0_4] : memref<1x128xf32, #tpu.memory_space<vmem>>, vector<1x128xf32>
    %4 = vector.broadcast %3 : vector<1x128xf32> to vector<256x128xf32>
    %5 = arith.addf %2, %4 : vector<256x128xf32>
    %cst_5 = arith.constant 0.000000e+00 : f32
    %6 = vector.broadcast %cst_5 : f32 to vector<256x128xf32>
    %7 = arith.maximumf %5, %6 : vector<256x128xf32>
    %8 = arith.truncf %7 : vector<256x128xf32> to vector<256x128xbf16>
    %c0_6 = arith.constant 0 : index
    %c0_7 = arith.constant 0 : index
    %9 = vector.load %arg4[%c0_6, %c0_7] : memref<256x128xbf16, #tpu.memory_space<vmem>>, vector<256x128xbf16>
    tpu.vector_store %arg4[%c0_6, %c0_7], %8 {strides = array<i32>} : memref<256x128xbf16, #tpu.memory_space<vmem>>, vector<256x128xbf16>,
    return
  }
  func.func @transform_0(%arg0: i32) -> (i32, i32) {
    %c0_i32 = arith.constant 0 : i32
    %c0_i32_0 = arith.constant 0 : i32
    return %arg0, %c0_i32 : i32, i32
  }
  func.func @transform_1(%arg0: i32) -> (i32, i32) {
    %c0_i32 = arith.constant 0 : i32
    %c0_i32_0 = arith.constant 0 : i32
    %c0_i32_1 = arith.constant 0 : i32
    return %c0_i32, %c0_i32_0 : i32, i32
  }
  func.func @transform_2(%arg0: i32) -> (i32, i32) {
    %c0_i32 = arith.constant 0 : i32
    %c0_i32_0 = arith.constant 0 : i32
    %c0_i32_1 = arith.constant 0 : i32
    return %c0_i32, %c0_i32_0 : i32, i32
  }
  func.func @transform_3(%arg0: i32) -> (i32, i32) {
    %c0_i32 = arith.constant 0 : i32
    %c0_i32_0 = arith.constant 0 : i32
    return %arg0, %c0_i32 : i32, i32
  }
}

module attributes {stable_mosaic.version = 11 : i64} {
  func.func @_tap_mm_kernel(%arg0: i32, %arg1: memref<1x352x6xbf16, #tpu.memory_space<vmem>>, %arg2: memref<7x6x128xbf16, #tpu.memory_space<vmem>>, %arg3: memref<1x128xf32, #tpu.memory_space<vmem>>, %arg4: memref<1x256x128xbf16, #tpu.memory_space<vmem>>) attributes {dimension_semantics = [#tpu.dimension_semantics<parallel>], iteration_bounds = array<i64: 2>, scalar_prefetch = 0 : i64, scratch_operands = 0 : i64, tpu.core_type = #tpu.core_type<tc>, window_params = [{transform_indices = @transform_0, window_bounds = array<i64: 1, 352, 6>}, {pipeline_mode = #tpu.pipeline_mode<synchronous>, transform_indices = @transform_1, window_bounds = array<i64: 7, 6, 128>}, {pipeline_mode = #tpu.pipeline_mode<synchronous>, transform_indices = @transform_2, window_bounds = array<i64: 1, 128>}, {transform_indices = @transform_3, window_bounds = array<i64: 1, 256, 128>}]} {
    %c0 = arith.constant 0 : index
    %c0_0 = arith.constant 0 : index
    %c0_1 = arith.constant 0 : index
    %0 = vector.load %arg1[%c0, %c0_0, %c0_1] : memref<1x352x6xbf16, #tpu.memory_space<vmem>>, vector<1x256x6xbf16>
    %1 = vector.shape_cast %0 : vector<1x256x6xbf16> to vector<256x6xbf16>
    %c0_2 = arith.constant 0 : index
    %c0_3 = arith.constant 0 : index
    %c0_4 = arith.constant 0 : index
    %2 = vector.load %arg2[%c0_2, %c0_3, %c0_4] : memref<7x6x128xbf16, #tpu.memory_space<vmem>>, vector<1x6x128xbf16>
    %3 = vector.shape_cast %2 : vector<1x6x128xbf16> to vector<6x128xbf16>
    %cst = arith.constant dense<0.000000e+00> : vector<256x128xf32>
    %4 = tpu.matmul %1, %3, %cst {dimension_numbers = #tpu.dot_dimension_numbers<[1], [0], [0], [1], [0, 0, 1, 1], [], []>} : vector<256x6xbf16>, vector<6x128xbf16>, vector<256x128xf32> -> vector<256x128xf32>
    %c0_5 = arith.constant 0 : index
    %c16 = arith.constant 16 : index
    %c0_6 = arith.constant 0 : index
    %5 = vector.load %arg1[%c0_5, %c16, %c0_6] : memref<1x352x6xbf16, #tpu.memory_space<vmem>>, vector<1x256x6xbf16>
    %6 = vector.shape_cast %5 : vector<1x256x6xbf16> to vector<256x6xbf16>
    %c1 = arith.constant 1 : index
    %c0_7 = arith.constant 0 : index
    %c0_8 = arith.constant 0 : index
    %7 = vector.load %arg2[%c1, %c0_7, %c0_8] : memref<7x6x128xbf16, #tpu.memory_space<vmem>>, vector<1x6x128xbf16>
    %8 = vector.shape_cast %7 : vector<1x6x128xbf16> to vector<6x128xbf16>
    %cst_9 = arith.constant dense<0.000000e+00> : vector<256x128xf32>
    %9 = tpu.matmul %6, %8, %cst_9 {dimension_numbers = #tpu.dot_dimension_numbers<[1], [0], [0], [1], [0, 0, 1, 1], [], []>} : vector<256x6xbf16>, vector<6x128xbf16>, vector<256x128xf32> -> vector<256x128xf32>
    %10 = arith.addf %4, %9 : vector<256x128xf32>
    %c0_10 = arith.constant 0 : index
    %c32 = arith.constant 32 : index
    %c0_11 = arith.constant 0 : index
    %11 = vector.load %arg1[%c0_10, %c32, %c0_11] : memref<1x352x6xbf16, #tpu.memory_space<vmem>>, vector<1x256x6xbf16>
    %12 = vector.shape_cast %11 : vector<1x256x6xbf16> to vector<256x6xbf16>
    %c2 = arith.constant 2 : index
    %c0_12 = arith.constant 0 : index
    %c0_13 = arith.constant 0 : index
    %13 = vector.load %arg2[%c2, %c0_12, %c0_13] : memref<7x6x128xbf16, #tpu.memory_space<vmem>>, vector<1x6x128xbf16>
    %14 = vector.shape_cast %13 : vector<1x6x128xbf16> to vector<6x128xbf16>
    %cst_14 = arith.constant dense<0.000000e+00> : vector<256x128xf32>
    %15 = tpu.matmul %12, %14, %cst_14 {dimension_numbers = #tpu.dot_dimension_numbers<[1], [0], [0], [1], [0, 0, 1, 1], [], []>} : vector<256x6xbf16>, vector<6x128xbf16>, vector<256x128xf32> -> vector<256x128xf32>
    %16 = arith.addf %10, %15 : vector<256x128xf32>
    %c0_15 = arith.constant 0 : index
    %c48 = arith.constant 48 : index
    %c0_16 = arith.constant 0 : index
    %17 = vector.load %arg1[%c0_15, %c48, %c0_16] : memref<1x352x6xbf16, #tpu.memory_space<vmem>>, vector<1x256x6xbf16>
    %18 = vector.shape_cast %17 : vector<1x256x6xbf16> to vector<256x6xbf16>
    %c3 = arith.constant 3 : index
    %c0_17 = arith.constant 0 : index
    %c0_18 = arith.constant 0 : index
    %19 = vector.load %arg2[%c3, %c0_17, %c0_18] : memref<7x6x128xbf16, #tpu.memory_space<vmem>>, vector<1x6x128xbf16>
    %20 = vector.shape_cast %19 : vector<1x6x128xbf16> to vector<6x128xbf16>
    %cst_19 = arith.constant dense<0.000000e+00> : vector<256x128xf32>
    %21 = tpu.matmul %18, %20, %cst_19 {dimension_numbers = #tpu.dot_dimension_numbers<[1], [0], [0], [1], [0, 0, 1, 1], [], []>} : vector<256x6xbf16>, vector<6x128xbf16>, vector<256x128xf32> -> vector<256x128xf32>
    %22 = arith.addf %16, %21 : vector<256x128xf32>
    %c0_20 = arith.constant 0 : index
    %c64 = arith.constant 64 : index
    %c0_21 = arith.constant 0 : index
    %23 = vector.load %arg1[%c0_20, %c64, %c0_21] : memref<1x352x6xbf16, #tpu.memory_space<vmem>>, vector<1x256x6xbf16>
    %24 = vector.shape_cast %23 : vector<1x256x6xbf16> to vector<256x6xbf16>
    %c4 = arith.constant 4 : index
    %c0_22 = arith.constant 0 : index
    %c0_23 = arith.constant 0 : index
    %25 = vector.load %arg2[%c4, %c0_22, %c0_23] : memref<7x6x128xbf16, #tpu.memory_space<vmem>>, vector<1x6x128xbf16>
    %26 = vector.shape_cast %25 : vector<1x6x128xbf16> to vector<6x128xbf16>
    %cst_24 = arith.constant dense<0.000000e+00> : vector<256x128xf32>
    %27 = tpu.matmul %24, %26, %cst_24 {dimension_numbers = #tpu.dot_dimension_numbers<[1], [0], [0], [1], [0, 0, 1, 1], [], []>} : vector<256x6xbf16>, vector<6x128xbf16>, vector<256x128xf32> -> vector<256x128xf32>
    %28 = arith.addf %22, %27 : vector<256x128xf32>
    %c0_25 = arith.constant 0 : index
    %c80 = arith.constant 80 : index
    %c0_26 = arith.constant 0 : index
    %29 = vector.load %arg1[%c0_25, %c80, %c0_26] : memref<1x352x6xbf16, #tpu.memory_space<vmem>>, vector<1x256x6xbf16>
    %30 = vector.shape_cast %29 : vector<1x256x6xbf16> to vector<256x6xbf16>
    %c5 = arith.constant 5 : index
    %c0_27 = arith.constant 0 : index
    %c0_28 = arith.constant 0 : index
    %31 = vector.load %arg2[%c5, %c0_27, %c0_28] : memref<7x6x128xbf16, #tpu.memory_space<vmem>>, vector<1x6x128xbf16>
    %32 = vector.shape_cast %31 : vector<1x6x128xbf16> to vector<6x128xbf16>
    %cst_29 = arith.constant dense<0.000000e+00> : vector<256x128xf32>
    %33 = tpu.matmul %30, %32, %cst_29 {dimension_numbers = #tpu.dot_dimension_numbers<[1], [0], [0], [1], [0, 0, 1, 1], [], []>} : vector<256x6xbf16>, vector<6x128xbf16>, vector<256x128xf32> -> vector<256x128xf32>
    %34 = arith.addf %28, %33 : vector<256x128xf32>
    %c0_30 = arith.constant 0 : index
    %c96 = arith.constant 96 : index
    %c0_31 = arith.constant 0 : index
    %35 = vector.load %arg1[%c0_30, %c96, %c0_31] : memref<1x352x6xbf16, #tpu.memory_space<vmem>>, vector<1x256x6xbf16>
    %36 = vector.shape_cast %35 : vector<1x256x6xbf16> to vector<256x6xbf16>
    %c6 = arith.constant 6 : index
    %c0_32 = arith.constant 0 : index
    %c0_33 = arith.constant 0 : index
    %37 = vector.load %arg2[%c6, %c0_32, %c0_33] : memref<7x6x128xbf16, #tpu.memory_space<vmem>>, vector<1x6x128xbf16>
    %38 = vector.shape_cast %37 : vector<1x6x128xbf16> to vector<6x128xbf16>
    %cst_34 = arith.constant dense<0.000000e+00> : vector<256x128xf32>
    %39 = tpu.matmul %36, %38, %cst_34 {dimension_numbers = #tpu.dot_dimension_numbers<[1], [0], [0], [1], [0, 0, 1, 1], [], []>} : vector<256x6xbf16>, vector<6x128xbf16>, vector<256x128xf32> -> vector<256x128xf32>
    %40 = arith.addf %34, %39 : vector<256x128xf32>
    %c0_35 = arith.constant 0 : index
    %c0_36 = arith.constant 0 : index
    %41 = vector.load %arg3[%c0_35, %c0_36] : memref<1x128xf32, #tpu.memory_space<vmem>>, vector<1x128xf32>
    %42 = vector.broadcast %41 : vector<1x128xf32> to vector<256x128xf32>
    %43 = arith.addf %40, %42 : vector<256x128xf32>
    %cst_37 = arith.constant 0.000000e+00 : f32
    %44 = vector.broadcast %cst_37 : f32 to vector<256x128xf32>
    %45 = arith.maximumf %43, %44 : vector<256x128xf32>
    %46 = arith.truncf %45 : vector<256x128xf32> to vector<256x128xbf16>
    %c0_38 = arith.constant 0 : index
    %c0_39 = arith.constant 0 : index
    %c0_40 = arith.constant 0 : index
    %47 = vector.load %arg4[%c0_38, %c0_39, %c0_40] : memref<1x256x128xbf16, #tpu.memory_space<vmem>>, vector<1x256x128xbf16>
    %48 = vector.shape_cast %47 : vector<1x256x128xbf16> to vector<256x128xbf16>
    %49 = vector.shape_cast %46 : vector<256x128xbf16> to vector<1x256x128xbf16>
    tpu.vector_store %arg4[%c0_38, %c0_39, %c0_40], %49 {strides = array<i32>} : memref<1x256x128xbf16, #tpu.memory_space<vmem>>, vector<1x256x128xbf16>,
    return
  }
  func.func @transform_0(%arg0: i32) -> (i32, i32, i32) {
    %c0_i32 = arith.constant 0 : i32
    %c0_i32_0 = arith.constant 0 : i32
    %c0_i32_1 = arith.constant 0 : i32
    return %arg0, %c0_i32, %c0_i32_0 : i32, i32, i32
  }
  func.func @transform_1(%arg0: i32) -> (i32, i32, i32) {
    %c0_i32 = arith.constant 0 : i32
    %c0_i32_0 = arith.constant 0 : i32
    %c0_i32_1 = arith.constant 0 : i32
    %c0_i32_2 = arith.constant 0 : i32
    return %c0_i32, %c0_i32_0, %c0_i32_1 : i32, i32, i32
  }
  func.func @transform_2(%arg0: i32) -> (i32, i32) {
    %c0_i32 = arith.constant 0 : i32
    %c0_i32_0 = arith.constant 0 : i32
    %c0_i32_1 = arith.constant 0 : i32
    return %c0_i32, %c0_i32_0 : i32, i32
  }
  func.func @transform_3(%arg0: i32) -> (i32, i32, i32) {
    %c0_i32 = arith.constant 0 : i32
    %c0_i32_0 = arith.constant 0 : i32
    %c0_i32_1 = arith.constant 0 : i32
    return %arg0, %c0_i32, %c0_i32_0 : i32, i32, i32
  }
}

module attributes {stable_mosaic.version = 11 : i64} {
  func.func @_tap_mm_kernel(%arg0: i32, %arg1: memref<1x352x128xbf16, #tpu.memory_space<vmem>>, %arg2: memref<7x128x128xbf16, #tpu.memory_space<vmem>>, %arg3: memref<1x128xf32, #tpu.memory_space<vmem>>, %arg4: memref<1x256x128xbf16, #tpu.memory_space<vmem>>) attributes {dimension_semantics = [#tpu.dimension_semantics<parallel>], iteration_bounds = array<i64: 2>, scalar_prefetch = 0 : i64, scratch_operands = 0 : i64, tpu.core_type = #tpu.core_type<tc>, window_params = [{transform_indices = @transform_0, window_bounds = array<i64: 1, 352, 128>}, {pipeline_mode = #tpu.pipeline_mode<synchronous>, transform_indices = @transform_1, window_bounds = array<i64: 7, 128, 128>}, {pipeline_mode = #tpu.pipeline_mode<synchronous>, transform_indices = @transform_2, window_bounds = array<i64: 1, 128>}, {transform_indices = @transform_3, window_bounds = array<i64: 1, 256, 128>}]} {
    %c0 = arith.constant 0 : index
    %c0_0 = arith.constant 0 : index
    %c0_1 = arith.constant 0 : index
    %0 = vector.load %arg1[%c0, %c0_0, %c0_1] : memref<1x352x128xbf16, #tpu.memory_space<vmem>>, vector<1x256x128xbf16>
    %1 = vector.shape_cast %0 : vector<1x256x128xbf16> to vector<256x128xbf16>
    %c0_2 = arith.constant 0 : index
    %c0_3 = arith.constant 0 : index
    %c0_4 = arith.constant 0 : index
    %2 = vector.load %arg2[%c0_2, %c0_3, %c0_4] : memref<7x128x128xbf16, #tpu.memory_space<vmem>>, vector<1x128x128xbf16>
    %3 = vector.shape_cast %2 : vector<1x128x128xbf16> to vector<128x128xbf16>
    %cst = arith.constant dense<0.000000e+00> : vector<256x128xf32>
    %4 = tpu.matmul %1, %3, %cst {dimension_numbers = #tpu.dot_dimension_numbers<[1], [0], [0], [1], [0, 0, 1, 1], [], []>} : vector<256x128xbf16>, vector<128x128xbf16>, vector<256x128xf32> -> vector<256x128xf32>
    %c0_5 = arith.constant 0 : index
    %c16 = arith.constant 16 : index
    %c0_6 = arith.constant 0 : index
    %5 = vector.load %arg1[%c0_5, %c16, %c0_6] : memref<1x352x128xbf16, #tpu.memory_space<vmem>>, vector<1x256x128xbf16>
    %6 = vector.shape_cast %5 : vector<1x256x128xbf16> to vector<256x128xbf16>
    %c1 = arith.constant 1 : index
    %c0_7 = arith.constant 0 : index
    %c0_8 = arith.constant 0 : index
    %7 = vector.load %arg2[%c1, %c0_7, %c0_8] : memref<7x128x128xbf16, #tpu.memory_space<vmem>>, vector<1x128x128xbf16>
    %8 = vector.shape_cast %7 : vector<1x128x128xbf16> to vector<128x128xbf16>
    %cst_9 = arith.constant dense<0.000000e+00> : vector<256x128xf32>
    %9 = tpu.matmul %6, %8, %cst_9 {dimension_numbers = #tpu.dot_dimension_numbers<[1], [0], [0], [1], [0, 0, 1, 1], [], []>} : vector<256x128xbf16>, vector<128x128xbf16>, vector<256x128xf32> -> vector<256x128xf32>
    %10 = arith.addf %4, %9 : vector<256x128xf32>
    %c0_10 = arith.constant 0 : index
    %c32 = arith.constant 32 : index
    %c0_11 = arith.constant 0 : index
    %11 = vector.load %arg1[%c0_10, %c32, %c0_11] : memref<1x352x128xbf16, #tpu.memory_space<vmem>>, vector<1x256x128xbf16>
    %12 = vector.shape_cast %11 : vector<1x256x128xbf16> to vector<256x128xbf16>
    %c2 = arith.constant 2 : index
    %c0_12 = arith.constant 0 : index
    %c0_13 = arith.constant 0 : index
    %13 = vector.load %arg2[%c2, %c0_12, %c0_13] : memref<7x128x128xbf16, #tpu.memory_space<vmem>>, vector<1x128x128xbf16>
    %14 = vector.shape_cast %13 : vector<1x128x128xbf16> to vector<128x128xbf16>
    %cst_14 = arith.constant dense<0.000000e+00> : vector<256x128xf32>
    %15 = tpu.matmul %12, %14, %cst_14 {dimension_numbers = #tpu.dot_dimension_numbers<[1], [0], [0], [1], [0, 0, 1, 1], [], []>} : vector<256x128xbf16>, vector<128x128xbf16>, vector<256x128xf32> -> vector<256x128xf32>
    %16 = arith.addf %10, %15 : vector<256x128xf32>
    %c0_15 = arith.constant 0 : index
    %c48 = arith.constant 48 : index
    %c0_16 = arith.constant 0 : index
    %17 = vector.load %arg1[%c0_15, %c48, %c0_16] : memref<1x352x128xbf16, #tpu.memory_space<vmem>>, vector<1x256x128xbf16>
    %18 = vector.shape_cast %17 : vector<1x256x128xbf16> to vector<256x128xbf16>
    %c3 = arith.constant 3 : index
    %c0_17 = arith.constant 0 : index
    %c0_18 = arith.constant 0 : index
    %19 = vector.load %arg2[%c3, %c0_17, %c0_18] : memref<7x128x128xbf16, #tpu.memory_space<vmem>>, vector<1x128x128xbf16>
    %20 = vector.shape_cast %19 : vector<1x128x128xbf16> to vector<128x128xbf16>
    %cst_19 = arith.constant dense<0.000000e+00> : vector<256x128xf32>
    %21 = tpu.matmul %18, %20, %cst_19 {dimension_numbers = #tpu.dot_dimension_numbers<[1], [0], [0], [1], [0, 0, 1, 1], [], []>} : vector<256x128xbf16>, vector<128x128xbf16>, vector<256x128xf32> -> vector<256x128xf32>
    %22 = arith.addf %16, %21 : vector<256x128xf32>
    %c0_20 = arith.constant 0 : index
    %c64 = arith.constant 64 : index
    %c0_21 = arith.constant 0 : index
    %23 = vector.load %arg1[%c0_20, %c64, %c0_21] : memref<1x352x128xbf16, #tpu.memory_space<vmem>>, vector<1x256x128xbf16>
    %24 = vector.shape_cast %23 : vector<1x256x128xbf16> to vector<256x128xbf16>
    %c4 = arith.constant 4 : index
    %c0_22 = arith.constant 0 : index
    %c0_23 = arith.constant 0 : index
    %25 = vector.load %arg2[%c4, %c0_22, %c0_23] : memref<7x128x128xbf16, #tpu.memory_space<vmem>>, vector<1x128x128xbf16>
    %26 = vector.shape_cast %25 : vector<1x128x128xbf16> to vector<128x128xbf16>
    %cst_24 = arith.constant dense<0.000000e+00> : vector<256x128xf32>
    %27 = tpu.matmul %24, %26, %cst_24 {dimension_numbers = #tpu.dot_dimension_numbers<[1], [0], [0], [1], [0, 0, 1, 1], [], []>} : vector<256x128xbf16>, vector<128x128xbf16>, vector<256x128xf32> -> vector<256x128xf32>
    %28 = arith.addf %22, %27 : vector<256x128xf32>
    %c0_25 = arith.constant 0 : index
    %c80 = arith.constant 80 : index
    %c0_26 = arith.constant 0 : index
    %29 = vector.load %arg1[%c0_25, %c80, %c0_26] : memref<1x352x128xbf16, #tpu.memory_space<vmem>>, vector<1x256x128xbf16>
    %30 = vector.shape_cast %29 : vector<1x256x128xbf16> to vector<256x128xbf16>
    %c5 = arith.constant 5 : index
    %c0_27 = arith.constant 0 : index
    %c0_28 = arith.constant 0 : index
    %31 = vector.load %arg2[%c5, %c0_27, %c0_28] : memref<7x128x128xbf16, #tpu.memory_space<vmem>>, vector<1x128x128xbf16>
    %32 = vector.shape_cast %31 : vector<1x128x128xbf16> to vector<128x128xbf16>
    %cst_29 = arith.constant dense<0.000000e+00> : vector<256x128xf32>
    %33 = tpu.matmul %30, %32, %cst_29 {dimension_numbers = #tpu.dot_dimension_numbers<[1], [0], [0], [1], [0, 0, 1, 1], [], []>} : vector<256x128xbf16>, vector<128x128xbf16>, vector<256x128xf32> -> vector<256x128xf32>
    %34 = arith.addf %28, %33 : vector<256x128xf32>
    %c0_30 = arith.constant 0 : index
    %c96 = arith.constant 96 : index
    %c0_31 = arith.constant 0 : index
    %35 = vector.load %arg1[%c0_30, %c96, %c0_31] : memref<1x352x128xbf16, #tpu.memory_space<vmem>>, vector<1x256x128xbf16>
    %36 = vector.shape_cast %35 : vector<1x256x128xbf16> to vector<256x128xbf16>
    %c6 = arith.constant 6 : index
    %c0_32 = arith.constant 0 : index
    %c0_33 = arith.constant 0 : index
    %37 = vector.load %arg2[%c6, %c0_32, %c0_33] : memref<7x128x128xbf16, #tpu.memory_space<vmem>>, vector<1x128x128xbf16>
    %38 = vector.shape_cast %37 : vector<1x128x128xbf16> to vector<128x128xbf16>
    %cst_34 = arith.constant dense<0.000000e+00> : vector<256x128xf32>
    %39 = tpu.matmul %36, %38, %cst_34 {dimension_numbers = #tpu.dot_dimension_numbers<[1], [0], [0], [1], [0, 0, 1, 1], [], []>} : vector<256x128xbf16>, vector<128x128xbf16>, vector<256x128xf32> -> vector<256x128xf32>
    %40 = arith.addf %34, %39 : vector<256x128xf32>
    %c0_35 = arith.constant 0 : index
    %c0_36 = arith.constant 0 : index
    %41 = vector.load %arg3[%c0_35, %c0_36] : memref<1x128xf32, #tpu.memory_space<vmem>>, vector<1x128xf32>
    %42 = vector.broadcast %41 : vector<1x128xf32> to vector<256x128xf32>
    %43 = arith.addf %40, %42 : vector<256x128xf32>
    %cst_37 = arith.constant 0.000000e+00 : f32
    %44 = vector.broadcast %cst_37 : f32 to vector<256x128xf32>
    %45 = arith.maximumf %43, %44 : vector<256x128xf32>
    %46 = arith.truncf %45 : vector<256x128xf32> to vector<256x128xbf16>
    %c0_38 = arith.constant 0 : index
    %c0_39 = arith.constant 0 : index
    %c0_40 = arith.constant 0 : index
    %47 = vector.load %arg4[%c0_38, %c0_39, %c0_40] : memref<1x256x128xbf16, #tpu.memory_space<vmem>>, vector<1x256x128xbf16>
    %48 = vector.shape_cast %47 : vector<1x256x128xbf16> to vector<256x128xbf16>
    %49 = vector.shape_cast %46 : vector<256x128xbf16> to vector<1x256x128xbf16>
    tpu.vector_store %arg4[%c0_38, %c0_39, %c0_40], %49 {strides = array<i32>} : memref<1x256x128xbf16, #tpu.memory_space<vmem>>, vector<1x256x128xbf16>,
    return
  }
  func.func @transform_0(%arg0: i32) -> (i32, i32, i32) {
    %c0_i32 = arith.constant 0 : i32
    %c0_i32_0 = arith.constant 0 : i32
    %c0_i32_1 = arith.constant 0 : i32
    return %arg0, %c0_i32, %c0_i32_0 : i32, i32, i32
  }
  func.func @transform_1(%arg0: i32) -> (i32, i32, i32) {
    %c0_i32 = arith.constant 0 : i32
    %c0_i32_0 = arith.constant 0 : i32
    %c0_i32_1 = arith.constant 0 : i32
    %c0_i32_2 = arith.constant 0 : i32
    return %c0_i32, %c0_i32_0, %c0_i32_1 : i32, i32, i32
  }
  func.func @transform_2(%arg0: i32) -> (i32, i32) {
    %c0_i32 = arith.constant 0 : i32
    %c0_i32_0 = arith.constant 0 : i32
    %c0_i32_1 = arith.constant 0 : i32
    return %c0_i32, %c0_i32_0 : i32, i32
  }
  func.func @transform_3(%arg0: i32) -> (i32, i32, i32) {
    %c0_i32 = arith.constant 0 : i32
    %c0_i32_0 = arith.constant 0 : i32
    %c0_i32_1 = arith.constant 0 : i32
    return %arg0, %c0_i32, %c0_i32_0 : i32, i32, i32
  }
}

module attributes {stable_mosaic.version = 11 : i64} {
  func.func @_tap_mm_kernel(%arg0: i32, %arg1: memref<1x352x128xbf16, #tpu.memory_space<vmem>>, %arg2: memref<7x128x128xbf16, #tpu.memory_space<vmem>>, %arg3: memref<1x128xf32, #tpu.memory_space<vmem>>, %arg4: memref<1x256x128xf32, #tpu.memory_space<vmem>>) attributes {dimension_semantics = [#tpu.dimension_semantics<parallel>], iteration_bounds = array<i64: 2>, scalar_prefetch = 0 : i64, scratch_operands = 0 : i64, tpu.core_type = #tpu.core_type<tc>, window_params = [{transform_indices = @transform_0, window_bounds = array<i64: 1, 352, 128>}, {pipeline_mode = #tpu.pipeline_mode<synchronous>, transform_indices = @transform_1, window_bounds = array<i64: 7, 128, 128>}, {pipeline_mode = #tpu.pipeline_mode<synchronous>, transform_indices = @transform_2, window_bounds = array<i64: 1, 128>}, {transform_indices = @transform_3, window_bounds = array<i64: 1, 256, 128>}]} {
    %c0 = arith.constant 0 : index
    %c0_0 = arith.constant 0 : index
    %c0_1 = arith.constant 0 : index
    %0 = vector.load %arg1[%c0, %c0_0, %c0_1] : memref<1x352x128xbf16, #tpu.memory_space<vmem>>, vector<1x256x128xbf16>
    %1 = vector.shape_cast %0 : vector<1x256x128xbf16> to vector<256x128xbf16>
    %c0_2 = arith.constant 0 : index
    %c0_3 = arith.constant 0 : index
    %c0_4 = arith.constant 0 : index
    %2 = vector.load %arg2[%c0_2, %c0_3, %c0_4] : memref<7x128x128xbf16, #tpu.memory_space<vmem>>, vector<1x128x128xbf16>
    %3 = vector.shape_cast %2 : vector<1x128x128xbf16> to vector<128x128xbf16>
    %cst = arith.constant dense<0.000000e+00> : vector<256x128xf32>
    %4 = tpu.matmul %1, %3, %cst {dimension_numbers = #tpu.dot_dimension_numbers<[1], [0], [0], [1], [0, 0, 1, 1], [], []>} : vector<256x128xbf16>, vector<128x128xbf16>, vector<256x128xf32> -> vector<256x128xf32>
    %c0_5 = arith.constant 0 : index
    %c16 = arith.constant 16 : index
    %c0_6 = arith.constant 0 : index
    %5 = vector.load %arg1[%c0_5, %c16, %c0_6] : memref<1x352x128xbf16, #tpu.memory_space<vmem>>, vector<1x256x128xbf16>
    %6 = vector.shape_cast %5 : vector<1x256x128xbf16> to vector<256x128xbf16>
    %c1 = arith.constant 1 : index
    %c0_7 = arith.constant 0 : index
    %c0_8 = arith.constant 0 : index
    %7 = vector.load %arg2[%c1, %c0_7, %c0_8] : memref<7x128x128xbf16, #tpu.memory_space<vmem>>, vector<1x128x128xbf16>
    %8 = vector.shape_cast %7 : vector<1x128x128xbf16> to vector<128x128xbf16>
    %cst_9 = arith.constant dense<0.000000e+00> : vector<256x128xf32>
    %9 = tpu.matmul %6, %8, %cst_9 {dimension_numbers = #tpu.dot_dimension_numbers<[1], [0], [0], [1], [0, 0, 1, 1], [], []>} : vector<256x128xbf16>, vector<128x128xbf16>, vector<256x128xf32> -> vector<256x128xf32>
    %10 = arith.addf %4, %9 : vector<256x128xf32>
    %c0_10 = arith.constant 0 : index
    %c32 = arith.constant 32 : index
    %c0_11 = arith.constant 0 : index
    %11 = vector.load %arg1[%c0_10, %c32, %c0_11] : memref<1x352x128xbf16, #tpu.memory_space<vmem>>, vector<1x256x128xbf16>
    %12 = vector.shape_cast %11 : vector<1x256x128xbf16> to vector<256x128xbf16>
    %c2 = arith.constant 2 : index
    %c0_12 = arith.constant 0 : index
    %c0_13 = arith.constant 0 : index
    %13 = vector.load %arg2[%c2, %c0_12, %c0_13] : memref<7x128x128xbf16, #tpu.memory_space<vmem>>, vector<1x128x128xbf16>
    %14 = vector.shape_cast %13 : vector<1x128x128xbf16> to vector<128x128xbf16>
    %cst_14 = arith.constant dense<0.000000e+00> : vector<256x128xf32>
    %15 = tpu.matmul %12, %14, %cst_14 {dimension_numbers = #tpu.dot_dimension_numbers<[1], [0], [0], [1], [0, 0, 1, 1], [], []>} : vector<256x128xbf16>, vector<128x128xbf16>, vector<256x128xf32> -> vector<256x128xf32>
    %16 = arith.addf %10, %15 : vector<256x128xf32>
    %c0_15 = arith.constant 0 : index
    %c48 = arith.constant 48 : index
    %c0_16 = arith.constant 0 : index
    %17 = vector.load %arg1[%c0_15, %c48, %c0_16] : memref<1x352x128xbf16, #tpu.memory_space<vmem>>, vector<1x256x128xbf16>
    %18 = vector.shape_cast %17 : vector<1x256x128xbf16> to vector<256x128xbf16>
    %c3 = arith.constant 3 : index
    %c0_17 = arith.constant 0 : index
    %c0_18 = arith.constant 0 : index
    %19 = vector.load %arg2[%c3, %c0_17, %c0_18] : memref<7x128x128xbf16, #tpu.memory_space<vmem>>, vector<1x128x128xbf16>
    %20 = vector.shape_cast %19 : vector<1x128x128xbf16> to vector<128x128xbf16>
    %cst_19 = arith.constant dense<0.000000e+00> : vector<256x128xf32>
    %21 = tpu.matmul %18, %20, %cst_19 {dimension_numbers = #tpu.dot_dimension_numbers<[1], [0], [0], [1], [0, 0, 1, 1], [], []>} : vector<256x128xbf16>, vector<128x128xbf16>, vector<256x128xf32> -> vector<256x128xf32>
    %22 = arith.addf %16, %21 : vector<256x128xf32>
    %c0_20 = arith.constant 0 : index
    %c64 = arith.constant 64 : index
    %c0_21 = arith.constant 0 : index
    %23 = vector.load %arg1[%c0_20, %c64, %c0_21] : memref<1x352x128xbf16, #tpu.memory_space<vmem>>, vector<1x256x128xbf16>
    %24 = vector.shape_cast %23 : vector<1x256x128xbf16> to vector<256x128xbf16>
    %c4 = arith.constant 4 : index
    %c0_22 = arith.constant 0 : index
    %c0_23 = arith.constant 0 : index
    %25 = vector.load %arg2[%c4, %c0_22, %c0_23] : memref<7x128x128xbf16, #tpu.memory_space<vmem>>, vector<1x128x128xbf16>
    %26 = vector.shape_cast %25 : vector<1x128x128xbf16> to vector<128x128xbf16>
    %cst_24 = arith.constant dense<0.000000e+00> : vector<256x128xf32>
    %27 = tpu.matmul %24, %26, %cst_24 {dimension_numbers = #tpu.dot_dimension_numbers<[1], [0], [0], [1], [0, 0, 1, 1], [], []>} : vector<256x128xbf16>, vector<128x128xbf16>, vector<256x128xf32> -> vector<256x128xf32>
    %28 = arith.addf %22, %27 : vector<256x128xf32>
    %c0_25 = arith.constant 0 : index
    %c80 = arith.constant 80 : index
    %c0_26 = arith.constant 0 : index
    %29 = vector.load %arg1[%c0_25, %c80, %c0_26] : memref<1x352x128xbf16, #tpu.memory_space<vmem>>, vector<1x256x128xbf16>
    %30 = vector.shape_cast %29 : vector<1x256x128xbf16> to vector<256x128xbf16>
    %c5 = arith.constant 5 : index
    %c0_27 = arith.constant 0 : index
    %c0_28 = arith.constant 0 : index
    %31 = vector.load %arg2[%c5, %c0_27, %c0_28] : memref<7x128x128xbf16, #tpu.memory_space<vmem>>, vector<1x128x128xbf16>
    %32 = vector.shape_cast %31 : vector<1x128x128xbf16> to vector<128x128xbf16>
    %cst_29 = arith.constant dense<0.000000e+00> : vector<256x128xf32>
    %33 = tpu.matmul %30, %32, %cst_29 {dimension_numbers = #tpu.dot_dimension_numbers<[1], [0], [0], [1], [0, 0, 1, 1], [], []>} : vector<256x128xbf16>, vector<128x128xbf16>, vector<256x128xf32> -> vector<256x128xf32>
    %34 = arith.addf %28, %33 : vector<256x128xf32>
    %c0_30 = arith.constant 0 : index
    %c96 = arith.constant 96 : index
    %c0_31 = arith.constant 0 : index
    %35 = vector.load %arg1[%c0_30, %c96, %c0_31] : memref<1x352x128xbf16, #tpu.memory_space<vmem>>, vector<1x256x128xbf16>
    %36 = vector.shape_cast %35 : vector<1x256x128xbf16> to vector<256x128xbf16>
    %c6 = arith.constant 6 : index
    %c0_32 = arith.constant 0 : index
    %c0_33 = arith.constant 0 : index
    %37 = vector.load %arg2[%c6, %c0_32, %c0_33] : memref<7x128x128xbf16, #tpu.memory_space<vmem>>, vector<1x128x128xbf16>
    %38 = vector.shape_cast %37 : vector<1x128x128xbf16> to vector<128x128xbf16>
    %cst_34 = arith.constant dense<0.000000e+00> : vector<256x128xf32>
    %39 = tpu.matmul %36, %38, %cst_34 {dimension_numbers = #tpu.dot_dimension_numbers<[1], [0], [0], [1], [0, 0, 1, 1], [], []>} : vector<256x128xbf16>, vector<128x128xbf16>, vector<256x128xf32> -> vector<256x128xf32>
    %40 = arith.addf %34, %39 : vector<256x128xf32>
    %c0_35 = arith.constant 0 : index
    %c0_36 = arith.constant 0 : index
    %41 = vector.load %arg3[%c0_35, %c0_36] : memref<1x128xf32, #tpu.memory_space<vmem>>, vector<1x128xf32>
    %42 = vector.broadcast %41 : vector<1x128xf32> to vector<256x128xf32>
    %43 = arith.addf %40, %42 : vector<256x128xf32>
    %cst_37 = arith.constant 0.000000e+00 : f32
    %44 = vector.broadcast %cst_37 : f32 to vector<256x128xf32>
    %45 = arith.maximumf %43, %44 : vector<256x128xf32>
    %c0_38 = arith.constant 0 : index
    %c0_39 = arith.constant 0 : index
    %c0_40 = arith.constant 0 : index
    %46 = vector.load %arg4[%c0_38, %c0_39, %c0_40] : memref<1x256x128xf32, #tpu.memory_space<vmem>>, vector<1x256x128xf32>
    %47 = vector.shape_cast %46 : vector<1x256x128xf32> to vector<256x128xf32>
    %48 = vector.shape_cast %45 : vector<256x128xf32> to vector<1x256x128xf32>
    tpu.vector_store %arg4[%c0_38, %c0_39, %c0_40], %48 {strides = array<i32>} : memref<1x256x128xf32, #tpu.memory_space<vmem>>, vector<1x256x128xf32>,
    return
  }
  func.func @transform_0(%arg0: i32) -> (i32, i32, i32) {
    %c0_i32 = arith.constant 0 : i32
    %c0_i32_0 = arith.constant 0 : i32
    %c0_i32_1 = arith.constant 0 : i32
    return %arg0, %c0_i32, %c0_i32_0 : i32, i32, i32
  }
  func.func @transform_1(%arg0: i32) -> (i32, i32, i32) {
    %c0_i32 = arith.constant 0 : i32
    %c0_i32_0 = arith.constant 0 : i32
    %c0_i32_1 = arith.constant 0 : i32
    %c0_i32_2 = arith.constant 0 : i32
    return %c0_i32, %c0_i32_0, %c0_i32_1 : i32, i32, i32
  }
  func.func @transform_2(%arg0: i32) -> (i32, i32) {
    %c0_i32 = arith.constant 0 : i32
    %c0_i32_0 = arith.constant 0 : i32
    %c0_i32_1 = arith.constant 0 : i32
    return %c0_i32, %c0_i32_0 : i32, i32
  }
  func.func @transform_3(%arg0: i32) -> (i32, i32, i32) {
    %c0_i32 = arith.constant 0 : i32
    %c0_i32_0 = arith.constant 0 : i32
    %c0_i32_1 = arith.constant 0 : i32
    return %arg0, %c0_i32, %c0_i32_0 : i32, i32, i32
  }
}

module attributes {stable_mosaic.version = 11 : i64} {
  func.func @_mm_bias_relu_kernel(%arg0: i32, %arg1: memref<256x4xbf16, #tpu.memory_space<vmem>>, %arg2: memref<4x128xbf16, #tpu.memory_space<vmem>>, %arg3: memref<1x128xf32, #tpu.memory_space<vmem>>, %arg4: memref<256x128xf32, #tpu.memory_space<vmem>>) attributes {dimension_semantics = [#tpu.dimension_semantics<parallel>], iteration_bounds = array<i64: 2>, scalar_prefetch = 0 : i64, scratch_operands = 0 : i64, tpu.core_type = #tpu.core_type<tc>, window_params = [{transform_indices = @transform_0, window_bounds = array<i64: 256, 4>}, {pipeline_mode = #tpu.pipeline_mode<synchronous>, transform_indices = @transform_1, window_bounds = array<i64: 4, 128>}, {pipeline_mode = #tpu.pipeline_mode<synchronous>, transform_indices = @transform_2, window_bounds = array<i64: 1, 128>}, {transform_indices = @transform_3, window_bounds = array<i64: 256, 128>}]} {
    %c0 = arith.constant 0 : index
    %c0_0 = arith.constant 0 : index
    %0 = vector.load %arg1[%c0, %c0_0] : memref<256x4xbf16, #tpu.memory_space<vmem>>, vector<256x4xbf16>
    %c0_1 = arith.constant 0 : index
    %c0_2 = arith.constant 0 : index
    %1 = vector.load %arg2[%c0_1, %c0_2] : memref<4x128xbf16, #tpu.memory_space<vmem>>, vector<4x128xbf16>
    %cst = arith.constant dense<0.000000e+00> : vector<256x128xf32>
    %2 = tpu.matmul %0, %1, %cst {dimension_numbers = #tpu.dot_dimension_numbers<[1], [0], [0], [1], [0, 0, 1, 1], [], []>} : vector<256x4xbf16>, vector<4x128xbf16>, vector<256x128xf32> -> vector<256x128xf32>
    %c0_3 = arith.constant 0 : index
    %c0_4 = arith.constant 0 : index
    %3 = vector.load %arg3[%c0_3, %c0_4] : memref<1x128xf32, #tpu.memory_space<vmem>>, vector<1x128xf32>
    %4 = vector.broadcast %3 : vector<1x128xf32> to vector<256x128xf32>
    %5 = arith.addf %2, %4 : vector<256x128xf32>
    %cst_5 = arith.constant 0.000000e+00 : f32
    %6 = vector.broadcast %cst_5 : f32 to vector<256x128xf32>
    %7 = arith.maximumf %5, %6 : vector<256x128xf32>
    %c0_6 = arith.constant 0 : index
    %c0_7 = arith.constant 0 : index
    %8 = vector.load %arg4[%c0_6, %c0_7] : memref<256x128xf32, #tpu.memory_space<vmem>>, vector<256x128xf32>
    tpu.vector_store %arg4[%c0_6, %c0_7], %7 {strides = array<i32>} : memref<256x128xf32, #tpu.memory_space<vmem>>, vector<256x128xf32>,
    return
  }
  func.func @transform_0(%arg0: i32) -> (i32, i32) {
    %c0_i32 = arith.constant 0 : i32
    %c0_i32_0 = arith.constant 0 : i32
    return %arg0, %c0_i32 : i32, i32
  }
  func.func @transform_1(%arg0: i32) -> (i32, i32) {
    %c0_i32 = arith.constant 0 : i32
    %c0_i32_0 = arith.constant 0 : i32
    %c0_i32_1 = arith.constant 0 : i32
    return %c0_i32, %c0_i32_0 : i32, i32
  }
  func.func @transform_2(%arg0: i32) -> (i32, i32) {
    %c0_i32 = arith.constant 0 : i32
    %c0_i32_0 = arith.constant 0 : i32
    %c0_i32_1 = arith.constant 0 : i32
    return %c0_i32, %c0_i32_0 : i32, i32
  }
  func.func @transform_3(%arg0: i32) -> (i32, i32) {
    %c0_i32 = arith.constant 0 : i32
    %c0_i32_0 = arith.constant 0 : i32
    return %arg0, %c0_i32 : i32, i32
  }
}

</mosaic_0001>

<llo_original>
// kernel: inception_b_forward.8
$region0: #{inception_b_forward.8}
  #allocation0 [shape = 'u32[]', space=smem, size = 0x4, offset = 0x4, fixed_abs, tag = 'smem constant byte address 0x4 - core index']
  #allocation1 [shape = 'u32[72,128]{1,0:T(1,128)}', space=vmem, size = 0x9000, scoped, tag = 'internal scratch']
  %s0 = inlined_call_operand.vmem [shape: bf16[512,4], index: 0, kind: input, shape index: {}]
  %s1 = inlined_call_operand.vmem [shape: bf16[4,128], index: 1, kind: input, shape index: {}]
  %s2 = inlined_call_operand.vmem [shape: f32[1,128], index: 2, kind: input, shape index: {}]
  %s3 = inlined_call_operand.vmem [shape: bf16[512,128], index: 3, kind: output, shape index: {}]
  %s4 = sld [smem:[#allocation0]]
  $region45: #{inception_b_forward.8} parent=0
    _
  %s6 = ssub.s32 1, %s4
  %s7 = scalar_select 0, %s6, %s4
  loop: start=0, step=1, limit=4
  $region2: #{inception_b_forward.8} parent=0 // loop_pre_header
    _
  $region3: #{inception_b_forward.8} parent=0 // loop_header
    %s9 = sphi 0, %s13
    %p10 = scmp.ge.s32.totalorder %s9, 4
    %s19 = sphi 0, %s21
    %s22 = sphi 0, %s19
    %s23 = sphi 0, %s22
    %s39 = sphi 0, %s23
    %s43 = sphi 0, %s43
    %s45 = sphi 0, %s43
    %s46 = sphi 0, %s45
    %s60 = sphi 0, %s46
    %s64 = sphi 0, %s64
    %s66 = sphi 0, %s64
    %s67 = sphi 0, %s66
    %s81 = sphi 0, %s67
    %s87 = sphi 0, %s89
    %s90 = sphi 0, %s87
    %s91 = sphi 0, %s90
    %s107 = sphi 0, %s91
  $region4: #{inception_b_forward.8} parent=0 // loop_header_branch
    %12 = sbr.rel (%p10) target = $region8
  $region5: #{inception_b_forward.8} parent=0 // loop_body
    %s14 = ssub.s32 %s9, 1
    %s15 = ssub.s32 %s9, 2
    %s16 = sadd.s32 %s9, 1
    %s17 = ssub.s32 %s9, %s16
    %p18 = scmp.eq.s32.totalorder %s17, 0
    %s20 = sadd.s32 %s19, 1
    %s21 = scalar_select %p18, %s19, %s20
    %p24 = pneg %p18
    %p25 = scmp.eq.s32.totalorder %s9, 1
    %p26 = por %p24, %p25
    %p27 = scmp.ne.s32.totalorder %s19, %s22
    %p28 = scmp.eq.s32.totalorder %s9, 0
    %p29 = por %p27, %p28
    %p30 = scmp.ne.s32.totalorder %s19, %s22
    %p31 = scmp.eq.s32.totalorder %s14, 1
    %p32 = por %p30, %p31
    %p33 = scmp.ne.s32.totalorder %s22, %s23
    %p34 = scmp.eq.s32.totalorder %s14, 0
    %p35 = por %p33, %p34
    %p36 = scmp.ne.s32.totalorder %s22, %s23
    %p37 = scmp.eq.s32.totalorder %s15, 1
    %p38 = por %p36, %p37
    %p40 = scmp.ne.s32.totalorder %s23, %s39
    %p41 = scmp.eq.s32.totalorder %s15, 0
    %p42 = por %p40, %p41
    %s44 = sadd.s32 %s43, 1
    %p47 = scmp.eq.s32.totalorder %s9, 1
    %p48 = scmp.ne.s32.totalorder %s43, %s45
    %p49 = scmp.eq.s32.totalorder %s9, 0
    %p50 = por %p48, %p49
    %p51 = scmp.ne.s32.totalorder %s43, %s45
    %p52 = scmp.eq.s32.totalorder %s14, 1
    %p53 = por %p51, %p52
    %p54 = scmp.ne.s32.totalorder %s45, %s46
    %p55 = scmp.eq.s32.totalorder %s14, 0
    %p56 = por %p54, %p55
    %p57 = scmp.ne.s32.totalorder %s45, %s46
    %p58 = scmp.eq.s32.totalorder %s15, 1
    %p59 = por %p57, %p58
    %p61 = scmp.ne.s32.totalorder %s46, %s60
    %p62 = scmp.eq.s32.totalorder %s15, 0
    %p63 = por %p61, %p62
    %s65 = sadd.s32 %s64, 1
    %p68 = scmp.eq.s32.totalorder %s9, 1
    %p69 = scmp.ne.s32.totalorder %s64, %s66
    %p70 = scmp.eq.s32.totalorder %s9, 0
    %p71 = por %p69, %p70
    %p72 = scmp.ne.s32.totalorder %s64, %s66
    %p73 = scmp.eq.s32.totalorder %s14, 1
    %p74 = por %p72, %p73
    %p75 = scmp.ne.s32.totalorder %s66, %s67
    %p76 = scmp.eq.s32.totalorder %s14, 0
    %p77 = por %p75, %p76
    %p78 = scmp.ne.s32.totalorder %s66, %s67
    %p79 = scmp.eq.s32.totalorder %s15, 1
    %p80 = por %p78, %p79
    %p82 = scmp.ne.s32.totalorder %s67, %s81
    %p83 = scmp.eq.s32.totalorder %s15, 0
    %p84 = por %p82, %p83
    %s85 = ssub.s32 %s9, %s16
    %p86 = scmp.eq.s32.totalorder %s85, 0
    %s88 = sadd.s32 %s87, 1
    %s89 = scalar_select %p86, %s87, %s88
    %p92 = pneg %p86
    %p93 = scmp.eq.s32.totalorder %s9, 1
    %p94 = por %p92, %p93
    %p95 = scmp.ne.s32.totalorder %s87, %s90
    %p96 = scmp.eq.s32.totalorder %s9, 0
    %p97 = por %p95, %p96
    %p98 = scmp.ne.s32.totalorder %s87, %s90
    %p99 = scmp.eq.s32.totalorder %s14, 1
    %p100 = por %p98, %p99
    %p101 = scmp.ne.s32.totalorder %s90, %s91
    %p102 = scmp.eq.s32.totalorder %s14, 0
    %p103 = por %p101, %p102
    %p104 = scmp.ne.s32.totalorder %s90, %s91
    %p105 = scmp.eq.s32.totalorder %s15, 1
    %p106 = por %p104, %p105
    %p108 = scmp.ne.s32.totalorder %s91, %s107
    %p109 = scmp.eq.s32.totalorder %s15, 0
    %p110 = por %p108, %p109
    %p111 = scmp.le.s32.totalorder 1, %s9
    %p112 = scmp.lt.s32.totalorder %s9, 3
    %p113 = pnand %p111, %p112
    %p114 = pneg %p113
    // Predicated region
    $region9: #{inception_b_forward.8} parent=5 // pred_check
      _
    $region10: #{inception_b_forward.8} parent=5 // pred_check_branch
      %116 = sbr.rel (%p113) target = $region12
    $region11: #{inception_b_forward.8} parent=5 // pred_region
      %s117 = ssub.s32 %s9, 1
      // Predicated region
      $region13: #{inception_b_forward.8} parent=11 // pred_check
        %p118 = pneg %p56
      $region14: #{inception_b_forward.8} parent=11 // pred_check_branch
        %120 = sbr.rel (%p118) target = $region16
      $region15: #{inception_b_forward.8} parent=11 // pred_region
        _
      $region16: #{inception_b_forward.8} parent=11 // pred_fallthru
        _
      // Predicated region
      $region17: #{inception_b_forward.8} parent=11 // pred_check
        %p121 = pneg %p77
      $region18: #{inception_b_forward.8} parent=11 // pred_check_branch
        %123 = sbr.rel (%p121) target = $region20
      $region19: #{inception_b_forward.8} parent=11 // pred_region
        _
      $region20: #{inception_b_forward.8} parent=11 // pred_fallthru
        _
    $region12: #{inception_b_forward.8} parent=5 // pred_fallthru
      _
    %p124 = scmp.lt.s32.totalorder %s9, 2
    // Predicated region
    $region21: #{inception_b_forward.8} parent=5 // pred_check
      %p125 = pneg %p124
    $region22: #{inception_b_forward.8} parent=5 // pred_check_branch
      %127 = sbr.rel (%p125) target = $region24
    $region23: #{inception_b_forward.8} parent=5 // pred_region
      // Predicated region
      $region25: #{inception_b_forward.8} parent=23 // pred_check
        %p128 = pneg %p29
      $region26: #{inception_b_forward.8} parent=23 // pred_check_branch
        %130 = sbr.rel (%p128) target = $region28
      $region27: #{inception_b_forward.8} parent=23 // pred_region
        %s131 = smul.u32 32, %s9
        %p132 = scmp.lt.s32.totalorder %s131, 63
        %s133 = scalar_select %p132, %s131, 63
        %s134 = smul.addr %s133, 4
        %s135 = scalar_lea.vmem %s0, %s134
        %s136 = smul.u32 32, %s9
      $region28: #{inception_b_forward.8} parent=23 // pred_fallthru
        _
    $region24: #{inception_b_forward.8} parent=5 // pred_fallthru
      _
    %p137 = scmp.le.s32.totalorder 1, %s9
    %p138 = scmp.lt.s32.totalorder %s9, 3
    %p139 = pnand %p137, %p138
    %p140 = pneg %p139
    // Predicated region
    $region29: #{inception_b_forward.8} parent=5 // pred_check
      _
    $region30: #{inception_b_forward.8} parent=5 // pred_check_branch
      %142 = sbr.rel (%p139) target = $region32
    $region31: #{inception_b_forward.8} parent=5 // pred_region
      %s143 = ssub.s32 %s9, 1
      %s144 = smul.u32 32, %s14
      %p145 = scmp.lt.s32.totalorder %s144, 63
      %s146 = scalar_select %p145, %s144, 63
      %s147 = smul.addr %s146, 4
      %s148 = scalar_lea.vmem %s0, %s147
      %p149 = pneg %p35
      %p150 = pneg %p32
      %p151 = pneg %p56
      %p152 = pneg %p53
      %p153 = pneg %p77
      %p154 = pneg %p74
      %p155 = pneg %p103
      %p156 = pneg %p100
      %s157 = smul.u32 32, %s14
      %p158 = scmp.lt.s32.totalorder %s157, 63
      %s159 = scalar_select %p158, %s157, 63
      %s160 = smul.addr %s159, 4
      %s161 = scalar_lea.vmem %s3, %s160
      %s162 = smul.u32 32, %s14
      %p163 = scmp.lt.s32.totalorder %s162, 63
      %s164 = scalar_select %p163, %s162, 63
      %s165 = smul.addr %s164, 4
      %s166 = scalar_lea.vmem %s0, %s165
      %s167 = smul.u32 32, %s14
      %s168 = smul.u32 32, %s14
      %p169 = scmp.lt.s32.totalorder %s168, 63
      %s170 = scalar_select %p169, %s168, 63
      %s171 = smul.addr %s170, 4
      %s172 = scalar_lea.vmem %s3, %s171
      %s173 = smul.u32 32, %s14
      %v175 = vld [vmem:[%s166] sm:$0xf]
      %v176 = vld [vmem:[%s166 + $0x4] sm:$0xf]
      %v177 = vld [vmem:[%s166 + $0x8] sm:$0xf]
      %v178 = vld [vmem:[%s166 + $0xc] sm:$0xf]
      %v179 = vld [vmem:[%s166 + $0x10] sm:$0xf]
      %v180 = vld [vmem:[%s166 + $0x14] sm:$0xf]
      %v181 = vld [vmem:[%s166 + $0x18] sm:$0xf]
      %v182 = vld [vmem:[%s166 + $0x1c] sm:$0xf]
      %v183 = vld [vmem:[%s166 + $0x20] sm:$0xf]
      %v184 = vld [vmem:[%s166 + $0x24] sm:$0xf]
      %v185 = vld [vmem:[%s166 + $0x28] sm:$0xf]
      %v186 = vld [vmem:[%s166 + $0x2c] sm:$0xf]
      %v187 = vld [vmem:[%s166 + $0x30] sm:$0xf]
      %v188 = vld [vmem:[%s166 + $0x34] sm:$0xf]
      %v189 = vld [vmem:[%s166 + $0x38] sm:$0xf]
      %v190 = vld [vmem:[%s166 + $0x3c] sm:$0xf]
      %v191 = vld [vmem:[%s166 + $0x40] sm:$0xf]
      %v192 = vld [vmem:[%s166 + $0x44] sm:$0xf]
      %v193 = vld [vmem:[%s166 + $0x48] sm:$0xf]
      %v194 = vld [vmem:[%s166 + $0x4c] sm:$0xf]
      %v195 = vld [vmem:[%s166 + $0x50] sm:$0xf]
      %v196 = vld [vmem:[%s166 + $0x54] sm:$0xf]
      %v197 = vld [vmem:[%s166 + $0x58] sm:$0xf]
      %v198 = vld [vmem:[%s166 + $0x5c] sm:$0xf]
      %v199 = vld [vmem:[%s166 + $0x60] sm:$0xf]
      %v200 = vld [vmem:[%s166 + $0x64] sm:$0xf]
      %v201 = vld [vmem:[%s166 + $0x68] sm:$0xf]
      %v202 = vld [vmem:[%s166 + $0x6c] sm:$0xf]
      %v203 = vld [vmem:[%s166 + $0x70] sm:$0xf]
      %v204 = vld [vmem:[%s166 + $0x74] sm:$0xf]
      %v205 = vld [vmem:[%s166 + $0x78] sm:$0xf]
      %v206 = vld [vmem:[%s166 + $0x7c] sm:$0xf]
      %v207 = vld [vmem:[%s1] sm:$0x3]
      %v208 = vld [vmem:[%s2] sm:$0x1]
      %v210 = vperm.slane %v208, 0
      %v244 = vunpack.c.l.b16 %v175
      %v245 = vunpack.c.l.b16 %v176
      %v246 = vunpack.c.l.b16 %v177
      %v247 = vunpack.c.l.b16 %v178
      %v248 = vunpack.c.l.b16 %v179
      %v249 = vunpack.c.l.b16 %v180
      %v250 = vunpack.c.l.b16 %v181
      %v251 = vunpack.c.l.b16 %v182
      %v252 = vunpack.c.l.b16 %v183
      %v253 = vunpack.c.l.b16 %v184
      %v254 = vunpack.c.l.b16 %v185
      %v255 = vunpack.c.l.b16 %v186
      %v256 = vunpack.c.l.b16 %v187
      %v257 = vunpack.c.l.b16 %v188
      %v258 = vunpack.c.l.b16 %v189
      %v259 = vunpack.c.l.b16 %v190
      %v260 = vunpack.c.l.b16 %v191
      %v261 = vunpack.c.l.b16 %v192
      %v262 = vunpack.c.l.b16 %v193
      %v263 = vunpack.c.l.b16 %v194
      %v264 = vunpack.c.l.b16 %v195
      %v265 = vunpack.c.l.b16 %v196
      %v266 = vunpack.c.l.b16 %v197
      %v267 = vunpack.c.l.b16 %v198
      %v268 = vunpack.c.l.b16 %v199
      %v269 = vunpack.c.l.b16 %v200
      %v270 = vunpack.c.l.b16 %v201
      %v271 = vunpack.c.l.b16 %v202
      %v272 = vunpack.c.l.b16 %v203
      %v273 = vunpack.c.l.b16 %v204
      %v274 = vunpack.c.l.b16 %v205
      %v275 = vunpack.c.l.b16 %v206
      %v276 = vpack.c.b16 %v245, %v244
      %v277 = vpack.c.b16 %v247, %v246
      %v278 = vpack.c.b16 %v249, %v248
      %v279 = vpack.c.b16 %v251, %v250
      %v280 = vpack.c.b16 %v253, %v252
      %v281 = vpack.c.b16 %v255, %v254
      %v282 = vpack.c.b16 %v257, %v256
      %v283 = vpack.c.b16 %v259, %v258
      %v284 = vpack.c.b16 %v261, %v260
      %v285 = vpack.c.b16 %v263, %v262
      %v286 = vpack.c.b16 %v265, %v264
      %v287 = vpack.c.b16 %v267, %v266
      %v288 = vpack.c.b16 %v269, %v268
      %v289 = vpack.c.b16 %v271, %v270
      %v290 = vpack.c.b16 %v273, %v272
      %v291 = vpack.c.b16 %v275, %v274
      %vm292 = vcmask 31744
      %v294 = vsel %vm292, %v276, 0
      %v297 = vsel %vm292, %v277, 0
      %v300 = vsel %vm292, %v278, 0
      %v303 = vsel %vm292, %v279, 0
      %v306 = vsel %vm292, %v280, 0
      %v309 = vsel %vm292, %v281, 0
      %v312 = vsel %vm292, %v282, 0
      %v315 = vsel %vm292, %v283, 0
      %v318 = vsel %vm292, %v284, 0
      %v321 = vsel %vm292, %v285, 0
      %v324 = vsel %vm292, %v286, 0
      %v327 = vsel %vm292, %v287, 0
      %v330 = vsel %vm292, %v288, 0
      %v333 = vsel %vm292, %v289, 0
      %v336 = vsel %vm292, %v290, 0
      %v339 = vsel %vm292, %v291, 0
      %vm341 = vcmask 1041408
      %v343 = vsel %vm341, %v207, 0
      %345 = vmatpush.bf16.msra.mxu0 0
      %346 = vmatpush.bf16.msra.mxu0 0
      %347 = vmatpush.bf16.msra.mxu0 0
      %348 = vmatpush.bf16.msra.mxu0 0
      %349 = vmatpush.bf16.msra.mxu0 0
      %350 = vmatpush.bf16.msra.mxu0 0
      %351 = vmatpush.bf16.msra.mxu0 0
      %352 = vmatpush.bf16.msra.mxu0 %v343
      %353 = vmatmul.bf16.gmra.mxu0 %v294
      %v354 = vpop.f32.mrf.mxu0
      %v355 = vadd.f32 %v210, %v354
      %v356 = vpop.f32.mrf.mxu0
      %v357 = vadd.f32 %v210, %v356
      %358 = vmatmul.bf16.gmra.mxu0 %v297
      %v359 = vpop.f32.mrf.mxu0
      %v360 = vadd.f32 %v210, %v359
      %v361 = vpop.f32.mrf.mxu0
      %v362 = vadd.f32 %v210, %v361
      %363 = vmatmul.bf16.gmra.mxu0 %v300
      %v364 = vpop.f32.mrf.mxu0
      %v365 = vadd.f32 %v210, %v364
      %v366 = vpop.f32.mrf.mxu0
      %v367 = vadd.f32 %v210, %v366
      %368 = vmatmul.bf16.gmra.mxu0 %v303
      %v369 = vpop.f32.mrf.mxu0
      %v370 = vadd.f32 %v210, %v369
      %v371 = vpop.f32.mrf.mxu0
      %v372 = vadd.f32 %v210, %v371
      %373 = vmatmul.bf16.gmra.mxu0 %v306
      %v374 = vpop.f32.mrf.mxu0
      %v375 = vadd.f32 %v210, %v374
      %v376 = vpop.f32.mrf.mxu0
      %v377 = vadd.f32 %v210, %v376
      %378 = vmatmul.bf16.gmra.mxu0 %v309
      %v379 = vpop.f32.mrf.mxu0
      %v380 = vadd.f32 %v210, %v379
      %v381 = vpop.f32.mrf.mxu0
      %v382 = vadd.f32 %v210, %v381
      %383 = vmatmul.bf16.gmra.mxu0 %v312
      %v384 = vpop.f32.mrf.mxu0
      %v385 = vadd.f32 %v210, %v384
      %v386 = vpop.f32.mrf.mxu0
      %v387 = vadd.f32 %v210, %v386
      %388 = vmatmul.bf16.gmra.mxu0 %v315
      %v389 = vpop.f32.mrf.mxu0
      %v390 = vadd.f32 %v210, %v389
      %v391 = vpop.f32.mrf.mxu0
      %v392 = vadd.f32 %v210, %v391
      %393 = vmatmul.bf16.gmra.mxu0 %v318
      %v394 = vpop.f32.mrf.mxu0
      %v395 = vadd.f32 %v210, %v394
      %v396 = vpop.f32.mrf.mxu0
      %v397 = vadd.f32 %v210, %v396
      %398 = vmatmul.bf16.gmra.mxu0 %v321
      %v399 = vpop.f32.mrf.mxu0
      %v400 = vadd.f32 %v210, %v399
      %v401 = vpop.f32.mrf.mxu0
      %v402 = vadd.f32 %v210, %v401
      %403 = vmatmul.bf16.gmra.mxu0 %v324
      %v404 = vpop.f32.mrf.mxu0
      %v405 = vadd.f32 %v210, %v404
      %v406 = vpop.f32.mrf.mxu0
      %v407 = vadd.f32 %v210, %v406
      %408 = vmatmul.bf16.gmra.mxu0 %v327
      %v409 = vpop.f32.mrf.mxu0
      %v410 = vadd.f32 %v210, %v409
      %v411 = vpop.f32.mrf.mxu0
      %v412 = vadd.f32 %v210, %v411
      %413 = vmatmul.bf16.gmra.mxu0 %v330
      %v414 = vpop.f32.mrf.mxu0
      %v415 = vadd.f32 %v210, %v414
      %v416 = vpop.f32.mrf.mxu0
      %v417 = vadd.f32 %v210, %v416
      %418 = vmatmul.bf16.gmra.mxu0 %v333
      %v419 = vpop.f32.mrf.mxu0
      %v420 = vadd.f32 %v210, %v419
      %v421 = vpop.f32.mrf.mxu0
      %v422 = vadd.f32 %v210, %v421
      %423 = vmatmul.bf16.gmra.mxu0 %v336
      %v424 = vpop.f32.mrf.mxu0
      %v425 = vadd.f32 %v210, %v424
      %v426 = vpop.f32.mrf.mxu0
      %v427 = vadd.f32 %v210, %v426
      %428 = vmatmul.bf16.gmra.mxu0 %v339
      %v429 = vpop.f32.mrf.mxu0
      %v430 = vadd.f32 %v210, %v429
      %v431 = vpop.f32.mrf.mxu0
      %v432 = vadd.f32 %v210, %v431
      %433 = vdwg.mxu0
      %v434 = vmax.f32 %v355, 0.0
      %v435 = vmax.f32 %v357, 0.0
      %v436 = vmax.f32 %v360, 0.0
      %v437 = vmax.f32 %v362, 0.0
      %v438 = vmax.f32 %v365, 0.0
      %v439 = vmax.f32 %v367, 0.0
      %v440 = vmax.f32 %v370, 0.0
      %v441 = vmax.f32 %v372, 0.0
      %v442 = vmax.f32 %v375, 0.0
      %v443 = vmax.f32 %v377, 0.0
      %v444 = vmax.f32 %v380, 0.0
      %v445 = vmax.f32 %v382, 0.0
      %v446 = vmax.f32 %v385, 0.0
      %v447 = vmax.f32 %v387, 0.0
      %v448 = vmax.f32 %v390, 0.0
      %v449 = vmax.f32 %v392, 0.0
      %v450 = vmax.f32 %v395, 0.0
      %v451 = vmax.f32 %v397, 0.0
      %v452 = vmax.f32 %v400, 0.0
      %v453 = vmax.f32 %v402, 0.0
      %v454 = vmax.f32 %v405, 0.0
      %v455 = vmax.f32 %v407, 0.0
      %v456 = vmax.f32 %v410, 0.0
      %v457 = vmax.f32 %v412, 0.0
      %v458 = vmax.f32 %v415, 0.0
      %v459 = vmax.f32 %v417, 0.0
      %v460 = vmax.f32 %v420, 0.0
      %v461 = vmax.f32 %v422, 0.0
      %v462 = vmax.f32 %v425, 0.0
      %v463 = vmax.f32 %v427, 0.0
      %v464 = vmax.f32 %v430, 0.0
      %v465 = vmax.f32 %v432, 0.0
      %v466 = vpack.c.bf16 %v434, %v434
      %v467 = vpack.c.bf16 %v435, %v435
      %v468 = vpack.c.bf16 %v436, %v436
      %v469 = vpack.c.bf16 %v437, %v437
      %v470 = vpack.c.bf16 %v438, %v438
      %v471 = vpack.c.bf16 %v439, %v439
      %v472 = vpack.c.bf16 %v440, %v440
      %v473 = vpack.c.bf16 %v441, %v441
      %v474 = vpack.c.bf16 %v442, %v442
      %v475 = vpack.c.bf16 %v443, %v443
      %v476 = vpack.c.bf16 %v444, %v444
      %v477 = vpack.c.bf16 %v445, %v445
      %v478 = vpack.c.bf16 %v446, %v446
      %v479 = vpack.c.bf16 %v447, %v447
      %v480 = vpack.c.bf16 %v448, %v448
      %v481 = vpack.c.bf16 %v449, %v449
      %v482 = vpack.c.bf16 %v450, %v450
      %v483 = vpack.c.bf16 %v451, %v451
      %v484 = vpack.c.bf16 %v452, %v452
      %v485 = vpack.c.bf16 %v453, %v453
      %v486 = vpack.c.bf16 %v454, %v454
      %v487 = vpack.c.bf16 %v455, %v455
      %v488 = vpack.c.bf16 %v456, %v456
      %v489 = vpack.c.bf16 %v457, %v457
      %v490 = vpack.c.bf16 %v458, %v458
      %v491 = vpack.c.bf16 %v459, %v459
      %v492 = vpack.c.bf16 %v460, %v460
      %v493 = vpack.c.bf16 %v461, %v461
      %v494 = vpack.c.bf16 %v462, %v462
      %v495 = vpack.c.bf16 %v463, %v463
      %v496 = vpack.c.bf16 %v464, %v464
      %v497 = vpack.c.bf16 %v465, %v465
      %498 = vst [vmem:[%s172] sm:$0xf] %v466
      %499 = vst [vmem:[%s172 + $0x4] sm:$0xf] %v467
      %500 = vst [vmem:[%s172 + $0x8] sm:$0xf] %v468
      %501 = vst [vmem:[%s172 + $0xc] sm:$0xf] %v469
      %502 = vst [vmem:[%s172 + $0x10] sm:$0xf] %v470
      %503 = vst [vmem:[%s172 + $0x14] sm:$0xf] %v471
      %504 = vst [vmem:[%s172 + $0x18] sm:$0xf] %v472
      %505 = vst [vmem:[%s172 + $0x1c] sm:$0xf] %v473
      %506 = vst [vmem:[%s172 + $0x20] sm:$0xf] %v474
      %507 = vst [vmem:[%s172 + $0x24] sm:$0xf] %v475
      %508 = vst [vmem:[%s172 + $0x28] sm:$0xf] %v476
      %509 = vst [vmem:[%s172 + $0x2c] sm:$0xf] %v477
      %510 = vst [vmem:[%s172 + $0x30] sm:$0xf] %v478
      %511 = vst [vmem:[%s172 + $0x34] sm:$0xf] %v479
      %512 = vst [vmem:[%s172 + $0x38] sm:$0xf] %v480
      %513 = vst [vmem:[%s172 + $0x3c] sm:$0xf] %v481
      %514 = vst [vmem:[%s172 + $0x40] sm:$0xf] %v482
      %515 = vst [vmem:[%s172 + $0x44] sm:$0xf] %v483
      %516 = vst [vmem:[%s172 + $0x48] sm:$0xf] %v484
      %517 = vst [vmem:[%s172 + $0x4c] sm:$0xf] %v485
      %518 = vst [vmem:[%s172 + $0x50] sm:$0xf] %v486
      %519 = vst [vmem:[%s172 + $0x54] sm:$0xf] %v487
      %520 = vst [vmem:[%s172 + $0x58] sm:$0xf] %v488
      %521 = vst [vmem:[%s172 + $0x5c] sm:$0xf] %v489
      %522 = vst [vmem:[%s172 + $0x60] sm:$0xf] %v490
      %523 = vst [vmem:[%s172 + $0x64] sm:$0xf] %v491
      %524 = vst [vmem:[%s172 + $0x68] sm:$0xf] %v492
      %525 = vst [vmem:[%s172 + $0x6c] sm:$0xf] %v493
      %526 = vst [vmem:[%s172 + $0x70] sm:$0xf] %v494
      %527 = vst [vmem:[%s172 + $0x74] sm:$0xf] %v495
      %528 = vst [vmem:[%s172 + $0x78] sm:$0xf] %v496
      %529 = vst [vmem:[%s172 + $0x7c] sm:$0xf] %v497
      %s530 = smul.u32 32, %s14
      %p531 = scmp.lt.s32.totalorder %s530, 63
      %s532 = scalar_select %p531, %s530, 63
      %s533 = smul.addr %s532, 4
      %s534 = scalar_lea.vmem %s3, %s533
      // Predicated region
      $region33: #{inception_b_forward.8} parent=31 // pred_check
        %p535 = pneg %p100
      $region34: #{inception_b_forward.8} parent=31 // pred_check_branch
        %537 = sbr.rel (%p535) target = $region36
      $region35: #{inception_b_forward.8} parent=31 // pred_region
        %s538 = smul.u32 32, %s14
      $region36: #{inception_b_forward.8} parent=31 // pred_fallthru
        _
    $region32: #{inception_b_forward.8} parent=5 // pred_fallthru
      _
    %p539 = scmp.le.s32.totalorder 2, %s9
    // Predicated region
    $region37: #{inception_b_forward.8} parent=5 // pred_check
      %p540 = pneg %p539
    $region38: #{inception_b_forward.8} parent=5 // pred_check_branch
      %542 = sbr.rel (%p540) target = $region40
    $region39: #{inception_b_forward.8} parent=5 // pred_region
      %s543 = ssub.s32 %s9, 2
      // Predicated region
      $region41: #{inception_b_forward.8} parent=39 // pred_check
        %p544 = pneg %p106
      $region42: #{inception_b_forward.8} parent=39 // pred_check_branch
        %546 = sbr.rel (%p544) target = $region44
      $region43: #{inception_b_forward.8} parent=39 // pred_region
        %s547 = smul.u32 32, %s15
        %p548 = scmp.lt.s32.totalorder %s547, 63
        %s549 = scalar_select %p548, %s547, 63
        %s550 = smul.addr %s549, 4
        %s551 = scalar_lea.vmem %s3, %s550
      $region44: #{inception_b_forward.8} parent=39 // pred_fallthru
        _
    $region40: #{inception_b_forward.8} parent=5 // pred_fallthru
      _
  $region6: #{inception_b_forward.8} parent=0 // loop_footer
    %s13 = sadd.s32 1, %s9
  $region7: #{inception_b_forward.8} parent=0 // loop_footer_branch
    %8 = sbr.rel target = $region3
  $region8: #{inception_b_forward.8} parent=0 // loop_exit
    _

// kernel: inception_b_forward.11
$region0: #{inception_b_forward.11}
  #allocation0 [shape = 'u32[]', space=smem, size = 0x4, offset = 0x4, fixed_abs, tag = 'smem constant byte address 0x4 - core index']
  #allocation1 [shape = 'u32[72,128]{1,0:T(1,128)}', space=vmem, size = 0x9000, scoped, tag = 'internal scratch']
  %s0 = inlined_call_operand.vmem [shape: bf16[2,352,6], index: 0, kind: input, shape index: {}]
  %s1 = inlined_call_operand.vmem [shape: bf16[7,6,128], index: 1, kind: input, shape index: {}]
  %s2 = inlined_call_operand.vmem [shape: f32[1,128], index: 2, kind: input, shape index: {}]
  %s3 = inlined_call_operand.vmem [shape: bf16[2,256,128], index: 3, kind: output, shape index: {}]
  %s4 = sld [smem:[#allocation0]]
  $region45: #{inception_b_forward.11} parent=0
    _
  %s6 = ssub.s32 1, %s4
  %s7 = scalar_select 0, %s6, %s4
  loop: start=0, step=1, limit=4
  $region2: #{inception_b_forward.11} parent=0 // loop_pre_header
    _
  $region3: #{inception_b_forward.11} parent=0 // loop_header
    %s9 = sphi 0, %s13
    %p10 = scmp.ge.s32.totalorder %s9, 4
    %s19 = sphi 0, %s21
    %s22 = sphi 0, %s19
    %s23 = sphi 0, %s22
    %s39 = sphi 0, %s23
    %s43 = sphi 0, %s43
    %s45 = sphi 0, %s43
    %s46 = sphi 0, %s45
    %s60 = sphi 0, %s46
    %s64 = sphi 0, %s64
    %s66 = sphi 0, %s64
    %s67 = sphi 0, %s66
    %s81 = sphi 0, %s67
    %s87 = sphi 0, %s89
    %s90 = sphi 0, %s87
    %s91 = sphi 0, %s90
    %s107 = sphi 0, %s91
  $region4: #{inception_b_forward.11} parent=0 // loop_header_branch
    %12 = sbr.rel (%p10) target = $region8
  $region5: #{inception_b_forward.11} parent=0 // loop_body
    %s14 = ssub.s32 %s9, 1
    %s15 = ssub.s32 %s9, 2
    %s16 = sadd.s32 %s9, 1
    %s17 = ssub.s32 %s9, %s16
    %p18 = scmp.eq.s32.totalorder %s17, 0
    %s20 = sadd.s32 %s19, 1
    %s21 = scalar_select %p18, %s19, %s20
    %p24 = pneg %p18
    %p25 = scmp.eq.s32.totalorder %s9, 1
    %p26 = por %p24, %p25
    %p27 = scmp.ne.s32.totalorder %s19, %s22
    %p28 = scmp.eq.s32.totalorder %s9, 0
    %p29 = por %p27, %p28
    %p30 = scmp.ne.s32.totalorder %s19, %s22
    %p31 = scmp.eq.s32.totalorder %s14, 1
    %p32 = por %p30, %p31
    %p33 = scmp.ne.s32.totalorder %s22, %s23
    %p34 = scmp.eq.s32.totalorder %s14, 0
    %p35 = por %p33, %p34
    %p36 = scmp.ne.s32.totalorder %s22, %s23
    %p37 = scmp.eq.s32.totalorder %s15, 1
    %p38 = por %p36, %p37
    %p40 = scmp.ne.s32.totalorder %s23, %s39
    %p41 = scmp.eq.s32.totalorder %s15, 0
    %p42 = por %p40, %p41
    %s44 = sadd.s32 %s43, 1
    %p47 = scmp.eq.s32.totalorder %s9, 1
    %p48 = scmp.ne.s32.totalorder %s43, %s45
    %p49 = scmp.eq.s32.totalorder %s9, 0
    %p50 = por %p48, %p49
    %p51 = scmp.ne.s32.totalorder %s43, %s45
    %p52 = scmp.eq.s32.totalorder %s14, 1
    %p53 = por %p51, %p52
    %p54 = scmp.ne.s32.totalorder %s45, %s46
    %p55 = scmp.eq.s32.totalorder %s14, 0
    %p56 = por %p54, %p55
    %p57 = scmp.ne.s32.totalorder %s45, %s46
    %p58 = scmp.eq.s32.totalorder %s15, 1
    %p59 = por %p57, %p58
    %p61 = scmp.ne.s32.totalorder %s46, %s60
    %p62 = scmp.eq.s32.totalorder %s15, 0
    %p63 = por %p61, %p62
    %s65 = sadd.s32 %s64, 1
    %p68 = scmp.eq.s32.totalorder %s9, 1
    %p69 = scmp.ne.s32.totalorder %s64, %s66
    %p70 = scmp.eq.s32.totalorder %s9, 0
    %p71 = por %p69, %p70
    %p72 = scmp.ne.s32.totalorder %s64, %s66
    %p73 = scmp.eq.s32.totalorder %s14, 1
    %p74 = por %p72, %p73
    %p75 = scmp.ne.s32.totalorder %s66, %s67
    %p76 = scmp.eq.s32.totalorder %s14, 0
    %p77 = por %p75, %p76
    %p78 = scmp.ne.s32.totalorder %s66, %s67
    %p79 = scmp.eq.s32.totalorder %s15, 1
    %p80 = por %p78, %p79
    %p82 = scmp.ne.s32.totalorder %s67, %s81
    %p83 = scmp.eq.s32.totalorder %s15, 0
    %p84 = por %p82, %p83
    %s85 = ssub.s32 %s9, %s16
    %p86 = scmp.eq.s32.totalorder %s85, 0
    %s88 = sadd.s32 %s87, 1
    %s89 = scalar_select %p86, %s87, %s88
    %p92 = pneg %p86
    %p93 = scmp.eq.s32.totalorder %s9, 1
    %p94 = por %p92, %p93
    %p95 = scmp.ne.s32.totalorder %s87, %s90
    %p96 = scmp.eq.s32.totalorder %s9, 0
    %p97 = por %p95, %p96
    %p98 = scmp.ne.s32.totalorder %s87, %s90
    %p99 = scmp.eq.s32.totalorder %s14, 1
    %p100 = por %p98, %p99
    %p101 = scmp.ne.s32.totalorder %s90, %s91
    %p102 = scmp.eq.s32.totalorder %s14, 0
    %p103 = por %p101, %p102
    %p104 = scmp.ne.s32.totalorder %s90, %s91
    %p105 = scmp.eq.s32.totalorder %s15, 1
    %p106 = por %p104, %p105
    %p108 = scmp.ne.s32.totalorder %s91, %s107
    %p109 = scmp.eq.s32.totalorder %s15, 0
    %p110 = por %p108, %p109
    %p111 = scmp.le.s32.totalorder 1, %s9
    %p112 = scmp.lt.s32.totalorder %s9, 3
    %p113 = pnand %p111, %p112
    %p114 = pneg %p113
    // Predicated region
    $region9: #{inception_b_forward.11} parent=5 // pred_check
      _
    $region10: #{inception_b_forward.11} parent=5 // pred_check_branch
      %116 = sbr.rel (%p113) target = $region12
    $region11: #{inception_b_forward.11} parent=5 // pred_region
      %s117 = ssub.s32 %s9, 1
      // Predicated region
      $region13: #{inception_b_forward.11} parent=11 // pred_check
        %p118 = pneg %p56
      $region14: #{inception_b_forward.11} parent=11 // pred_check_branch
        %120 = sbr.rel (%p118) target = $region16
      $region15: #{inception_b_forward.11} parent=11 // pred_region
        _
      $region16: #{inception_b_forward.11} parent=11 // pred_fallthru
        _
      // Predicated region
      $region17: #{inception_b_forward.11} parent=11 // pred_check
        %p121 = pneg %p77
      $region18: #{inception_b_forward.11} parent=11 // pred_check_branch
        %123 = sbr.rel (%p121) target = $region20
      $region19: #{inception_b_forward.11} parent=11 // pred_region
        _
      $region20: #{inception_b_forward.11} parent=11 // pred_fallthru
        _
    $region12: #{inception_b_forward.11} parent=5 // pred_fallthru
      _
    %p124 = scmp.lt.s32.totalorder %s9, 2
    // Predicated region
    $region21: #{inception_b_forward.11} parent=5 // pred_check
      %p125 = pneg %p124
    $region22: #{inception_b_forward.11} parent=5 // pred_check_branch
      %127 = sbr.rel (%p125) target = $region24
    $region23: #{inception_b_forward.11} parent=5 // pred_region
      // Predicated region
      $region25: #{inception_b_forward.11} parent=23 // pred_check
        %p128 = pneg %p29
      $region26: #{inception_b_forward.11} parent=23 // pred_check_branch
        %130 = sbr.rel (%p128) target = $region28
      $region27: #{inception_b_forward.11} parent=23 // pred_region
        %p131 = scmp.lt.s32.totalorder %s9, 1
        %s132 = scalar_select %p131, %s9, 1
        %s133 = smul.addr %s132, 44
        %s134 = smul.addr %s133, 4
        %s135 = scalar_lea.vmem %s0, %s134
      $region28: #{inception_b_forward.11} parent=23 // pred_fallthru
        _
    $region24: #{inception_b_forward.11} parent=5 // pred_fallthru
      _
    %p136 = scmp.le.s32.totalorder 1, %s9
    %p137 = scmp.lt.s32.totalorder %s9, 3
    %p138 = pnand %p136, %p137
    %p139 = pneg %p138
    // Predicated region
    $region29: #{inception_b_forward.11} parent=5 // pred_check
      _
    $region30: #{inception_b_forward.11} parent=5 // pred_check_branch
      %141 = sbr.rel (%p138) target = $region32
    $region31: #{inception_b_forward.11} parent=5 // pred_region
      %s142 = ssub.s32 %s9, 1
      %p143 = scmp.lt.s32.totalorder %s14, 1
      %s144 = scalar_select %p143, %s14, 1
      %s145 = smul.addr %s144, 44
      %s146 = smul.addr %s145, 4
      %s147 = scalar_lea.vmem %s0, %s146
      %p148 = pneg %p35
      %p149 = pneg %p32
      %p150 = pneg %p56
      %p151 = pneg %p53
      %p152 = pneg %p77
      %p153 = pneg %p74
      %p154 = pneg %p103
      %p155 = pneg %p100
      %p156 = scmp.lt.s32.totalorder %s14, 1
      %s157 = scalar_select %p156, %s14, 1
      %s158 = smul.addr %s157, 32
      %s159 = smul.addr %s158, 4
      %s160 = scalar_lea.vmem %s3, %s159
      %p161 = scmp.lt.s32.totalorder %s14, 1
      %s162 = scalar_select %p161, %s14, 1
      %s163 = smul.addr %s162, 44
      %s164 = smul.addr %s163, 4
      %s165 = scalar_lea.vmem %s0, %s164
      %p166 = scmp.lt.s32.totalorder %s14, 1
      %s167 = scalar_select %p166, %s14, 1
      %s168 = smul.addr %s167, 32
      %s169 = smul.addr %s168, 4
      %s170 = scalar_lea.vmem %s3, %s169
      %v172 = vld [vmem:[%s165] sm:$0xf]
      %v173 = vld [vmem:[%s165 + $0x4] sm:$0xf]
      %v174 = vld [vmem:[%s165 + $0x8] sm:$0xf]
      %v175 = vld [vmem:[%s165 + $0xc] sm:$0xf]
      %v176 = vld [vmem:[%s165 + $0x10] sm:$0xf]
      %v177 = vld [vmem:[%s165 + $0x14] sm:$0xf]
      %v178 = vld [vmem:[%s165 + $0x18] sm:$0xf]
      %v179 = vld [vmem:[%s165 + $0x1c] sm:$0xf]
      %v180 = vld [vmem:[%s165 + $0x20] sm:$0xf]
      %v181 = vld [vmem:[%s165 + $0x24] sm:$0xf]
      %v182 = vld [vmem:[%s165 + $0x28] sm:$0xf]
      %v183 = vld [vmem:[%s165 + $0x2c] sm:$0xf]
      %v184 = vld [vmem:[%s165 + $0x30] sm:$0xf]
      %v185 = vld [vmem:[%s165 + $0x34] sm:$0xf]
      %v186 = vld [vmem:[%s165 + $0x38] sm:$0xf]
      %v187 = vld [vmem:[%s165 + $0x3c] sm:$0xf]
      %v188 = vld [vmem:[%s165 + $0x40] sm:$0xf]
      %v189 = vld [vmem:[%s165 + $0x44] sm:$0xf]
      %v190 = vld [vmem:[%s165 + $0x48] sm:$0xf]
      %v191 = vld [vmem:[%s165 + $0x4c] sm:$0xf]
      %v192 = vld [vmem:[%s165 + $0x50] sm:$0xf]
      %v193 = vld [vmem:[%s165 + $0x54] sm:$0xf]
      %v194 = vld [vmem:[%s165 + $0x58] sm:$0xf]
      %v195 = vld [vmem:[%s165 + $0x5c] sm:$0xf]
      %v196 = vld [vmem:[%s165 + $0x60] sm:$0xf]
      %v197 = vld [vmem:[%s165 + $0x64] sm:$0xf]
      %v198 = vld [vmem:[%s165 + $0x68] sm:$0xf]
      %v199 = vld [vmem:[%s165 + $0x6c] sm:$0xf]
      %v200 = vld [vmem:[%s165 + $0x70] sm:$0xf]
      %v201 = vld [vmem:[%s165 + $0x74] sm:$0xf]
      %v202 = vld [vmem:[%s165 + $0x78] sm:$0xf]
      %v203 = vld [vmem:[%s165 + $0x7c] sm:$0xf]
      %v204 = vld [vmem:[%s1] sm:$0x7]
      %v205 = vld [vmem:[%s165 + $0x80] sm:$0xf]
      %v206 = vld [vmem:[%s165 + $0x84] sm:$0xf]
      %s207 = scalar_lea.vmem %s1, 4
      %v208 = vld [vmem:[%s207] sm:$0x7]
      %v241 = vunpack.c.l.b16 %v174
      %v242 = vunpack.c.l.b16 %v175
      %v243 = vunpack.c.l.b16 %v176
      %v244 = vunpack.c.l.b16 %v177
      %v245 = vunpack.c.l.b16 %v178
      %v246 = vunpack.c.l.b16 %v179
      %v247 = vunpack.c.l.b16 %v180
      %v248 = vunpack.c.l.b16 %v181
      %v249 = vunpack.c.l.b16 %v182
      %v250 = vunpack.c.l.b16 %v183
      %v251 = vunpack.c.l.b16 %v184
      %v252 = vunpack.c.l.b16 %v185
      %v253 = vunpack.c.l.b16 %v186
      %v254 = vunpack.c.l.b16 %v187
      %v255 = vunpack.c.l.b16 %v188
      %v256 = vunpack.c.l.b16 %v189
      %v257 = vunpack.c.l.b16 %v190
      %v258 = vunpack.c.l.b16 %v191
      %v259 = vunpack.c.l.b16 %v192
      %v260 = vunpack.c.l.b16 %v193
      %v261 = vunpack.c.l.b16 %v194
      %v262 = vunpack.c.l.b16 %v195
      %v263 = vunpack.c.l.b16 %v196
      %v264 = vunpack.c.l.b16 %v197
      %v265 = vunpack.c.l.b16 %v198
      %v266 = vunpack.c.l.b16 %v199
      %v267 = vunpack.c.l.b16 %v200
      %v268 = vunpack.c.l.b16 %v201
      %v269 = vunpack.c.l.b16 %v202
      %v270 = vunpack.c.l.b16 %v203
      %v271 = vunpack.c.l.b16 %v205
      %v272 = vunpack.c.l.b16 %v206
      %v273 = vpack.c.b16 %v242, %v241
      %v274 = vpack.c.b16 %v244, %v243
      %v275 = vpack.c.b16 %v246, %v245
      %v276 = vpack.c.b16 %v248, %v247
      %v277 = vpack.c.b16 %v250, %v249
      %v278 = vpack.c.b16 %v252, %v251
      %v279 = vpack.c.b16 %v254, %v253
      %v280 = vpack.c.b16 %v256, %v255
      %v281 = vpack.c.b16 %v258, %v257
      %v282 = vpack.c.b16 %v260, %v259
      %v283 = vpack.c.b16 %v262, %v261
      %v284 = vpack.c.b16 %v264, %v263
      %v285 = vpack.c.b16 %v266, %v265
      %v286 = vpack.c.b16 %v268, %v267
      %v287 = vpack.c.b16 %v270, %v269
      %v288 = vpack.c.b16 %v272, %v271
      %vm289 = vcmask 48128
      %v291 = vsel %vm289, %v273, 0
      %v294 = vsel %vm289, %v274, 0
      %v297 = vsel %vm289, %v275, 0
      %v300 = vsel %vm289, %v276, 0
      %v303 = vsel %vm289, %v277, 0
      %v306 = vsel %vm289, %v278, 0
      %v309 = vsel %vm289, %v279, 0
      %v312 = vsel %vm289, %v280, 0
      %v315 = vsel %vm289, %v281, 0
      %v318 = vsel %vm289, %v282, 0
      %v321 = vsel %vm289, %v283, 0
      %v324 = vsel %vm289, %v284, 0
      %v327 = vsel %vm289, %v285, 0
      %v330 = vsel %vm289, %v286, 0
      %v333 = vsel %vm289, %v287, 0
      %v336 = vsel %vm289, %v288, 0
      %vm338 = vcmask 1042432
      %v340 = vsel %vm338, %v208, 0
      %342 = vmatpush.bf16.msra.mxu0 0
      %343 = vmatpush.bf16.msra.mxu0 0
      %344 = vmatpush.bf16.msra.mxu0 0
      %345 = vmatpush.bf16.msra.mxu0 0
      %346 = vmatpush.bf16.msra.mxu0 0
      %347 = vmatpush.bf16.msra.mxu0 0
      %348 = vmatpush.bf16.msra.mxu0 0
      %349 = vmatpush.bf16.msra.mxu0 %v340
      %350 = vmatmul.bf16.gmra.mxu0 %v291
      %v351 = vpop.f32.mrf.mxu0
      %v352 = vadd.f32 0.0, %v351
      %v353 = vpop.f32.mrf.mxu0
      %v354 = vadd.f32 0.0, %v353
      %355 = vmatmul.bf16.gmra.mxu0 %v294
      %v356 = vpop.f32.mrf.mxu0
      %v357 = vadd.f32 0.0, %v356
      %v358 = vpop.f32.mrf.mxu0
      %v359 = vadd.f32 0.0, %v358
      %360 = vmatmul.bf16.gmra.mxu0 %v297
      %v361 = vpop.f32.mrf.mxu0
      %v362 = vadd.f32 0.0, %v361
      %v363 = vpop.f32.mrf.mxu0
      %v364 = vadd.f32 0.0, %v363
      %365 = vmatmul.bf16.gmra.mxu0 %v300
      %v366 = vpop.f32.mrf.mxu0
      %v367 = vadd.f32 0.0, %v366
      %v368 = vpop.f32.mrf.mxu0
      %v369 = vadd.f32 0.0, %v368
      %370 = vmatmul.bf16.gmra.mxu0 %v303
      %v371 = vpop.f32.mrf.mxu0
      %v372 = vadd.f32 0.0, %v371
      %v373 = vpop.f32.mrf.mxu0
      %v374 = vadd.f32 0.0, %v373
      %375 = vmatmul.bf16.gmra.mxu0 %v306
      %v376 = vpop.f32.mrf.mxu0
      %v377 = vadd.f32 0.0, %v376
      %v378 = vpop.f32.mrf.mxu0
      %v379 = vadd.f32 0.0, %v378
      %380 = vmatmul.bf16.gmra.mxu0 %v309
      %v381 = vpop.f32.mrf.mxu0
      %v382 = vadd.f32 0.0, %v381
      %v383 = vpop.f32.mrf.mxu0
      %v384 = vadd.f32 0.0, %v383
      %385 = vmatmul.bf16.gmra.mxu0 %v312
      %v386 = vpop.f32.mrf.mxu0
      %v387 = vadd.f32 0.0, %v386
      %v388 = vpop.f32.mrf.mxu0
      %v389 = vadd.f32 0.0, %v388
      %390 = vmatmul.bf16.gmra.mxu0 %v315
      %v391 = vpop.f32.mrf.mxu0
      %v392 = vadd.f32 0.0, %v391
      %v393 = vpop.f32.mrf.mxu0
      %v394 = vadd.f32 0.0, %v393
      %395 = vmatmul.bf16.gmra.mxu0 %v318
      %v396 = vpop.f32.mrf.mxu0
      %v397 = vadd.f32 0.0, %v396
      %v398 = vpop.f32.mrf.mxu0
      %v399 = vadd.f32 0.0, %v398
      %400 = vmatmul.bf16.gmra.mxu0 %v321
      %v401 = vpop.f32.mrf.mxu0
      %v402 = vadd.f32 0.0, %v401
      %v403 = vpop.f32.mrf.mxu0
      %v404 = vadd.f32 0.0, %v403
      %405 = vmatmul.bf16.gmra.mxu0 %v324
      %v406 = vpop.f32.mrf.mxu0
      %v407 = vadd.f32 0.0, %v406
      %v408 = vpop.f32.mrf.mxu0
      %v409 = vadd.f32 0.0, %v408
      %410 = vmatmul.bf16.gmra.mxu0 %v327
      %v411 = vpop.f32.mrf.mxu0
      %v412 = vadd.f32 0.0, %v411
      %v413 = vpop.f32.mrf.mxu0
      %v414 = vadd.f32 0.0, %v413
      %415 = vmatmul.bf16.gmra.mxu0 %v330
      %v416 = vpop.f32.mrf.mxu0
      %v417 = vadd.f32 0.0, %v416
      %v418 = vpop.f32.mrf.mxu0
      %v419 = vadd.f32 0.0, %v418
      %420 = vmatmul.bf16.gmra.mxu0 %v333
      %v421 = vpop.f32.mrf.mxu0
      %v422 = vadd.f32 0.0, %v421
      %v423 = vpop.f32.mrf.mxu0
      %v424 = vadd.f32 0.0, %v423
      %425 = vmatmul.bf16.gmra.mxu0 %v336
      %v426 = vpop.f32.mrf.mxu0
      %v427 = vadd.f32 0.0, %v426
      %v428 = vpop.f32.mrf.mxu0
      %v429 = vadd.f32 0.0, %v428
      %430 = vdwg.mxu0
      %v433 = vunpack.c.l.b16 %v172
      %v434 = vunpack.c.l.b16 %v173
      %v435 = vpack.c.b16 %v434, %v433
      %v437 = vsel %vm289, %v435, 0
      %v440 = vsel %vm338, %v204, 0
      %442 = vmatpush.bf16.msra.mxu0 0
      %443 = vmatpush.bf16.msra.mxu0 0
      %444 = vmatpush.bf16.msra.mxu0 0
      %445 = vmatpush.bf16.msra.mxu0 0
      %446 = vmatpush.bf16.msra.mxu0 0
      %447 = vmatpush.bf16.msra.mxu0 0
      %448 = vmatpush.bf16.msra.mxu0 0
      %449 = vmatpush.bf16.msra.mxu0 %v440
      %450 = vmatmul.bf16.gmra.mxu0 %v437
      %v451 = vpop.f32.mrf.mxu0
      %v452 = vadd.f32 %v352, %v451
      %v453 = vpop.f32.mrf.mxu0
      %v454 = vadd.f32 %v354, %v453
      %455 = vmatmul.bf16.gmra.mxu0 %v291
      %v456 = vpop.f32.mrf.mxu0
      %v457 = vadd.f32 %v357, %v456
      %v458 = vpop.f32.mrf.mxu0
      %v459 = vadd.f32 %v359, %v458
      %460 = vmatmul.bf16.gmra.mxu0 %v294
      %v461 = vpop.f32.mrf.mxu0
      %v462 = vadd.f32 %v362, %v461
      %v463 = vpop.f32.mrf.mxu0
      %v464 = vadd.f32 %v364, %v463
      %465 = vmatmul.bf16.gmra.mxu0 %v297
      %v466 = vpop.f32.mrf.mxu0
      %v467 = vadd.f32 %v367, %v466
      %v468 = vpop.f32.mrf.mxu0
      %v469 = vadd.f32 %v369, %v468
      %470 = vmatmul.bf16.gmra.mxu0 %v300
      %v471 = vpop.f32.mrf.mxu0
      %v472 = vadd.f32 %v372, %v471
      %v473 = vpop.f32.mrf.mxu0
      %v474 = vadd.f32 %v374, %v473
      %475 = vmatmul.bf16.gmra.mxu0 %v303
      %v476 = vpop.f32.mrf.mxu0
      %v477 = vadd.f32 %v377, %v476
      %v478 = vpop.f32.mrf.mxu0
      %v479 = vadd.f32 %v379, %v478
      %480 = vmatmul.bf16.gmra.mxu0 %v306
      %v481 = vpop.f32.mrf.mxu0
      %v482 = vadd.f32 %v382, %v481
      %v483 = vpop.f32.mrf.mxu0
      %v484 = vadd.f32 %v384, %v483
      %485 = vmatmul.bf16.gmra.mxu0 %v309
      %v486 = vpop.f32.mrf.mxu0
      %v487 = vadd.f32 %v387, %v486
      %v488 = vpop.f32.mrf.mxu0
      %v489 = vadd.f32 %v389, %v488
      %490 = vmatmul.bf16.gmra.mxu0 %v312
      %v491 = vpop.f32.mrf.mxu0
      %v492 = vadd.f32 %v392, %v491
      %v493 = vpop.f32.mrf.mxu0
      %v494 = vadd.f32 %v394, %v493
      %495 = vmatmul.bf16.gmra.mxu0 %v315
      %v496 = vpop.f32.mrf.mxu0
      %v497 = vadd.f32 %v397, %v496
      %v498 = vpop.f32.mrf.mxu0
      %v499 = vadd.f32 %v399, %v498
      %500 = vmatmul.bf16.gmra.mxu0 %v318
      %v501 = vpop.f32.mrf.mxu0
      %v502 = vadd.f32 %v402, %v501
      %v503 = vpop.f32.mrf.mxu0
      %v504 = vadd.f32 %v404, %v503
      %505 = vmatmul.bf16.gmra.mxu0 %v321
      %v506 = vpop.f32.mrf.mxu0
      %v507 = vadd.f32 %v407, %v506
      %v508 = vpop.f32.mrf.mxu0
      %v509 = vadd.f32 %v409, %v508
      %510 = vmatmul.bf16.gmra.mxu0 %v324
      %v511 = vpop.f32.mrf.mxu0
      %v512 = vadd.f32 %v412, %v511
      %v513 = vpop.f32.mrf.mxu0
      %v514 = vadd.f32 %v414, %v513
      %515 = vmatmul.bf16.gmra.mxu0 %v327
      %v516 = vpop.f32.mrf.mxu0
      %v517 = vadd.f32 %v417, %v516
      %v518 = vpop.f32.mrf.mxu0
      %v519 = vadd.f32 %v419, %v518
      %520 = vmatmul.bf16.gmra.mxu0 %v330
      %v521 = vpop.f32.mrf.mxu0
      %v522 = vadd.f32 %v422, %v521
      %v523 = vpop.f32.mrf.mxu0
      %v524 = vadd.f32 %v424, %v523
      %525 = vmatmul.bf16.gmra.mxu0 %v333
      %v526 = vpop.f32.mrf.mxu0
      %v527 = vadd.f32 %v427, %v526
      %v528 = vpop.f32.mrf.mxu0
      %v529 = vadd.f32 %v429, %v528
      %530 = vdwg.mxu0
      %v531 = vld [vmem:[%s165 + $0x10] sm:$0xf]
      %v532 = vld [vmem:[%s165 + $0x14] sm:$0xf]
      %v533 = vld [vmem:[%s165 + $0x18] sm:$0xf]
      %v534 = vld [vmem:[%s165 + $0x1c] sm:$0xf]
      %v535 = vld [vmem:[%s165 + $0x20] sm:$0xf]
      %v536 = vld [vmem:[%s165 + $0x24] sm:$0xf]
      %v537 = vld [vmem:[%s165 + $0x28] sm:$0xf]
      %v538 = vld [vmem:[%s165 + $0x2c] sm:$0xf]
      %v539 = vld [vmem:[%s165 + $0x30] sm:$0xf]
      %v540 = vld [vmem:[%s165 + $0x34] sm:$0xf]
      %v541 = vld [vmem:[%s165 + $0x38] sm:$0xf]
      %v542 = vld [vmem:[%s165 + $0x3c] sm:$0xf]
      %v543 = vld [vmem:[%s165 + $0x40] sm:$0xf]
      %v544 = vld [vmem:[%s165 + $0x44] sm:$0xf]
      %v545 = vld [vmem:[%s165 + $0x48] sm:$0xf]
      %v546 = vld [vmem:[%s165 + $0x4c] sm:$0xf]
      %v547 = vld [vmem:[%s165 + $0x50] sm:$0xf]
      %v548 = vld [vmem:[%s165 + $0x54] sm:$0xf]
      %v549 = vld [vmem:[%s165 + $0x58] sm:$0xf]
      %v550 = vld [vmem:[%s165 + $0x5c] sm:$0xf]
      %v551 = vld [vmem:[%s165 + $0x60] sm:$0xf]
      %v552 = vld [vmem:[%s165 + $0x64] sm:$0xf]
      %v553 = vld [vmem:[%s165 + $0x68] sm:$0xf]
      %v554 = vld [vmem:[%s165 + $0x6c] sm:$0xf]
      %v555 = vld [vmem:[%s165 + $0x70] sm:$0xf]
      %v556 = vld [vmem:[%s165 + $0x74] sm:$0xf]
      %v557 = vld [vmem:[%s165 + $0x78] sm:$0xf]
      %v558 = vld [vmem:[%s165 + $0x7c] sm:$0xf]
      %v559 = vld [vmem:[%s165 + $0x80] sm:$0xf]
      %v560 = vld [vmem:[%s165 + $0x84] sm:$0xf]
      %v561 = vld [vmem:[%s165 + $0x88] sm:$0xf]
      %v562 = vld [vmem:[%s165 + $0x8c] sm:$0xf]
      %s563 = scalar_lea.vmem %s1, 8
      %v564 = vld [vmem:[%s563] sm:$0x7]
      %v597 = vunpack.c.l.b16 %v531
      %v598 = vunpack.c.l.b16 %v532
      %v599 = vunpack.c.l.b16 %v533
      %v600 = vunpack.c.l.b16 %v534
      %v601 = vunpack.c.l.b16 %v535
      %v602 = vunpack.c.l.b16 %v536
      %v603 = vunpack.c.l.b16 %v537
      %v604 = vunpack.c.l.b16 %v538
      %v605 = vunpack.c.l.b16 %v539
      %v606 = vunpack.c.l.b16 %v540
      %v607 = vunpack.c.l.b16 %v541
      %v608 = vunpack.c.l.b16 %v542
      %v609 = vunpack.c.l.b16 %v543
      %v610 = vunpack.c.l.b16 %v544
      %v611 = vunpack.c.l.b16 %v545
      %v612 = vunpack.c.l.b16 %v546
      %v613 = vunpack.c.l.b16 %v547
      %v614 = vunpack.c.l.b16 %v548
      %v615 = vunpack.c.l.b16 %v549
      %v616 = vunpack.c.l.b16 %v550
      %v617 = vunpack.c.l.b16 %v551
      %v618 = vunpack.c.l.b16 %v552
      %v619 = vunpack.c.l.b16 %v553
      %v620 = vunpack.c.l.b16 %v554
      %v621 = vunpack.c.l.b16 %v555
      %v622 = vunpack.c.l.b16 %v556
      %v623 = vunpack.c.l.b16 %v557
      %v624 = vunpack.c.l.b16 %v558
      %v625 = vunpack.c.l.b16 %v559
      %v626 = vunpack.c.l.b16 %v560
      %v627 = vunpack.c.l.b16 %v561
      %v628 = vunpack.c.l.b16 %v562
      %v629 = vpack.c.b16 %v598, %v597
      %v630 = vpack.c.b16 %v600, %v599
      %v631 = vpack.c.b16 %v602, %v601
      %v632 = vpack.c.b16 %v604, %v603
      %v633 = vpack.c.b16 %v606, %v605
      %v634 = vpack.c.b16 %v608, %v607
      %v635 = vpack.c.b16 %v610, %v609
      %v636 = vpack.c.b16 %v612, %v611
      %v637 = vpack.c.b16 %v614, %v613
      %v638 = vpack.c.b16 %v616, %v615
      %v639 = vpack.c.b16 %v618, %v617
      %v640 = vpack.c.b16 %v620, %v619
      %v641 = vpack.c.b16 %v622, %v621
      %v642 = vpack.c.b16 %v624, %v623
      %v643 = vpack.c.b16 %v626, %v625
      %v644 = vpack.c.b16 %v628, %v627
      %v646 = vsel %vm289, %v629, 0
      %v649 = vsel %vm289, %v630, 0
      %v652 = vsel %vm289, %v631, 0
      %v655 = vsel %vm289, %v632, 0
      %v658 = vsel %vm289, %v633, 0
      %v661 = vsel %vm289, %v634, 0
      %v664 = vsel %vm289, %v635, 0
      %v667 = vsel %vm289, %v636, 0
      %v670 = vsel %vm289, %v637, 0
      %v673 = vsel %vm289, %v638, 0
      %v676 = vsel %vm289, %v639, 0
      %v679 = vsel %vm289, %v640, 0
      %v682 = vsel %vm289, %v641, 0
      %v685 = vsel %vm289, %v642, 0
      %v688 = vsel %vm289, %v643, 0
      %v691 = vsel %vm289, %v644, 0
      %v694 = vsel %vm338, %v564, 0
      %696 = vmatpush.bf16.msra.mxu0 0
      %697 = vmatpush.bf16.msra.mxu0 0
      %698 = vmatpush.bf16.msra.mxu0 0
      %699 = vmatpush.bf16.msra.mxu0 0
      %700 = vmatpush.bf16.msra.mxu0 0
      %701 = vmatpush.bf16.msra.mxu0 0
      %702 = vmatpush.bf16.msra.mxu0 0
      %703 = vmatpush.bf16.msra.mxu0 %v694
      %704 = vmatmul.bf16.gmra.mxu0 %v646
      %v705 = vpop.f32.mrf.mxu0
      %v706 = vadd.f32 0.0, %v705
      %v707 = vpop.f32.mrf.mxu0
      %v708 = vadd.f32 0.0, %v707
      %709 = vmatmul.bf16.gmra.mxu0 %v649
      %v710 = vpop.f32.mrf.mxu0
      %v711 = vadd.f32 0.0, %v710
      %v712 = vpop.f32.mrf.mxu0
      %v713 = vadd.f32 0.0, %v712
      %714 = vmatmul.bf16.gmra.mxu0 %v652
      %v715 = vpop.f32.mrf.mxu0
      %v716 = vadd.f32 0.0, %v715
      %v717 = vpop.f32.mrf.mxu0
      %v718 = vadd.f32 0.0, %v717
      %719 = vmatmul.bf16.gmra.mxu0 %v655
      %v720 = vpop.f32.mrf.mxu0
      %v721 = vadd.f32 0.0, %v720
      %v722 = vpop.f32.mrf.mxu0
      %v723 = vadd.f32 0.0, %v722
      %724 = vmatmul.bf16.gmra.mxu0 %v658
      %v725 = vpop.f32.mrf.mxu0
      %v726 = vadd.f32 0.0, %v725
      %v727 = vpop.f32.mrf.mxu0
      %v728 = vadd.f32 0.0, %v727
      %729 = vmatmul.bf16.gmra.mxu0 %v661
      %v730 = vpop.f32.mrf.mxu0
      %v731 = vadd.f32 0.0, %v730
      %v732 = vpop.f32.mrf.mxu0
      %v733 = vadd.f32 0.0, %v732
      %734 = vmatmul.bf16.gmra.mxu0 %v664
      %v735 = vpop.f32.mrf.mxu0
      %v736 = vadd.f32 0.0, %v735
      %v737 = vpop.f32.mrf.mxu0
      %v738 = vadd.f32 0.0, %v737
      %739 = vmatmul.bf16.gmra.mxu0 %v667
      %v740 = vpop.f32.mrf.mxu0
      %v741 = vadd.f32 0.0, %v740
      %v742 = vpop.f32.mrf.mxu0
      %v743 = vadd.f32 0.0, %v742
      %744 = vmatmul.bf16.gmra.mxu0 %v670
      %v745 = vpop.f32.mrf.mxu0
      %v746 = vadd.f32 0.0, %v745
      %v747 = vpop.f32.mrf.mxu0
      %v748 = vadd.f32 0.0, %v747
      %749 = vmatmul.bf16.gmra.mxu0 %v673
      %v750 = vpop.f32.mrf.mxu0
      %v751 = vadd.f32 0.0, %v750
      %v752 = vpop.f32.mrf.mxu0
      %v753 = vadd.f32 0.0, %v752
      %754 = vmatmul.bf16.gmra.mxu0 %v676
      %v755 = vpop.f32.mrf.mxu0
      %v756 = vadd.f32 0.0, %v755
      %v757 = vpop.f32.mrf.mxu0
      %v758 = vadd.f32 0.0, %v757
      %759 = vmatmul.bf16.gmra.mxu0 %v679
      %v760 = vpop.f32.mrf.mxu0
      %v761 = vadd.f32 0.0, %v760
      %v762 = vpop.f32.mrf.mxu0
      %v763 = vadd.f32 0.0, %v762
      %764 = vmatmul.bf16.gmra.mxu0 %v682
      %v765 = vpop.f32.mrf.mxu0
      %v766 = vadd.f32 0.0, %v765
      %v767 = vpop.f32.mrf.mxu0
      %v768 = vadd.f32 0.0, %v767
      %769 = vmatmul.bf16.gmra.mxu0 %v685
      %v770 = vpop.f32.mrf.mxu0
      %v771 = vadd.f32 0.0, %v770
      %v772 = vpop.f32.mrf.mxu0
      %v773 = vadd.f32 0.0, %v772
      %774 = vmatmul.bf16.gmra.mxu0 %v688
      %v775 = vpop.f32.mrf.mxu0
      %v776 = vadd.f32 0.0, %v775
      %v777 = vpop.f32.mrf.mxu0
      %v778 = vadd.f32 0.0, %v777
      %779 = vmatmul.bf16.gmra.mxu0 %v691
      %v780 = vpop.f32.mrf.mxu0
      %v781 = vadd.f32 0.0, %v780
      %v782 = vpop.f32.mrf.mxu0
      %v783 = vadd.f32 0.0, %v782
      %784 = vdwg.mxu0
      %v785 = vadd.f32 %v452, %v706
      %v786 = vadd.f32 %v454, %v708
      %v787 = vadd.f32 %v457, %v711
      %v788 = vadd.f32 %v459, %v713
      %v789 = vadd.f32 %v462, %v716
      %v790 = vadd.f32 %v464, %v718
      %v791 = vadd.f32 %v467, %v721
      %v792 = vadd.f32 %v469, %v723
      %v793 = vadd.f32 %v472, %v726
      %v794 = vadd.f32 %v474, %v728
      %v795 = vadd.f32 %v477, %v731
      %v796 = vadd.f32 %v479, %v733
      %v797 = vadd.f32 %v482, %v736
      %v798 = vadd.f32 %v484, %v738
      %v799 = vadd.f32 %v487, %v741
      %v800 = vadd.f32 %v489, %v743
      %v801 = vadd.f32 %v492, %v746
      %v802 = vadd.f32 %v494, %v748
      %v803 = vadd.f32 %v497, %v751
      %v804 = vadd.f32 %v499, %v753
      %v805 = vadd.f32 %v502, %v756
      %v806 = vadd.f32 %v504, %v758
      %v807 = vadd.f32 %v507, %v761
      %v808 = vadd.f32 %v509, %v763
      %v809 = vadd.f32 %v512, %v766
      %v810 = vadd.f32 %v514, %v768
      %v811 = vadd.f32 %v517, %v771
      %v812 = vadd.f32 %v519, %v773
      %v813 = vadd.f32 %v522, %v776
      %v814 = vadd.f32 %v524, %v778
      %v815 = vadd.f32 %v527, %v781
      %v816 = vadd.f32 %v529, %v783
      %v817 = vld [vmem:[%s165 + $0x18] sm:$0xf]
      %v818 = vld [vmem:[%s165 + $0x1c] sm:$0xf]
      %v819 = vld [vmem:[%s165 + $0x20] sm:$0xf]
      %v820 = vld [vmem:[%s165 + $0x24] sm:$0xf]
      %v821 = vld [vmem:[%s165 + $0x28] sm:$0xf]
      %v822 = vld [vmem:[%s165 + $0x2c] sm:$0xf]
      %v823 = vld [vmem:[%s165 + $0x30] sm:$0xf]
      %v824 = vld [vmem:[%s165 + $0x34] sm:$0xf]
      %v825 = vld [vmem:[%s165 + $0x38] sm:$0xf]
      %v826 = vld [vmem:[%s165 + $0x3c] sm:$0xf]
      %v827 = vld [vmem:[%s165 + $0x40] sm:$0xf]
      %v828 = vld [vmem:[%s165 + $0x44] sm:$0xf]
      %v829 = vld [vmem:[%s165 + $0x48] sm:$0xf]
      %v830 = vld [vmem:[%s165 + $0x4c] sm:$0xf]
      %v831 = vld [vmem:[%s165 + $0x50] sm:$0xf]
      %v832 = vld [vmem:[%s165 + $0x54] sm:$0xf]
      %v833 = vld [vmem:[%s165 + $0x58] sm:$0xf]
      %v834 = vld [vmem:[%s165 + $0x5c] sm:$0xf]
      %v835 = vld [vmem:[%s165 + $0x60] sm:$0xf]
      %v836 = vld [vmem:[%s165 + $0x64] sm:$0xf]
      %v837 = vld [vmem:[%s165 + $0x68] sm:$0xf]
      %v838 = vld [vmem:[%s165 + $0x6c] sm:$0xf]
      %v839 = vld [vmem:[%s165 + $0x70] sm:$0xf]
      %v840 = vld [vmem:[%s165 + $0x74] sm:$0xf]
      %v841 = vld [vmem:[%s165 + $0x78] sm:$0xf]
      %v842 = vld [vmem:[%s165 + $0x7c] sm:$0xf]
      %v843 = vld [vmem:[%s165 + $0x80] sm:$0xf]
      %v844 = vld [vmem:[%s165 + $0x84] sm:$0xf]
      %v845 = vld [vmem:[%s165 + $0x88] sm:$0xf]
      %v846 = vld [vmem:[%s165 + $0x8c] sm:$0xf]
      %v847 = vld [vmem:[%s165 + $0x90] sm:$0xf]
      %v848 = vld [vmem:[%s165 + $0x94] sm:$0xf]
      %s849 = scalar_lea.vmem %s1, 12
      %v850 = vld [vmem:[%s849] sm:$0x7]
      %v883 = vunpack.c.l.b16 %v817
      %v884 = vunpack.c.l.b16 %v818
      %v885 = vunpack.c.l.b16 %v819
      %v886 = vunpack.c.l.b16 %v820
      %v887 = vunpack.c.l.b16 %v821
      %v888 = vunpack.c.l.b16 %v822
      %v889 = vunpack.c.l.b16 %v823
      %v890 = vunpack.c.l.b16 %v824
      %v891 = vunpack.c.l.b16 %v825
      %v892 = vunpack.c.l.b16 %v826
      %v893 = vunpack.c.l.b16 %v827
      %v894 = vunpack.c.l.b16 %v828
      %v895 = vunpack.c.l.b16 %v829
      %v896 = vunpack.c.l.b16 %v830
      %v897 = vunpack.c.l.b16 %v831
      %v898 = vunpack.c.l.b16 %v832
      %v899 = vunpack.c.l.b16 %v833
      %v900 = vunpack.c.l.b16 %v834
      %v901 = vunpack.c.l.b16 %v835
      %v902 = vunpack.c.l.b16 %v836
      %v903 = vunpack.c.l.b16 %v837
      %v904 = vunpack.c.l.b16 %v838
      %v905 = vunpack.c.l.b16 %v839
      %v906 = vunpack.c.l.b16 %v840
      %v907 = vunpack.c.l.b16 %v841
      %v908 = vunpack.c.l.b16 %v842
      %v909 = vunpack.c.l.b16 %v843
      %v910 = vunpack.c.l.b16 %v844
      %v911 = vunpack.c.l.b16 %v845
      %v912 = vunpack.c.l.b16 %v846
      %v913 = vunpack.c.l.b16 %v847
      %v914 = vunpack.c.l.b16 %v848
      %v915 = vpack.c.b16 %v884, %v883
      %v916 = vpack.c.b16 %v886, %v885
      %v917 = vpack.c.b16 %v888, %v887
      %v918 = vpack.c.b16 %v890, %v889
      %v919 = vpack.c.b16 %v892, %v891
      %v920 = vpack.c.b16 %v894, %v893
      %v921 = vpack.c.b16 %v896, %v895
      %v922 = vpack.c.b16 %v898, %v897
      %v923 = vpack.c.b16 %v900, %v899
      %v924 = vpack.c.b16 %v902, %v901
      %v925 = vpack.c.b16 %v904, %v903
      %v926 = vpack.c.b16 %v906, %v905
      %v927 = vpack.c.b16 %v908, %v907
      %v928 = vpack.c.b16 %v910, %v909
      %v929 = vpack.c.b16 %v912, %v911
      %v930 = vpack.c.b16 %v914, %v913
      %v932 = vsel %vm289, %v915, 0
      %v935 = vsel %vm289, %v916, 0
      %v938 = vsel %vm289, %v917, 0
      %v941 = vsel %vm289, %v918, 0
      %v944 = vsel %vm289, %v919, 0
      %v947 = vsel %vm289, %v920, 0
      %v950 = vsel %vm289, %v921, 0
      %v953 = vsel %vm289, %v922, 0
      %v956 = vsel %vm289, %v923, 0
      %v959 = vsel %vm289, %v924, 0
      %v962 = vsel %vm289, %v925, 0
      %v965 = vsel %vm289, %v926, 0
      %v968 = vsel %vm289, %v927, 0
      %v971 = vsel %vm289, %v928, 0
      %v974 = vsel %vm289, %v929, 0
      %v977 = vsel %vm289, %v930, 0
      %v980 = vsel %vm338, %v850, 0
      %982 = vmatpush.bf16.msra.mxu0 0
      %983 = vmatpush.bf16.msra.mxu0 0
      %984 = vmatpush.bf16.msra.mxu0 0
      %985 = vmatpush.bf16.msra.mxu0 0
      %986 = vmatpush.bf16.msra.mxu0 0
      %987 = vmatpush.bf16.msra.mxu0 0
      %988 = vmatpush.bf16.msra.mxu0 0
      %989 = vmatpush.bf16.msra.mxu0 %v980
      %990 = vmatmul.bf16.gmra.mxu0 %v932
      %v991 = vpop.f32.mrf.mxu0
      %v992 = vadd.f32 0.0, %v991
      %v993 = vpop.f32.mrf.mxu0
      %v994 = vadd.f32 0.0, %v993
      %995 = vmatmul.bf16.gmra.mxu0 %v935
      %v996 = vpop.f32.mrf.mxu0
      %v997 = vadd.f32 0.0, %v996
      %v998 = vpop.f32.mrf.mxu0
      %v999 = vadd.f32 0.0, %v998
      %1000 = vmatmul.bf16.gmra.mxu0 %v938
      %v1001 = vpop.f32.mrf.mxu0
      %v1002 = vadd.f32 0.0, %v1001
      %v1003 = vpop.f32.mrf.mxu0
      %v1004 = vadd.f32 0.0, %v1003
      %1005 = vmatmul.bf16.gmra.mxu0 %v941
      %v1006 = vpop.f32.mrf.mxu0
      %v1007 = vadd.f32 0.0, %v1006
      %v1008 = vpop.f32.mrf.mxu0
      %v1009 = vadd.f32 0.0, %v1008
      %1010 = vmatmul.bf16.gmra.mxu0 %v944
      %v1011 = vpop.f32.mrf.mxu0
      %v1012 = vadd.f32 0.0, %v1011
      %v1013 = vpop.f32.mrf.mxu0
      %v1014 = vadd.f32 0.0, %v1013
      %1015 = vmatmul.bf16.gmra.mxu0 %v947
      %v1016 = vpop.f32.mrf.mxu0
      %v1017 = vadd.f32 0.0, %v1016
      %v1018 = vpop.f32.mrf.mxu0
      %v1019 = vadd.f32 0.0, %v1018
      %1020 = vmatmul.bf16.gmra.mxu0 %v950
      %v1021 = vpop.f32.mrf.mxu0
      %v1022 = vadd.f32 0.0, %v1021
      %v1023 = vpop.f32.mrf.mxu0
      %v1024 = vadd.f32 0.0, %v1023
      %1025 = vmatmul.bf16.gmra.mxu0 %v953
      %v1026 = vpop.f32.mrf.mxu0
      %v1027 = vadd.f32 0.0, %v1026
      %v1028 = vpop.f32.mrf.mxu0
      %v1029 = vadd.f32 0.0, %v1028
      %1030 = vmatmul.bf16.gmra.mxu0 %v956
      %v1031 = vpop.f32.mrf.mxu0
      %v1032 = vadd.f32 0.0, %v1031
      %v1033 = vpop.f32.mrf.mxu0
      %v1034 = vadd.f32 0.0, %v1033
      %1035 = vmatmul.bf16.gmra.mxu0 %v959
      %v1036 = vpop.f32.mrf.mxu0
      %v1037 = vadd.f32 0.0, %v1036
      %v1038 = vpop.f32.mrf.mxu0
      %v1039 = vadd.f32 0.0, %v1038
      %1040 = vmatmul.bf16.gmra.mxu0 %v962
      %v1041 = vpop.f32.mrf.mxu0
      %v1042 = vadd.f32 0.0, %v1041
      %v1043 = vpop.f32.mrf.mxu0
      %v1044 = vadd.f32 0.0, %v1043
      %1045 = vmatmul.bf16.gmra.mxu0 %v965
      %v1046 = vpop.f32.mrf.mxu0
      %v1047 = vadd.f32 0.0, %v1046
      %v1048 = vpop.f32.mrf.mxu0
      %v1049 = vadd.f32 0.0, %v1048
      %1050 = vmatmul.bf16.gmra.mxu0 %v968
      %v1051 = vpop.f32.mrf.mxu0
      %v1052 = vadd.f32 0.0, %v1051
      %v1053 = vpop.f32.mrf.mxu0
      %v1054 = vadd.f32 0.0, %v1053
      %1055 = vmatmul.bf16.gmra.mxu0 %v971
      %v1056 = vpop.f32.mrf.mxu0
      %v1057 = vadd.f32 0.0, %v1056
      %v1058 = vpop.f32.mrf.mxu0
      %v1059 = vadd.f32 0.0, %v1058
      %1060 = vmatmul.bf16.gmra.mxu0 %v974
      %v1061 = vpop.f32.mrf.mxu0
      %v1062 = vadd.f32 0.0, %v1061
      %v1063 = vpop.f32.mrf.mxu0
      %v1064 = vadd.f32 0.0, %v1063
      %1065 = vmatmul.bf16.gmra.mxu0 %v977
      %v1066 = vpop.f32.mrf.mxu0
      %v1067 = vadd.f32 0.0, %v1066
      %v1068 = vpop.f32.mrf.mxu0
      %v1069 = vadd.f32 0.0, %v1068
      %1070 = vdwg.mxu0
      %v1071 = vadd.f32 %v785, %v992
      %v1072 = vadd.f32 %v786, %v994
      %v1073 = vadd.f32 %v787, %v997
      %v1074 = vadd.f32 %v788, %v999
      %v1075 = vadd.f32 %v789, %v1002
      %v1076 = vadd.f32 %v790, %v1004
      %v1077 = vadd.f32 %v791, %v1007
      %v1078 = vadd.f32 %v792, %v1009
      %v1079 = vadd.f32 %v793, %v1012
      %v1080 = vadd.f32 %v794, %v1014
      %v1081 = vadd.f32 %v795, %v1017
      %v1082 = vadd.f32 %v796, %v1019
      %v1083 = vadd.f32 %v797, %v1022
      %v1084 = vadd.f32 %v798, %v1024
      %v1085 = vadd.f32 %v799, %v1027
      %v1086 = vadd.f32 %v800, %v1029
      %v1087 = vadd.f32 %v801, %v1032
      %v1088 = vadd.f32 %v802, %v1034
      %v1089 = vadd.f32 %v803, %v1037
      %v1090 = vadd.f32 %v804, %v1039
      %v1091 = vadd.f32 %v805, %v1042
      %v1092 = vadd.f32 %v806, %v1044
      %v1093 = vadd.f32 %v807, %v1047
      %v1094 = vadd.f32 %v808, %v1049
      %v1095 = vadd.f32 %v809, %v1052
      %v1096 = vadd.f32 %v810, %v1054
      %v1097 = vadd.f32 %v811, %v1057
      %v1098 = vadd.f32 %v812, %v1059
      %v1099 = vadd.f32 %v813, %v1062
      %v1100 = vadd.f32 %v814, %v1064
      %v1101 = vadd.f32 %v815, %v1067
      %v1102 = vadd.f32 %v816, %v1069
      %v1103 = vld [vmem:[%s165 + $0x20] sm:$0xf]
      %v1104 = vld [vmem:[%s165 + $0x24] sm:$0xf]
      %v1105 = vld [vmem:[%s165 + $0x28] sm:$0xf]
      %v1106 = vld [vmem:[%s165 + $0x2c] sm:$0xf]
      %v1107 = vld [vmem:[%s165 + $0x30] sm:$0xf]
      %v1108 = vld [vmem:[%s165 + $0x34] sm:$0xf]
      %v1109 = vld [vmem:[%s165 + $0x38] sm:$0xf]
      %v1110 = vld [vmem:[%s165 + $0x3c] sm:$0xf]
      %v1111 = vld [vmem:[%s165 + $0x40] sm:$0xf]
      %v1112 = vld [vmem:[%s165 + $0x44] sm:$0xf]
      %v1113 = vld [vmem:[%s165 + $0x48] sm:$0xf]
      %v1114 = vld [vmem:[%s165 + $0x4c] sm:$0xf]
      %v1115 = vld [vmem:[%s165 + $0x50] sm:$0xf]
      %v1116 = vld [vmem:[%s165 + $0x54] sm:$0xf]
      %v1117 = vld [vmem:[%s165 + $0x58] sm:$0xf]
      %v1118 = vld [vmem:[%s165 + $0x5c] sm:$0xf]
      %v1119 = vld [vmem:[%s165 + $0x60] sm:$0xf]
      %v1120 = vld [vmem:[%s165 + $0x64] sm:$0xf]
      %v1121 = vld [vmem:[%s165 + $0x68] sm:$0xf]
      %v1122 = vld [vmem:[%s165 + $0x6c] sm:$0xf]
      %v1123 = vld [vmem:[%s165 + $0x70] sm:$0xf]
      %v1124 = vld [vmem:[%s165 + $0x74] sm:$0xf]
      %v1125 = vld [vmem:[%s165 + $0x78] sm:$0xf]
      %v1126 = vld [vmem:[%s165 + $0x7c] sm:$0xf]
      %v1127 = vld [vmem:[%s165 + $0x80] sm:$0xf]
      %v1128 = vld [vmem:[%s165 + $0x84] sm:$0xf]
      %v1129 = vld [vmem:[%s165 + $0x88] sm:$0xf]
      %v1130 = vld [vmem:[%s165 + $0x8c] sm:$0xf]
      %v1131 = vld [vmem:[%s165 + $0x90] sm:$0xf]
      %v1132 = vld [vmem:[%s165 + $0x94] sm:$0xf]
      %v1133 = vld [vmem:[%s165 + $0x98] sm:$0xf]
      %v1134 = vld [vmem:[%s165 + $0x9c] sm:$0xf]
      %s1135 = scalar_lea.vmem %s1, 16
      %v1136 = vld [vmem:[%s1135] sm:$0x7]
      %v1169 = vunpack.c.l.b16 %v1103
      %v1170 = vunpack.c.l.b16 %v1104
      %v1171 = vunpack.c.l.b16 %v1105
      %v1172 = vunpack.c.l.b16 %v1106
      %v1173 = vunpack.c.l.b16 %v1107
      %v1174 = vunpack.c.l.b16 %v1108
      %v1175 = vunpack.c.l.b16 %v1109
      %v1176 = vunpack.c.l.b16 %v1110
      %v1177 = vunpack.c.l.b16 %v1111
      %v1178 = vunpack.c.l.b16 %v1112
      %v1179 = vunpack.c.l.b16 %v1113
      %v1180 = vunpack.c.l.b16 %v1114
      %v1181 = vunpack.c.l.b16 %v1115
      %v1182 = vunpack.c.l.b16 %v1116
      %v1183 = vunpack.c.l.b16 %v1117
      %v1184 = vunpack.c.l.b16 %v1118
      %v1185 = vunpack.c.l.b16 %v1119
      %v1186 = vunpack.c.l.b16 %v1120
      %v1187 = vunpack.c.l.b16 %v1121
      %v1188 = vunpack.c.l.b16 %v1122
      %v1189 = vunpack.c.l.b16 %v1123
      %v1190 = vunpack.c.l.b16 %v1124
      %v1191 = vunpack.c.l.b16 %v1125
      %v1192 = vunpack.c.l.b16 %v1126
      %v1193 = vunpack.c.l.b16 %v1127
      %v1194 = vunpack.c.l.b16 %v1128
      %v1195 = vunpack.c.l.b16 %v1129
      %v1196 = vunpack.c.l.b16 %v1130
      %v1197 = vunpack.c.l.b16 %v1131
      %v1198 = vunpack.c.l.b16 %v1132
      %v1199 = vunpack.c.l.b16 %v1133
      %v1200 = vunpack.c.l.b16 %v1134
      %v1201 = vpack.c.b16 %v1170, %v1169
      %v1202 = vpack.c.b16 %v1172, %v1171
      %v1203 = vpack.c.b16 %v1174, %v1173
      %v1204 = vpack.c.b16 %v1176, %v1175
      %v1205 = vpack.c.b16 %v1178, %v1177
      %v1206 = vpack.c.b16 %v1180, %v1179
      %v1207 = vpack.c.b16 %v1182, %v1181
      %v1208 = vpack.c.b16 %v1184, %v1183
      %v1209 = vpack.c.b16 %v1186, %v1185
      %v1210 = vpack.c.b16 %v1188, %v1187
      %v1211 = vpack.c.b16 %v1190, %v1189
      %v1212 = vpack.c.b16 %v1192, %v1191
      %v1213 = vpack.c.b16 %v1194, %v1193
      %v1214 = vpack.c.b16 %v1196, %v1195
      %v1215 = vpack.c.b16 %v1198, %v1197
      %v1216 = vpack.c.b16 %v1200, %v1199
      %v1218 = vsel %vm289, %v1201, 0
      %v1221 = vsel %vm289, %v1202, 0
      %v1224 = vsel %vm289, %v1203, 0
      %v1227 = vsel %vm289, %v1204, 0
      %v1230 = vsel %vm289, %v1205, 0
      %v1233 = vsel %vm289, %v1206, 0
      %v1236 = vsel %vm289, %v1207, 0
      %v1239 = vsel %vm289, %v1208, 0
      %v1242 = vsel %vm289, %v1209, 0
      %v1245 = vsel %vm289, %v1210, 0
      %v1248 = vsel %vm289, %v1211, 0
      %v1251 = vsel %vm289, %v1212, 0
      %v1254 = vsel %vm289, %v1213, 0
      %v1257 = vsel %vm289, %v1214, 0
      %v1260 = vsel %vm289, %v1215, 0
      %v1263 = vsel %vm289, %v1216, 0
      %v1266 = vsel %vm338, %v1136, 0
      %1268 = vmatpush.bf16.msra.mxu0 0
      %1269 = vmatpush.bf16.msra.mxu0 0
      %1270 = vmatpush.bf16.msra.mxu0 0
      %1271 = vmatpush.bf16.msra.mxu0 0
      %1272 = vmatpush.bf16.msra.mxu0 0
      %1273 = vmatpush.bf16.msra.mxu0 0
      %1274 = vmatpush.bf16.msra.mxu0 0
      %1275 = vmatpush.bf16.msra.mxu0 %v1266
      %1276 = vmatmul.bf16.gmra.mxu0 %v1218
      %v1277 = vpop.f32.mrf.mxu0
      %v1278 = vadd.f32 0.0, %v1277
      %v1279 = vpop.f32.mrf.mxu0
      %v1280 = vadd.f32 0.0, %v1279
      %1281 = vmatmul.bf16.gmra.mxu0 %v1221
      %v1282 = vpop.f32.mrf.mxu0
      %v1283 = vadd.f32 0.0, %v1282
      %v1284 = vpop.f32.mrf.mxu0
      %v1285 = vadd.f32 0.0, %v1284
      %1286 = vmatmul.bf16.gmra.mxu0 %v1224
      %v1287 = vpop.f32.mrf.mxu0
      %v1288 = vadd.f32 0.0, %v1287
      %v1289 = vpop.f32.mrf.mxu0
      %v1290 = vadd.f32 0.0, %v1289
      %1291 = vmatmul.bf16.gmra.mxu0 %v1227
      %v1292 = vpop.f32.mrf.mxu0
      %v1293 = vadd.f32 0.0, %v1292
      %v1294 = vpop.f32.mrf.mxu0
      %v1295 = vadd.f32 0.0, %v1294
      %1296 = vmatmul.bf16.gmra.mxu0 %v1230
      %v1297 = vpop.f32.mrf.mxu0
      %v1298 = vadd.f32 0.0, %v1297
      %v1299 = vpop.f32.mrf.mxu0
      %v1300 = vadd.f32 0.0, %v1299
      %1301 = vmatmul.bf16.gmra.mxu0 %v1233
      %v1302 = vpop.f32.mrf.mxu0
      %v1303 = vadd.f32 0.0, %v1302
      %v1304 = vpop.f32.mrf.mxu0
      %v1305 = vadd.f32 0.0, %v1304
      %1306 = vmatmul.bf16.gmra.mxu0 %v1236
      %v1307 = vpop.f32.mrf.mxu0
      %v1308 = vadd.f32 0.0, %v1307
      %v1309 = vpop.f32.mrf.mxu0
      %v1310 = vadd.f32 0.0, %v1309
      %1311 = vmatmul.bf16.gmra.mxu0 %v1239
      %v1312 = vpop.f32.mrf.mxu0
      %v1313 = vadd.f32 0.0, %v1312
      %v1314 = vpop.f32.mrf.mxu0
      %v1315 = vadd.f32 0.0, %v1314
      %1316 = vmatmul.bf16.gmra.mxu0 %v1242
      %v1317 = vpop.f32.mrf.mxu0
      %v1318 = vadd.f32 0.0, %v1317
      %v1319 = vpop.f32.mrf.mxu0
      %v1320 = vadd.f32 0.0, %v1319
      %1321 = vmatmul.bf16.gmra.mxu0 %v1245
      %v1322 = vpop.f32.mrf.mxu0
      %v1323 = vadd.f32 0.0, %v1322
      %v1324 = vpop.f32.mrf.mxu0
      %v1325 = vadd.f32 0.0, %v1324
      %1326 = vmatmul.bf16.gmra.mxu0 %v1248
      %v1327 = vpop.f32.mrf.mxu0
      %v1328 = vadd.f32 0.0, %v1327
      %v1329 = vpop.f32.mrf.mxu0
      %v1330 = vadd.f32 0.0, %v1329
      %1331 = vmatmul.bf16.gmra.mxu0 %v1251
      %v1332 = vpop.f32.mrf.mxu0
      %v1333 = vadd.f32 0.0, %v1332
      %v1334 = vpop.f32.mrf.mxu0
      %v1335 = vadd.f32 0.0, %v1334
      %1336 = vmatmul.bf16.gmra.mxu0 %v1254
      %v1337 = vpop.f32.mrf.mxu0
      %v1338 = vadd.f32 0.0, %v1337
      %v1339 = vpop.f32.mrf.mxu0
      %v1340 = vadd.f32 0.0, %v1339
      %1341 = vmatmul.bf16.gmra.mxu0 %v1257
      %v1342 = vpop.f32.mrf.mxu0
      %v1343 = vadd.f32 0.0, %v1342
      %v1344 = vpop.f32.mrf.mxu0
      %v1345 = vadd.f32 0.0, %v1344
      %1346 = vmatmul.bf16.gmra.mxu0 %v1260
      %v1347 = vpop.f32.mrf.mxu0
      %v1348 = vadd.f32 0.0, %v1347
      %v1349 = vpop.f32.mrf.mxu0
      %v1350 = vadd.f32 0.0, %v1349
      %1351 = vmatmul.bf16.gmra.mxu0 %v1263
      %v1352 = vpop.f32.mrf.mxu0
      %v1353 = vadd.f32 0.0, %v1352
      %v1354 = vpop.f32.mrf.mxu0
      %v1355 = vadd.f32 0.0, %v1354
      %1356 = vdwg.mxu0
      %v1357 = vadd.f32 %v1071, %v1278
      %v1358 = vadd.f32 %v1072, %v1280
      %v1359 = vadd.f32 %v1073, %v1283
      %v1360 = vadd.f32 %v1074, %v1285
      %v1361 = vadd.f32 %v1075, %v1288
      %v1362 = vadd.f32 %v1076, %v1290
      %v1363 = vadd.f32 %v1077, %v1293
      %v1364 = vadd.f32 %v1078, %v1295
      %v1365 = vadd.f32 %v1079, %v1298
      %v1366 = vadd.f32 %v1080, %v1300
      %v1367 = vadd.f32 %v1081, %v1303
      %v1368 = vadd.f32 %v1082, %v1305
      %v1369 = vadd.f32 %v1083, %v1308
      %v1370 = vadd.f32 %v1084, %v1310
      %v1371 = vadd.f32 %v1085, %v1313
      %v1372 = vadd.f32 %v1086, %v1315
      %v1373 = vadd.f32 %v1087, %v1318
      %v1374 = vadd.f32 %v1088, %v1320
      %v1375 = vadd.f32 %v1089, %v1323
      %v1376 = vadd.f32 %v1090, %v1325
      %v1377 = vadd.f32 %v1091, %v1328
      %v1378 = vadd.f32 %v1092, %v1330
      %v1379 = vadd.f32 %v1093, %v1333
      %v1380 = vadd.f32 %v1094, %v1335
      %v1381 = vadd.f32 %v1095, %v1338
      %v1382 = vadd.f32 %v1096, %v1340
      %v1383 = vadd.f32 %v1097, %v1343
      %v1384 = vadd.f32 %v1098, %v1345
      %v1385 = vadd.f32 %v1099, %v1348
      %v1386 = vadd.f32 %v1100, %v1350
      %v1387 = vadd.f32 %v1101, %v1353
      %v1388 = vadd.f32 %v1102, %v1355
      %v1389 = vld [vmem:[%s165 + $0x28] sm:$0xf]
      %v1390 = vld [vmem:[%s165 + $0x2c] sm:$0xf]
      %v1391 = vld [vmem:[%s165 + $0x30] sm:$0xf]
      %v1392 = vld [vmem:[%s165 + $0x34] sm:$0xf]
      %v1393 = vld [vmem:[%s165 + $0x38] sm:$0xf]
      %v1394 = vld [vmem:[%s165 + $0x3c] sm:$0xf]
      %v1395 = vld [vmem:[%s165 + $0x40] sm:$0xf]
      %v1396 = vld [vmem:[%s165 + $0x44] sm:$0xf]
      %v1397 = vld [vmem:[%s165 + $0x48] sm:$0xf]
      %v1398 = vld [vmem:[%s165 + $0x4c] sm:$0xf]
      %v1399 = vld [vmem:[%s165 + $0x50] sm:$0xf]
      %v1400 = vld [vmem:[%s165 + $0x54] sm:$0xf]
      %v1401 = vld [vmem:[%s165 + $0x58] sm:$0xf]
      %v1402 = vld [vmem:[%s165 + $0x5c] sm:$0xf]
      %v1403 = vld [vmem:[%s165 + $0x60] sm:$0xf]
      %v1404 = vld [vmem:[%s165 + $0x64] sm:$0xf]
      %v1405 = vld [vmem:[%s165 + $0x68] sm:$0xf]
      %v1406 = vld [vmem:[%s165 + $0x6c] sm:$0xf]
      %v1407 = vld [vmem:[%s165 + $0x70] sm:$0xf]
      %v1408 = vld [vmem:[%s165 + $0x74] sm:$0xf]
      %v1409 = vld [vmem:[%s165 + $0x78] sm:$0xf]
      %v1410 = vld [vmem:[%s165 + $0x7c] sm:$0xf]
      %v1411 = vld [vmem:[%s165 + $0x80] sm:$0xf]
      %v1412 = vld [vmem:[%s165 + $0x84] sm:$0xf]
      %v1413 = vld [vmem:[%s165 + $0x88] sm:$0xf]
      %v1414 = vld [vmem:[%s165 + $0x8c] sm:$0xf]
      %v1415 = vld [vmem:[%s165 + $0x90] sm:$0xf]
      %v1416 = vld [vmem:[%s165 + $0x94] sm:$0xf]
      %v1417 = vld [vmem:[%s165 + $0x98] sm:$0xf]
      %v1418 = vld [vmem:[%s165 + $0x9c] sm:$0xf]
      %v1419 = vld [vmem:[%s165 + $0xa0] sm:$0xf]
      %v1420 = vld [vmem:[%s165 + $0xa4] sm:$0xf]
      %s1421 = scalar_lea.vmem %s1, 20
      %v1422 = vld [vmem:[%s1421] sm:$0x7]
      %v1455 = vunpack.c.l.b16 %v1389
      %v1456 = vunpack.c.l.b16 %v1390
      %v1457 = vunpack.c.l.b16 %v1391
      %v1458 = vunpack.c.l.b16 %v1392
      %v1459 = vunpack.c.l.b16 %v1393
      %v1460 = vunpack.c.l.b16 %v1394
      %v1461 = vunpack.c.l.b16 %v1395
      %v1462 = vunpack.c.l.b16 %v1396
      %v1463 = vunpack.c.l.b16 %v1397
      %v1464 = vunpack.c.l.b16 %v1398
      %v1465 = vunpack.c.l.b16 %v1399
      %v1466 = vunpack.c.l.b16 %v1400
      %v1467 = vunpack.c.l.b16 %v1401
      %v1468 = vunpack.c.l.b16 %v1402
      %v1469 = vunpack.c.l.b16 %v1403
      %v1470 = vunpack.c.l.b16 %v1404
      %v1471 = vunpack.c.l.b16 %v1405
      %v1472 = vunpack.c.l.b16 %v1406
      %v1473 = vunpack.c.l.b16 %v1407
      %v1474 = vunpack.c.l.b16 %v1408
      %v1475 = vunpack.c.l.b16 %v1409
      %v1476 = vunpack.c.l.b16 %v1410
      %v1477 = vunpack.c.l.b16 %v1411
      %v1478 = vunpack.c.l.b16 %v1412
      %v1479 = vunpack.c.l.b16 %v1413
      %v1480 = vunpack.c.l.b16 %v1414
      %v1481 = vunpack.c.l.b16 %v1415
      %v1482 = vunpack.c.l.b16 %v1416
      %v1483 = vunpack.c.l.b16 %v1417
      %v1484 = vunpack.c.l.b16 %v1418
      %v1485 = vunpack.c.l.b16 %v1419
      %v1486 = vunpack.c.l.b16 %v1420
      %v1487 = vpack.c.b16 %v1456, %v1455
      %v1488 = vpack.c.b16 %v1458, %v1457
      %v1489 = vpack.c.b16 %v1460, %v1459
      %v1490 = vpack.c.b16 %v1462, %v1461
      %v1491 = vpack.c.b16 %v1464, %v1463
      %v1492 = vpack.c.b16 %v1466, %v1465
      %v1493 = vpack.c.b16 %v1468, %v1467
      %v1494 = vpack.c.b16 %v1470, %v1469
      %v1495 = vpack.c.b16 %v1472, %v1471
      %v1496 = vpack.c.b16 %v1474, %v1473
      %v1497 = vpack.c.b16 %v1476, %v1475
      %v1498 = vpack.c.b16 %v1478, %v1477
      %v1499 = vpack.c.b16 %v1480, %v1479
      %v1500 = vpack.c.b16 %v1482, %v1481
      %v1501 = vpack.c.b16 %v1484, %v1483
      %v1502 = vpack.c.b16 %v1486, %v1485
      %v1504 = vsel %vm289, %v1487, 0
      %v1507 = vsel %vm289, %v1488, 0
      %v1510 = vsel %vm289, %v1489, 0
      %v1513 = vsel %vm289, %v1490, 0
      %v1516 = vsel %vm289, %v1491, 0
      %v1519 = vsel %vm289, %v1492, 0
      %v1522 = vsel %vm289, %v1493, 0
      %v1525 = vsel %vm289, %v1494, 0
      %v1528 = vsel %vm289, %v1495, 0
      %v1531 = vsel %vm289, %v1496, 0
      %v1534 = vsel %vm289, %v1497, 0
      %v1537 = vsel %vm289, %v1498, 0
      %v1540 = vsel %vm289, %v1499, 0
      %v1543 = vsel %vm289, %v1500, 0
      %v1546 = vsel %vm289, %v1501, 0
      %v1549 = vsel %vm289, %v1502, 0
      %v1552 = vsel %vm338, %v1422, 0
      %1554 = vmatpush.bf16.msra.mxu0 0
      %1555 = vmatpush.bf16.msra.mxu0 0
      %1556 = vmatpush.bf16.msra.mxu0 0
      %1557 = vmatpush.bf16.msra.mxu0 0
      %1558 = vmatpush.bf16.msra.mxu0 0
      %1559 = vmatpush.bf16.msra.mxu0 0
      %1560 = vmatpush.bf16.msra.mxu0 0
      %1561 = vmatpush.bf16.msra.mxu0 %v1552
      %1562 = vmatmul.bf16.gmra.mxu0 %v1504
      %v1563 = vpop.f32.mrf.mxu0
      %v1564 = vadd.f32 0.0, %v1563
      %v1565 = vpop.f32.mrf.mxu0
      %v1566 = vadd.f32 0.0, %v1565
      %1567 = vmatmul.bf16.gmra.mxu0 %v1507
      %v1568 = vpop.f32.mrf.mxu0
      %v1569 = vadd.f32 0.0, %v1568
      %v1570 = vpop.f32.mrf.mxu0
      %v1571 = vadd.f32 0.0, %v1570
      %1572 = vmatmul.bf16.gmra.mxu0 %v1510
      %v1573 = vpop.f32.mrf.mxu0
      %v1574 = vadd.f32 0.0, %v1573
      %v1575 = vpop.f32.mrf.mxu0
      %v1576 = vadd.f32 0.0, %v1575
      %1577 = vmatmul.bf16.gmra.mxu0 %v1513
      %v1578 = vpop.f32.mrf.mxu0
      %v1579 = vadd.f32 0.0, %v1578
      %v1580 = vpop.f32.mrf.mxu0
      %v1581 = vadd.f32 0.0, %v1580
      %1582 = vmatmul.bf16.gmra.mxu0 %v1516
      %v1583 = vpop.f32.mrf.mxu0
      %v1584 = vadd.f32 0.0, %v1583
      %v1585 = vpop.f32.mrf.mxu0
      %v1586 = vadd.f32 0.0, %v1585
      %1587 = vmatmul.bf16.gmra.mxu0 %v1519
      %v1588 = vpop.f32.mrf.mxu0
      %v1589 = vadd.f32 0.0, %v1588
      %v1590 = vpop.f32.mrf.mxu0
      %v1591 = vadd.f32 0.0, %v1590
      %1592 = vmatmul.bf16.gmra.mxu0 %v1522
      %v1593 = vpop.f32.mrf.mxu0
      %v1594 = vadd.f32 0.0, %v1593
      %v1595 = vpop.f32.mrf.mxu0
      %v1596 = vadd.f32 0.0, %v1595
      %1597 = vmatmul.bf16.gmra.mxu0 %v1525
      %v1598 = vpop.f32.mrf.mxu0
      %v1599 = vadd.f32 0.0, %v1598
      %v1600 = vpop.f32.mrf.mxu0
      %v1601 = vadd.f32 0.0, %v1600
      %1602 = vmatmul.bf16.gmra.mxu0 %v1528
      %v1603 = vpop.f32.mrf.mxu0
      %v1604 = vadd.f32 0.0, %v1603
      %v1605 = vpop.f32.mrf.mxu0
      %v1606 = vadd.f32 0.0, %v1605
      %1607 = vmatmul.bf16.gmra.mxu0 %v1531
      %v1608 = vpop.f32.mrf.mxu0
      %v1609 = vadd.f32 0.0, %v1608
      %v1610 = vpop.f32.mrf.mxu0
      %v1611 = vadd.f32 0.0, %v1610
      %1612 = vmatmul.bf16.gmra.mxu0 %v1534
      %v1613 = vpop.f32.mrf.mxu0
      %v1614 = vadd.f32 0.0, %v1613
      %v1615 = vpop.f32.mrf.mxu0
      %v1616 = vadd.f32 0.0, %v1615
      %1617 = vmatmul.bf16.gmra.mxu0 %v1537
      %v1618 = vpop.f32.mrf.mxu0
      %v1619 = vadd.f32 0.0, %v1618
      %v1620 = vpop.f32.mrf.mxu0
      %v1621 = vadd.f32 0.0, %v1620
      %1622 = vmatmul.bf16.gmra.mxu0 %v1540
      %v1623 = vpop.f32.mrf.mxu0
      %v1624 = vadd.f32 0.0, %v1623
      %v1625 = vpop.f32.mrf.mxu0
      %v1626 = vadd.f32 0.0, %v1625
      %1627 = vmatmul.bf16.gmra.mxu0 %v1543
      %v1628 = vpop.f32.mrf.mxu0
      %v1629 = vadd.f32 0.0, %v1628
      %v1630 = vpop.f32.mrf.mxu0
      %v1631 = vadd.f32 0.0, %v1630
      %1632 = vmatmul.bf16.gmra.mxu0 %v1546
      %v1633 = vpop.f32.mrf.mxu0
      %v1634 = vadd.f32 0.0, %v1633
      %v1635 = vpop.f32.mrf.mxu0
      %v1636 = vadd.f32 0.0, %v1635
      %1637 = vmatmul.bf16.gmra.mxu0 %v1549
      %v1638 = vpop.f32.mrf.mxu0
      %v1639 = vadd.f32 0.0, %v1638
      %v1640 = vpop.f32.mrf.mxu0
      %v1641 = vadd.f32 0.0, %v1640
      %1642 = vdwg.mxu0
      %v1643 = vadd.f32 %v1357, %v1564
      %v1644 = vadd.f32 %v1358, %v1566
      %v1645 = vadd.f32 %v1359, %v1569
      %v1646 = vadd.f32 %v1360, %v1571
      %v1647 = vadd.f32 %v1361, %v1574
      %v1648 = vadd.f32 %v1362, %v1576
      %v1649 = vadd.f32 %v1363, %v1579
      %v1650 = vadd.f32 %v1364, %v1581
      %v1651 = vadd.f32 %v1365, %v1584
      %v1652 = vadd.f32 %v1366, %v1586
      %v1653 = vadd.f32 %v1367, %v1589
      %v1654 = vadd.f32 %v1368, %v1591
      %v1655 = vadd.f32 %v1369, %v1594
      %v1656 = vadd.f32 %v1370, %v1596
      %v1657 = vadd.f32 %v1371, %v1599
      %v1658 = vadd.f32 %v1372, %v1601
      %v1659 = vadd.f32 %v1373, %v1604
      %v1660 = vadd.f32 %v1374, %v1606
      %v1661 = vadd.f32 %v1375, %v1609
      %v1662 = vadd.f32 %v1376, %v1611
      %v1663 = vadd.f32 %v1377, %v1614
      %v1664 = vadd.f32 %v1378, %v1616
      %v1665 = vadd.f32 %v1379, %v1619
      %v1666 = vadd.f32 %v1380, %v1621
      %v1667 = vadd.f32 %v1381, %v1624
      %v1668 = vadd.f32 %v1382, %v1626
      %v1669 = vadd.f32 %v1383, %v1629
      %v1670 = vadd.f32 %v1384, %v1631
      %v1671 = vadd.f32 %v1385, %v1634
      %v1672 = vadd.f32 %v1386, %v1636
      %v1673 = vadd.f32 %v1387, %v1639
      %v1674 = vadd.f32 %v1388, %v1641
      %v1675 = vld [vmem:[%s165 + $0x30] sm:$0xf]
      %v1676 = vld [vmem:[%s165 + $0x34] sm:$0xf]
      %v1677 = vld [vmem:[%s165 + $0x38] sm:$0xf]
      %v1678 = vld [vmem:[%s165 + $0x3c] sm:$0xf]
      %v1679 = vld [vmem:[%s165 + $0x40] sm:$0xf]
      %v1680 = vld [vmem:[%s165 + $0x44] sm:$0xf]
      %v1681 = vld [vmem:[%s165 + $0x48] sm:$0xf]
      %v1682 = vld [vmem:[%s165 + $0x4c] sm:$0xf]
      %v1683 = vld [vmem:[%s165 + $0x50] sm:$0xf]
      %v1684 = vld [vmem:[%s165 + $0x54] sm:$0xf]
      %v1685 = vld [vmem:[%s165 + $0x58] sm:$0xf]
      %v1686 = vld [vmem:[%s165 + $0x5c] sm:$0xf]
      %v1687 = vld [vmem:[%s165 + $0x60] sm:$0xf]
      %v1688 = vld [vmem:[%s165 + $0x64] sm:$0xf]
      %v1689 = vld [vmem:[%s165 + $0x68] sm:$0xf]
      %v1690 = vld [vmem:[%s165 + $0x6c] sm:$0xf]
      %v1691 = vld [vmem:[%s165 + $0x70] sm:$0xf]
      %v1692 = vld [vmem:[%s165 + $0x74] sm:$0xf]
      %v1693 = vld [vmem:[%s165 + $0x78] sm:$0xf]
      %v1694 = vld [vmem:[%s165 + $0x7c] sm:$0xf]
      %v1695 = vld [vmem:[%s165 + $0x80] sm:$0xf]
      %v1696 = vld [vmem:[%s165 + $0x84] sm:$0xf]
      %v1697 = vld [vmem:[%s165 + $0x88] sm:$0xf]
      %v1698 = vld [vmem:[%s165 + $0x8c] sm:$0xf]
      %v1699 = vld [vmem:[%s165 + $0x90] sm:$0xf]
      %v1700 = vld [vmem:[%s165 + $0x94] sm:$0xf]
      %v1701 = vld [vmem:[%s165 + $0x98] sm:$0xf]
      %v1702 = vld [vmem:[%s165 + $0x9c] sm:$0xf]
      %v1703 = vld [vmem:[%s165 + $0xa0] sm:$0xf]
      %v1704 = vld [vmem:[%s165 + $0xa4] sm:$0xf]
      %v1705 = vld [vmem:[%s165 + $0xa8] sm:$0xf]
      %v1706 = vld [vmem:[%s165 + $0xac] sm:$0xf]
      %s1707 = scalar_lea.vmem %s1, 24
      %v1708 = vld [vmem:[%s1707] sm:$0x7]
      %v1741 = vunpack.c.l.b16 %v1675
      %v1742 = vunpack.c.l.b16 %v1676
      %v1743 = vunpack.c.l.b16 %v1677
      %v1744 = vunpack.c.l.b16 %v1678
      %v1745 = vunpack.c.l.b16 %v1679
      %v1746 = vunpack.c.l.b16 %v1680
      %v1747 = vunpack.c.l.b16 %v1681
      %v1748 = vunpack.c.l.b16 %v1682
      %v1749 = vunpack.c.l.b16 %v1683
      %v1750 = vunpack.c.l.b16 %v1684
      %v1751 = vunpack.c.l.b16 %v1685
      %v1752 = vunpack.c.l.b16 %v1686
      %v1753 = vunpack.c.l.b16 %v1687
      %v1754 = vunpack.c.l.b16 %v1688
      %v1755 = vunpack.c.l.b16 %v1689
      %v1756 = vunpack.c.l.b16 %v1690
      %v1757 = vunpack.c.l.b16 %v1691
      %v1758 = vunpack.c.l.b16 %v1692
      %v1759 = vunpack.c.l.b16 %v1693
      %v1760 = vunpack.c.l.b16 %v1694
      %v1761 = vunpack.c.l.b16 %v1695
      %v1762 = vunpack.c.l.b16 %v1696
      %v1763 = vunpack.c.l.b16 %v1697
      %v1764 = vunpack.c.l.b16 %v1698
      %v1765 = vunpack.c.l.b16 %v1699
      %v1766 = vunpack.c.l.b16 %v1700
      %v1767 = vunpack.c.l.b16 %v1701
      %v1768 = vunpack.c.l.b16 %v1702
      %v1769 = vunpack.c.l.b16 %v1703
      %v1770 = vunpack.c.l.b16 %v1704
      %v1771 = vunpack.c.l.b16 %v1705
      %v1772 = vunpack.c.l.b16 %v1706
      %v1773 = vpack.c.b16 %v1742, %v1741
      %v1774 = vpack.c.b16 %v1744, %v1743
      %v1775 = vpack.c.b16 %v1746, %v1745
      %v1776 = vpack.c.b16 %v1748, %v1747
      %v1777 = vpack.c.b16 %v1750, %v1749
      %v1778 = vpack.c.b16 %v1752, %v1751
      %v1779 = vpack.c.b16 %v1754, %v1753
      %v1780 = vpack.c.b16 %v1756, %v1755
      %v1781 = vpack.c.b16 %v1758, %v1757
      %v1782 = vpack.c.b16 %v1760, %v1759
      %v1783 = vpack.c.b16 %v1762, %v1761
      %v1784 = vpack.c.b16 %v1764, %v1763
      %v1785 = vpack.c.b16 %v1766, %v1765
      %v1786 = vpack.c.b16 %v1768, %v1767
      %v1787 = vpack.c.b16 %v1770, %v1769
      %v1788 = vpack.c.b16 %v1772, %v1771
      %v1790 = vsel %vm289, %v1773, 0
      %v1793 = vsel %vm289, %v1774, 0
      %v1796 = vsel %vm289, %v1775, 0
      %v1799 = vsel %vm289, %v1776, 0
      %v1802 = vsel %vm289, %v1777, 0
      %v1805 = vsel %vm289, %v1778, 0
      %v1808 = vsel %vm289, %v1779, 0
      %v1811 = vsel %vm289, %v1780, 0
      %v1814 = vsel %vm289, %v1781, 0
      %v1817 = vsel %vm289, %v1782, 0
      %v1820 = vsel %vm289, %v1783, 0
      %v1823 = vsel %vm289, %v1784, 0
      %v1826 = vsel %vm289, %v1785, 0
      %v1829 = vsel %vm289, %v1786, 0
      %v1832 = vsel %vm289, %v1787, 0
      %v1835 = vsel %vm289, %v1788, 0
      %v1838 = vsel %vm338, %v1708, 0
      %1840 = vmatpush.bf16.msra.mxu0 0
      %1841 = vmatpush.bf16.msra.mxu0 0
      %1842 = vmatpush.bf16.msra.mxu0 0
      %1843 = vmatpush.bf16.msra.mxu0 0
      %1844 = vmatpush.bf16.msra.mxu0 0
      %1845 = vmatpush.bf16.msra.mxu0 0
      %1846 = vmatpush.bf16.msra.mxu0 0
      %1847 = vmatpush.bf16.msra.mxu0 %v1838
      %1848 = vmatmul.bf16.gmra.mxu0 %v1790
      %v1849 = vpop.f32.mrf.mxu0
      %v1850 = vadd.f32 0.0, %v1849
      %v1851 = vpop.f32.mrf.mxu0
      %v1852 = vadd.f32 0.0, %v1851
      %1853 = vmatmul.bf16.gmra.mxu0 %v1793
      %v1854 = vpop.f32.mrf.mxu0
      %v1855 = vadd.f32 0.0, %v1854
      %v1856 = vpop.f32.mrf.mxu0
      %v1857 = vadd.f32 0.0, %v1856
      %1858 = vmatmul.bf16.gmra.mxu0 %v1796
      %v1859 = vpop.f32.mrf.mxu0
      %v1860 = vadd.f32 0.0, %v1859
      %v1861 = vpop.f32.mrf.mxu0
      %v1862 = vadd.f32 0.0, %v1861
      %1863 = vmatmul.bf16.gmra.mxu0 %v1799
      %v1864 = vpop.f32.mrf.mxu0
      %v1865 = vadd.f32 0.0, %v1864
      %v1866 = vpop.f32.mrf.mxu0
      %v1867 = vadd.f32 0.0, %v1866
      %1868 = vmatmul.bf16.gmra.mxu0 %v1802
      %v1869 = vpop.f32.mrf.mxu0
      %v1870 = vadd.f32 0.0, %v1869
      %v1871 = vpop.f32.mrf.mxu0
      %v1872 = vadd.f32 0.0, %v1871
      %1873 = vmatmul.bf16.gmra.mxu0 %v1805
      %v1874 = vpop.f32.mrf.mxu0
      %v1875 = vadd.f32 0.0, %v1874
      %v1876 = vpop.f32.mrf.mxu0
      %v1877 = vadd.f32 0.0, %v1876
      %1878 = vmatmul.bf16.gmra.mxu0 %v1808
      %v1879 = vpop.f32.mrf.mxu0
      %v1880 = vadd.f32 0.0, %v1879
      %v1881 = vpop.f32.mrf.mxu0
      %v1882 = vadd.f32 0.0, %v1881
      %1883 = vmatmul.bf16.gmra.mxu0 %v1811
      %v1884 = vpop.f32.mrf.mxu0
      %v1885 = vadd.f32 0.0, %v1884
      %v1886 = vpop.f32.mrf.mxu0
      %v1887 = vadd.f32 0.0, %v1886
      %1888 = vmatmul.bf16.gmra.mxu0 %v1814
      %v1889 = vpop.f32.mrf.mxu0
      %v1890 = vadd.f32 0.0, %v1889
      %v1891 = vpop.f32.mrf.mxu0
      %v1892 = vadd.f32 0.0, %v1891
      %1893 = vmatmul.bf16.gmra.mxu0 %v1817
      %v1894 = vpop.f32.mrf.mxu0
      %v1895 = vadd.f32 0.0, %v1894
      %v1896 = vpop.f32.mrf.mxu0
      %v1897 = vadd.f32 0.0, %v1896
      %1898 = vmatmul.bf16.gmra.mxu0 %v1820
      %v1899 = vpop.f32.mrf.mxu0
      %v1900 = vadd.f32 0.0, %v1899
      %v1901 = vpop.f32.mrf.mxu0
      %v1902 = vadd.f32 0.0, %v1901
      %1903 = vmatmul.bf16.gmra.mxu0 %v1823
      %v1904 = vpop.f32.mrf.mxu0
      %v1905 = vadd.f32 0.0, %v1904
      %v1906 = vpop.f32.mrf.mxu0
      %v1907 = vadd.f32 0.0, %v1906
      %1908 = vmatmul.bf16.gmra.mxu0 %v1826
      %v1909 = vpop.f32.mrf.mxu0
      %v1910 = vadd.f32 0.0, %v1909
      %v1911 = vpop.f32.mrf.mxu0
      %v1912 = vadd.f32 0.0, %v1911
      %1913 = vmatmul.bf16.gmra.mxu0 %v1829
      %v1914 = vpop.f32.mrf.mxu0
      %v1915 = vadd.f32 0.0, %v1914
      %v1916 = vpop.f32.mrf.mxu0
      %v1917 = vadd.f32 0.0, %v1916
      %1918 = vmatmul.bf16.gmra.mxu0 %v1832
      %v1919 = vpop.f32.mrf.mxu0
      %v1920 = vadd.f32 0.0, %v1919
      %v1921 = vpop.f32.mrf.mxu0
      %v1922 = vadd.f32 0.0, %v1921
      %1923 = vmatmul.bf16.gmra.mxu0 %v1835
      %v1924 = vpop.f32.mrf.mxu0
      %v1925 = vadd.f32 0.0, %v1924
      %v1926 = vpop.f32.mrf.mxu0
      %v1927 = vadd.f32 0.0, %v1926
      %1928 = vdwg.mxu0
      %v1929 = vadd.f32 %v1643, %v1850
      %v1930 = vadd.f32 %v1644, %v1852
      %v1931 = vadd.f32 %v1645, %v1855
      %v1932 = vadd.f32 %v1646, %v1857
      %v1933 = vadd.f32 %v1647, %v1860
      %v1934 = vadd.f32 %v1648, %v1862
      %v1935 = vadd.f32 %v1649, %v1865
      %v1936 = vadd.f32 %v1650, %v1867
      %v1937 = vadd.f32 %v1651, %v1870
      %v1938 = vadd.f32 %v1652, %v1872
      %v1939 = vadd.f32 %v1653, %v1875
      %v1940 = vadd.f32 %v1654, %v1877
      %v1941 = vadd.f32 %v1655, %v1880
      %v1942 = vadd.f32 %v1656, %v1882
      %v1943 = vadd.f32 %v1657, %v1885
      %v1944 = vadd.f32 %v1658, %v1887
      %v1945 = vadd.f32 %v1659, %v1890
      %v1946 = vadd.f32 %v1660, %v1892
      %v1947 = vadd.f32 %v1661, %v1895
      %v1948 = vadd.f32 %v1662, %v1897
      %v1949 = vadd.f32 %v1663, %v1900
      %v1950 = vadd.f32 %v1664, %v1902
      %v1951 = vadd.f32 %v1665, %v1905
      %v1952 = vadd.f32 %v1666, %v1907
      %v1953 = vadd.f32 %v1667, %v1910
      %v1954 = vadd.f32 %v1668, %v1912
      %v1955 = vadd.f32 %v1669, %v1915
      %v1956 = vadd.f32 %v1670, %v1917
      %v1957 = vadd.f32 %v1671, %v1920
      %v1958 = vadd.f32 %v1672, %v1922
      %v1959 = vadd.f32 %v1673, %v1925
      %v1960 = vadd.f32 %v1674, %v1927
      %v1961 = vld [vmem:[%s2] sm:$0x1]
      %v1963 = vperm.slane %v1961, 0
      %v1965 = vadd.f32 %v1929, %v1963
      %v1966 = vadd.f32 %v1930, %v1963
      %v1967 = vadd.f32 %v1931, %v1963
      %v1968 = vadd.f32 %v1932, %v1963
      %v1969 = vadd.f32 %v1933, %v1963
      %v1970 = vadd.f32 %v1934, %v1963
      %v1971 = vadd.f32 %v1935, %v1963
      %v1972 = vadd.f32 %v1936, %v1963
      %v1973 = vadd.f32 %v1937, %v1963
      %v1974 = vadd.f32 %v1938, %v1963
      %v1975 = vadd.f32 %v1939, %v1963
      %v1976 = vadd.f32 %v1940, %v1963
      %v1977 = vadd.f32 %v1941, %v1963
      %v1978 = vadd.f32 %v1942, %v1963
      %v1979 = vadd.f32 %v1943, %v1963
      %v1980 = vadd.f32 %v1944, %v1963
      %v1981 = vadd.f32 %v1945, %v1963
      %v1982 = vadd.f32 %v1946, %v1963
      %v1983 = vadd.f32 %v1947, %v1963
      %v1984 = vadd.f32 %v1948, %v1963
      %v1985 = vadd.f32 %v1949, %v1963
      %v1986 = vadd.f32 %v1950, %v1963
      %v1987 = vadd.f32 %v1951, %v1963
      %v1988 = vadd.f32 %v1952, %v1963
      %v1989 = vadd.f32 %v1953, %v1963
      %v1990 = vadd.f32 %v1954, %v1963
      %v1991 = vadd.f32 %v1955, %v1963
      %v1992 = vadd.f32 %v1956, %v1963
      %v1993 = vadd.f32 %v1957, %v1963
      %v1994 = vadd.f32 %v1958, %v1963
      %v1995 = vadd.f32 %v1959, %v1963
      %v1996 = vadd.f32 %v1960, %v1963
      %v1997 = vmax.f32 %v1965, 0.0
      %v1998 = vmax.f32 %v1966, 0.0
      %v1999 = vmax.f32 %v1967, 0.0
      %v2000 = vmax.f32 %v1968, 0.0
      %v2001 = vmax.f32 %v1969, 0.0
      %v2002 = vmax.f32 %v1970, 0.0
      %v2003 = vmax.f32 %v1971, 0.0
      %v2004 = vmax.f32 %v1972, 0.0
      %v2005 = vmax.f32 %v1973, 0.0
      %v2006 = vmax.f32 %v1974, 0.0
      %v2007 = vmax.f32 %v1975, 0.0
      %v2008 = vmax.f32 %v1976, 0.0
      %v2009 = vmax.f32 %v1977, 0.0
      %v2010 = vmax.f32 %v1978, 0.0
      %v2011 = vmax.f32 %v1979, 0.0
      %v2012 = vmax.f32 %v1980, 0.0
      %v2013 = vmax.f32 %v1981, 0.0
      %v2014 = vmax.f32 %v1982, 0.0
      %v2015 = vmax.f32 %v1983, 0.0
      %v2016 = vmax.f32 %v1984, 0.0
      %v2017 = vmax.f32 %v1985, 0.0
      %v2018 = vmax.f32 %v1986, 0.0
      %v2019 = vmax.f32 %v1987, 0.0
      %v2020 = vmax.f32 %v1988, 0.0
      %v2021 = vmax.f32 %v1989, 0.0
      %v2022 = vmax.f32 %v1990, 0.0
      %v2023 = vmax.f32 %v1991, 0.0
      %v2024 = vmax.f32 %v1992, 0.0
      %v2025 = vmax.f32 %v1993, 0.0
      %v2026 = vmax.f32 %v1994, 0.0
      %v2027 = vmax.f32 %v1995, 0.0
      %v2028 = vmax.f32 %v1996, 0.0
      %v2029 = vpack.c.bf16 %v1997, %v1997
      %v2030 = vpack.c.bf16 %v1998, %v1998
      %v2031 = vpack.c.bf16 %v1999, %v1999
      %v2032 = vpack.c.bf16 %v2000, %v2000
      %v2033 = vpack.c.bf16 %v2001, %v2001
      %v2034 = vpack.c.bf16 %v2002, %v2002
      %v2035 = vpack.c.bf16 %v2003, %v2003
      %v2036 = vpack.c.bf16 %v2004, %v2004
      %v2037 = vpack.c.bf16 %v2005, %v2005
      %v2038 = vpack.c.bf16 %v2006, %v2006
      %v2039 = vpack.c.bf16 %v2007, %v2007
      %v2040 = vpack.c.bf16 %v2008, %v2008
      %v2041 = vpack.c.bf16 %v2009, %v2009
      %v2042 = vpack.c.bf16 %v2010, %v2010
      %v2043 = vpack.c.bf16 %v2011, %v2011
      %v2044 = vpack.c.bf16 %v2012, %v2012
      %v2045 = vpack.c.bf16 %v2013, %v2013
      %v2046 = vpack.c.bf16 %v2014, %v2014
      %v2047 = vpack.c.bf16 %v2015, %v2015
      %v2048 = vpack.c.bf16 %v2016, %v2016
      %v2049 = vpack.c.bf16 %v2017, %v2017
      %v2050 = vpack.c.bf16 %v2018, %v2018
      %v2051 = vpack.c.bf16 %v2019, %v2019
      %v2052 = vpack.c.bf16 %v2020, %v2020
      %v2053 = vpack.c.bf16 %v2021, %v2021
      %v2054 = vpack.c.bf16 %v2022, %v2022
      %v2055 = vpack.c.bf16 %v2023, %v2023
      %v2056 = vpack.c.bf16 %v2024, %v2024
      %v2057 = vpack.c.bf16 %v2025, %v2025
      %v2058 = vpack.c.bf16 %v2026, %v2026
      %v2059 = vpack.c.bf16 %v2027, %v2027
      %v2060 = vpack.c.bf16 %v2028, %v2028
      %2061 = vst [vmem:[%s170] sm:$0xf] %v2029
      %2062 = vst [vmem:[%s170 + $0x4] sm:$0xf] %v2030
      %2063 = vst [vmem:[%s170 + $0x8] sm:$0xf] %v2031
      %2064 = vst [vmem:[%s170 + $0xc] sm:$0xf] %v2032
      %2065 = vst [vmem:[%s170 + $0x10] sm:$0xf] %v2033
      %2066 = vst [vmem:[%s170 + $0x14] sm:$0xf] %v2034
      %2067 = vst [vmem:[%s170 + $0x18] sm:$0xf] %v2035
      %2068 = vst [vmem:[%s170 + $0x1c] sm:$0xf] %v2036
      %2069 = vst [vmem:[%s170 + $0x20] sm:$0xf] %v2037
      %2070 = vst [vmem:[%s170 + $0x24] sm:$0xf] %v2038
      %2071 = vst [vmem:[%s170 + $0x28] sm:$0xf] %v2039
      %2072 = vst [vmem:[%s170 + $0x2c] sm:$0xf] %v2040
      %2073 = vst [vmem:[%s170 + $0x30] sm:$0xf] %v2041
      %2074 = vst [vmem:[%s170 + $0x34] sm:$0xf] %v2042
      %2075 = vst [vmem:[%s170 + $0x38] sm:$0xf] %v2043
      %2076 = vst [vmem:[%s170 + $0x3c] sm:$0xf] %v2044
      %2077 = vst [vmem:[%s170 + $0x40] sm:$0xf] %v2045
      %2078 = vst [vmem:[%s170 + $0x44] sm:$0xf] %v2046
      %2079 = vst [vmem:[%s170 + $0x48] sm:$0xf] %v2047
      %2080 = vst [vmem:[%s170 + $0x4c] sm:$0xf] %v2048
      %2081 = vst [vmem:[%s170 + $0x50] sm:$0xf] %v2049
      %2082 = vst [vmem:[%s170 + $0x54] sm:$0xf] %v2050
      %2083 = vst [vmem:[%s170 + $0x58] sm:$0xf] %v2051
      %2084 = vst [vmem:[%s170 + $0x5c] sm:$0xf] %v2052
      %2085 = vst [vmem:[%s170 + $0x60] sm:$0xf] %v2053
      %2086 = vst [vmem:[%s170 + $0x64] sm:$0xf] %v2054
      %2087 = vst [vmem:[%s170 + $0x68] sm:$0xf] %v2055
      %2088 = vst [vmem:[%s170 + $0x6c] sm:$0xf] %v2056
      %2089 = vst [vmem:[%s170 + $0x70] sm:$0xf] %v2057
      %2090 = vst [vmem:[%s170 + $0x74] sm:$0xf] %v2058
      %2091 = vst [vmem:[%s170 + $0x78] sm:$0xf] %v2059
      %2092 = vst [vmem:[%s170 + $0x7c] sm:$0xf] %v2060
      %p2093 = scmp.lt.s32.totalorder %s14, 1
      %s2094 = scalar_select %p2093, %s14, 1
      %s2095 = smul.addr %s2094, 32
      %s2096 = smul.addr %s2095, 4
      %s2097 = scalar_lea.vmem %s3, %s2096
      // Predicated region
      $region33: #{inception_b_forward.11} parent=31 // pred_check
        %p2098 = pneg %p100
      $region34: #{inception_b_forward.11} parent=31 // pred_check_branch
        %2100 = sbr.rel (%p2098) target = $region36
      $region35: #{inception_b_forward.11} parent=31 // pred_region
        _
      $region36: #{inception_b_forward.11} parent=31 // pred_fallthru
        _
    $region32: #{inception_b_forward.11} parent=5 // pred_fallthru
      _
    %p2101 = scmp.le.s32.totalorder 2, %s9
    // Predicated region
    $region37: #{inception_b_forward.11} parent=5 // pred_check
      %p2102 = pneg %p2101
    $region38: #{inception_b_forward.11} parent=5 // pred_check_branch
      %2104 = sbr.rel (%p2102) target = $region40
    $region39: #{inception_b_forward.11} parent=5 // pred_region
      %s2105 = ssub.s32 %s9, 2
      // Predicated region
      $region41: #{inception_b_forward.11} parent=39 // pred_check
        %p2106 = pneg %p106
      $region42: #{inception_b_forward.11} parent=39 // pred_check_branch
        %2108 = sbr.rel (%p2106) target = $region44
      $region43: #{inception_b_forward.11} parent=39 // pred_region
        %p2109 = scmp.lt.s32.totalorder %s15, 1
        %s2110 = scalar_select %p2109, %s15, 1
        %s2111 = smul.addr %s2110, 32
        %s2112 = smul.addr %s2111, 4
        %s2113 = scalar_lea.vmem %s3, %s2112
      $region44: #{inception_b_forward.11} parent=39 // pred_fallthru
        _
    $region40: #{inception_b_forward.11} parent=5 // pred_fallthru
      _
  $region6: #{inception_b_forward.11} parent=0 // loop_footer
    %s13 = sadd.s32 1, %s9
  $region7: #{inception_b_forward.11} parent=0 // loop_footer_branch
    %8 = sbr.rel target = $region3
  $region8: #{inception_b_forward.11} parent=0 // loop_exit
    _

// kernel: inception_b_forward.12
$region0: #{inception_b_forward.12}
  #allocation0 [shape = 'u32[]', space=smem, size = 0x4, offset = 0x4, fixed_abs, tag = 'smem constant byte address 0x4 - core index']
  #allocation1 [shape = 'u32[72,128]{1,0:T(1,128)}', space=vmem, size = 0x9000, scoped, tag = 'internal scratch']
  %s0 = inlined_call_operand.vmem [shape: bf16[2,352,128], index: 0, kind: input, shape index: {}]
  %s1 = inlined_call_operand.vmem [shape: bf16[7,128,128], index: 1, kind: input, shape index: {}]
  %s2 = inlined_call_operand.vmem [shape: f32[1,128], index: 2, kind: input, shape index: {}]
  %s3 = inlined_call_operand.vmem [shape: bf16[2,256,128], index: 3, kind: output, shape index: {}]
  %s4 = sld [smem:[#allocation0]]
  $region45: #{inception_b_forward.12} parent=0
    _
  %s6 = ssub.s32 1, %s4
  %s7 = scalar_select 0, %s6, %s4
  loop: start=0, step=1, limit=4
  $region2: #{inception_b_forward.12} parent=0 // loop_pre_header
    _
  $region3: #{inception_b_forward.12} parent=0 // loop_header
    %s9 = sphi 0, %s13
    %p10 = scmp.ge.s32.totalorder %s9, 4
    %s19 = sphi 0, %s21
    %s22 = sphi 0, %s19
    %s23 = sphi 0, %s22
    %s39 = sphi 0, %s23
    %s43 = sphi 0, %s43
    %s45 = sphi 0, %s43
    %s46 = sphi 0, %s45
    %s60 = sphi 0, %s46
    %s64 = sphi 0, %s64
    %s66 = sphi 0, %s64
    %s67 = sphi 0, %s66
    %s81 = sphi 0, %s67
    %s87 = sphi 0, %s89
    %s90 = sphi 0, %s87
    %s91 = sphi 0, %s90
    %s107 = sphi 0, %s91
  $region4: #{inception_b_forward.12} parent=0 // loop_header_branch
    %12 = sbr.rel (%p10) target = $region8
  $region5: #{inception_b_forward.12} parent=0 // loop_body
    %s14 = ssub.s32 %s9, 1
    %s15 = ssub.s32 %s9, 2
    %s16 = sadd.s32 %s9, 1
    %s17 = ssub.s32 %s9, %s16
    %p18 = scmp.eq.s32.totalorder %s17, 0
    %s20 = sadd.s32 %s19, 1
    %s21 = scalar_select %p18, %s19, %s20
    %p24 = pneg %p18
    %p25 = scmp.eq.s32.totalorder %s9, 1
    %p26 = por %p24, %p25
    %p27 = scmp.ne.s32.totalorder %s19, %s22
    %p28 = scmp.eq.s32.totalorder %s9, 0
    %p29 = por %p27, %p28
    %p30 = scmp.ne.s32.totalorder %s19, %s22
    %p31 = scmp.eq.s32.totalorder %s14, 1
    %p32 = por %p30, %p31
    %p33 = scmp.ne.s32.totalorder %s22, %s23
    %p34 = scmp.eq.s32.totalorder %s14, 0
    %p35 = por %p33, %p34
    %p36 = scmp.ne.s32.totalorder %s22, %s23
    %p37 = scmp.eq.s32.totalorder %s15, 1
    %p38 = por %p36, %p37
    %p40 = scmp.ne.s32.totalorder %s23, %s39
    %p41 = scmp.eq.s32.totalorder %s15, 0
    %p42 = por %p40, %p41
    %s44 = sadd.s32 %s43, 1
    %p47 = scmp.eq.s32.totalorder %s9, 1
    %p48 = scmp.ne.s32.totalorder %s43, %s45
    %p49 = scmp.eq.s32.totalorder %s9, 0
    %p50 = por %p48, %p49
    %p51 = scmp.ne.s32.totalorder %s43, %s45
    %p52 = scmp.eq.s32.totalorder %s14, 1
    %p53 = por %p51, %p52
    %p54 = scmp.ne.s32.totalorder %s45, %s46
    %p55 = scmp.eq.s32.totalorder %s14, 0
    %p56 = por %p54, %p55
    %p57 = scmp.ne.s32.totalorder %s45, %s46
    %p58 = scmp.eq.s32.totalorder %s15, 1
    %p59 = por %p57, %p58
    %p61 = scmp.ne.s32.totalorder %s46, %s60
    %p62 = scmp.eq.s32.totalorder %s15, 0
    %p63 = por %p61, %p62
    %s65 = sadd.s32 %s64, 1
    %p68 = scmp.eq.s32.totalorder %s9, 1
    %p69 = scmp.ne.s32.totalorder %s64, %s66
    %p70 = scmp.eq.s32.totalorder %s9, 0
    %p71 = por %p69, %p70
    %p72 = scmp.ne.s32.totalorder %s64, %s66
    %p73 = scmp.eq.s32.totalorder %s14, 1
    %p74 = por %p72, %p73
    %p75 = scmp.ne.s32.totalorder %s66, %s67
    %p76 = scmp.eq.s32.totalorder %s14, 0
    %p77 = por %p75, %p76
    %p78 = scmp.ne.s32.totalorder %s66, %s67
    %p79 = scmp.eq.s32.totalorder %s15, 1
    %p80 = por %p78, %p79
    %p82 = scmp.ne.s32.totalorder %s67, %s81
    %p83 = scmp.eq.s32.totalorder %s15, 0
    %p84 = por %p82, %p83
    %s85 = ssub.s32 %s9, %s16
    %p86 = scmp.eq.s32.totalorder %s85, 0
    %s88 = sadd.s32 %s87, 1
    %s89 = scalar_select %p86, %s87, %s88
    %p92 = pneg %p86
    %p93 = scmp.eq.s32.totalorder %s9, 1
    %p94 = por %p92, %p93
    %p95 = scmp.ne.s32.totalorder %s87, %s90
    %p96 = scmp.eq.s32.totalorder %s9, 0
    %p97 = por %p95, %p96
    %p98 = scmp.ne.s32.totalorder %s87, %s90
    %p99 = scmp.eq.s32.totalorder %s14, 1
    %p100 = por %p98, %p99
    %p101 = scmp.ne.s32.totalorder %s90, %s91
    %p102 = scmp.eq.s32.totalorder %s14, 0
    %p103 = por %p101, %p102
    %p104 = scmp.ne.s32.totalorder %s90, %s91
    %p105 = scmp.eq.s32.totalorder %s15, 1
    %p106 = por %p104, %p105
    %p108 = scmp.ne.s32.totalorder %s91, %s107
    %p109 = scmp.eq.s32.totalorder %s15, 0
    %p110 = por %p108, %p109
    %p111 = scmp.le.s32.totalorder 1, %s9
    %p112 = scmp.lt.s32.totalorder %s9, 3
    %p113 = pnand %p111, %p112
    %p114 = pneg %p113
    // Predicated region
    $region9: #{inception_b_forward.12} parent=5 // pred_check
      _
    $region10: #{inception_b_forward.12} parent=5 // pred_check_branch
      %116 = sbr.rel (%p113) target = $region12
    $region11: #{inception_b_forward.12} parent=5 // pred_region
      %s117 = ssub.s32 %s9, 1
      // Predicated region
      $region13: #{inception_b_forward.12} parent=11 // pred_check
        %p118 = pneg %p56
      $region14: #{inception_b_forward.12} parent=11 // pred_check_branch
        %120 = sbr.rel (%p118) target = $region16
      $region15: #{inception_b_forward.12} parent=11 // pred_region
        _
      $region16: #{inception_b_forward.12} parent=11 // pred_fallthru
        _
      // Predicated region
      $region17: #{inception_b_forward.12} parent=11 // pred_check
        %p121 = pneg %p77
      $region18: #{inception_b_forward.12} parent=11 // pred_check_branch
        %123 = sbr.rel (%p121) target = $region20
      $region19: #{inception_b_forward.12} parent=11 // pred_region
        _
      $region20: #{inception_b_forward.12} parent=11 // pred_fallthru
        _
    $region12: #{inception_b_forward.12} parent=5 // pred_fallthru
      _
    %p124 = scmp.lt.s32.totalorder %s9, 2
    // Predicated region
    $region21: #{inception_b_forward.12} parent=5 // pred_check
      %p125 = pneg %p124
    $region22: #{inception_b_forward.12} parent=5 // pred_check_branch
      %127 = sbr.rel (%p125) target = $region24
    $region23: #{inception_b_forward.12} parent=5 // pred_region
      // Predicated region
      $region25: #{inception_b_forward.12} parent=23 // pred_check
        %p128 = pneg %p29
      $region26: #{inception_b_forward.12} parent=23 // pred_check_branch
        %130 = sbr.rel (%p128) target = $region28
      $region27: #{inception_b_forward.12} parent=23 // pred_region
        %p131 = scmp.lt.s32.totalorder %s9, 1
        %s132 = scalar_select %p131, %s9, 1
        %s133 = smul.addr %s132, 44
        %s134 = smul.addr %s133, 4
        %s135 = scalar_lea.vmem %s0, %s134
      $region28: #{inception_b_forward.12} parent=23 // pred_fallthru
        _
    $region24: #{inception_b_forward.12} parent=5 // pred_fallthru
      _
    %p136 = scmp.le.s32.totalorder 1, %s9
    %p137 = scmp.lt.s32.totalorder %s9, 3
    %p138 = pnand %p136, %p137
    %p139 = pneg %p138
    // Predicated region
    $region29: #{inception_b_forward.12} parent=5 // pred_check
      _
    $region30: #{inception_b_forward.12} parent=5 // pred_check_branch
      %141 = sbr.rel (%p138) target = $region32
    $region31: #{inception_b_forward.12} parent=5 // pred_region
      %s142 = ssub.s32 %s9, 1
      %p143 = scmp.lt.s32.totalorder %s14, 1
      %s144 = scalar_select %p143, %s14, 1
      %s145 = smul.addr %s144, 44
      %s146 = smul.addr %s145, 4
      %s147 = scalar_lea.vmem %s0, %s146
      %p148 = pneg %p35
      %p149 = pneg %p32
      %p150 = pneg %p56
      %p151 = pneg %p53
      %p152 = pneg %p77
      %p153 = pneg %p74
      %p154 = pneg %p103
      %p155 = pneg %p100
      %p156 = scmp.lt.s32.totalorder %s14, 1
      %s157 = scalar_select %p156, %s14, 1
      %s158 = smul.addr %s157, 32
      %s159 = smul.addr %s158, 4
      %s160 = scalar_lea.vmem %s3, %s159
      %p161 = scmp.lt.s32.totalorder %s14, 1
      %s162 = scalar_select %p161, %s14, 1
      %s163 = smul.addr %s162, 44
      %s164 = smul.addr %s163, 4
      %s165 = scalar_lea.vmem %s0, %s164
      %p166 = scmp.lt.s32.totalorder %s14, 1
      %s167 = scalar_select %p166, %s14, 1
      %s168 = smul.addr %s167, 32
      %s169 = smul.addr %s168, 4
      %s170 = scalar_lea.vmem %s3, %s169
      %v171 = vld [vmem:[%s165] sm:$0xf]
      %v172 = vld [vmem:[%s165 + $0x4] sm:$0xf]
      %v173 = vld [vmem:[%s165 + $0x8] sm:$0xf]
      %v174 = vld [vmem:[%s165 + $0xc] sm:$0xf]
      %v175 = vld [vmem:[%s165 + $0x10] sm:$0xf]
      %v176 = vld [vmem:[%s165 + $0x14] sm:$0xf]
      %v177 = vld [vmem:[%s165 + $0x18] sm:$0xf]
      %v178 = vld [vmem:[%s165 + $0x1c] sm:$0xf]
      %v179 = vld [vmem:[%s165 + $0x20] sm:$0xf]
      %v180 = vld [vmem:[%s165 + $0x24] sm:$0xf]
      %v181 = vld [vmem:[%s165 + $0x28] sm:$0xf]
      %v182 = vld [vmem:[%s165 + $0x2c] sm:$0xf]
      %v183 = vld [vmem:[%s165 + $0x30] sm:$0xf]
      %v184 = vld [vmem:[%s165 + $0x34] sm:$0xf]
      %v185 = vld [vmem:[%s165 + $0x38] sm:$0xf]
      %v186 = vld [vmem:[%s165 + $0x3c] sm:$0xf]
      %v187 = vld [vmem:[%s165 + $0x40] sm:$0xf]
      %v188 = vld [vmem:[%s165 + $0x44] sm:$0xf]
      %v189 = vld [vmem:[%s165 + $0x48] sm:$0xf]
      %v190 = vld [vmem:[%s165 + $0x4c] sm:$0xf]
      %v191 = vld [vmem:[%s165 + $0x50] sm:$0xf]
      %v192 = vld [vmem:[%s165 + $0x54] sm:$0xf]
      %v193 = vld [vmem:[%s165 + $0x58] sm:$0xf]
      %v194 = vld [vmem:[%s165 + $0x5c] sm:$0xf]
      %v195 = vld [vmem:[%s165 + $0x60] sm:$0xf]
      %v196 = vld [vmem:[%s165 + $0x64] sm:$0xf]
      %v197 = vld [vmem:[%s165 + $0x68] sm:$0xf]
      %v198 = vld [vmem:[%s165 + $0x6c] sm:$0xf]
      %v199 = vld [vmem:[%s165 + $0x70] sm:$0xf]
      %v200 = vld [vmem:[%s165 + $0x74] sm:$0xf]
      %v201 = vld [vmem:[%s165 + $0x78] sm:$0xf]
      %v202 = vld [vmem:[%s165 + $0x7c] sm:$0xf]
      %v203 = vld [vmem:[%s1] sm:$0xf]
      %v204 = vld [vmem:[%s1 + $0x4] sm:$0xf]
      %v205 = vld [vmem:[%s1 + $0x8] sm:$0xf]
      %v206 = vld [vmem:[%s1 + $0xc] sm:$0xf]
      %v207 = vld [vmem:[%s1 + $0x10] sm:$0xf]
      %v208 = vld [vmem:[%s1 + $0x14] sm:$0xf]
      %v209 = vld [vmem:[%s1 + $0x18] sm:$0xf]
      %v210 = vld [vmem:[%s1 + $0x1c] sm:$0xf]
      %v211 = vld [vmem:[%s1 + $0x20] sm:$0xf]
      %v212 = vld [vmem:[%s1 + $0x24] sm:$0xf]
      %v213 = vld [vmem:[%s1 + $0x28] sm:$0xf]
      %v214 = vld [vmem:[%s1 + $0x2c] sm:$0xf]
      %v215 = vld [vmem:[%s1 + $0x30] sm:$0xf]
      %v216 = vld [vmem:[%s1 + $0x34] sm:$0xf]
      %v217 = vld [vmem:[%s1 + $0x38] sm:$0xf]
      %v218 = vld [vmem:[%s1 + $0x3c] sm:$0xf]
      %v219 = vld [vmem:[%s165 + $0x80] sm:$0xf]
      %v220 = vld [vmem:[%s165 + $0x84] sm:$0xf]
      %s221 = scalar_lea.vmem %s1, 64
      %v222 = vld [vmem:[%s221] sm:$0xf]
      %v223 = vld [vmem:[%s221 + $0x4] sm:$0xf]
      %v224 = vld [vmem:[%s221 + $0x8] sm:$0xf]
      %v225 = vld [vmem:[%s221 + $0xc] sm:$0xf]
      %v226 = vld [vmem:[%s221 + $0x10] sm:$0xf]
      %v227 = vld [vmem:[%s221 + $0x14] sm:$0xf]
      %v228 = vld [vmem:[%s221 + $0x18] sm:$0xf]
      %v229 = vld [vmem:[%s221 + $0x1c] sm:$0xf]
      %v230 = vld [vmem:[%s221 + $0x20] sm:$0xf]
      %v231 = vld [vmem:[%s221 + $0x24] sm:$0xf]
      %v232 = vld [vmem:[%s221 + $0x28] sm:$0xf]
      %v233 = vld [vmem:[%s221 + $0x2c] sm:$0xf]
      %v234 = vld [vmem:[%s221 + $0x30] sm:$0xf]
      %v235 = vld [vmem:[%s221 + $0x34] sm:$0xf]
      %v236 = vld [vmem:[%s221 + $0x38] sm:$0xf]
      %v237 = vld [vmem:[%s221 + $0x3c] sm:$0xf]
      %v270 = vunpack.c.l.b16 %v173
      %v271 = vunpack.c.l.b16 %v174
      %v272 = vunpack.c.l.b16 %v175
      %v273 = vunpack.c.l.b16 %v176
      %v274 = vunpack.c.l.b16 %v177
      %v275 = vunpack.c.l.b16 %v178
      %v276 = vunpack.c.l.b16 %v179
      %v277 = vunpack.c.l.b16 %v180
      %v278 = vunpack.c.l.b16 %v181
      %v279 = vunpack.c.l.b16 %v182
      %v280 = vunpack.c.l.b16 %v183
      %v281 = vunpack.c.l.b16 %v184
      %v282 = vunpack.c.l.b16 %v185
      %v283 = vunpack.c.l.b16 %v186
      %v284 = vunpack.c.l.b16 %v187
      %v285 = vunpack.c.l.b16 %v188
      %v286 = vunpack.c.l.b16 %v189
      %v287 = vunpack.c.l.b16 %v190
      %v288 = vunpack.c.l.b16 %v191
      %v289 = vunpack.c.l.b16 %v192
      %v290 = vunpack.c.l.b16 %v193
      %v291 = vunpack.c.l.b16 %v194
      %v292 = vunpack.c.l.b16 %v195
      %v293 = vunpack.c.l.b16 %v196
      %v294 = vunpack.c.l.b16 %v197
      %v295 = vunpack.c.l.b16 %v198
      %v296 = vunpack.c.l.b16 %v199
      %v297 = vunpack.c.l.b16 %v200
      %v298 = vunpack.c.l.b16 %v201
      %v299 = vunpack.c.l.b16 %v202
      %v300 = vunpack.c.l.b16 %v219
      %v301 = vunpack.c.l.b16 %v220
      %v302 = vpack.c.b16 %v271, %v270
      %v303 = vpack.c.b16 %v273, %v272
      %v304 = vpack.c.b16 %v275, %v274
      %v305 = vpack.c.b16 %v277, %v276
      %v306 = vpack.c.b16 %v279, %v278
      %v307 = vpack.c.b16 %v281, %v280
      %v308 = vpack.c.b16 %v283, %v282
      %v309 = vpack.c.b16 %v285, %v284
      %v310 = vpack.c.b16 %v287, %v286
      %v311 = vpack.c.b16 %v289, %v288
      %v312 = vpack.c.b16 %v291, %v290
      %v313 = vpack.c.b16 %v293, %v292
      %v314 = vpack.c.b16 %v295, %v294
      %v315 = vpack.c.b16 %v297, %v296
      %v316 = vpack.c.b16 %v299, %v298
      %v317 = vpack.c.b16 %v301, %v300
      %v350 = vunpack.c.l.b16 %v222
      %v351 = vunpack.c.l.b16 %v223
      %v352 = vunpack.c.l.b16 %v224
      %v353 = vunpack.c.l.b16 %v225
      %v354 = vunpack.c.l.b16 %v226
      %v355 = vunpack.c.l.b16 %v227
      %v356 = vunpack.c.l.b16 %v228
      %v357 = vunpack.c.l.b16 %v229
      %v358 = vunpack.c.l.b16 %v230
      %v359 = vunpack.c.l.b16 %v231
      %v360 = vunpack.c.l.b16 %v232
      %v361 = vunpack.c.l.b16 %v233
      %v362 = vunpack.c.l.b16 %v234
      %v363 = vunpack.c.l.b16 %v235
      %v364 = vunpack.c.l.b16 %v236
      %v365 = vunpack.c.l.b16 %v237
      %v366 = vpack.c.b16 %v351, %v350
      %v367 = vpack.c.b16 %v353, %v352
      %v368 = vpack.c.b16 %v355, %v354
      %v369 = vpack.c.b16 %v357, %v356
      %v370 = vpack.c.b16 %v359, %v358
      %v371 = vpack.c.b16 %v361, %v360
      %v372 = vpack.c.b16 %v363, %v362
      %v373 = vpack.c.b16 %v365, %v364
      %382 = vmatpush.bf16.msra.mxu0 %v373
      %383 = vmatpush.bf16.msra.mxu0 %v372
      %384 = vmatpush.bf16.msra.mxu0 %v371
      %385 = vmatpush.bf16.msra.mxu0 %v370
      %386 = vmatpush.bf16.msra.mxu0 %v369
      %387 = vmatpush.bf16.msra.mxu0 %v368
      %388 = vmatpush.bf16.msra.mxu0 %v367
      %389 = vmatpush.bf16.msra.mxu0 %v366
      %390 = vmatmul.bf16.gmra.mxu0 %v302
      %v391 = vpop.f32.mrf.mxu0
      %v392 = vadd.f32 0.0, %v391
      %v393 = vpop.f32.mrf.mxu0
      %v394 = vadd.f32 0.0, %v393
      %395 = vmatmul.bf16.gmra.mxu0 %v303
      %v396 = vpop.f32.mrf.mxu0
      %v397 = vadd.f32 0.0, %v396
      %v398 = vpop.f32.mrf.mxu0
      %v399 = vadd.f32 0.0, %v398
      %400 = vmatmul.bf16.gmra.mxu0 %v304
      %v401 = vpop.f32.mrf.mxu0
      %v402 = vadd.f32 0.0, %v401
      %v403 = vpop.f32.mrf.mxu0
      %v404 = vadd.f32 0.0, %v403
      %405 = vmatmul.bf16.gmra.mxu0 %v305
      %v406 = vpop.f32.mrf.mxu0
      %v407 = vadd.f32 0.0, %v406
      %v408 = vpop.f32.mrf.mxu0
      %v409 = vadd.f32 0.0, %v408
      %410 = vmatmul.bf16.gmra.mxu0 %v306
      %v411 = vpop.f32.mrf.mxu0
      %v412 = vadd.f32 0.0, %v411
      %v413 = vpop.f32.mrf.mxu0
      %v414 = vadd.f32 0.0, %v413
      %415 = vmatmul.bf16.gmra.mxu0 %v307
      %v416 = vpop.f32.mrf.mxu0
      %v417 = vadd.f32 0.0, %v416
      %v418 = vpop.f32.mrf.mxu0
      %v419 = vadd.f32 0.0, %v418
      %420 = vmatmul.bf16.gmra.mxu0 %v308
      %v421 = vpop.f32.mrf.mxu0
      %v422 = vadd.f32 0.0, %v421
      %v423 = vpop.f32.mrf.mxu0
      %v424 = vadd.f32 0.0, %v423
      %425 = vmatmul.bf16.gmra.mxu0 %v309
      %v426 = vpop.f32.mrf.mxu0
      %v427 = vadd.f32 0.0, %v426
      %v428 = vpop.f32.mrf.mxu0
      %v429 = vadd.f32 0.0, %v428
      %430 = vmatmul.bf16.gmra.mxu0 %v310
      %v431 = vpop.f32.mrf.mxu0
      %v432 = vadd.f32 0.0, %v431
      %v433 = vpop.f32.mrf.mxu0
      %v434 = vadd.f32 0.0, %v433
      %435 = vmatmul.bf16.gmra.mxu0 %v311
      %v436 = vpop.f32.mrf.mxu0
      %v437 = vadd.f32 0.0, %v436
      %v438 = vpop.f32.mrf.mxu0
      %v439 = vadd.f32 0.0, %v438
      %440 = vmatmul.bf16.gmra.mxu0 %v312
      %v441 = vpop.f32.mrf.mxu0
      %v442 = vadd.f32 0.0, %v441
      %v443 = vpop.f32.mrf.mxu0
      %v444 = vadd.f32 0.0, %v443
      %445 = vmatmul.bf16.gmra.mxu0 %v313
      %v446 = vpop.f32.mrf.mxu0
      %v447 = vadd.f32 0.0, %v446
      %v448 = vpop.f32.mrf.mxu0
      %v449 = vadd.f32 0.0, %v448
      %450 = vmatmul.bf16.gmra.mxu0 %v314
      %v451 = vpop.f32.mrf.mxu0
      %v452 = vadd.f32 0.0, %v451
      %v453 = vpop.f32.mrf.mxu0
      %v454 = vadd.f32 0.0, %v453
      %455 = vmatmul.bf16.gmra.mxu0 %v315
      %v456 = vpop.f32.mrf.mxu0
      %v457 = vadd.f32 0.0, %v456
      %v458 = vpop.f32.mrf.mxu0
      %v459 = vadd.f32 0.0, %v458
      %460 = vmatmul.bf16.gmra.mxu0 %v316
      %v461 = vpop.f32.mrf.mxu0
      %v462 = vadd.f32 0.0, %v461
      %v463 = vpop.f32.mrf.mxu0
      %v464 = vadd.f32 0.0, %v463
      %465 = vmatmul.bf16.gmra.mxu0 %v317
      %v466 = vpop.f32.mrf.mxu0
      %v467 = vadd.f32 0.0, %v466
      %v468 = vpop.f32.mrf.mxu0
      %v469 = vadd.f32 0.0, %v468
      %470 = vdwg.mxu0
      %v473 = vunpack.c.l.b16 %v171
      %v474 = vunpack.c.l.b16 %v172
      %v475 = vpack.c.b16 %v474, %v473
      %v493 = vunpack.c.l.b16 %v203
      %v494 = vunpack.c.l.b16 %v204
      %v495 = vunpack.c.l.b16 %v205
      %v496 = vunpack.c.l.b16 %v206
      %v497 = vunpack.c.l.b16 %v207
      %v498 = vunpack.c.l.b16 %v208
      %v499 = vunpack.c.l.b16 %v209
      %v500 = vunpack.c.l.b16 %v210
      %v501 = vunpack.c.l.b16 %v211
      %v502 = vunpack.c.l.b16 %v212
      %v503 = vunpack.c.l.b16 %v213
      %v504 = vunpack.c.l.b16 %v214
      %v505 = vunpack.c.l.b16 %v215
      %v506 = vunpack.c.l.b16 %v216
      %v507 = vunpack.c.l.b16 %v217
      %v508 = vunpack.c.l.b16 %v218
      %v509 = vpack.c.b16 %v494, %v493
      %v510 = vpack.c.b16 %v496, %v495
      %v511 = vpack.c.b16 %v498, %v497
      %v512 = vpack.c.b16 %v500, %v499
      %v513 = vpack.c.b16 %v502, %v501
      %v514 = vpack.c.b16 %v504, %v503
      %v515 = vpack.c.b16 %v506, %v505
      %v516 = vpack.c.b16 %v508, %v507
      %525 = vmatpush.bf16.msra.mxu0 %v516
      %526 = vmatpush.bf16.msra.mxu0 %v515
      %527 = vmatpush.bf16.msra.mxu0 %v514
      %528 = vmatpush.bf16.msra.mxu0 %v513
      %529 = vmatpush.bf16.msra.mxu0 %v512
      %530 = vmatpush.bf16.msra.mxu0 %v511
      %531 = vmatpush.bf16.msra.mxu0 %v510
      %532 = vmatpush.bf16.msra.mxu0 %v509
      %533 = vmatmul.bf16.gmra.mxu0 %v475
      %v534 = vpop.f32.mrf.mxu0
      %v535 = vadd.f32 %v392, %v534
      %v536 = vpop.f32.mrf.mxu0
      %v537 = vadd.f32 %v394, %v536
      %538 = vmatmul.bf16.gmra.mxu0 %v302
      %v539 = vpop.f32.mrf.mxu0
      %v540 = vadd.f32 %v397, %v539
      %v541 = vpop.f32.mrf.mxu0
      %v542 = vadd.f32 %v399, %v541
      %543 = vmatmul.bf16.gmra.mxu0 %v303
      %v544 = vpop.f32.mrf.mxu0
      %v545 = vadd.f32 %v402, %v544
      %v546 = vpop.f32.mrf.mxu0
      %v547 = vadd.f32 %v404, %v546
      %548 = vmatmul.bf16.gmra.mxu0 %v304
      %v549 = vpop.f32.mrf.mxu0
      %v550 = vadd.f32 %v407, %v549
      %v551 = vpop.f32.mrf.mxu0
      %v552 = vadd.f32 %v409, %v551
      %553 = vmatmul.bf16.gmra.mxu0 %v305
      %v554 = vpop.f32.mrf.mxu0
      %v555 = vadd.f32 %v412, %v554
      %v556 = vpop.f32.mrf.mxu0
      %v557 = vadd.f32 %v414, %v556
      %558 = vmatmul.bf16.gmra.mxu0 %v306
      %v559 = vpop.f32.mrf.mxu0
      %v560 = vadd.f32 %v417, %v559
      %v561 = vpop.f32.mrf.mxu0
      %v562 = vadd.f32 %v419, %v561
      %563 = vmatmul.bf16.gmra.mxu0 %v307
      %v564 = vpop.f32.mrf.mxu0
      %v565 = vadd.f32 %v422, %v564
      %v566 = vpop.f32.mrf.mxu0
      %v567 = vadd.f32 %v424, %v566
      %568 = vmatmul.bf16.gmra.mxu0 %v308
      %v569 = vpop.f32.mrf.mxu0
      %v570 = vadd.f32 %v427, %v569
      %v571 = vpop.f32.mrf.mxu0
      %v572 = vadd.f32 %v429, %v571
      %573 = vmatmul.bf16.gmra.mxu0 %v309
      %v574 = vpop.f32.mrf.mxu0
      %v575 = vadd.f32 %v432, %v574
      %v576 = vpop.f32.mrf.mxu0
      %v577 = vadd.f32 %v434, %v576
      %578 = vmatmul.bf16.gmra.mxu0 %v310
      %v579 = vpop.f32.mrf.mxu0
      %v580 = vadd.f32 %v437, %v579
      %v581 = vpop.f32.mrf.mxu0
      %v582 = vadd.f32 %v439, %v581
      %583 = vmatmul.bf16.gmra.mxu0 %v311
      %v584 = vpop.f32.mrf.mxu0
      %v585 = vadd.f32 %v442, %v584
      %v586 = vpop.f32.mrf.mxu0
      %v587 = vadd.f32 %v444, %v586
      %588 = vmatmul.bf16.gmra.mxu0 %v312
      %v589 = vpop.f32.mrf.mxu0
      %v590 = vadd.f32 %v447, %v589
      %v591 = vpop.f32.mrf.mxu0
      %v592 = vadd.f32 %v449, %v591
      %593 = vmatmul.bf16.gmra.mxu0 %v313
      %v594 = vpop.f32.mrf.mxu0
      %v595 = vadd.f32 %v452, %v594
      %v596 = vpop.f32.mrf.mxu0
      %v597 = vadd.f32 %v454, %v596
      %598 = vmatmul.bf16.gmra.mxu0 %v314
      %v599 = vpop.f32.mrf.mxu0
      %v600 = vadd.f32 %v457, %v599
      %v601 = vpop.f32.mrf.mxu0
      %v602 = vadd.f32 %v459, %v601
      %603 = vmatmul.bf16.gmra.mxu0 %v315
      %v604 = vpop.f32.mrf.mxu0
      %v605 = vadd.f32 %v462, %v604
      %v606 = vpop.f32.mrf.mxu0
      %v607 = vadd.f32 %v464, %v606
      %608 = vmatmul.bf16.gmra.mxu0 %v316
      %v609 = vpop.f32.mrf.mxu0
      %v610 = vadd.f32 %v467, %v609
      %v611 = vpop.f32.mrf.mxu0
      %v612 = vadd.f32 %v469, %v611
      %613 = vdwg.mxu0
      %v614 = vld [vmem:[%s165 + $0x10] sm:$0xf]
      %v615 = vld [vmem:[%s165 + $0x14] sm:$0xf]
      %v616 = vld [vmem:[%s165 + $0x18] sm:$0xf]
      %v617 = vld [vmem:[%s165 + $0x1c] sm:$0xf]
      %v618 = vld [vmem:[%s165 + $0x20] sm:$0xf]
      %v619 = vld [vmem:[%s165 + $0x24] sm:$0xf]
      %v620 = vld [vmem:[%s165 + $0x28] sm:$0xf]
      %v621 = vld [vmem:[%s165 + $0x2c] sm:$0xf]
      %v622 = vld [vmem:[%s165 + $0x30] sm:$0xf]
      %v623 = vld [vmem:[%s165 + $0x34] sm:$0xf]
      %v624 = vld [vmem:[%s165 + $0x38] sm:$0xf]
      %v625 = vld [vmem:[%s165 + $0x3c] sm:$0xf]
      %v626 = vld [vmem:[%s165 + $0x40] sm:$0xf]
      %v627 = vld [vmem:[%s165 + $0x44] sm:$0xf]
      %v628 = vld [vmem:[%s165 + $0x48] sm:$0xf]
      %v629 = vld [vmem:[%s165 + $0x4c] sm:$0xf]
      %v630 = vld [vmem:[%s165 + $0x50] sm:$0xf]
      %v631 = vld [vmem:[%s165 + $0x54] sm:$0xf]
      %v632 = vld [vmem:[%s165 + $0x58] sm:$0xf]
      %v633 = vld [vmem:[%s165 + $0x5c] sm:$0xf]
      %v634 = vld [vmem:[%s165 + $0x60] sm:$0xf]
      %v635 = vld [vmem:[%s165 + $0x64] sm:$0xf]
      %v636 = vld [vmem:[%s165 + $0x68] sm:$0xf]
      %v637 = vld [vmem:[%s165 + $0x6c] sm:$0xf]
      %v638 = vld [vmem:[%s165 + $0x70] sm:$0xf]
      %v639 = vld [vmem:[%s165 + $0x74] sm:$0xf]
      %v640 = vld [vmem:[%s165 + $0x78] sm:$0xf]
      %v641 = vld [vmem:[%s165 + $0x7c] sm:$0xf]
      %v642 = vld [vmem:[%s165 + $0x80] sm:$0xf]
      %v643 = vld [vmem:[%s165 + $0x84] sm:$0xf]
      %v644 = vld [vmem:[%s165 + $0x88] sm:$0xf]
      %v645 = vld [vmem:[%s165 + $0x8c] sm:$0xf]
      %s646 = scalar_lea.vmem %s1, 128
      %v647 = vld [vmem:[%s646] sm:$0xf]
      %v648 = vld [vmem:[%s646 + $0x4] sm:$0xf]
      %v649 = vld [vmem:[%s646 + $0x8] sm:$0xf]
      %v650 = vld [vmem:[%s646 + $0xc] sm:$0xf]
      %v651 = vld [vmem:[%s646 + $0x10] sm:$0xf]
      %v652 = vld [vmem:[%s646 + $0x14] sm:$0xf]
      %v653 = vld [vmem:[%s646 + $0x18] sm:$0xf]
      %v654 = vld [vmem:[%s646 + $0x1c] sm:$0xf]
      %v655 = vld [vmem:[%s646 + $0x20] sm:$0xf]
      %v656 = vld [vmem:[%s646 + $0x24] sm:$0xf]
      %v657 = vld [vmem:[%s646 + $0x28] sm:$0xf]
      %v658 = vld [vmem:[%s646 + $0x2c] sm:$0xf]
      %v659 = vld [vmem:[%s646 + $0x30] sm:$0xf]
      %v660 = vld [vmem:[%s646 + $0x34] sm:$0xf]
      %v661 = vld [vmem:[%s646 + $0x38] sm:$0xf]
      %v662 = vld [vmem:[%s646 + $0x3c] sm:$0xf]
      %v695 = vunpack.c.l.b16 %v614
      %v696 = vunpack.c.l.b16 %v615
      %v697 = vunpack.c.l.b16 %v616
      %v698 = vunpack.c.l.b16 %v617
      %v699 = vunpack.c.l.b16 %v618
      %v700 = vunpack.c.l.b16 %v619
      %v701 = vunpack.c.l.b16 %v620
      %v702 = vunpack.c.l.b16 %v621
      %v703 = vunpack.c.l.b16 %v622
      %v704 = vunpack.c.l.b16 %v623
      %v705 = vunpack.c.l.b16 %v624
      %v706 = vunpack.c.l.b16 %v625
      %v707 = vunpack.c.l.b16 %v626
      %v708 = vunpack.c.l.b16 %v627
      %v709 = vunpack.c.l.b16 %v628
      %v710 = vunpack.c.l.b16 %v629
      %v711 = vunpack.c.l.b16 %v630
      %v712 = vunpack.c.l.b16 %v631
      %v713 = vunpack.c.l.b16 %v632
      %v714 = vunpack.c.l.b16 %v633
      %v715 = vunpack.c.l.b16 %v634
      %v716 = vunpack.c.l.b16 %v635
      %v717 = vunpack.c.l.b16 %v636
      %v718 = vunpack.c.l.b16 %v637
      %v719 = vunpack.c.l.b16 %v638
      %v720 = vunpack.c.l.b16 %v639
      %v721 = vunpack.c.l.b16 %v640
      %v722 = vunpack.c.l.b16 %v641
      %v723 = vunpack.c.l.b16 %v642
      %v724 = vunpack.c.l.b16 %v643
      %v725 = vunpack.c.l.b16 %v644
      %v726 = vunpack.c.l.b16 %v645
      %v727 = vpack.c.b16 %v696, %v695
      %v728 = vpack.c.b16 %v698, %v697
      %v729 = vpack.c.b16 %v700, %v699
      %v730 = vpack.c.b16 %v702, %v701
      %v731 = vpack.c.b16 %v704, %v703
      %v732 = vpack.c.b16 %v706, %v705
      %v733 = vpack.c.b16 %v708, %v707
      %v734 = vpack.c.b16 %v710, %v709
      %v735 = vpack.c.b16 %v712, %v711
      %v736 = vpack.c.b16 %v714, %v713
      %v737 = vpack.c.b16 %v716, %v715
      %v738 = vpack.c.b16 %v718, %v717
      %v739 = vpack.c.b16 %v720, %v719
      %v740 = vpack.c.b16 %v722, %v721
      %v741 = vpack.c.b16 %v724, %v723
      %v742 = vpack.c.b16 %v726, %v725
      %v775 = vunpack.c.l.b16 %v647
      %v776 = vunpack.c.l.b16 %v648
      %v777 = vunpack.c.l.b16 %v649
      %v778 = vunpack.c.l.b16 %v650
      %v779 = vunpack.c.l.b16 %v651
      %v780 = vunpack.c.l.b16 %v652
      %v781 = vunpack.c.l.b16 %v653
      %v782 = vunpack.c.l.b16 %v654
      %v783 = vunpack.c.l.b16 %v655
      %v784 = vunpack.c.l.b16 %v656
      %v785 = vunpack.c.l.b16 %v657
      %v786 = vunpack.c.l.b16 %v658
      %v787 = vunpack.c.l.b16 %v659
      %v788 = vunpack.c.l.b16 %v660
      %v789 = vunpack.c.l.b16 %v661
      %v790 = vunpack.c.l.b16 %v662
      %v791 = vpack.c.b16 %v776, %v775
      %v792 = vpack.c.b16 %v778, %v777
      %v793 = vpack.c.b16 %v780, %v779
      %v794 = vpack.c.b16 %v782, %v781
      %v795 = vpack.c.b16 %v784, %v783
      %v796 = vpack.c.b16 %v786, %v785
      %v797 = vpack.c.b16 %v788, %v787
      %v798 = vpack.c.b16 %v790, %v789
      %807 = vmatpush.bf16.msra.mxu0 %v798
      %808 = vmatpush.bf16.msra.mxu0 %v797
      %809 = vmatpush.bf16.msra.mxu0 %v796
      %810 = vmatpush.bf16.msra.mxu0 %v795
      %811 = vmatpush.bf16.msra.mxu0 %v794
      %812 = vmatpush.bf16.msra.mxu0 %v793
      %813 = vmatpush.bf16.msra.mxu0 %v792
      %814 = vmatpush.bf16.msra.mxu0 %v791
      %815 = vmatmul.bf16.gmra.mxu0 %v727
      %v816 = vpop.f32.mrf.mxu0
      %v817 = vadd.f32 0.0, %v816
      %v818 = vpop.f32.mrf.mxu0
      %v819 = vadd.f32 0.0, %v818
      %820 = vmatmul.bf16.gmra.mxu0 %v728
      %v821 = vpop.f32.mrf.mxu0
      %v822 = vadd.f32 0.0, %v821
      %v823 = vpop.f32.mrf.mxu0
      %v824 = vadd.f32 0.0, %v823
      %825 = vmatmul.bf16.gmra.mxu0 %v729
      %v826 = vpop.f32.mrf.mxu0
      %v827 = vadd.f32 0.0, %v826
      %v828 = vpop.f32.mrf.mxu0
      %v829 = vadd.f32 0.0, %v828
      %830 = vmatmul.bf16.gmra.mxu0 %v730
      %v831 = vpop.f32.mrf.mxu0
      %v832 = vadd.f32 0.0, %v831
      %v833 = vpop.f32.mrf.mxu0
      %v834 = vadd.f32 0.0, %v833
      %835 = vmatmul.bf16.gmra.mxu0 %v731
      %v836 = vpop.f32.mrf.mxu0
      %v837 = vadd.f32 0.0, %v836
      %v838 = vpop.f32.mrf.mxu0
      %v839 = vadd.f32 0.0, %v838
      %840 = vmatmul.bf16.gmra.mxu0 %v732
      %v841 = vpop.f32.mrf.mxu0
      %v842 = vadd.f32 0.0, %v841
      %v843 = vpop.f32.mrf.mxu0
      %v844 = vadd.f32 0.0, %v843
      %845 = vmatmul.bf16.gmra.mxu0 %v733
      %v846 = vpop.f32.mrf.mxu0
      %v847 = vadd.f32 0.0, %v846
      %v848 = vpop.f32.mrf.mxu0
      %v849 = vadd.f32 0.0, %v848
      %850 = vmatmul.bf16.gmra.mxu0 %v734
      %v851 = vpop.f32.mrf.mxu0
      %v852 = vadd.f32 0.0, %v851
      %v853 = vpop.f32.mrf.mxu0
      %v854 = vadd.f32 0.0, %v853
      %855 = vmatmul.bf16.gmra.mxu0 %v735
      %v856 = vpop.f32.mrf.mxu0
      %v857 = vadd.f32 0.0, %v856
      %v858 = vpop.f32.mrf.mxu0
      %v859 = vadd.f32 0.0, %v858
      %860 = vmatmul.bf16.gmra.mxu0 %v736
      %v861 = vpop.f32.mrf.mxu0
      %v862 = vadd.f32 0.0, %v861
      %v863 = vpop.f32.mrf.mxu0
      %v864 = vadd.f32 0.0, %v863
      %865 = vmatmul.bf16.gmra.mxu0 %v737
      %v866 = vpop.f32.mrf.mxu0
      %v867 = vadd.f32 0.0, %v866
      %v868 = vpop.f32.mrf.mxu0
      %v869 = vadd.f32 0.0, %v868
      %870 = vmatmul.bf16.gmra.mxu0 %v738
      %v871 = vpop.f32.mrf.mxu0
      %v872 = vadd.f32 0.0, %v871
      %v873 = vpop.f32.mrf.mxu0
      %v874 = vadd.f32 0.0, %v873
      %875 = vmatmul.bf16.gmra.mxu0 %v739
      %v876 = vpop.f32.mrf.mxu0
      %v877 = vadd.f32 0.0, %v876
      %v878 = vpop.f32.mrf.mxu0
      %v879 = vadd.f32 0.0, %v878
      %880 = vmatmul.bf16.gmra.mxu0 %v740
      %v881 = vpop.f32.mrf.mxu0
      %v882 = vadd.f32 0.0, %v881
      %v883 = vpop.f32.mrf.mxu0
      %v884 = vadd.f32 0.0, %v883
      %885 = vmatmul.bf16.gmra.mxu0 %v741
      %v886 = vpop.f32.mrf.mxu0
      %v887 = vadd.f32 0.0, %v886
      %v888 = vpop.f32.mrf.mxu0
      %v889 = vadd.f32 0.0, %v888
      %890 = vmatmul.bf16.gmra.mxu0 %v742
      %v891 = vpop.f32.mrf.mxu0
      %v892 = vadd.f32 0.0, %v891
      %v893 = vpop.f32.mrf.mxu0
      %v894 = vadd.f32 0.0, %v893
      %895 = vdwg.mxu0
      %v896 = vadd.f32 %v535, %v817
      %v897 = vadd.f32 %v537, %v819
      %v898 = vadd.f32 %v540, %v822
      %v899 = vadd.f32 %v542, %v824
      %v900 = vadd.f32 %v545, %v827
      %v901 = vadd.f32 %v547, %v829
      %v902 = vadd.f32 %v550, %v832
      %v903 = vadd.f32 %v552, %v834
      %v904 = vadd.f32 %v555, %v837
      %v905 = vadd.f32 %v557, %v839
      %v906 = vadd.f32 %v560, %v842
      %v907 = vadd.f32 %v562, %v844
      %v908 = vadd.f32 %v565, %v847
      %v909 = vadd.f32 %v567, %v849
      %v910 = vadd.f32 %v570, %v852
      %v911 = vadd.f32 %v572, %v854
      %v912 = vadd.f32 %v575, %v857
      %v913 = vadd.f32 %v577, %v859
      %v914 = vadd.f32 %v580, %v862
      %v915 = vadd.f32 %v582, %v864
      %v916 = vadd.f32 %v585, %v867
      %v917 = vadd.f32 %v587, %v869
      %v918 = vadd.f32 %v590, %v872
      %v919 = vadd.f32 %v592, %v874
      %v920 = vadd.f32 %v595, %v877
      %v921 = vadd.f32 %v597, %v879
      %v922 = vadd.f32 %v600, %v882
      %v923 = vadd.f32 %v602, %v884
      %v924 = vadd.f32 %v605, %v887
      %v925 = vadd.f32 %v607, %v889
      %v926 = vadd.f32 %v610, %v892
      %v927 = vadd.f32 %v612, %v894
      %v928 = vld [vmem:[%s165 + $0x18] sm:$0xf]
      %v929 = vld [vmem:[%s165 + $0x1c] sm:$0xf]
      %v930 = vld [vmem:[%s165 + $0x20] sm:$0xf]
      %v931 = vld [vmem:[%s165 + $0x24] sm:$0xf]
      %v932 = vld [vmem:[%s165 + $0x28] sm:$0xf]
      %v933 = vld [vmem:[%s165 + $0x2c] sm:$0xf]
      %v934 = vld [vmem:[%s165 + $0x30] sm:$0xf]
      %v935 = vld [vmem:[%s165 + $0x34] sm:$0xf]
      %v936 = vld [vmem:[%s165 + $0x38] sm:$0xf]
      %v937 = vld [vmem:[%s165 + $0x3c] sm:$0xf]
      %v938 = vld [vmem:[%s165 + $0x40] sm:$0xf]
      %v939 = vld [vmem:[%s165 + $0x44] sm:$0xf]
      %v940 = vld [vmem:[%s165 + $0x48] sm:$0xf]
      %v941 = vld [vmem:[%s165 + $0x4c] sm:$0xf]
      %v942 = vld [vmem:[%s165 + $0x50] sm:$0xf]
      %v943 = vld [vmem:[%s165 + $0x54] sm:$0xf]
      %v944 = vld [vmem:[%s165 + $0x58] sm:$0xf]
      %v945 = vld [vmem:[%s165 + $0x5c] sm:$0xf]
      %v946 = vld [vmem:[%s165 + $0x60] sm:$0xf]
      %v947 = vld [vmem:[%s165 + $0x64] sm:$0xf]
      %v948 = vld [vmem:[%s165 + $0x68] sm:$0xf]
      %v949 = vld [vmem:[%s165 + $0x6c] sm:$0xf]
      %v950 = vld [vmem:[%s165 + $0x70] sm:$0xf]
      %v951 = vld [vmem:[%s165 + $0x74] sm:$0xf]
      %v952 = vld [vmem:[%s165 + $0x78] sm:$0xf]
      %v953 = vld [vmem:[%s165 + $0x7c] sm:$0xf]
      %v954 = vld [vmem:[%s165 + $0x80] sm:$0xf]
      %v955 = vld [vmem:[%s165 + $0x84] sm:$0xf]
      %v956 = vld [vmem:[%s165 + $0x88] sm:$0xf]
      %v957 = vld [vmem:[%s165 + $0x8c] sm:$0xf]
      %v958 = vld [vmem:[%s165 + $0x90] sm:$0xf]
      %v959 = vld [vmem:[%s165 + $0x94] sm:$0xf]
      %s960 = scalar_lea.vmem %s1, 192
      %v961 = vld [vmem:[%s960] sm:$0xf]
      %v962 = vld [vmem:[%s960 + $0x4] sm:$0xf]
      %v963 = vld [vmem:[%s960 + $0x8] sm:$0xf]
      %v964 = vld [vmem:[%s960 + $0xc] sm:$0xf]
      %v965 = vld [vmem:[%s960 + $0x10] sm:$0xf]
      %v966 = vld [vmem:[%s960 + $0x14] sm:$0xf]
      %v967 = vld [vmem:[%s960 + $0x18] sm:$0xf]
      %v968 = vld [vmem:[%s960 + $0x1c] sm:$0xf]
      %v969 = vld [vmem:[%s960 + $0x20] sm:$0xf]
      %v970 = vld [vmem:[%s960 + $0x24] sm:$0xf]
      %v971 = vld [vmem:[%s960 + $0x28] sm:$0xf]
      %v972 = vld [vmem:[%s960 + $0x2c] sm:$0xf]
      %v973 = vld [vmem:[%s960 + $0x30] sm:$0xf]
      %v974 = vld [vmem:[%s960 + $0x34] sm:$0xf]
      %v975 = vld [vmem:[%s960 + $0x38] sm:$0xf]
      %v976 = vld [vmem:[%s960 + $0x3c] sm:$0xf]
      %v1009 = vunpack.c.l.b16 %v928
      %v1010 = vunpack.c.l.b16 %v929
      %v1011 = vunpack.c.l.b16 %v930
      %v1012 = vunpack.c.l.b16 %v931
      %v1013 = vunpack.c.l.b16 %v932
      %v1014 = vunpack.c.l.b16 %v933
      %v1015 = vunpack.c.l.b16 %v934
      %v1016 = vunpack.c.l.b16 %v935
      %v1017 = vunpack.c.l.b16 %v936
      %v1018 = vunpack.c.l.b16 %v937
      %v1019 = vunpack.c.l.b16 %v938
      %v1020 = vunpack.c.l.b16 %v939
      %v1021 = vunpack.c.l.b16 %v940
      %v1022 = vunpack.c.l.b16 %v941
      %v1023 = vunpack.c.l.b16 %v942
      %v1024 = vunpack.c.l.b16 %v943
      %v1025 = vunpack.c.l.b16 %v944
      %v1026 = vunpack.c.l.b16 %v945
      %v1027 = vunpack.c.l.b16 %v946
      %v1028 = vunpack.c.l.b16 %v947
      %v1029 = vunpack.c.l.b16 %v948
      %v1030 = vunpack.c.l.b16 %v949
      %v1031 = vunpack.c.l.b16 %v950
      %v1032 = vunpack.c.l.b16 %v951
      %v1033 = vunpack.c.l.b16 %v952
      %v1034 = vunpack.c.l.b16 %v953
      %v1035 = vunpack.c.l.b16 %v954
      %v1036 = vunpack.c.l.b16 %v955
      %v1037 = vunpack.c.l.b16 %v956
      %v1038 = vunpack.c.l.b16 %v957
      %v1039 = vunpack.c.l.b16 %v958
      %v1040 = vunpack.c.l.b16 %v959
      %v1041 = vpack.c.b16 %v1010, %v1009
      %v1042 = vpack.c.b16 %v1012, %v1011
      %v1043 = vpack.c.b16 %v1014, %v1013
      %v1044 = vpack.c.b16 %v1016, %v1015
      %v1045 = vpack.c.b16 %v1018, %v1017
      %v1046 = vpack.c.b16 %v1020, %v1019
      %v1047 = vpack.c.b16 %v1022, %v1021
      %v1048 = vpack.c.b16 %v1024, %v1023
      %v1049 = vpack.c.b16 %v1026, %v1025
      %v1050 = vpack.c.b16 %v1028, %v1027
      %v1051 = vpack.c.b16 %v1030, %v1029
      %v1052 = vpack.c.b16 %v1032, %v1031
      %v1053 = vpack.c.b16 %v1034, %v1033
      %v1054 = vpack.c.b16 %v1036, %v1035
      %v1055 = vpack.c.b16 %v1038, %v1037
      %v1056 = vpack.c.b16 %v1040, %v1039
      %v1089 = vunpack.c.l.b16 %v961
      %v1090 = vunpack.c.l.b16 %v962
      %v1091 = vunpack.c.l.b16 %v963
      %v1092 = vunpack.c.l.b16 %v964
      %v1093 = vunpack.c.l.b16 %v965
      %v1094 = vunpack.c.l.b16 %v966
      %v1095 = vunpack.c.l.b16 %v967
      %v1096 = vunpack.c.l.b16 %v968
      %v1097 = vunpack.c.l.b16 %v969
      %v1098 = vunpack.c.l.b16 %v970
      %v1099 = vunpack.c.l.b16 %v971
      %v1100 = vunpack.c.l.b16 %v972
      %v1101 = vunpack.c.l.b16 %v973
      %v1102 = vunpack.c.l.b16 %v974
      %v1103 = vunpack.c.l.b16 %v975
      %v1104 = vunpack.c.l.b16 %v976
      %v1105 = vpack.c.b16 %v1090, %v1089
      %v1106 = vpack.c.b16 %v1092, %v1091
      %v1107 = vpack.c.b16 %v1094, %v1093
      %v1108 = vpack.c.b16 %v1096, %v1095
      %v1109 = vpack.c.b16 %v1098, %v1097
      %v1110 = vpack.c.b16 %v1100, %v1099
      %v1111 = vpack.c.b16 %v1102, %v1101
      %v1112 = vpack.c.b16 %v1104, %v1103
      %1121 = vmatpush.bf16.msra.mxu0 %v1112
      %1122 = vmatpush.bf16.msra.mxu0 %v1111
      %1123 = vmatpush.bf16.msra.mxu0 %v1110
      %1124 = vmatpush.bf16.msra.mxu0 %v1109
      %1125 = vmatpush.bf16.msra.mxu0 %v1108
      %1126 = vmatpush.bf16.msra.mxu0 %v1107
      %1127 = vmatpush.bf16.msra.mxu0 %v1106
      %1128 = vmatpush.bf16.msra.mxu0 %v1105
      %1129 = vmatmul.bf16.gmra.mxu0 %v1041
      %v1130 = vpop.f32.mrf.mxu0
      %v1131 = vadd.f32 0.0, %v1130
      %v1132 = vpop.f32.mrf.mxu0
      %v1133 = vadd.f32 0.0, %v1132
      %1134 = vmatmul.bf16.gmra.mxu0 %v1042
      %v1135 = vpop.f32.mrf.mxu0
      %v1136 = vadd.f32 0.0, %v1135
      %v1137 = vpop.f32.mrf.mxu0
      %v1138 = vadd.f32 0.0, %v1137
      %1139 = vmatmul.bf16.gmra.mxu0 %v1043
      %v1140 = vpop.f32.mrf.mxu0
      %v1141 = vadd.f32 0.0, %v1140
      %v1142 = vpop.f32.mrf.mxu0
      %v1143 = vadd.f32 0.0, %v1142
      %1144 = vmatmul.bf16.gmra.mxu0 %v1044
      %v1145 = vpop.f32.mrf.mxu0
      %v1146 = vadd.f32 0.0, %v1145
      %v1147 = vpop.f32.mrf.mxu0
      %v1148 = vadd.f32 0.0, %v1147
      %1149 = vmatmul.bf16.gmra.mxu0 %v1045
      %v1150 = vpop.f32.mrf.mxu0
      %v1151 = vadd.f32 0.0, %v1150
      %v1152 = vpop.f32.mrf.mxu0
      %v1153 = vadd.f32 0.0, %v1152
      %1154 = vmatmul.bf16.gmra.mxu0 %v1046
      %v1155 = vpop.f32.mrf.mxu0
      %v1156 = vadd.f32 0.0, %v1155
      %v1157 = vpop.f32.mrf.mxu0
      %v1158 = vadd.f32 0.0, %v1157
      %1159 = vmatmul.bf16.gmra.mxu0 %v1047
      %v1160 = vpop.f32.mrf.mxu0
      %v1161 = vadd.f32 0.0, %v1160
      %v1162 = vpop.f32.mrf.mxu0
      %v1163 = vadd.f32 0.0, %v1162
      %1164 = vmatmul.bf16.gmra.mxu0 %v1048
      %v1165 = vpop.f32.mrf.mxu0
      %v1166 = vadd.f32 0.0, %v1165
      %v1167 = vpop.f32.mrf.mxu0
      %v1168 = vadd.f32 0.0, %v1167
      %1169 = vmatmul.bf16.gmra.mxu0 %v1049
      %v1170 = vpop.f32.mrf.mxu0
      %v1171 = vadd.f32 0.0, %v1170
      %v1172 = vpop.f32.mrf.mxu0
      %v1173 = vadd.f32 0.0, %v1172
      %1174 = vmatmul.bf16.gmra.mxu0 %v1050
      %v1175 = vpop.f32.mrf.mxu0
      %v1176 = vadd.f32 0.0, %v1175
      %v1177 = vpop.f32.mrf.mxu0
      %v1178 = vadd.f32 0.0, %v1177
      %1179 = vmatmul.bf16.gmra.mxu0 %v1051
      %v1180 = vpop.f32.mrf.mxu0
      %v1181 = vadd.f32 0.0, %v1180
      %v1182 = vpop.f32.mrf.mxu0
      %v1183 = vadd.f32 0.0, %v1182
      %1184 = vmatmul.bf16.gmra.mxu0 %v1052
      %v1185 = vpop.f32.mrf.mxu0
      %v1186 = vadd.f32 0.0, %v1185
      %v1187 = vpop.f32.mrf.mxu0
      %v1188 = vadd.f32 0.0, %v1187
      %1189 = vmatmul.bf16.gmra.mxu0 %v1053
      %v1190 = vpop.f32.mrf.mxu0
      %v1191 = vadd.f32 0.0, %v1190
      %v1192 = vpop.f32.mrf.mxu0
      %v1193 = vadd.f32 0.0, %v1192
      %1194 = vmatmul.bf16.gmra.mxu0 %v1054
      %v1195 = vpop.f32.mrf.mxu0
      %v1196 = vadd.f32 0.0, %v1195
      %v1197 = vpop.f32.mrf.mxu0
      %v1198 = vadd.f32 0.0, %v1197
      %1199 = vmatmul.bf16.gmra.mxu0 %v1055
      %v1200 = vpop.f32.mrf.mxu0
      %v1201 = vadd.f32 0.0, %v1200
      %v1202 = vpop.f32.mrf.mxu0
      %v1203 = vadd.f32 0.0, %v1202
      %1204 = vmatmul.bf16.gmra.mxu0 %v1056
      %v1205 = vpop.f32.mrf.mxu0
      %v1206 = vadd.f32 0.0, %v1205
      %v1207 = vpop.f32.mrf.mxu0
      %v1208 = vadd.f32 0.0, %v1207
      %1209 = vdwg.mxu0
      %v1210 = vadd.f32 %v896, %v1131
      %v1211 = vadd.f32 %v897, %v1133
      %v1212 = vadd.f32 %v898, %v1136
      %v1213 = vadd.f32 %v899, %v1138
      %v1214 = vadd.f32 %v900, %v1141
      %v1215 = vadd.f32 %v901, %v1143
      %v1216 = vadd.f32 %v902, %v1146
      %v1217 = vadd.f32 %v903, %v1148
      %v1218 = vadd.f32 %v904, %v1151
      %v1219 = vadd.f32 %v905, %v1153
      %v1220 = vadd.f32 %v906, %v1156
      %v1221 = vadd.f32 %v907, %v1158
      %v1222 = vadd.f32 %v908, %v1161
      %v1223 = vadd.f32 %v909, %v1163
      %v1224 = vadd.f32 %v910, %v1166
      %v1225 = vadd.f32 %v911, %v1168
      %v1226 = vadd.f32 %v912, %v1171
      %v1227 = vadd.f32 %v913, %v1173
      %v1228 = vadd.f32 %v914, %v1176
      %v1229 = vadd.f32 %v915, %v1178
      %v1230 = vadd.f32 %v916, %v1181
      %v1231 = vadd.f32 %v917, %v1183
      %v1232 = vadd.f32 %v918, %v1186
      %v1233 = vadd.f32 %v919, %v1188
      %v1234 = vadd.f32 %v920, %v1191
      %v1235 = vadd.f32 %v921, %v1193
      %v1236 = vadd.f32 %v922, %v1196
      %v1237 = vadd.f32 %v923, %v1198
      %v1238 = vadd.f32 %v924, %v1201
      %v1239 = vadd.f32 %v925, %v1203
      %v1240 = vadd.f32 %v926, %v1206
      %v1241 = vadd.f32 %v927, %v1208
      %v1242 = vld [vmem:[%s165 + $0x20] sm:$0xf]
      %v1243 = vld [vmem:[%s165 + $0x24] sm:$0xf]
      %v1244 = vld [vmem:[%s165 + $0x28] sm:$0xf]
      %v1245 = vld [vmem:[%s165 + $0x2c] sm:$0xf]
      %v1246 = vld [vmem:[%s165 + $0x30] sm:$0xf]
      %v1247 = vld [vmem:[%s165 + $0x34] sm:$0xf]
      %v1248 = vld [vmem:[%s165 + $0x38] sm:$0xf]
      %v1249 = vld [vmem:[%s165 + $0x3c] sm:$0xf]
      %v1250 = vld [vmem:[%s165 + $0x40] sm:$0xf]
      %v1251 = vld [vmem:[%s165 + $0x44] sm:$0xf]
      %v1252 = vld [vmem:[%s165 + $0x48] sm:$0xf]
      %v1253 = vld [vmem:[%s165 + $0x4c] sm:$0xf]
      %v1254 = vld [vmem:[%s165 + $0x50] sm:$0xf]
      %v1255 = vld [vmem:[%s165 + $0x54] sm:$0xf]
      %v1256 = vld [vmem:[%s165 + $0x58] sm:$0xf]
      %v1257 = vld [vmem:[%s165 + $0x5c] sm:$0xf]
      %v1258 = vld [vmem:[%s165 + $0x60] sm:$0xf]
      %v1259 = vld [vmem:[%s165 + $0x64] sm:$0xf]
      %v1260 = vld [vmem:[%s165 + $0x68] sm:$0xf]
      %v1261 = vld [vmem:[%s165 + $0x6c] sm:$0xf]
      %v1262 = vld [vmem:[%s165 + $0x70] sm:$0xf]
      %v1263 = vld [vmem:[%s165 + $0x74] sm:$0xf]
      %v1264 = vld [vmem:[%s165 + $0x78] sm:$0xf]
      %v1265 = vld [vmem:[%s165 + $0x7c] sm:$0xf]
      %v1266 = vld [vmem:[%s165 + $0x80] sm:$0xf]
      %v1267 = vld [vmem:[%s165 + $0x84] sm:$0xf]
      %v1268 = vld [vmem:[%s165 + $0x88] sm:$0xf]
      %v1269 = vld [vmem:[%s165 + $0x8c] sm:$0xf]
      %v1270 = vld [vmem:[%s165 + $0x90] sm:$0xf]
      %v1271 = vld [vmem:[%s165 + $0x94] sm:$0xf]
      %v1272 = vld [vmem:[%s165 + $0x98] sm:$0xf]
      %v1273 = vld [vmem:[%s165 + $0x9c] sm:$0xf]
      %s1274 = scalar_lea.vmem %s1, 256
      %v1275 = vld [vmem:[%s1274] sm:$0xf]
      %v1276 = vld [vmem:[%s1274 + $0x4] sm:$0xf]
      %v1277 = vld [vmem:[%s1274 + $0x8] sm:$0xf]
      %v1278 = vld [vmem:[%s1274 + $0xc] sm:$0xf]
      %v1279 = vld [vmem:[%s1274 + $0x10] sm:$0xf]
      %v1280 = vld [vmem:[%s1274 + $0x14] sm:$0xf]
      %v1281 = vld [vmem:[%s1274 + $0x18] sm:$0xf]
      %v1282 = vld [vmem:[%s1274 + $0x1c] sm:$0xf]
      %v1283 = vld [vmem:[%s1274 + $0x20] sm:$0xf]
      %v1284 = vld [vmem:[%s1274 + $0x24] sm:$0xf]
      %v1285 = vld [vmem:[%s1274 + $0x28] sm:$0xf]
      %v1286 = vld [vmem:[%s1274 + $0x2c] sm:$0xf]
      %v1287 = vld [vmem:[%s1274 + $0x30] sm:$0xf]
      %v1288 = vld [vmem:[%s1274 + $0x34] sm:$0xf]
      %v1289 = vld [vmem:[%s1274 + $0x38] sm:$0xf]
      %v1290 = vld [vmem:[%s1274 + $0x3c] sm:$0xf]
      %v1323 = vunpack.c.l.b16 %v1242
      %v1324 = vunpack.c.l.b16 %v1243
      %v1325 = vunpack.c.l.b16 %v1244
      %v1326 = vunpack.c.l.b16 %v1245
      %v1327 = vunpack.c.l.b16 %v1246
      %v1328 = vunpack.c.l.b16 %v1247
      %v1329 = vunpack.c.l.b16 %v1248
      %v1330 = vunpack.c.l.b16 %v1249
      %v1331 = vunpack.c.l.b16 %v1250
      %v1332 = vunpack.c.l.b16 %v1251
      %v1333 = vunpack.c.l.b16 %v1252
      %v1334 = vunpack.c.l.b16 %v1253
      %v1335 = vunpack.c.l.b16 %v1254
      %v1336 = vunpack.c.l.b16 %v1255
      %v1337 = vunpack.c.l.b16 %v1256
      %v1338 = vunpack.c.l.b16 %v1257
      %v1339 = vunpack.c.l.b16 %v1258
      %v1340 = vunpack.c.l.b16 %v1259
      %v1341 = vunpack.c.l.b16 %v1260
      %v1342 = vunpack.c.l.b16 %v1261
      %v1343 = vunpack.c.l.b16 %v1262
      %v1344 = vunpack.c.l.b16 %v1263
      %v1345 = vunpack.c.l.b16 %v1264
      %v1346 = vunpack.c.l.b16 %v1265
      %v1347 = vunpack.c.l.b16 %v1266
      %v1348 = vunpack.c.l.b16 %v1267
      %v1349 = vunpack.c.l.b16 %v1268
      %v1350 = vunpack.c.l.b16 %v1269
      %v1351 = vunpack.c.l.b16 %v1270
      %v1352 = vunpack.c.l.b16 %v1271
      %v1353 = vunpack.c.l.b16 %v1272
      %v1354 = vunpack.c.l.b16 %v1273
      %v1355 = vpack.c.b16 %v1324, %v1323
      %v1356 = vpack.c.b16 %v1326, %v1325
      %v1357 = vpack.c.b16 %v1328, %v1327
      %v1358 = vpack.c.b16 %v1330, %v1329
      %v1359 = vpack.c.b16 %v1332, %v1331
      %v1360 = vpack.c.b16 %v1334, %v1333
      %v1361 = vpack.c.b16 %v1336, %v1335
      %v1362 = vpack.c.b16 %v1338, %v1337
      %v1363 = vpack.c.b16 %v1340, %v1339
      %v1364 = vpack.c.b16 %v1342, %v1341
      %v1365 = vpack.c.b16 %v1344, %v1343
      %v1366 = vpack.c.b16 %v1346, %v1345
      %v1367 = vpack.c.b16 %v1348, %v1347
      %v1368 = vpack.c.b16 %v1350, %v1349
      %v1369 = vpack.c.b16 %v1352, %v1351
      %v1370 = vpack.c.b16 %v1354, %v1353
      %v1403 = vunpack.c.l.b16 %v1275
      %v1404 = vunpack.c.l.b16 %v1276
      %v1405 = vunpack.c.l.b16 %v1277
      %v1406 = vunpack.c.l.b16 %v1278
      %v1407 = vunpack.c.l.b16 %v1279
      %v1408 = vunpack.c.l.b16 %v1280
      %v1409 = vunpack.c.l.b16 %v1281
      %v1410 = vunpack.c.l.b16 %v1282
      %v1411 = vunpack.c.l.b16 %v1283
      %v1412 = vunpack.c.l.b16 %v1284
      %v1413 = vunpack.c.l.b16 %v1285
      %v1414 = vunpack.c.l.b16 %v1286
      %v1415 = vunpack.c.l.b16 %v1287
      %v1416 = vunpack.c.l.b16 %v1288
      %v1417 = vunpack.c.l.b16 %v1289
      %v1418 = vunpack.c.l.b16 %v1290
      %v1419 = vpack.c.b16 %v1404, %v1403
      %v1420 = vpack.c.b16 %v1406, %v1405
      %v1421 = vpack.c.b16 %v1408, %v1407
      %v1422 = vpack.c.b16 %v1410, %v1409
      %v1423 = vpack.c.b16 %v1412, %v1411
      %v1424 = vpack.c.b16 %v1414, %v1413
      %v1425 = vpack.c.b16 %v1416, %v1415
      %v1426 = vpack.c.b16 %v1418, %v1417
      %1435 = vmatpush.bf16.msra.mxu0 %v1426
      %1436 = vmatpush.bf16.msra.mxu0 %v1425
      %1437 = vmatpush.bf16.msra.mxu0 %v1424
      %1438 = vmatpush.bf16.msra.mxu0 %v1423
      %1439 = vmatpush.bf16.msra.mxu0 %v1422
      %1440 = vmatpush.bf16.msra.mxu0 %v1421
      %1441 = vmatpush.bf16.msra.mxu0 %v1420
      %1442 = vmatpush.bf16.msra.mxu0 %v1419
      %1443 = vmatmul.bf16.gmra.mxu0 %v1355
      %v1444 = vpop.f32.mrf.mxu0
      %v1445 = vadd.f32 0.0, %v1444
      %v1446 = vpop.f32.mrf.mxu0
      %v1447 = vadd.f32 0.0, %v1446
      %1448 = vmatmul.bf16.gmra.mxu0 %v1356
      %v1449 = vpop.f32.mrf.mxu0
      %v1450 = vadd.f32 0.0, %v1449
      %v1451 = vpop.f32.mrf.mxu0
      %v1452 = vadd.f32 0.0, %v1451
      %1453 = vmatmul.bf16.gmra.mxu0 %v1357
      %v1454 = vpop.f32.mrf.mxu0
      %v1455 = vadd.f32 0.0, %v1454
      %v1456 = vpop.f32.mrf.mxu0
      %v1457 = vadd.f32 0.0, %v1456
      %1458 = vmatmul.bf16.gmra.mxu0 %v1358
      %v1459 = vpop.f32.mrf.mxu0
      %v1460 = vadd.f32 0.0, %v1459
      %v1461 = vpop.f32.mrf.mxu0
      %v1462 = vadd.f32 0.0, %v1461
      %1463 = vmatmul.bf16.gmra.mxu0 %v1359
      %v1464 = vpop.f32.mrf.mxu0
      %v1465 = vadd.f32 0.0, %v1464
      %v1466 = vpop.f32.mrf.mxu0
      %v1467 = vadd.f32 0.0, %v1466
      %1468 = vmatmul.bf16.gmra.mxu0 %v1360
      %v1469 = vpop.f32.mrf.mxu0
      %v1470 = vadd.f32 0.0, %v1469
      %v1471 = vpop.f32.mrf.mxu0
      %v1472 = vadd.f32 0.0, %v1471
      %1473 = vmatmul.bf16.gmra.mxu0 %v1361
      %v1474 = vpop.f32.mrf.mxu0
      %v1475 = vadd.f32 0.0, %v1474
      %v1476 = vpop.f32.mrf.mxu0
      %v1477 = vadd.f32 0.0, %v1476
      %1478 = vmatmul.bf16.gmra.mxu0 %v1362
      %v1479 = vpop.f32.mrf.mxu0
      %v1480 = vadd.f32 0.0, %v1479
      %v1481 = vpop.f32.mrf.mxu0
      %v1482 = vadd.f32 0.0, %v1481
      %1483 = vmatmul.bf16.gmra.mxu0 %v1363
      %v1484 = vpop.f32.mrf.mxu0
      %v1485 = vadd.f32 0.0, %v1484
      %v1486 = vpop.f32.mrf.mxu0
      %v1487 = vadd.f32 0.0, %v1486
      %1488 = vmatmul.bf16.gmra.mxu0 %v1364
      %v1489 = vpop.f32.mrf.mxu0
      %v1490 = vadd.f32 0.0, %v1489
      %v1491 = vpop.f32.mrf.mxu0
      %v1492 = vadd.f32 0.0, %v1491
      %1493 = vmatmul.bf16.gmra.mxu0 %v1365
      %v1494 = vpop.f32.mrf.mxu0
      %v1495 = vadd.f32 0.0, %v1494
      %v1496 = vpop.f32.mrf.mxu0
      %v1497 = vadd.f32 0.0, %v1496
      %1498 = vmatmul.bf16.gmra.mxu0 %v1366
      %v1499 = vpop.f32.mrf.mxu0
      %v1500 = vadd.f32 0.0, %v1499
      %v1501 = vpop.f32.mrf.mxu0
      %v1502 = vadd.f32 0.0, %v1501
      %1503 = vmatmul.bf16.gmra.mxu0 %v1367
      %v1504 = vpop.f32.mrf.mxu0
      %v1505 = vadd.f32 0.0, %v1504
      %v1506 = vpop.f32.mrf.mxu0
      %v1507 = vadd.f32 0.0, %v1506
      %1508 = vmatmul.bf16.gmra.mxu0 %v1368
      %v1509 = vpop.f32.mrf.mxu0
      %v1510 = vadd.f32 0.0, %v1509
      %v1511 = vpop.f32.mrf.mxu0
      %v1512 = vadd.f32 0.0, %v1511
      %1513 = vmatmul.bf16.gmra.mxu0 %v1369
      %v1514 = vpop.f32.mrf.mxu0
      %v1515 = vadd.f32 0.0, %v1514
      %v1516 = vpop.f32.mrf.mxu0
      %v1517 = vadd.f32 0.0, %v1516
      %1518 = vmatmul.bf16.gmra.mxu0 %v1370
      %v1519 = vpop.f32.mrf.mxu0
      %v1520 = vadd.f32 0.0, %v1519
      %v1521 = vpop.f32.mrf.mxu0
      %v1522 = vadd.f32 0.0, %v1521
      %1523 = vdwg.mxu0
      %v1524 = vadd.f32 %v1210, %v1445
      %v1525 = vadd.f32 %v1211, %v1447
      %v1526 = vadd.f32 %v1212, %v1450
      %v1527 = vadd.f32 %v1213, %v1452
      %v1528 = vadd.f32 %v1214, %v1455
      %v1529 = vadd.f32 %v1215, %v1457
      %v1530 = vadd.f32 %v1216, %v1460
      %v1531 = vadd.f32 %v1217, %v1462
      %v1532 = vadd.f32 %v1218, %v1465
      %v1533 = vadd.f32 %v1219, %v1467
      %v1534 = vadd.f32 %v1220, %v1470
      %v1535 = vadd.f32 %v1221, %v1472
      %v1536 = vadd.f32 %v1222, %v1475
      %v1537 = vadd.f32 %v1223, %v1477
      %v1538 = vadd.f32 %v1224, %v1480
      %v1539 = vadd.f32 %v1225, %v1482
      %v1540 = vadd.f32 %v1226, %v1485
      %v1541 = vadd.f32 %v1227, %v1487
      %v1542 = vadd.f32 %v1228, %v1490
      %v1543 = vadd.f32 %v1229, %v1492
      %v1544 = vadd.f32 %v1230, %v1495
      %v1545 = vadd.f32 %v1231, %v1497
      %v1546 = vadd.f32 %v1232, %v1500
      %v1547 = vadd.f32 %v1233, %v1502
      %v1548 = vadd.f32 %v1234, %v1505
      %v1549 = vadd.f32 %v1235, %v1507
      %v1550 = vadd.f32 %v1236, %v1510
      %v1551 = vadd.f32 %v1237, %v1512
      %v1552 = vadd.f32 %v1238, %v1515
      %v1553 = vadd.f32 %v1239, %v1517
      %v1554 = vadd.f32 %v1240, %v1520
      %v1555 = vadd.f32 %v1241, %v1522
      %v1556 = vld [vmem:[%s165 + $0x28] sm:$0xf]
      %v1557 = vld [vmem:[%s165 + $0x2c] sm:$0xf]
      %v1558 = vld [vmem:[%s165 + $0x30] sm:$0xf]
      %v1559 = vld [vmem:[%s165 + $0x34] sm:$0xf]
      %v1560 = vld [vmem:[%s165 + $0x38] sm:$0xf]
      %v1561 = vld [vmem:[%s165 + $0x3c] sm:$0xf]
      %v1562 = vld [vmem:[%s165 + $0x40] sm:$0xf]
      %v1563 = vld [vmem:[%s165 + $0x44] sm:$0xf]
      %v1564 = vld [vmem:[%s165 + $0x48] sm:$0xf]
      %v1565 = vld [vmem:[%s165 + $0x4c] sm:$0xf]
      %v1566 = vld [vmem:[%s165 + $0x50] sm:$0xf]
      %v1567 = vld [vmem:[%s165 + $0x54] sm:$0xf]
      %v1568 = vld [vmem:[%s165 + $0x58] sm:$0xf]
      %v1569 = vld [vmem:[%s165 + $0x5c] sm:$0xf]
      %v1570 = vld [vmem:[%s165 + $0x60] sm:$0xf]
      %v1571 = vld [vmem:[%s165 + $0x64] sm:$0xf]
      %v1572 = vld [vmem:[%s165 + $0x68] sm:$0xf]
      %v1573 = vld [vmem:[%s165 + $0x6c] sm:$0xf]
      %v1574 = vld [vmem:[%s165 + $0x70] sm:$0xf]
      %v1575 = vld [vmem:[%s165 + $0x74] sm:$0xf]
      %v1576 = vld [vmem:[%s165 + $0x78] sm:$0xf]
      %v1577 = vld [vmem:[%s165 + $0x7c] sm:$0xf]
      %v1578 = vld [vmem:[%s165 + $0x80] sm:$0xf]
      %v1579 = vld [vmem:[%s165 + $0x84] sm:$0xf]
      %v1580 = vld [vmem:[%s165 + $0x88] sm:$0xf]
      %v1581 = vld [vmem:[%s165 + $0x8c] sm:$0xf]
      %v1582 = vld [vmem:[%s165 + $0x90] sm:$0xf]
      %v1583 = vld [vmem:[%s165 + $0x94] sm:$0xf]
      %v1584 = vld [vmem:[%s165 + $0x98] sm:$0xf]
      %v1585 = vld [vmem:[%s165 + $0x9c] sm:$0xf]
      %v1586 = vld [vmem:[%s165 + $0xa0] sm:$0xf]
      %v1587 = vld [vmem:[%s165 + $0xa4] sm:$0xf]
      %s1588 = scalar_lea.vmem %s1, 320
      %v1589 = vld [vmem:[%s1588] sm:$0xf]
      %v1590 = vld [vmem:[%s1588 + $0x4] sm:$0xf]
      %v1591 = vld [vmem:[%s1588 + $0x8] sm:$0xf]
      %v1592 = vld [vmem:[%s1588 + $0xc] sm:$0xf]
      %v1593 = vld [vmem:[%s1588 + $0x10] sm:$0xf]
      %v1594 = vld [vmem:[%s1588 + $0x14] sm:$0xf]
      %v1595 = vld [vmem:[%s1588 + $0x18] sm:$0xf]
      %v1596 = vld [vmem:[%s1588 + $0x1c] sm:$0xf]
      %v1597 = vld [vmem:[%s1588 + $0x20] sm:$0xf]
      %v1598 = vld [vmem:[%s1588 + $0x24] sm:$0xf]
      %v1599 = vld [vmem:[%s1588 + $0x28] sm:$0xf]
      %v1600 = vld [vmem:[%s1588 + $0x2c] sm:$0xf]
      %v1601 = vld [vmem:[%s1588 + $0x30] sm:$0xf]
      %v1602 = vld [vmem:[%s1588 + $0x34] sm:$0xf]
      %v1603 = vld [vmem:[%s1588 + $0x38] sm:$0xf]
      %v1604 = vld [vmem:[%s1588 + $0x3c] sm:$0xf]
      %v1637 = vunpack.c.l.b16 %v1556
      %v1638 = vunpack.c.l.b16 %v1557
      %v1639 = vunpack.c.l.b16 %v1558
      %v1640 = vunpack.c.l.b16 %v1559
      %v1641 = vunpack.c.l.b16 %v1560
      %v1642 = vunpack.c.l.b16 %v1561
      %v1643 = vunpack.c.l.b16 %v1562
      %v1644 = vunpack.c.l.b16 %v1563
      %v1645 = vunpack.c.l.b16 %v1564
      %v1646 = vunpack.c.l.b16 %v1565
      %v1647 = vunpack.c.l.b16 %v1566
      %v1648 = vunpack.c.l.b16 %v1567
      %v1649 = vunpack.c.l.b16 %v1568
      %v1650 = vunpack.c.l.b16 %v1569
      %v1651 = vunpack.c.l.b16 %v1570
      %v1652 = vunpack.c.l.b16 %v1571
      %v1653 = vunpack.c.l.b16 %v1572
      %v1654 = vunpack.c.l.b16 %v1573
      %v1655 = vunpack.c.l.b16 %v1574
      %v1656 = vunpack.c.l.b16 %v1575
      %v1657 = vunpack.c.l.b16 %v1576
      %v1658 = vunpack.c.l.b16 %v1577
      %v1659 = vunpack.c.l.b16 %v1578
      %v1660 = vunpack.c.l.b16 %v1579
      %v1661 = vunpack.c.l.b16 %v1580
      %v1662 = vunpack.c.l.b16 %v1581
      %v1663 = vunpack.c.l.b16 %v1582
      %v1664 = vunpack.c.l.b16 %v1583
      %v1665 = vunpack.c.l.b16 %v1584
      %v1666 = vunpack.c.l.b16 %v1585
      %v1667 = vunpack.c.l.b16 %v1586
      %v1668 = vunpack.c.l.b16 %v1587
      %v1669 = vpack.c.b16 %v1638, %v1637
      %v1670 = vpack.c.b16 %v1640, %v1639
      %v1671 = vpack.c.b16 %v1642, %v1641
      %v1672 = vpack.c.b16 %v1644, %v1643
      %v1673 = vpack.c.b16 %v1646, %v1645
      %v1674 = vpack.c.b16 %v1648, %v1647
      %v1675 = vpack.c.b16 %v1650, %v1649
      %v1676 = vpack.c.b16 %v1652, %v1651
      %v1677 = vpack.c.b16 %v1654, %v1653
      %v1678 = vpack.c.b16 %v1656, %v1655
      %v1679 = vpack.c.b16 %v1658, %v1657
      %v1680 = vpack.c.b16 %v1660, %v1659
      %v1681 = vpack.c.b16 %v1662, %v1661
      %v1682 = vpack.c.b16 %v1664, %v1663
      %v1683 = vpack.c.b16 %v1666, %v1665
      %v1684 = vpack.c.b16 %v1668, %v1667
      %v1717 = vunpack.c.l.b16 %v1589
      %v1718 = vunpack.c.l.b16 %v1590
      %v1719 = vunpack.c.l.b16 %v1591
      %v1720 = vunpack.c.l.b16 %v1592
      %v1721 = vunpack.c.l.b16 %v1593
      %v1722 = vunpack.c.l.b16 %v1594
      %v1723 = vunpack.c.l.b16 %v1595
      %v1724 = vunpack.c.l.b16 %v1596
      %v1725 = vunpack.c.l.b16 %v1597
      %v1726 = vunpack.c.l.b16 %v1598
      %v1727 = vunpack.c.l.b16 %v1599
      %v1728 = vunpack.c.l.b16 %v1600
      %v1729 = vunpack.c.l.b16 %v1601
      %v1730 = vunpack.c.l.b16 %v1602
      %v1731 = vunpack.c.l.b16 %v1603
      %v1732 = vunpack.c.l.b16 %v1604
      %v1733 = vpack.c.b16 %v1718, %v1717
      %v1734 = vpack.c.b16 %v1720, %v1719
      %v1735 = vpack.c.b16 %v1722, %v1721
      %v1736 = vpack.c.b16 %v1724, %v1723
      %v1737 = vpack.c.b16 %v1726, %v1725
      %v1738 = vpack.c.b16 %v1728, %v1727
      %v1739 = vpack.c.b16 %v1730, %v1729
      %v1740 = vpack.c.b16 %v1732, %v1731
      %1749 = vmatpush.bf16.msra.mxu0 %v1740
      %1750 = vmatpush.bf16.msra.mxu0 %v1739
      %1751 = vmatpush.bf16.msra.mxu0 %v1738
      %1752 = vmatpush.bf16.msra.mxu0 %v1737
      %1753 = vmatpush.bf16.msra.mxu0 %v1736
      %1754 = vmatpush.bf16.msra.mxu0 %v1735
      %1755 = vmatpush.bf16.msra.mxu0 %v1734
      %1756 = vmatpush.bf16.msra.mxu0 %v1733
      %1757 = vmatmul.bf16.gmra.mxu0 %v1669
      %v1758 = vpop.f32.mrf.mxu0
      %v1759 = vadd.f32 0.0, %v1758
      %v1760 = vpop.f32.mrf.mxu0
      %v1761 = vadd.f32 0.0, %v1760
      %1762 = vmatmul.bf16.gmra.mxu0 %v1670
      %v1763 = vpop.f32.mrf.mxu0
      %v1764 = vadd.f32 0.0, %v1763
      %v1765 = vpop.f32.mrf.mxu0
      %v1766 = vadd.f32 0.0, %v1765
      %1767 = vmatmul.bf16.gmra.mxu0 %v1671
      %v1768 = vpop.f32.mrf.mxu0
      %v1769 = vadd.f32 0.0, %v1768
      %v1770 = vpop.f32.mrf.mxu0
      %v1771 = vadd.f32 0.0, %v1770
      %1772 = vmatmul.bf16.gmra.mxu0 %v1672
      %v1773 = vpop.f32.mrf.mxu0
      %v1774 = vadd.f32 0.0, %v1773
      %v1775 = vpop.f32.mrf.mxu0
      %v1776 = vadd.f32 0.0, %v1775
      %1777 = vmatmul.bf16.gmra.mxu0 %v1673
      %v1778 = vpop.f32.mrf.mxu0
      %v1779 = vadd.f32 0.0, %v1778
      %v1780 = vpop.f32.mrf.mxu0
      %v1781 = vadd.f32 0.0, %v1780
      %1782 = vmatmul.bf16.gmra.mxu0 %v1674
      %v1783 = vpop.f32.mrf.mxu0
      %v1784 = vadd.f32 0.0, %v1783
      %v1785 = vpop.f32.mrf.mxu0
      %v1786 = vadd.f32 0.0, %v1785
      %1787 = vmatmul.bf16.gmra.mxu0 %v1675
      %v1788 = vpop.f32.mrf.mxu0
      %v1789 = vadd.f32 0.0, %v1788
      %v1790 = vpop.f32.mrf.mxu0
      %v1791 = vadd.f32 0.0, %v1790
      %1792 = vmatmul.bf16.gmra.mxu0 %v1676
      %v1793 = vpop.f32.mrf.mxu0
      %v1794 = vadd.f32 0.0, %v1793
      %v1795 = vpop.f32.mrf.mxu0
      %v1796 = vadd.f32 0.0, %v1795
      %1797 = vmatmul.bf16.gmra.mxu0 %v1677
      %v1798 = vpop.f32.mrf.mxu0
      %v1799 = vadd.f32 0.0, %v1798
      %v1800 = vpop.f32.mrf.mxu0
      %v1801 = vadd.f32 0.0, %v1800
      %1802 = vmatmul.bf16.gmra.mxu0 %v1678
      %v1803 = vpop.f32.mrf.mxu0
      %v1804 = vadd.f32 0.0, %v1803
      %v1805 = vpop.f32.mrf.mxu0
      %v1806 = vadd.f32 0.0, %v1805
      %1807 = vmatmul.bf16.gmra.mxu0 %v1679
      %v1808 = vpop.f32.mrf.mxu0
      %v1809 = vadd.f32 0.0, %v1808
      %v1810 = vpop.f32.mrf.mxu0
      %v1811 = vadd.f32 0.0, %v1810
      %1812 = vmatmul.bf16.gmra.mxu0 %v1680
      %v1813 = vpop.f32.mrf.mxu0
      %v1814 = vadd.f32 0.0, %v1813
      %v1815 = vpop.f32.mrf.mxu0
      %v1816 = vadd.f32 0.0, %v1815
      %1817 = vmatmul.bf16.gmra.mxu0 %v1681
      %v1818 = vpop.f32.mrf.mxu0
      %v1819 = vadd.f32 0.0, %v1818
      %v1820 = vpop.f32.mrf.mxu0
      %v1821 = vadd.f32 0.0, %v1820
      %1822 = vmatmul.bf16.gmra.mxu0 %v1682
      %v1823 = vpop.f32.mrf.mxu0
      %v1824 = vadd.f32 0.0, %v1823
      %v1825 = vpop.f32.mrf.mxu0
      %v1826 = vadd.f32 0.0, %v1825
      %1827 = vmatmul.bf16.gmra.mxu0 %v1683
      %v1828 = vpop.f32.mrf.mxu0
      %v1829 = vadd.f32 0.0, %v1828
      %v1830 = vpop.f32.mrf.mxu0
      %v1831 = vadd.f32 0.0, %v1830
      %1832 = vmatmul.bf16.gmra.mxu0 %v1684
      %v1833 = vpop.f32.mrf.mxu0
      %v1834 = vadd.f32 0.0, %v1833
      %v1835 = vpop.f32.mrf.mxu0
      %v1836 = vadd.f32 0.0, %v1835
      %1837 = vdwg.mxu0
      %v1838 = vadd.f32 %v1524, %v1759
      %v1839 = vadd.f32 %v1525, %v1761
      %v1840 = vadd.f32 %v1526, %v1764
      %v1841 = vadd.f32 %v1527, %v1766
      %v1842 = vadd.f32 %v1528, %v1769
      %v1843 = vadd.f32 %v1529, %v1771
      %v1844 = vadd.f32 %v1530, %v1774
      %v1845 = vadd.f32 %v1531, %v1776
      %v1846 = vadd.f32 %v1532, %v1779
      %v1847 = vadd.f32 %v1533, %v1781
      %v1848 = vadd.f32 %v1534, %v1784
      %v1849 = vadd.f32 %v1535, %v1786
      %v1850 = vadd.f32 %v1536, %v1789
      %v1851 = vadd.f32 %v1537, %v1791
      %v1852 = vadd.f32 %v1538, %v1794
      %v1853 = vadd.f32 %v1539, %v1796
      %v1854 = vadd.f32 %v1540, %v1799
      %v1855 = vadd.f32 %v1541, %v1801
      %v1856 = vadd.f32 %v1542, %v1804
      %v1857 = vadd.f32 %v1543, %v1806
      %v1858 = vadd.f32 %v1544, %v1809
      %v1859 = vadd.f32 %v1545, %v1811
      %v1860 = vadd.f32 %v1546, %v1814
      %v1861 = vadd.f32 %v1547, %v1816
      %v1862 = vadd.f32 %v1548, %v1819
      %v1863 = vadd.f32 %v1549, %v1821
      %v1864 = vadd.f32 %v1550, %v1824
      %v1865 = vadd.f32 %v1551, %v1826
      %v1866 = vadd.f32 %v1552, %v1829
      %v1867 = vadd.f32 %v1553, %v1831
      %v1868 = vadd.f32 %v1554, %v1834
      %v1869 = vadd.f32 %v1555, %v1836
      %v1870 = vld [vmem:[%s165 + $0x30] sm:$0xf]
      %v1871 = vld [vmem:[%s165 + $0x34] sm:$0xf]
      %v1872 = vld [vmem:[%s165 + $0x38] sm:$0xf]
      %v1873 = vld [vmem:[%s165 + $0x3c] sm:$0xf]
      %v1874 = vld [vmem:[%s165 + $0x40] sm:$0xf]
      %v1875 = vld [vmem:[%s165 + $0x44] sm:$0xf]
      %v1876 = vld [vmem:[%s165 + $0x48] sm:$0xf]
      %v1877 = vld [vmem:[%s165 + $0x4c] sm:$0xf]
      %v1878 = vld [vmem:[%s165 + $0x50] sm:$0xf]
      %v1879 = vld [vmem:[%s165 + $0x54] sm:$0xf]
      %v1880 = vld [vmem:[%s165 + $0x58] sm:$0xf]
      %v1881 = vld [vmem:[%s165 + $0x5c] sm:$0xf]
      %v1882 = vld [vmem:[%s165 + $0x60] sm:$0xf]
      %v1883 = vld [vmem:[%s165 + $0x64] sm:$0xf]
      %v1884 = vld [vmem:[%s165 + $0x68] sm:$0xf]
      %v1885 = vld [vmem:[%s165 + $0x6c] sm:$0xf]
      %v1886 = vld [vmem:[%s165 + $0x70] sm:$0xf]
      %v1887 = vld [vmem:[%s165 + $0x74] sm:$0xf]
      %v1888 = vld [vmem:[%s165 + $0x78] sm:$0xf]
      %v1889 = vld [vmem:[%s165 + $0x7c] sm:$0xf]
      %v1890 = vld [vmem:[%s165 + $0x80] sm:$0xf]
      %v1891 = vld [vmem:[%s165 + $0x84] sm:$0xf]
      %v1892 = vld [vmem:[%s165 + $0x88] sm:$0xf]
      %v1893 = vld [vmem:[%s165 + $0x8c] sm:$0xf]
      %v1894 = vld [vmem:[%s165 + $0x90] sm:$0xf]
      %v1895 = vld [vmem:[%s165 + $0x94] sm:$0xf]
      %v1896 = vld [vmem:[%s165 + $0x98] sm:$0xf]
      %v1897 = vld [vmem:[%s165 + $0x9c] sm:$0xf]
      %v1898 = vld [vmem:[%s165 + $0xa0] sm:$0xf]
      %v1899 = vld [vmem:[%s165 + $0xa4] sm:$0xf]
      %v1900 = vld [vmem:[%s165 + $0xa8] sm:$0xf]
      %v1901 = vld [vmem:[%s165 + $0xac] sm:$0xf]
      %s1902 = scalar_lea.vmem %s1, 384
      %v1903 = vld [vmem:[%s1902] sm:$0xf]
      %v1904 = vld [vmem:[%s1902 + $0x4] sm:$0xf]
      %v1905 = vld [vmem:[%s1902 + $0x8] sm:$0xf]
      %v1906 = vld [vmem:[%s1902 + $0xc] sm:$0xf]
      %v1907 = vld [vmem:[%s1902 + $0x10] sm:$0xf]
      %v1908 = vld [vmem:[%s1902 + $0x14] sm:$0xf]
      %v1909 = vld [vmem:[%s1902 + $0x18] sm:$0xf]
      %v1910 = vld [vmem:[%s1902 + $0x1c] sm:$0xf]
      %v1911 = vld [vmem:[%s1902 + $0x20] sm:$0xf]
      %v1912 = vld [vmem:[%s1902 + $0x24] sm:$0xf]
      %v1913 = vld [vmem:[%s1902 + $0x28] sm:$0xf]
      %v1914 = vld [vmem:[%s1902 + $0x2c] sm:$0xf]
      %v1915 = vld [vmem:[%s1902 + $0x30] sm:$0xf]
      %v1916 = vld [vmem:[%s1902 + $0x34] sm:$0xf]
      %v1917 = vld [vmem:[%s1902 + $0x38] sm:$0xf]
      %v1918 = vld [vmem:[%s1902 + $0x3c] sm:$0xf]
      %v1951 = vunpack.c.l.b16 %v1870
      %v1952 = vunpack.c.l.b16 %v1871
      %v1953 = vunpack.c.l.b16 %v1872
      %v1954 = vunpack.c.l.b16 %v1873
      %v1955 = vunpack.c.l.b16 %v1874
      %v1956 = vunpack.c.l.b16 %v1875
      %v1957 = vunpack.c.l.b16 %v1876
      %v1958 = vunpack.c.l.b16 %v1877
      %v1959 = vunpack.c.l.b16 %v1878
      %v1960 = vunpack.c.l.b16 %v1879
      %v1961 = vunpack.c.l.b16 %v1880
      %v1962 = vunpack.c.l.b16 %v1881
      %v1963 = vunpack.c.l.b16 %v1882
      %v1964 = vunpack.c.l.b16 %v1883
      %v1965 = vunpack.c.l.b16 %v1884
      %v1966 = vunpack.c.l.b16 %v1885
      %v1967 = vunpack.c.l.b16 %v1886
      %v1968 = vunpack.c.l.b16 %v1887
      %v1969 = vunpack.c.l.b16 %v1888
      %v1970 = vunpack.c.l.b16 %v1889
      %v1971 = vunpack.c.l.b16 %v1890
      %v1972 = vunpack.c.l.b16 %v1891
      %v1973 = vunpack.c.l.b16 %v1892
      %v1974 = vunpack.c.l.b16 %v1893
      %v1975 = vunpack.c.l.b16 %v1894
      %v1976 = vunpack.c.l.b16 %v1895
      %v1977 = vunpack.c.l.b16 %v1896
      %v1978 = vunpack.c.l.b16 %v1897
      %v1979 = vunpack.c.l.b16 %v1898
      %v1980 = vunpack.c.l.b16 %v1899
      %v1981 = vunpack.c.l.b16 %v1900
      %v1982 = vunpack.c.l.b16 %v1901
      %v1983 = vpack.c.b16 %v1952, %v1951
      %v1984 = vpack.c.b16 %v1954, %v1953
      %v1985 = vpack.c.b16 %v1956, %v1955
      %v1986 = vpack.c.b16 %v1958, %v1957
      %v1987 = vpack.c.b16 %v1960, %v1959
      %v1988 = vpack.c.b16 %v1962, %v1961
      %v1989 = vpack.c.b16 %v1964, %v1963
      %v1990 = vpack.c.b16 %v1966, %v1965
      %v1991 = vpack.c.b16 %v1968, %v1967
      %v1992 = vpack.c.b16 %v1970, %v1969
      %v1993 = vpack.c.b16 %v1972, %v1971
      %v1994 = vpack.c.b16 %v1974, %v1973
      %v1995 = vpack.c.b16 %v1976, %v1975
      %v1996 = vpack.c.b16 %v1978, %v1977
      %v1997 = vpack.c.b16 %v1980, %v1979
      %v1998 = vpack.c.b16 %v1982, %v1981
      %v2031 = vunpack.c.l.b16 %v1903
      %v2032 = vunpack.c.l.b16 %v1904
      %v2033 = vunpack.c.l.b16 %v1905
      %v2034 = vunpack.c.l.b16 %v1906
      %v2035 = vunpack.c.l.b16 %v1907
      %v2036 = vunpack.c.l.b16 %v1908
      %v2037 = vunpack.c.l.b16 %v1909
      %v2038 = vunpack.c.l.b16 %v1910
      %v2039 = vunpack.c.l.b16 %v1911
      %v2040 = vunpack.c.l.b16 %v1912
      %v2041 = vunpack.c.l.b16 %v1913
      %v2042 = vunpack.c.l.b16 %v1914
      %v2043 = vunpack.c.l.b16 %v1915
      %v2044 = vunpack.c.l.b16 %v1916
      %v2045 = vunpack.c.l.b16 %v1917
      %v2046 = vunpack.c.l.b16 %v1918
      %v2047 = vpack.c.b16 %v2032, %v2031
      %v2048 = vpack.c.b16 %v2034, %v2033
      %v2049 = vpack.c.b16 %v2036, %v2035
      %v2050 = vpack.c.b16 %v2038, %v2037
      %v2051 = vpack.c.b16 %v2040, %v2039
      %v2052 = vpack.c.b16 %v2042, %v2041
      %v2053 = vpack.c.b16 %v2044, %v2043
      %v2054 = vpack.c.b16 %v2046, %v2045
      %2063 = vmatpush.bf16.msra.mxu0 %v2054
      %2064 = vmatpush.bf16.msra.mxu0 %v2053
      %2065 = vmatpush.bf16.msra.mxu0 %v2052
      %2066 = vmatpush.bf16.msra.mxu0 %v2051
      %2067 = vmatpush.bf16.msra.mxu0 %v2050
      %2068 = vmatpush.bf16.msra.mxu0 %v2049
      %2069 = vmatpush.bf16.msra.mxu0 %v2048
      %2070 = vmatpush.bf16.msra.mxu0 %v2047
      %2071 = vmatmul.bf16.gmra.mxu0 %v1983
      %v2072 = vpop.f32.mrf.mxu0
      %v2073 = vadd.f32 0.0, %v2072
      %v2074 = vpop.f32.mrf.mxu0
      %v2075 = vadd.f32 0.0, %v2074
      %2076 = vmatmul.bf16.gmra.mxu0 %v1984
      %v2077 = vpop.f32.mrf.mxu0
      %v2078 = vadd.f32 0.0, %v2077
      %v2079 = vpop.f32.mrf.mxu0
      %v2080 = vadd.f32 0.0, %v2079
      %2081 = vmatmul.bf16.gmra.mxu0 %v1985
      %v2082 = vpop.f32.mrf.mxu0
      %v2083 = vadd.f32 0.0, %v2082
      %v2084 = vpop.f32.mrf.mxu0
      %v2085 = vadd.f32 0.0, %v2084
      %2086 = vmatmul.bf16.gmra.mxu0 %v1986
      %v2087 = vpop.f32.mrf.mxu0
      %v2088 = vadd.f32 0.0, %v2087
      %v2089 = vpop.f32.mrf.mxu0
      %v2090 = vadd.f32 0.0, %v2089
      %2091 = vmatmul.bf16.gmra.mxu0 %v1987
      %v2092 = vpop.f32.mrf.mxu0
      %v2093 = vadd.f32 0.0, %v2092
      %v2094 = vpop.f32.mrf.mxu0
      %v2095 = vadd.f32 0.0, %v2094
      %2096 = vmatmul.bf16.gmra.mxu0 %v1988
      %v2097 = vpop.f32.mrf.mxu0
      %v2098 = vadd.f32 0.0, %v2097
      %v2099 = vpop.f32.mrf.mxu0
      %v2100 = vadd.f32 0.0, %v2099
      %2101 = vmatmul.bf16.gmra.mxu0 %v1989
      %v2102 = vpop.f32.mrf.mxu0
      %v2103 = vadd.f32 0.0, %v2102
      %v2104 = vpop.f32.mrf.mxu0
      %v2105 = vadd.f32 0.0, %v2104
      %2106 = vmatmul.bf16.gmra.mxu0 %v1990
      %v2107 = vpop.f32.mrf.mxu0
      %v2108 = vadd.f32 0.0, %v2107
      %v2109 = vpop.f32.mrf.mxu0
      %v2110 = vadd.f32 0.0, %v2109
      %2111 = vmatmul.bf16.gmra.mxu0 %v1991
      %v2112 = vpop.f32.mrf.mxu0
      %v2113 = vadd.f32 0.0, %v2112
      %v2114 = vpop.f32.mrf.mxu0
      %v2115 = vadd.f32 0.0, %v2114
      %2116 = vmatmul.bf16.gmra.mxu0 %v1992
      %v2117 = vpop.f32.mrf.mxu0
      %v2118 = vadd.f32 0.0, %v2117
      %v2119 = vpop.f32.mrf.mxu0
      %v2120 = vadd.f32 0.0, %v2119
      %2121 = vmatmul.bf16.gmra.mxu0 %v1993
      %v2122 = vpop.f32.mrf.mxu0
      %v2123 = vadd.f32 0.0, %v2122
      %v2124 = vpop.f32.mrf.mxu0
      %v2125 = vadd.f32 0.0, %v2124
      %2126 = vmatmul.bf16.gmra.mxu0 %v1994
      %v2127 = vpop.f32.mrf.mxu0
      %v2128 = vadd.f32 0.0, %v2127
      %v2129 = vpop.f32.mrf.mxu0
      %v2130 = vadd.f32 0.0, %v2129
      %2131 = vmatmul.bf16.gmra.mxu0 %v1995
      %v2132 = vpop.f32.mrf.mxu0
      %v2133 = vadd.f32 0.0, %v2132
      %v2134 = vpop.f32.mrf.mxu0
      %v2135 = vadd.f32 0.0, %v2134
      %2136 = vmatmul.bf16.gmra.mxu0 %v1996
      %v2137 = vpop.f32.mrf.mxu0
      %v2138 = vadd.f32 0.0, %v2137
      %v2139 = vpop.f32.mrf.mxu0
      %v2140 = vadd.f32 0.0, %v2139
      %2141 = vmatmul.bf16.gmra.mxu0 %v1997
      %v2142 = vpop.f32.mrf.mxu0
      %v2143 = vadd.f32 0.0, %v2142
      %v2144 = vpop.f32.mrf.mxu0
      %v2145 = vadd.f32 0.0, %v2144
      %2146 = vmatmul.bf16.gmra.mxu0 %v1998
      %v2147 = vpop.f32.mrf.mxu0
      %v2148 = vadd.f32 0.0, %v2147
      %v2149 = vpop.f32.mrf.mxu0
      %v2150 = vadd.f32 0.0, %v2149
      %2151 = vdwg.mxu0
      %v2152 = vadd.f32 %v1838, %v2073
      %v2153 = vadd.f32 %v1839, %v2075
      %v2154 = vadd.f32 %v1840, %v2078
      %v2155 = vadd.f32 %v1841, %v2080
      %v2156 = vadd.f32 %v1842, %v2083
      %v2157 = vadd.f32 %v1843, %v2085
      %v2158 = vadd.f32 %v1844, %v2088
      %v2159 = vadd.f32 %v1845, %v2090
      %v2160 = vadd.f32 %v1846, %v2093
      %v2161 = vadd.f32 %v1847, %v2095
      %v2162 = vadd.f32 %v1848, %v2098
      %v2163 = vadd.f32 %v1849, %v2100
      %v2164 = vadd.f32 %v1850, %v2103
      %v2165 = vadd.f32 %v1851, %v2105
      %v2166 = vadd.f32 %v1852, %v2108
      %v2167 = vadd.f32 %v1853, %v2110
      %v2168 = vadd.f32 %v1854, %v2113
      %v2169 = vadd.f32 %v1855, %v2115
      %v2170 = vadd.f32 %v1856, %v2118
      %v2171 = vadd.f32 %v1857, %v2120
      %v2172 = vadd.f32 %v1858, %v2123
      %v2173 = vadd.f32 %v1859, %v2125
      %v2174 = vadd.f32 %v1860, %v2128
      %v2175 = vadd.f32 %v1861, %v2130
      %v2176 = vadd.f32 %v1862, %v2133
      %v2177 = vadd.f32 %v1863, %v2135
      %v2178 = vadd.f32 %v1864, %v2138
      %v2179 = vadd.f32 %v1865, %v2140
      %v2180 = vadd.f32 %v1866, %v2143
      %v2181 = vadd.f32 %v1867, %v2145
      %v2182 = vadd.f32 %v1868, %v2148
      %v2183 = vadd.f32 %v1869, %v2150
      %v2184 = vld [vmem:[%s2] sm:$0x1]
      %v2186 = vperm.slane %v2184, 0
      %v2188 = vadd.f32 %v2152, %v2186
      %v2189 = vadd.f32 %v2153, %v2186
      %v2190 = vadd.f32 %v2154, %v2186
      %v2191 = vadd.f32 %v2155, %v2186
      %v2192 = vadd.f32 %v2156, %v2186
      %v2193 = vadd.f32 %v2157, %v2186
      %v2194 = vadd.f32 %v2158, %v2186
      %v2195 = vadd.f32 %v2159, %v2186
      %v2196 = vadd.f32 %v2160, %v2186
      %v2197 = vadd.f32 %v2161, %v2186
      %v2198 = vadd.f32 %v2162, %v2186
      %v2199 = vadd.f32 %v2163, %v2186
      %v2200 = vadd.f32 %v2164, %v2186
      %v2201 = vadd.f32 %v2165, %v2186
      %v2202 = vadd.f32 %v2166, %v2186
      %v2203 = vadd.f32 %v2167, %v2186
      %v2204 = vadd.f32 %v2168, %v2186
      %v2205 = vadd.f32 %v2169, %v2186
      %v2206 = vadd.f32 %v2170, %v2186
      %v2207 = vadd.f32 %v2171, %v2186
      %v2208 = vadd.f32 %v2172, %v2186
      %v2209 = vadd.f32 %v2173, %v2186
      %v2210 = vadd.f32 %v2174, %v2186
      %v2211 = vadd.f32 %v2175, %v2186
      %v2212 = vadd.f32 %v2176, %v2186
      %v2213 = vadd.f32 %v2177, %v2186
      %v2214 = vadd.f32 %v2178, %v2186
      %v2215 = vadd.f32 %v2179, %v2186
      %v2216 = vadd.f32 %v2180, %v2186
      %v2217 = vadd.f32 %v2181, %v2186
      %v2218 = vadd.f32 %v2182, %v2186
      %v2219 = vadd.f32 %v2183, %v2186
      %v2220 = vmax.f32 %v2188, 0.0
      %v2221 = vmax.f32 %v2189, 0.0
      %v2222 = vmax.f32 %v2190, 0.0
      %v2223 = vmax.f32 %v2191, 0.0
      %v2224 = vmax.f32 %v2192, 0.0
      %v2225 = vmax.f32 %v2193, 0.0
      %v2226 = vmax.f32 %v2194, 0.0
      %v2227 = vmax.f32 %v2195, 0.0
      %v2228 = vmax.f32 %v2196, 0.0
      %v2229 = vmax.f32 %v2197, 0.0
      %v2230 = vmax.f32 %v2198, 0.0
      %v2231 = vmax.f32 %v2199, 0.0
      %v2232 = vmax.f32 %v2200, 0.0
      %v2233 = vmax.f32 %v2201, 0.0
      %v2234 = vmax.f32 %v2202, 0.0
      %v2235 = vmax.f32 %v2203, 0.0
      %v2236 = vmax.f32 %v2204, 0.0
      %v2237 = vmax.f32 %v2205, 0.0
      %v2238 = vmax.f32 %v2206, 0.0
      %v2239 = vmax.f32 %v2207, 0.0
      %v2240 = vmax.f32 %v2208, 0.0
      %v2241 = vmax.f32 %v2209, 0.0
      %v2242 = vmax.f32 %v2210, 0.0
      %v2243 = vmax.f32 %v2211, 0.0
      %v2244 = vmax.f32 %v2212, 0.0
      %v2245 = vmax.f32 %v2213, 0.0
      %v2246 = vmax.f32 %v2214, 0.0
      %v2247 = vmax.f32 %v2215, 0.0
      %v2248 = vmax.f32 %v2216, 0.0
      %v2249 = vmax.f32 %v2217, 0.0
      %v2250 = vmax.f32 %v2218, 0.0
      %v2251 = vmax.f32 %v2219, 0.0
      %v2252 = vpack.c.bf16 %v2220, %v2220
      %v2253 = vpack.c.bf16 %v2221, %v2221
      %v2254 = vpack.c.bf16 %v2222, %v2222
      %v2255 = vpack.c.bf16 %v2223, %v2223
      %v2256 = vpack.c.bf16 %v2224, %v2224
      %v2257 = vpack.c.bf16 %v2225, %v2225
      %v2258 = vpack.c.bf16 %v2226, %v2226
      %v2259 = vpack.c.bf16 %v2227, %v2227
      %v2260 = vpack.c.bf16 %v2228, %v2228
      %v2261 = vpack.c.bf16 %v2229, %v2229
      %v2262 = vpack.c.bf16 %v2230, %v2230
      %v2263 = vpack.c.bf16 %v2231, %v2231
      %v2264 = vpack.c.bf16 %v2232, %v2232
      %v2265 = vpack.c.bf16 %v2233, %v2233
      %v2266 = vpack.c.bf16 %v2234, %v2234
      %v2267 = vpack.c.bf16 %v2235, %v2235
      %v2268 = vpack.c.bf16 %v2236, %v2236
      %v2269 = vpack.c.bf16 %v2237, %v2237
      %v2270 = vpack.c.bf16 %v2238, %v2238
      %v2271 = vpack.c.bf16 %v2239, %v2239
      %v2272 = vpack.c.bf16 %v2240, %v2240
      %v2273 = vpack.c.bf16 %v2241, %v2241
      %v2274 = vpack.c.bf16 %v2242, %v2242
      %v2275 = vpack.c.bf16 %v2243, %v2243
      %v2276 = vpack.c.bf16 %v2244, %v2244
      %v2277 = vpack.c.bf16 %v2245, %v2245
      %v2278 = vpack.c.bf16 %v2246, %v2246
      %v2279 = vpack.c.bf16 %v2247, %v2247
      %v2280 = vpack.c.bf16 %v2248, %v2248
      %v2281 = vpack.c.bf16 %v2249, %v2249
      %v2282 = vpack.c.bf16 %v2250, %v2250
      %v2283 = vpack.c.bf16 %v2251, %v2251
      %2284 = vst [vmem:[%s170] sm:$0xf] %v2252
      %2285 = vst [vmem:[%s170 + $0x4] sm:$0xf] %v2253
      %2286 = vst [vmem:[%s170 + $0x8] sm:$0xf] %v2254
      %2287 = vst [vmem:[%s170 + $0xc] sm:$0xf] %v2255
      %2288 = vst [vmem:[%s170 + $0x10] sm:$0xf] %v2256
      %2289 = vst [vmem:[%s170 + $0x14] sm:$0xf] %v2257
      %2290 = vst [vmem:[%s170 + $0x18] sm:$0xf] %v2258
      %2291 = vst [vmem:[%s170 + $0x1c] sm:$0xf] %v2259
      %2292 = vst [vmem:[%s170 + $0x20] sm:$0xf] %v2260
      %2293 = vst [vmem:[%s170 + $0x24] sm:$0xf] %v2261
      %2294 = vst [vmem:[%s170 + $0x28] sm:$0xf] %v2262
      %2295 = vst [vmem:[%s170 + $0x2c] sm:$0xf] %v2263
      %2296 = vst [vmem:[%s170 + $0x30] sm:$0xf] %v2264
      %2297 = vst [vmem:[%s170 + $0x34] sm:$0xf] %v2265
      %2298 = vst [vmem:[%s170 + $0x38] sm:$0xf] %v2266
      %2299 = vst [vmem:[%s170 + $0x3c] sm:$0xf] %v2267
      %2300 = vst [vmem:[%s170 + $0x40] sm:$0xf] %v2268
      %2301 = vst [vmem:[%s170 + $0x44] sm:$0xf] %v2269
      %2302 = vst [vmem:[%s170 + $0x48] sm:$0xf] %v2270
      %2303 = vst [vmem:[%s170 + $0x4c] sm:$0xf] %v2271
      %2304 = vst [vmem:[%s170 + $0x50] sm:$0xf] %v2272
      %2305 = vst [vmem:[%s170 + $0x54] sm:$0xf] %v2273
      %2306 = vst [vmem:[%s170 + $0x58] sm:$0xf] %v2274
      %2307 = vst [vmem:[%s170 + $0x5c] sm:$0xf] %v2275
      %2308 = vst [vmem:[%s170 + $0x60] sm:$0xf] %v2276
      %2309 = vst [vmem:[%s170 + $0x64] sm:$0xf] %v2277
      %2310 = vst [vmem:[%s170 + $0x68] sm:$0xf] %v2278
      %2311 = vst [vmem:[%s170 + $0x6c] sm:$0xf] %v2279
      %2312 = vst [vmem:[%s170 + $0x70] sm:$0xf] %v2280
      %2313 = vst [vmem:[%s170 + $0x74] sm:$0xf] %v2281
      %2314 = vst [vmem:[%s170 + $0x78] sm:$0xf] %v2282
      %2315 = vst [vmem:[%s170 + $0x7c] sm:$0xf] %v2283
      %p2316 = scmp.lt.s32.totalorder %s14, 1
      %s2317 = scalar_select %p2316, %s14, 1
      %s2318 = smul.addr %s2317, 32
      %s2319 = smul.addr %s2318, 4
      %s2320 = scalar_lea.vmem %s3, %s2319
      // Predicated region
      $region33: #{inception_b_forward.12} parent=31 // pred_check
        %p2321 = pneg %p100
      $region34: #{inception_b_forward.12} parent=31 // pred_check_branch
        %2323 = sbr.rel (%p2321) target = $region36
      $region35: #{inception_b_forward.12} parent=31 // pred_region
        _
      $region36: #{inception_b_forward.12} parent=31 // pred_fallthru
        _
    $region32: #{inception_b_forward.12} parent=5 // pred_fallthru
      _
    %p2324 = scmp.le.s32.totalorder 2, %s9
    // Predicated region
    $region37: #{inception_b_forward.12} parent=5 // pred_check
      %p2325 = pneg %p2324
    $region38: #{inception_b_forward.12} parent=5 // pred_check_branch
      %2327 = sbr.rel (%p2325) target = $region40
    $region39: #{inception_b_forward.12} parent=5 // pred_region
      %s2328 = ssub.s32 %s9, 2
      // Predicated region
      $region41: #{inception_b_forward.12} parent=39 // pred_check
        %p2329 = pneg %p106
      $region42: #{inception_b_forward.12} parent=39 // pred_check_branch
        %2331 = sbr.rel (%p2329) target = $region44
      $region43: #{inception_b_forward.12} parent=39 // pred_region
        %p2332 = scmp.lt.s32.totalorder %s15, 1
        %s2333 = scalar_select %p2332, %s15, 1
        %s2334 = smul.addr %s2333, 32
        %s2335 = smul.addr %s2334, 4
        %s2336 = scalar_lea.vmem %s3, %s2335
      $region44: #{inception_b_forward.12} parent=39 // pred_fallthru
        _
    $region40: #{inception_b_forward.12} parent=5 // pred_fallthru
      _
  $region6: #{inception_b_forward.12} parent=0 // loop_footer
    %s13 = sadd.s32 1, %s9
  $region7: #{inception_b_forward.12} parent=0 // loop_footer_branch
    %8 = sbr.rel target = $region3
  $region8: #{inception_b_forward.12} parent=0 // loop_exit
    _

// kernel: inception_b_forward.14
$region0: #{inception_b_forward.14}
  #allocation0 [shape = 'u32[]', space=smem, size = 0x4, offset = 0x4, fixed_abs, tag = 'smem constant byte address 0x4 - core index']
  #allocation1 [shape = 'u32[72,128]{1,0:T(1,128)}', space=vmem, size = 0x9000, scoped, tag = 'internal scratch']
  %s0 = inlined_call_operand.vmem [shape: bf16[2,352,128], index: 0, kind: input, shape index: {}]
  %s1 = inlined_call_operand.vmem [shape: bf16[7,128,128], index: 1, kind: input, shape index: {}]
  %s2 = inlined_call_operand.vmem [shape: f32[1,128], index: 2, kind: input, shape index: {}]
  %s3 = inlined_call_operand.vmem [shape: f32[2,256,128], index: 3, kind: output, shape index: {}]
  %s4 = sld [smem:[#allocation0]]
  $region45: #{inception_b_forward.14} parent=0
    _
  %s6 = ssub.s32 1, %s4
  %s7 = scalar_select 0, %s6, %s4
  loop: start=0, step=1, limit=4
  $region2: #{inception_b_forward.14} parent=0 // loop_pre_header
    _
  $region3: #{inception_b_forward.14} parent=0 // loop_header
    %s9 = sphi 0, %s13
    %p10 = scmp.ge.s32.totalorder %s9, 4
    %s19 = sphi 0, %s21
    %s22 = sphi 0, %s19
    %s23 = sphi 0, %s22
    %s39 = sphi 0, %s23
    %s43 = sphi 0, %s43
    %s45 = sphi 0, %s43
    %s46 = sphi 0, %s45
    %s60 = sphi 0, %s46
    %s64 = sphi 0, %s64
    %s66 = sphi 0, %s64
    %s67 = sphi 0, %s66
    %s81 = sphi 0, %s67
    %s87 = sphi 0, %s89
    %s90 = sphi 0, %s87
    %s91 = sphi 0, %s90
    %s107 = sphi 0, %s91
  $region4: #{inception_b_forward.14} parent=0 // loop_header_branch
    %12 = sbr.rel (%p10) target = $region8
  $region5: #{inception_b_forward.14} parent=0 // loop_body
    %s14 = ssub.s32 %s9, 1
    %s15 = ssub.s32 %s9, 2
    %s16 = sadd.s32 %s9, 1
    %s17 = ssub.s32 %s9, %s16
    %p18 = scmp.eq.s32.totalorder %s17, 0
    %s20 = sadd.s32 %s19, 1
    %s21 = scalar_select %p18, %s19, %s20
    %p24 = pneg %p18
    %p25 = scmp.eq.s32.totalorder %s9, 1
    %p26 = por %p24, %p25
    %p27 = scmp.ne.s32.totalorder %s19, %s22
    %p28 = scmp.eq.s32.totalorder %s9, 0
    %p29 = por %p27, %p28
    %p30 = scmp.ne.s32.totalorder %s19, %s22
    %p31 = scmp.eq.s32.totalorder %s14, 1
    %p32 = por %p30, %p31
    %p33 = scmp.ne.s32.totalorder %s22, %s23
    %p34 = scmp.eq.s32.totalorder %s14, 0
    %p35 = por %p33, %p34
    %p36 = scmp.ne.s32.totalorder %s22, %s23
    %p37 = scmp.eq.s32.totalorder %s15, 1
    %p38 = por %p36, %p37
    %p40 = scmp.ne.s32.totalorder %s23, %s39
    %p41 = scmp.eq.s32.totalorder %s15, 0
    %p42 = por %p40, %p41
    %s44 = sadd.s32 %s43, 1
    %p47 = scmp.eq.s32.totalorder %s9, 1
    %p48 = scmp.ne.s32.totalorder %s43, %s45
    %p49 = scmp.eq.s32.totalorder %s9, 0
    %p50 = por %p48, %p49
    %p51 = scmp.ne.s32.totalorder %s43, %s45
    %p52 = scmp.eq.s32.totalorder %s14, 1
    %p53 = por %p51, %p52
    %p54 = scmp.ne.s32.totalorder %s45, %s46
    %p55 = scmp.eq.s32.totalorder %s14, 0
    %p56 = por %p54, %p55
    %p57 = scmp.ne.s32.totalorder %s45, %s46
    %p58 = scmp.eq.s32.totalorder %s15, 1
    %p59 = por %p57, %p58
    %p61 = scmp.ne.s32.totalorder %s46, %s60
    %p62 = scmp.eq.s32.totalorder %s15, 0
    %p63 = por %p61, %p62
    %s65 = sadd.s32 %s64, 1
    %p68 = scmp.eq.s32.totalorder %s9, 1
    %p69 = scmp.ne.s32.totalorder %s64, %s66
    %p70 = scmp.eq.s32.totalorder %s9, 0
    %p71 = por %p69, %p70
    %p72 = scmp.ne.s32.totalorder %s64, %s66
    %p73 = scmp.eq.s32.totalorder %s14, 1
    %p74 = por %p72, %p73
    %p75 = scmp.ne.s32.totalorder %s66, %s67
    %p76 = scmp.eq.s32.totalorder %s14, 0
    %p77 = por %p75, %p76
    %p78 = scmp.ne.s32.totalorder %s66, %s67
    %p79 = scmp.eq.s32.totalorder %s15, 1
    %p80 = por %p78, %p79
    %p82 = scmp.ne.s32.totalorder %s67, %s81
    %p83 = scmp.eq.s32.totalorder %s15, 0
    %p84 = por %p82, %p83
    %s85 = ssub.s32 %s9, %s16
    %p86 = scmp.eq.s32.totalorder %s85, 0
    %s88 = sadd.s32 %s87, 1
    %s89 = scalar_select %p86, %s87, %s88
    %p92 = pneg %p86
    %p93 = scmp.eq.s32.totalorder %s9, 1
    %p94 = por %p92, %p93
    %p95 = scmp.ne.s32.totalorder %s87, %s90
    %p96 = scmp.eq.s32.totalorder %s9, 0
    %p97 = por %p95, %p96
    %p98 = scmp.ne.s32.totalorder %s87, %s90
    %p99 = scmp.eq.s32.totalorder %s14, 1
    %p100 = por %p98, %p99
    %p101 = scmp.ne.s32.totalorder %s90, %s91
    %p102 = scmp.eq.s32.totalorder %s14, 0
    %p103 = por %p101, %p102
    %p104 = scmp.ne.s32.totalorder %s90, %s91
    %p105 = scmp.eq.s32.totalorder %s15, 1
    %p106 = por %p104, %p105
    %p108 = scmp.ne.s32.totalorder %s91, %s107
    %p109 = scmp.eq.s32.totalorder %s15, 0
    %p110 = por %p108, %p109
    %p111 = scmp.le.s32.totalorder 1, %s9
    %p112 = scmp.lt.s32.totalorder %s9, 3
    %p113 = pnand %p111, %p112
    %p114 = pneg %p113
    // Predicated region
    $region9: #{inception_b_forward.14} parent=5 // pred_check
      _
    $region10: #{inception_b_forward.14} parent=5 // pred_check_branch
      %116 = sbr.rel (%p113) target = $region12
    $region11: #{inception_b_forward.14} parent=5 // pred_region
      %s117 = ssub.s32 %s9, 1
      // Predicated region
      $region13: #{inception_b_forward.14} parent=11 // pred_check
        %p118 = pneg %p56
      $region14: #{inception_b_forward.14} parent=11 // pred_check_branch
        %120 = sbr.rel (%p118) target = $region16
      $region15: #{inception_b_forward.14} parent=11 // pred_region
        _
      $region16: #{inception_b_forward.14} parent=11 // pred_fallthru
        _
      // Predicated region
      $region17: #{inception_b_forward.14} parent=11 // pred_check
        %p121 = pneg %p77
      $region18: #{inception_b_forward.14} parent=11 // pred_check_branch
        %123 = sbr.rel (%p121) target = $region20
      $region19: #{inception_b_forward.14} parent=11 // pred_region
        _
      $region20: #{inception_b_forward.14} parent=11 // pred_fallthru
        _
    $region12: #{inception_b_forward.14} parent=5 // pred_fallthru
      _
    %p124 = scmp.lt.s32.totalorder %s9, 2
    // Predicated region
    $region21: #{inception_b_forward.14} parent=5 // pred_check
      %p125 = pneg %p124
    $region22: #{inception_b_forward.14} parent=5 // pred_check_branch
      %127 = sbr.rel (%p125) target = $region24
    $region23: #{inception_b_forward.14} parent=5 // pred_region
      // Predicated region
      $region25: #{inception_b_forward.14} parent=23 // pred_check
        %p128 = pneg %p29
      $region26: #{inception_b_forward.14} parent=23 // pred_check_branch
        %130 = sbr.rel (%p128) target = $region28
      $region27: #{inception_b_forward.14} parent=23 // pred_region
        %p131 = scmp.lt.s32.totalorder %s9, 1
        %s132 = scalar_select %p131, %s9, 1
        %s133 = smul.addr %s132, 44
        %s134 = smul.addr %s133, 4
        %s135 = scalar_lea.vmem %s0, %s134
      $region28: #{inception_b_forward.14} parent=23 // pred_fallthru
        _
    $region24: #{inception_b_forward.14} parent=5 // pred_fallthru
      _
    %p136 = scmp.le.s32.totalorder 1, %s9
    %p137 = scmp.lt.s32.totalorder %s9, 3
    %p138 = pnand %p136, %p137
    %p139 = pneg %p138
    // Predicated region
    $region29: #{inception_b_forward.14} parent=5 // pred_check
      _
    $region30: #{inception_b_forward.14} parent=5 // pred_check_branch
      %141 = sbr.rel (%p138) target = $region32
    $region31: #{inception_b_forward.14} parent=5 // pred_region
      %s142 = ssub.s32 %s9, 1
      %p143 = scmp.lt.s32.totalorder %s14, 1
      %s144 = scalar_select %p143, %s14, 1
      %s145 = smul.addr %s144, 44
      %s146 = smul.addr %s145, 4
      %s147 = scalar_lea.vmem %s0, %s146
      %p148 = pneg %p35
      %p149 = pneg %p32
      %p150 = pneg %p56
      %p151 = pneg %p53
      %p152 = pneg %p77
      %p153 = pneg %p74
      %p154 = pneg %p103
      %p155 = pneg %p100
      %p156 = scmp.lt.s32.totalorder %s14, 1
      %s157 = scalar_select %p156, %s14, 1
      %s158 = smul.addr %s157, 32
      %s159 = smul.addr %s158, 8
      %s160 = scalar_lea.vmem %s3, %s159
      %p161 = scmp.lt.s32.totalorder %s14, 1
      %s162 = scalar_select %p161, %s14, 1
      %s163 = smul.addr %s162, 44
      %s164 = smul.addr %s163, 4
      %s165 = scalar_lea.vmem %s0, %s164
      %p166 = scmp.lt.s32.totalorder %s14, 1
      %s167 = scalar_select %p166, %s14, 1
      %s168 = smul.addr %s167, 32
      %s169 = smul.addr %s168, 8
      %s170 = scalar_lea.vmem %s3, %s169
      %v171 = vld [vmem:[%s165] sm:$0xf]
      %v172 = vld [vmem:[%s165 + $0x4] sm:$0xf]
      %v173 = vld [vmem:[%s165 + $0x8] sm:$0xf]
      %v174 = vld [vmem:[%s165 + $0xc] sm:$0xf]
      %v175 = vld [vmem:[%s165 + $0x10] sm:$0xf]
      %v176 = vld [vmem:[%s165 + $0x14] sm:$0xf]
      %v177 = vld [vmem:[%s165 + $0x18] sm:$0xf]
      %v178 = vld [vmem:[%s165 + $0x1c] sm:$0xf]
      %v179 = vld [vmem:[%s165 + $0x20] sm:$0xf]
      %v180 = vld [vmem:[%s165 + $0x24] sm:$0xf]
      %v181 = vld [vmem:[%s165 + $0x28] sm:$0xf]
      %v182 = vld [vmem:[%s165 + $0x2c] sm:$0xf]
      %v183 = vld [vmem:[%s165 + $0x30] sm:$0xf]
      %v184 = vld [vmem:[%s165 + $0x34] sm:$0xf]
      %v185 = vld [vmem:[%s165 + $0x38] sm:$0xf]
      %v186 = vld [vmem:[%s165 + $0x3c] sm:$0xf]
      %v187 = vld [vmem:[%s165 + $0x40] sm:$0xf]
      %v188 = vld [vmem:[%s165 + $0x44] sm:$0xf]
      %v189 = vld [vmem:[%s165 + $0x48] sm:$0xf]
      %v190 = vld [vmem:[%s165 + $0x4c] sm:$0xf]
      %v191 = vld [vmem:[%s165 + $0x50] sm:$0xf]
      %v192 = vld [vmem:[%s165 + $0x54] sm:$0xf]
      %v193 = vld [vmem:[%s165 + $0x58] sm:$0xf]
      %v194 = vld [vmem:[%s165 + $0x5c] sm:$0xf]
      %v195 = vld [vmem:[%s165 + $0x60] sm:$0xf]
      %v196 = vld [vmem:[%s165 + $0x64] sm:$0xf]
      %v197 = vld [vmem:[%s165 + $0x68] sm:$0xf]
      %v198 = vld [vmem:[%s165 + $0x6c] sm:$0xf]
      %v199 = vld [vmem:[%s165 + $0x70] sm:$0xf]
      %v200 = vld [vmem:[%s165 + $0x74] sm:$0xf]
      %v201 = vld [vmem:[%s165 + $0x78] sm:$0xf]
      %v202 = vld [vmem:[%s165 + $0x7c] sm:$0xf]
      %v203 = vld [vmem:[%s1] sm:$0xf]
      %v204 = vld [vmem:[%s1 + $0x4] sm:$0xf]
      %v205 = vld [vmem:[%s1 + $0x8] sm:$0xf]
      %v206 = vld [vmem:[%s1 + $0xc] sm:$0xf]
      %v207 = vld [vmem:[%s1 + $0x10] sm:$0xf]
      %v208 = vld [vmem:[%s1 + $0x14] sm:$0xf]
      %v209 = vld [vmem:[%s1 + $0x18] sm:$0xf]
      %v210 = vld [vmem:[%s1 + $0x1c] sm:$0xf]
      %v211 = vld [vmem:[%s1 + $0x20] sm:$0xf]
      %v212 = vld [vmem:[%s1 + $0x24] sm:$0xf]
      %v213 = vld [vmem:[%s1 + $0x28] sm:$0xf]
      %v214 = vld [vmem:[%s1 + $0x2c] sm:$0xf]
      %v215 = vld [vmem:[%s1 + $0x30] sm:$0xf]
      %v216 = vld [vmem:[%s1 + $0x34] sm:$0xf]
      %v217 = vld [vmem:[%s1 + $0x38] sm:$0xf]
      %v218 = vld [vmem:[%s1 + $0x3c] sm:$0xf]
      %v219 = vld [vmem:[%s165 + $0x80] sm:$0xf]
      %v220 = vld [vmem:[%s165 + $0x84] sm:$0xf]
      %s221 = scalar_lea.vmem %s1, 64
      %v222 = vld [vmem:[%s221] sm:$0xf]
      %v223 = vld [vmem:[%s221 + $0x4] sm:$0xf]
      %v224 = vld [vmem:[%s221 + $0x8] sm:$0xf]
      %v225 = vld [vmem:[%s221 + $0xc] sm:$0xf]
      %v226 = vld [vmem:[%s221 + $0x10] sm:$0xf]
      %v227 = vld [vmem:[%s221 + $0x14] sm:$0xf]
      %v228 = vld [vmem:[%s221 + $0x18] sm:$0xf]
      %v229 = vld [vmem:[%s221 + $0x1c] sm:$0xf]
      %v230 = vld [vmem:[%s221 + $0x20] sm:$0xf]
      %v231 = vld [vmem:[%s221 + $0x24] sm:$0xf]
      %v232 = vld [vmem:[%s221 + $0x28] sm:$0xf]
      %v233 = vld [vmem:[%s221 + $0x2c] sm:$0xf]
      %v234 = vld [vmem:[%s221 + $0x30] sm:$0xf]
      %v235 = vld [vmem:[%s221 + $0x34] sm:$0xf]
      %v236 = vld [vmem:[%s221 + $0x38] sm:$0xf]
      %v237 = vld [vmem:[%s221 + $0x3c] sm:$0xf]
      %v270 = vunpack.c.l.b16 %v173
      %v271 = vunpack.c.l.b16 %v174
      %v272 = vunpack.c.l.b16 %v175
      %v273 = vunpack.c.l.b16 %v176
      %v274 = vunpack.c.l.b16 %v177
      %v275 = vunpack.c.l.b16 %v178
      %v276 = vunpack.c.l.b16 %v179
      %v277 = vunpack.c.l.b16 %v180
      %v278 = vunpack.c.l.b16 %v181
      %v279 = vunpack.c.l.b16 %v182
      %v280 = vunpack.c.l.b16 %v183
      %v281 = vunpack.c.l.b16 %v184
      %v282 = vunpack.c.l.b16 %v185
      %v283 = vunpack.c.l.b16 %v186
      %v284 = vunpack.c.l.b16 %v187
      %v285 = vunpack.c.l.b16 %v188
      %v286 = vunpack.c.l.b16 %v189
      %v287 = vunpack.c.l.b16 %v190
      %v288 = vunpack.c.l.b16 %v191
      %v289 = vunpack.c.l.b16 %v192
      %v290 = vunpack.c.l.b16 %v193
      %v291 = vunpack.c.l.b16 %v194
      %v292 = vunpack.c.l.b16 %v195
      %v293 = vunpack.c.l.b16 %v196
      %v294 = vunpack.c.l.b16 %v197
      %v295 = vunpack.c.l.b16 %v198
      %v296 = vunpack.c.l.b16 %v199
      %v297 = vunpack.c.l.b16 %v200
      %v298 = vunpack.c.l.b16 %v201
      %v299 = vunpack.c.l.b16 %v202
      %v300 = vunpack.c.l.b16 %v219
      %v301 = vunpack.c.l.b16 %v220
      %v302 = vpack.c.b16 %v271, %v270
      %v303 = vpack.c.b16 %v273, %v272
      %v304 = vpack.c.b16 %v275, %v274
      %v305 = vpack.c.b16 %v277, %v276
      %v306 = vpack.c.b16 %v279, %v278
      %v307 = vpack.c.b16 %v281, %v280
      %v308 = vpack.c.b16 %v283, %v282
      %v309 = vpack.c.b16 %v285, %v284
      %v310 = vpack.c.b16 %v287, %v286
      %v311 = vpack.c.b16 %v289, %v288
      %v312 = vpack.c.b16 %v291, %v290
      %v313 = vpack.c.b16 %v293, %v292
      %v314 = vpack.c.b16 %v295, %v294
      %v315 = vpack.c.b16 %v297, %v296
      %v316 = vpack.c.b16 %v299, %v298
      %v317 = vpack.c.b16 %v301, %v300
      %v350 = vunpack.c.l.b16 %v222
      %v351 = vunpack.c.l.b16 %v223
      %v352 = vunpack.c.l.b16 %v224
      %v353 = vunpack.c.l.b16 %v225
      %v354 = vunpack.c.l.b16 %v226
      %v355 = vunpack.c.l.b16 %v227
      %v356 = vunpack.c.l.b16 %v228
      %v357 = vunpack.c.l.b16 %v229
      %v358 = vunpack.c.l.b16 %v230
      %v359 = vunpack.c.l.b16 %v231
      %v360 = vunpack.c.l.b16 %v232
      %v361 = vunpack.c.l.b16 %v233
      %v362 = vunpack.c.l.b16 %v234
      %v363 = vunpack.c.l.b16 %v235
      %v364 = vunpack.c.l.b16 %v236
      %v365 = vunpack.c.l.b16 %v237
      %v366 = vpack.c.b16 %v351, %v350
      %v367 = vpack.c.b16 %v353, %v352
      %v368 = vpack.c.b16 %v355, %v354
      %v369 = vpack.c.b16 %v357, %v356
      %v370 = vpack.c.b16 %v359, %v358
      %v371 = vpack.c.b16 %v361, %v360
      %v372 = vpack.c.b16 %v363, %v362
      %v373 = vpack.c.b16 %v365, %v364
      %382 = vmatpush.bf16.msra.mxu0 %v373
      %383 = vmatpush.bf16.msra.mxu0 %v372
      %384 = vmatpush.bf16.msra.mxu0 %v371
      %385 = vmatpush.bf16.msra.mxu0 %v370
      %386 = vmatpush.bf16.msra.mxu0 %v369
      %387 = vmatpush.bf16.msra.mxu0 %v368
      %388 = vmatpush.bf16.msra.mxu0 %v367
      %389 = vmatpush.bf16.msra.mxu0 %v366
      %390 = vmatmul.bf16.gmra.mxu0 %v302
      %v391 = vpop.f32.mrf.mxu0
      %v392 = vadd.f32 0.0, %v391
      %v393 = vpop.f32.mrf.mxu0
      %v394 = vadd.f32 0.0, %v393
      %395 = vmatmul.bf16.gmra.mxu0 %v303
      %v396 = vpop.f32.mrf.mxu0
      %v397 = vadd.f32 0.0, %v396
      %v398 = vpop.f32.mrf.mxu0
      %v399 = vadd.f32 0.0, %v398
      %400 = vmatmul.bf16.gmra.mxu0 %v304
      %v401 = vpop.f32.mrf.mxu0
      %v402 = vadd.f32 0.0, %v401
      %v403 = vpop.f32.mrf.mxu0
      %v404 = vadd.f32 0.0, %v403
      %405 = vmatmul.bf16.gmra.mxu0 %v305
      %v406 = vpop.f32.mrf.mxu0
      %v407 = vadd.f32 0.0, %v406
      %v408 = vpop.f32.mrf.mxu0
      %v409 = vadd.f32 0.0, %v408
      %410 = vmatmul.bf16.gmra.mxu0 %v306
      %v411 = vpop.f32.mrf.mxu0
      %v412 = vadd.f32 0.0, %v411
      %v413 = vpop.f32.mrf.mxu0
      %v414 = vadd.f32 0.0, %v413
      %415 = vmatmul.bf16.gmra.mxu0 %v307
      %v416 = vpop.f32.mrf.mxu0
      %v417 = vadd.f32 0.0, %v416
      %v418 = vpop.f32.mrf.mxu0
      %v419 = vadd.f32 0.0, %v418
      %420 = vmatmul.bf16.gmra.mxu0 %v308
      %v421 = vpop.f32.mrf.mxu0
      %v422 = vadd.f32 0.0, %v421
      %v423 = vpop.f32.mrf.mxu0
      %v424 = vadd.f32 0.0, %v423
      %425 = vmatmul.bf16.gmra.mxu0 %v309
      %v426 = vpop.f32.mrf.mxu0
      %v427 = vadd.f32 0.0, %v426
      %v428 = vpop.f32.mrf.mxu0
      %v429 = vadd.f32 0.0, %v428
      %430 = vmatmul.bf16.gmra.mxu0 %v310
      %v431 = vpop.f32.mrf.mxu0
      %v432 = vadd.f32 0.0, %v431
      %v433 = vpop.f32.mrf.mxu0
      %v434 = vadd.f32 0.0, %v433
      %435 = vmatmul.bf16.gmra.mxu0 %v311
      %v436 = vpop.f32.mrf.mxu0
      %v437 = vadd.f32 0.0, %v436
      %v438 = vpop.f32.mrf.mxu0
      %v439 = vadd.f32 0.0, %v438
      %440 = vmatmul.bf16.gmra.mxu0 %v312
      %v441 = vpop.f32.mrf.mxu0
      %v442 = vadd.f32 0.0, %v441
      %v443 = vpop.f32.mrf.mxu0
      %v444 = vadd.f32 0.0, %v443
      %445 = vmatmul.bf16.gmra.mxu0 %v313
      %v446 = vpop.f32.mrf.mxu0
      %v447 = vadd.f32 0.0, %v446
      %v448 = vpop.f32.mrf.mxu0
      %v449 = vadd.f32 0.0, %v448
      %450 = vmatmul.bf16.gmra.mxu0 %v314
      %v451 = vpop.f32.mrf.mxu0
      %v452 = vadd.f32 0.0, %v451
      %v453 = vpop.f32.mrf.mxu0
      %v454 = vadd.f32 0.0, %v453
      %455 = vmatmul.bf16.gmra.mxu0 %v315
      %v456 = vpop.f32.mrf.mxu0
      %v457 = vadd.f32 0.0, %v456
      %v458 = vpop.f32.mrf.mxu0
      %v459 = vadd.f32 0.0, %v458
      %460 = vmatmul.bf16.gmra.mxu0 %v316
      %v461 = vpop.f32.mrf.mxu0
      %v462 = vadd.f32 0.0, %v461
      %v463 = vpop.f32.mrf.mxu0
      %v464 = vadd.f32 0.0, %v463
      %465 = vmatmul.bf16.gmra.mxu0 %v317
      %v466 = vpop.f32.mrf.mxu0
      %v467 = vadd.f32 0.0, %v466
      %v468 = vpop.f32.mrf.mxu0
      %v469 = vadd.f32 0.0, %v468
      %470 = vdwg.mxu0
      %v473 = vunpack.c.l.b16 %v171
      %v474 = vunpack.c.l.b16 %v172
      %v475 = vpack.c.b16 %v474, %v473
      %v493 = vunpack.c.l.b16 %v203
      %v494 = vunpack.c.l.b16 %v204
      %v495 = vunpack.c.l.b16 %v205
      %v496 = vunpack.c.l.b16 %v206
      %v497 = vunpack.c.l.b16 %v207
      %v498 = vunpack.c.l.b16 %v208
      %v499 = vunpack.c.l.b16 %v209
      %v500 = vunpack.c.l.b16 %v210
      %v501 = vunpack.c.l.b16 %v211
      %v502 = vunpack.c.l.b16 %v212
      %v503 = vunpack.c.l.b16 %v213
      %v504 = vunpack.c.l.b16 %v214
      %v505 = vunpack.c.l.b16 %v215
      %v506 = vunpack.c.l.b16 %v216
      %v507 = vunpack.c.l.b16 %v217
      %v508 = vunpack.c.l.b16 %v218
      %v509 = vpack.c.b16 %v494, %v493
      %v510 = vpack.c.b16 %v496, %v495
      %v511 = vpack.c.b16 %v498, %v497
      %v512 = vpack.c.b16 %v500, %v499
      %v513 = vpack.c.b16 %v502, %v501
      %v514 = vpack.c.b16 %v504, %v503
      %v515 = vpack.c.b16 %v506, %v505
      %v516 = vpack.c.b16 %v508, %v507
      %525 = vmatpush.bf16.msra.mxu0 %v516
      %526 = vmatpush.bf16.msra.mxu0 %v515
      %527 = vmatpush.bf16.msra.mxu0 %v514
      %528 = vmatpush.bf16.msra.mxu0 %v513
      %529 = vmatpush.bf16.msra.mxu0 %v512
      %530 = vmatpush.bf16.msra.mxu0 %v511
      %531 = vmatpush.bf16.msra.mxu0 %v510
      %532 = vmatpush.bf16.msra.mxu0 %v509
      %533 = vmatmul.bf16.gmra.mxu0 %v475
      %v534 = vpop.f32.mrf.mxu0
      %v535 = vadd.f32 %v392, %v534
      %v536 = vpop.f32.mrf.mxu0
      %v537 = vadd.f32 %v394, %v536
      %538 = vmatmul.bf16.gmra.mxu0 %v302
      %v539 = vpop.f32.mrf.mxu0
      %v540 = vadd.f32 %v397, %v539
      %v541 = vpop.f32.mrf.mxu0
      %v542 = vadd.f32 %v399, %v541
      %543 = vmatmul.bf16.gmra.mxu0 %v303
      %v544 = vpop.f32.mrf.mxu0
      %v545 = vadd.f32 %v402, %v544
      %v546 = vpop.f32.mrf.mxu0
      %v547 = vadd.f32 %v404, %v546
      %548 = vmatmul.bf16.gmra.mxu0 %v304
      %v549 = vpop.f32.mrf.mxu0
      %v550 = vadd.f32 %v407, %v549
      %v551 = vpop.f32.mrf.mxu0
      %v552 = vadd.f32 %v409, %v551
      %553 = vmatmul.bf16.gmra.mxu0 %v305
      %v554 = vpop.f32.mrf.mxu0
      %v555 = vadd.f32 %v412, %v554
      %v556 = vpop.f32.mrf.mxu0
      %v557 = vadd.f32 %v414, %v556
      %558 = vmatmul.bf16.gmra.mxu0 %v306
      %v559 = vpop.f32.mrf.mxu0
      %v560 = vadd.f32 %v417, %v559
      %v561 = vpop.f32.mrf.mxu0
      %v562 = vadd.f32 %v419, %v561
      %563 = vmatmul.bf16.gmra.mxu0 %v307
      %v564 = vpop.f32.mrf.mxu0
      %v565 = vadd.f32 %v422, %v564
      %v566 = vpop.f32.mrf.mxu0
      %v567 = vadd.f32 %v424, %v566
      %568 = vmatmul.bf16.gmra.mxu0 %v308
      %v569 = vpop.f32.mrf.mxu0
      %v570 = vadd.f32 %v427, %v569
      %v571 = vpop.f32.mrf.mxu0
      %v572 = vadd.f32 %v429, %v571
      %573 = vmatmul.bf16.gmra.mxu0 %v309
      %v574 = vpop.f32.mrf.mxu0
      %v575 = vadd.f32 %v432, %v574
      %v576 = vpop.f32.mrf.mxu0
      %v577 = vadd.f32 %v434, %v576
      %578 = vmatmul.bf16.gmra.mxu0 %v310
      %v579 = vpop.f32.mrf.mxu0
      %v580 = vadd.f32 %v437, %v579
      %v581 = vpop.f32.mrf.mxu0
      %v582 = vadd.f32 %v439, %v581
      %583 = vmatmul.bf16.gmra.mxu0 %v311
      %v584 = vpop.f32.mrf.mxu0
      %v585 = vadd.f32 %v442, %v584
      %v586 = vpop.f32.mrf.mxu0
      %v587 = vadd.f32 %v444, %v586
      %588 = vmatmul.bf16.gmra.mxu0 %v312
      %v589 = vpop.f32.mrf.mxu0
      %v590 = vadd.f32 %v447, %v589
      %v591 = vpop.f32.mrf.mxu0
      %v592 = vadd.f32 %v449, %v591
      %593 = vmatmul.bf16.gmra.mxu0 %v313
      %v594 = vpop.f32.mrf.mxu0
      %v595 = vadd.f32 %v452, %v594
      %v596 = vpop.f32.mrf.mxu0
      %v597 = vadd.f32 %v454, %v596
      %598 = vmatmul.bf16.gmra.mxu0 %v314
      %v599 = vpop.f32.mrf.mxu0
      %v600 = vadd.f32 %v457, %v599
      %v601 = vpop.f32.mrf.mxu0
      %v602 = vadd.f32 %v459, %v601
      %603 = vmatmul.bf16.gmra.mxu0 %v315
      %v604 = vpop.f32.mrf.mxu0
      %v605 = vadd.f32 %v462, %v604
      %v606 = vpop.f32.mrf.mxu0
      %v607 = vadd.f32 %v464, %v606
      %608 = vmatmul.bf16.gmra.mxu0 %v316
      %v609 = vpop.f32.mrf.mxu0
      %v610 = vadd.f32 %v467, %v609
      %v611 = vpop.f32.mrf.mxu0
      %v612 = vadd.f32 %v469, %v611
      %613 = vdwg.mxu0
      %v614 = vld [vmem:[%s165 + $0x10] sm:$0xf]
      %v615 = vld [vmem:[%s165 + $0x14] sm:$0xf]
      %v616 = vld [vmem:[%s165 + $0x18] sm:$0xf]
      %v617 = vld [vmem:[%s165 + $0x1c] sm:$0xf]
      %v618 = vld [vmem:[%s165 + $0x20] sm:$0xf]
      %v619 = vld [vmem:[%s165 + $0x24] sm:$0xf]
      %v620 = vld [vmem:[%s165 + $0x28] sm:$0xf]
      %v621 = vld [vmem:[%s165 + $0x2c] sm:$0xf]
      %v622 = vld [vmem:[%s165 + $0x30] sm:$0xf]
      %v623 = vld [vmem:[%s165 + $0x34] sm:$0xf]
      %v624 = vld [vmem:[%s165 + $0x38] sm:$0xf]
      %v625 = vld [vmem:[%s165 + $0x3c] sm:$0xf]
      %v626 = vld [vmem:[%s165 + $0x40] sm:$0xf]
      %v627 = vld [vmem:[%s165 + $0x44] sm:$0xf]
      %v628 = vld [vmem:[%s165 + $0x48] sm:$0xf]
      %v629 = vld [vmem:[%s165 + $0x4c] sm:$0xf]
      %v630 = vld [vmem:[%s165 + $0x50] sm:$0xf]
      %v631 = vld [vmem:[%s165 + $0x54] sm:$0xf]
      %v632 = vld [vmem:[%s165 + $0x58] sm:$0xf]
      %v633 = vld [vmem:[%s165 + $0x5c] sm:$0xf]
      %v634 = vld [vmem:[%s165 + $0x60] sm:$0xf]
      %v635 = vld [vmem:[%s165 + $0x64] sm:$0xf]
      %v636 = vld [vmem:[%s165 + $0x68] sm:$0xf]
      %v637 = vld [vmem:[%s165 + $0x6c] sm:$0xf]
      %v638 = vld [vmem:[%s165 + $0x70] sm:$0xf]
      %v639 = vld [vmem:[%s165 + $0x74] sm:$0xf]
      %v640 = vld [vmem:[%s165 + $0x78] sm:$0xf]
      %v641 = vld [vmem:[%s165 + $0x7c] sm:$0xf]
      %v642 = vld [vmem:[%s165 + $0x80] sm:$0xf]
      %v643 = vld [vmem:[%s165 + $0x84] sm:$0xf]
      %v644 = vld [vmem:[%s165 + $0x88] sm:$0xf]
      %v645 = vld [vmem:[%s165 + $0x8c] sm:$0xf]
      %s646 = scalar_lea.vmem %s1, 128
      %v647 = vld [vmem:[%s646] sm:$0xf]
      %v648 = vld [vmem:[%s646 + $0x4] sm:$0xf]
      %v649 = vld [vmem:[%s646 + $0x8] sm:$0xf]
      %v650 = vld [vmem:[%s646 + $0xc] sm:$0xf]
      %v651 = vld [vmem:[%s646 + $0x10] sm:$0xf]
      %v652 = vld [vmem:[%s646 + $0x14] sm:$0xf]
      %v653 = vld [vmem:[%s646 + $0x18] sm:$0xf]
      %v654 = vld [vmem:[%s646 + $0x1c] sm:$0xf]
      %v655 = vld [vmem:[%s646 + $0x20] sm:$0xf]
      %v656 = vld [vmem:[%s646 + $0x24] sm:$0xf]
      %v657 = vld [vmem:[%s646 + $0x28] sm:$0xf]
      %v658 = vld [vmem:[%s646 + $0x2c] sm:$0xf]
      %v659 = vld [vmem:[%s646 + $0x30] sm:$0xf]
      %v660 = vld [vmem:[%s646 + $0x34] sm:$0xf]
      %v661 = vld [vmem:[%s646 + $0x38] sm:$0xf]
      %v662 = vld [vmem:[%s646 + $0x3c] sm:$0xf]
      %v695 = vunpack.c.l.b16 %v614
      %v696 = vunpack.c.l.b16 %v615
      %v697 = vunpack.c.l.b16 %v616
      %v698 = vunpack.c.l.b16 %v617
      %v699 = vunpack.c.l.b16 %v618
      %v700 = vunpack.c.l.b16 %v619
      %v701 = vunpack.c.l.b16 %v620
      %v702 = vunpack.c.l.b16 %v621
      %v703 = vunpack.c.l.b16 %v622
      %v704 = vunpack.c.l.b16 %v623
      %v705 = vunpack.c.l.b16 %v624
      %v706 = vunpack.c.l.b16 %v625
      %v707 = vunpack.c.l.b16 %v626
      %v708 = vunpack.c.l.b16 %v627
      %v709 = vunpack.c.l.b16 %v628
      %v710 = vunpack.c.l.b16 %v629
      %v711 = vunpack.c.l.b16 %v630
      %v712 = vunpack.c.l.b16 %v631
      %v713 = vunpack.c.l.b16 %v632
      %v714 = vunpack.c.l.b16 %v633
      %v715 = vunpack.c.l.b16 %v634
      %v716 = vunpack.c.l.b16 %v635
      %v717 = vunpack.c.l.b16 %v636
      %v718 = vunpack.c.l.b16 %v637
      %v719 = vunpack.c.l.b16 %v638
      %v720 = vunpack.c.l.b16 %v639
      %v721 = vunpack.c.l.b16 %v640
      %v722 = vunpack.c.l.b16 %v641
      %v723 = vunpack.c.l.b16 %v642
      %v724 = vunpack.c.l.b16 %v643
      %v725 = vunpack.c.l.b16 %v644
      %v726 = vunpack.c.l.b16 %v645
      %v727 = vpack.c.b16 %v696, %v695
      %v728 = vpack.c.b16 %v698, %v697
      %v729 = vpack.c.b16 %v700, %v699
      %v730 = vpack.c.b16 %v702, %v701
      %v731 = vpack.c.b16 %v704, %v703
      %v732 = vpack.c.b16 %v706, %v705
      %v733 = vpack.c.b16 %v708, %v707
      %v734 = vpack.c.b16 %v710, %v709
      %v735 = vpack.c.b16 %v712, %v711
      %v736 = vpack.c.b16 %v714, %v713
      %v737 = vpack.c.b16 %v716, %v715
      %v738 = vpack.c.b16 %v718, %v717
      %v739 = vpack.c.b16 %v720, %v719
      %v740 = vpack.c.b16 %v722, %v721
      %v741 = vpack.c.b16 %v724, %v723
      %v742 = vpack.c.b16 %v726, %v725
      %v775 = vunpack.c.l.b16 %v647
      %v776 = vunpack.c.l.b16 %v648
      %v777 = vunpack.c.l.b16 %v649
      %v778 = vunpack.c.l.b16 %v650
      %v779 = vunpack.c.l.b16 %v651
      %v780 = vunpack.c.l.b16 %v652
      %v781 = vunpack.c.l.b16 %v653
      %v782 = vunpack.c.l.b16 %v654
      %v783 = vunpack.c.l.b16 %v655
      %v784 = vunpack.c.l.b16 %v656
      %v785 = vunpack.c.l.b16 %v657
      %v786 = vunpack.c.l.b16 %v658
      %v787 = vunpack.c.l.b16 %v659
      %v788 = vunpack.c.l.b16 %v660
      %v789 = vunpack.c.l.b16 %v661
      %v790 = vunpack.c.l.b16 %v662
      %v791 = vpack.c.b16 %v776, %v775
      %v792 = vpack.c.b16 %v778, %v777
      %v793 = vpack.c.b16 %v780, %v779
      %v794 = vpack.c.b16 %v782, %v781
      %v795 = vpack.c.b16 %v784, %v783
      %v796 = vpack.c.b16 %v786, %v785
      %v797 = vpack.c.b16 %v788, %v787
      %v798 = vpack.c.b16 %v790, %v789
      %807 = vmatpush.bf16.msra.mxu0 %v798
      %808 = vmatpush.bf16.msra.mxu0 %v797
      %809 = vmatpush.bf16.msra.mxu0 %v796
      %810 = vmatpush.bf16.msra.mxu0 %v795
      %811 = vmatpush.bf16.msra.mxu0 %v794
      %812 = vmatpush.bf16.msra.mxu0 %v793
      %813 = vmatpush.bf16.msra.mxu0 %v792
      %814 = vmatpush.bf16.msra.mxu0 %v791
      %815 = vmatmul.bf16.gmra.mxu0 %v727
      %v816 = vpop.f32.mrf.mxu0
      %v817 = vadd.f32 0.0, %v816
      %v818 = vpop.f32.mrf.mxu0
      %v819 = vadd.f32 0.0, %v818
      %820 = vmatmul.bf16.gmra.mxu0 %v728
      %v821 = vpop.f32.mrf.mxu0
      %v822 = vadd.f32 0.0, %v821
      %v823 = vpop.f32.mrf.mxu0
      %v824 = vadd.f32 0.0, %v823
      %825 = vmatmul.bf16.gmra.mxu0 %v729
      %v826 = vpop.f32.mrf.mxu0
      %v827 = vadd.f32 0.0, %v826
      %v828 = vpop.f32.mrf.mxu0
      %v829 = vadd.f32 0.0, %v828
      %830 = vmatmul.bf16.gmra.mxu0 %v730
      %v831 = vpop.f32.mrf.mxu0
      %v832 = vadd.f32 0.0, %v831
      %v833 = vpop.f32.mrf.mxu0
      %v834 = vadd.f32 0.0, %v833
      %835 = vmatmul.bf16.gmra.mxu0 %v731
      %v836 = vpop.f32.mrf.mxu0
      %v837 = vadd.f32 0.0, %v836
      %v838 = vpop.f32.mrf.mxu0
      %v839 = vadd.f32 0.0, %v838
      %840 = vmatmul.bf16.gmra.mxu0 %v732
      %v841 = vpop.f32.mrf.mxu0
      %v842 = vadd.f32 0.0, %v841
      %v843 = vpop.f32.mrf.mxu0
      %v844 = vadd.f32 0.0, %v843
      %845 = vmatmul.bf16.gmra.mxu0 %v733
      %v846 = vpop.f32.mrf.mxu0
      %v847 = vadd.f32 0.0, %v846
      %v848 = vpop.f32.mrf.mxu0
      %v849 = vadd.f32 0.0, %v848
      %850 = vmatmul.bf16.gmra.mxu0 %v734
      %v851 = vpop.f32.mrf.mxu0
      %v852 = vadd.f32 0.0, %v851
      %v853 = vpop.f32.mrf.mxu0
      %v854 = vadd.f32 0.0, %v853
      %855 = vmatmul.bf16.gmra.mxu0 %v735
      %v856 = vpop.f32.mrf.mxu0
      %v857 = vadd.f32 0.0, %v856
      %v858 = vpop.f32.mrf.mxu0
      %v859 = vadd.f32 0.0, %v858
      %860 = vmatmul.bf16.gmra.mxu0 %v736
      %v861 = vpop.f32.mrf.mxu0
      %v862 = vadd.f32 0.0, %v861
      %v863 = vpop.f32.mrf.mxu0
      %v864 = vadd.f32 0.0, %v863
      %865 = vmatmul.bf16.gmra.mxu0 %v737
      %v866 = vpop.f32.mrf.mxu0
      %v867 = vadd.f32 0.0, %v866
      %v868 = vpop.f32.mrf.mxu0
      %v869 = vadd.f32 0.0, %v868
      %870 = vmatmul.bf16.gmra.mxu0 %v738
      %v871 = vpop.f32.mrf.mxu0
      %v872 = vadd.f32 0.0, %v871
      %v873 = vpop.f32.mrf.mxu0
      %v874 = vadd.f32 0.0, %v873
      %875 = vmatmul.bf16.gmra.mxu0 %v739
      %v876 = vpop.f32.mrf.mxu0
      %v877 = vadd.f32 0.0, %v876
      %v878 = vpop.f32.mrf.mxu0
      %v879 = vadd.f32 0.0, %v878
      %880 = vmatmul.bf16.gmra.mxu0 %v740
      %v881 = vpop.f32.mrf.mxu0
      %v882 = vadd.f32 0.0, %v881
      %v883 = vpop.f32.mrf.mxu0
      %v884 = vadd.f32 0.0, %v883
      %885 = vmatmul.bf16.gmra.mxu0 %v741
      %v886 = vpop.f32.mrf.mxu0
      %v887 = vadd.f32 0.0, %v886
      %v888 = vpop.f32.mrf.mxu0
      %v889 = vadd.f32 0.0, %v888
      %890 = vmatmul.bf16.gmra.mxu0 %v742
      %v891 = vpop.f32.mrf.mxu0
      %v892 = vadd.f32 0.0, %v891
      %v893 = vpop.f32.mrf.mxu0
      %v894 = vadd.f32 0.0, %v893
      %895 = vdwg.mxu0
      %v896 = vadd.f32 %v535, %v817
      %v897 = vadd.f32 %v537, %v819
      %v898 = vadd.f32 %v540, %v822
      %v899 = vadd.f32 %v542, %v824
      %v900 = vadd.f32 %v545, %v827
      %v901 = vadd.f32 %v547, %v829
      %v902 = vadd.f32 %v550, %v832
      %v903 = vadd.f32 %v552, %v834
      %v904 = vadd.f32 %v555, %v837
      %v905 = vadd.f32 %v557, %v839
      %v906 = vadd.f32 %v560, %v842
      %v907 = vadd.f32 %v562, %v844
      %v908 = vadd.f32 %v565, %v847
      %v909 = vadd.f32 %v567, %v849
      %v910 = vadd.f32 %v570, %v852
      %v911 = vadd.f32 %v572, %v854
      %v912 = vadd.f32 %v575, %v857
      %v913 = vadd.f32 %v577, %v859
      %v914 = vadd.f32 %v580, %v862
      %v915 = vadd.f32 %v582, %v864
      %v916 = vadd.f32 %v585, %v867
      %v917 = vadd.f32 %v587, %v869
      %v918 = vadd.f32 %v590, %v872
      %v919 = vadd.f32 %v592, %v874
      %v920 = vadd.f32 %v595, %v877
      %v921 = vadd.f32 %v597, %v879
      %v922 = vadd.f32 %v600, %v882
      %v923 = vadd.f32 %v602, %v884
      %v924 = vadd.f32 %v605, %v887
      %v925 = vadd.f32 %v607, %v889
      %v926 = vadd.f32 %v610, %v892
      %v927 = vadd.f32 %v612, %v894
      %v928 = vld [vmem:[%s165 + $0x18] sm:$0xf]
      %v929 = vld [vmem:[%s165 + $0x1c] sm:$0xf]
      %v930 = vld [vmem:[%s165 + $0x20] sm:$0xf]
      %v931 = vld [vmem:[%s165 + $0x24] sm:$0xf]
      %v932 = vld [vmem:[%s165 + $0x28] sm:$0xf]
      %v933 = vld [vmem:[%s165 + $0x2c] sm:$0xf]
      %v934 = vld [vmem:[%s165 + $0x30] sm:$0xf]
      %v935 = vld [vmem:[%s165 + $0x34] sm:$0xf]
      %v936 = vld [vmem:[%s165 + $0x38] sm:$0xf]
      %v937 = vld [vmem:[%s165 + $0x3c] sm:$0xf]
      %v938 = vld [vmem:[%s165 + $0x40] sm:$0xf]
      %v939 = vld [vmem:[%s165 + $0x44] sm:$0xf]
      %v940 = vld [vmem:[%s165 + $0x48] sm:$0xf]
      %v941 = vld [vmem:[%s165 + $0x4c] sm:$0xf]
      %v942 = vld [vmem:[%s165 + $0x50] sm:$0xf]
      %v943 = vld [vmem:[%s165 + $0x54] sm:$0xf]
      %v944 = vld [vmem:[%s165 + $0x58] sm:$0xf]
      %v945 = vld [vmem:[%s165 + $0x5c] sm:$0xf]
      %v946 = vld [vmem:[%s165 + $0x60] sm:$0xf]
      %v947 = vld [vmem:[%s165 + $0x64] sm:$0xf]
      %v948 = vld [vmem:[%s165 + $0x68] sm:$0xf]
      %v949 = vld [vmem:[%s165 + $0x6c] sm:$0xf]
      %v950 = vld [vmem:[%s165 + $0x70] sm:$0xf]
      %v951 = vld [vmem:[%s165 + $0x74] sm:$0xf]
      %v952 = vld [vmem:[%s165 + $0x78] sm:$0xf]
      %v953 = vld [vmem:[%s165 + $0x7c] sm:$0xf]
      %v954 = vld [vmem:[%s165 + $0x80] sm:$0xf]
      %v955 = vld [vmem:[%s165 + $0x84] sm:$0xf]
      %v956 = vld [vmem:[%s165 + $0x88] sm:$0xf]
      %v957 = vld [vmem:[%s165 + $0x8c] sm:$0xf]
      %v958 = vld [vmem:[%s165 + $0x90] sm:$0xf]
      %v959 = vld [vmem:[%s165 + $0x94] sm:$0xf]
      %s960 = scalar_lea.vmem %s1, 192
      %v961 = vld [vmem:[%s960] sm:$0xf]
      %v962 = vld [vmem:[%s960 + $0x4] sm:$0xf]
      %v963 = vld [vmem:[%s960 + $0x8] sm:$0xf]
      %v964 = vld [vmem:[%s960 + $0xc] sm:$0xf]
      %v965 = vld [vmem:[%s960 + $0x10] sm:$0xf]
      %v966 = vld [vmem:[%s960 + $0x14] sm:$0xf]
      %v967 = vld [vmem:[%s960 + $0x18] sm:$0xf]
      %v968 = vld [vmem:[%s960 + $0x1c] sm:$0xf]
      %v969 = vld [vmem:[%s960 + $0x20] sm:$0xf]
      %v970 = vld [vmem:[%s960 + $0x24] sm:$0xf]
      %v971 = vld [vmem:[%s960 + $0x28] sm:$0xf]
      %v972 = vld [vmem:[%s960 + $0x2c] sm:$0xf]
      %v973 = vld [vmem:[%s960 + $0x30] sm:$0xf]
      %v974 = vld [vmem:[%s960 + $0x34] sm:$0xf]
      %v975 = vld [vmem:[%s960 + $0x38] sm:$0xf]
      %v976 = vld [vmem:[%s960 + $0x3c] sm:$0xf]
      %v1009 = vunpack.c.l.b16 %v928
      %v1010 = vunpack.c.l.b16 %v929
      %v1011 = vunpack.c.l.b16 %v930
      %v1012 = vunpack.c.l.b16 %v931
      %v1013 = vunpack.c.l.b16 %v932
      %v1014 = vunpack.c.l.b16 %v933
      %v1015 = vunpack.c.l.b16 %v934
      %v1016 = vunpack.c.l.b16 %v935
      %v1017 = vunpack.c.l.b16 %v936
      %v1018 = vunpack.c.l.b16 %v937
      %v1019 = vunpack.c.l.b16 %v938
      %v1020 = vunpack.c.l.b16 %v939
      %v1021 = vunpack.c.l.b16 %v940
      %v1022 = vunpack.c.l.b16 %v941
      %v1023 = vunpack.c.l.b16 %v942
      %v1024 = vunpack.c.l.b16 %v943
      %v1025 = vunpack.c.l.b16 %v944
      %v1026 = vunpack.c.l.b16 %v945
      %v1027 = vunpack.c.l.b16 %v946
      %v1028 = vunpack.c.l.b16 %v947
      %v1029 = vunpack.c.l.b16 %v948
      %v1030 = vunpack.c.l.b16 %v949
      %v1031 = vunpack.c.l.b16 %v950
      %v1032 = vunpack.c.l.b16 %v951
      %v1033 = vunpack.c.l.b16 %v952
      %v1034 = vunpack.c.l.b16 %v953
      %v1035 = vunpack.c.l.b16 %v954
      %v1036 = vunpack.c.l.b16 %v955
      %v1037 = vunpack.c.l.b16 %v956
      %v1038 = vunpack.c.l.b16 %v957
      %v1039 = vunpack.c.l.b16 %v958
      %v1040 = vunpack.c.l.b16 %v959
      %v1041 = vpack.c.b16 %v1010, %v1009
      %v1042 = vpack.c.b16 %v1012, %v1011
      %v1043 = vpack.c.b16 %v1014, %v1013
      %v1044 = vpack.c.b16 %v1016, %v1015
      %v1045 = vpack.c.b16 %v1018, %v1017
      %v1046 = vpack.c.b16 %v1020, %v1019
      %v1047 = vpack.c.b16 %v1022, %v1021
      %v1048 = vpack.c.b16 %v1024, %v1023
      %v1049 = vpack.c.b16 %v1026, %v1025
      %v1050 = vpack.c.b16 %v1028, %v1027
      %v1051 = vpack.c.b16 %v1030, %v1029
      %v1052 = vpack.c.b16 %v1032, %v1031
      %v1053 = vpack.c.b16 %v1034, %v1033
      %v1054 = vpack.c.b16 %v1036, %v1035
      %v1055 = vpack.c.b16 %v1038, %v1037
      %v1056 = vpack.c.b16 %v1040, %v1039
      %v1089 = vunpack.c.l.b16 %v961
      %v1090 = vunpack.c.l.b16 %v962
      %v1091 = vunpack.c.l.b16 %v963
      %v1092 = vunpack.c.l.b16 %v964
      %v1093 = vunpack.c.l.b16 %v965
      %v1094 = vunpack.c.l.b16 %v966
      %v1095 = vunpack.c.l.b16 %v967
      %v1096 = vunpack.c.l.b16 %v968
      %v1097 = vunpack.c.l.b16 %v969
      %v1098 = vunpack.c.l.b16 %v970
      %v1099 = vunpack.c.l.b16 %v971
      %v1100 = vunpack.c.l.b16 %v972
      %v1101 = vunpack.c.l.b16 %v973
      %v1102 = vunpack.c.l.b16 %v974
      %v1103 = vunpack.c.l.b16 %v975
      %v1104 = vunpack.c.l.b16 %v976
      %v1105 = vpack.c.b16 %v1090, %v1089
      %v1106 = vpack.c.b16 %v1092, %v1091
      %v1107 = vpack.c.b16 %v1094, %v1093
      %v1108 = vpack.c.b16 %v1096, %v1095
      %v1109 = vpack.c.b16 %v1098, %v1097
      %v1110 = vpack.c.b16 %v1100, %v1099
      %v1111 = vpack.c.b16 %v1102, %v1101
      %v1112 = vpack.c.b16 %v1104, %v1103
      %1121 = vmatpush.bf16.msra.mxu0 %v1112
      %1122 = vmatpush.bf16.msra.mxu0 %v1111
      %1123 = vmatpush.bf16.msra.mxu0 %v1110
      %1124 = vmatpush.bf16.msra.mxu0 %v1109
      %1125 = vmatpush.bf16.msra.mxu0 %v1108
      %1126 = vmatpush.bf16.msra.mxu0 %v1107
      %1127 = vmatpush.bf16.msra.mxu0 %v1106
      %1128 = vmatpush.bf16.msra.mxu0 %v1105
      %1129 = vmatmul.bf16.gmra.mxu0 %v1041
      %v1130 = vpop.f32.mrf.mxu0
      %v1131 = vadd.f32 0.0, %v1130
      %v1132 = vpop.f32.mrf.mxu0
      %v1133 = vadd.f32 0.0, %v1132
      %1134 = vmatmul.bf16.gmra.mxu0 %v1042
      %v1135 = vpop.f32.mrf.mxu0
      %v1136 = vadd.f32 0.0, %v1135
      %v1137 = vpop.f32.mrf.mxu0
      %v1138 = vadd.f32 0.0, %v1137
      %1139 = vmatmul.bf16.gmra.mxu0 %v1043
      %v1140 = vpop.f32.mrf.mxu0
      %v1141 = vadd.f32 0.0, %v1140
      %v1142 = vpop.f32.mrf.mxu0
      %v1143 = vadd.f32 0.0, %v1142
      %1144 = vmatmul.bf16.gmra.mxu0 %v1044
      %v1145 = vpop.f32.mrf.mxu0
      %v1146 = vadd.f32 0.0, %v1145
      %v1147 = vpop.f32.mrf.mxu0
      %v1148 = vadd.f32 0.0, %v1147
      %1149 = vmatmul.bf16.gmra.mxu0 %v1045
      %v1150 = vpop.f32.mrf.mxu0
      %v1151 = vadd.f32 0.0, %v1150
      %v1152 = vpop.f32.mrf.mxu0
      %v1153 = vadd.f32 0.0, %v1152
      %1154 = vmatmul.bf16.gmra.mxu0 %v1046
      %v1155 = vpop.f32.mrf.mxu0
      %v1156 = vadd.f32 0.0, %v1155
      %v1157 = vpop.f32.mrf.mxu0
      %v1158 = vadd.f32 0.0, %v1157
      %1159 = vmatmul.bf16.gmra.mxu0 %v1047
      %v1160 = vpop.f32.mrf.mxu0
      %v1161 = vadd.f32 0.0, %v1160
      %v1162 = vpop.f32.mrf.mxu0
      %v1163 = vadd.f32 0.0, %v1162
      %1164 = vmatmul.bf16.gmra.mxu0 %v1048
      %v1165 = vpop.f32.mrf.mxu0
      %v1166 = vadd.f32 0.0, %v1165
      %v1167 = vpop.f32.mrf.mxu0
      %v1168 = vadd.f32 0.0, %v1167
      %1169 = vmatmul.bf16.gmra.mxu0 %v1049
      %v1170 = vpop.f32.mrf.mxu0
      %v1171 = vadd.f32 0.0, %v1170
      %v1172 = vpop.f32.mrf.mxu0
      %v1173 = vadd.f32 0.0, %v1172
      %1174 = vmatmul.bf16.gmra.mxu0 %v1050
      %v1175 = vpop.f32.mrf.mxu0
      %v1176 = vadd.f32 0.0, %v1175
      %v1177 = vpop.f32.mrf.mxu0
      %v1178 = vadd.f32 0.0, %v1177
      %1179 = vmatmul.bf16.gmra.mxu0 %v1051
      %v1180 = vpop.f32.mrf.mxu0
      %v1181 = vadd.f32 0.0, %v1180
      %v1182 = vpop.f32.mrf.mxu0
      %v1183 = vadd.f32 0.0, %v1182
      %1184 = vmatmul.bf16.gmra.mxu0 %v1052
      %v1185 = vpop.f32.mrf.mxu0
      %v1186 = vadd.f32 0.0, %v1185
      %v1187 = vpop.f32.mrf.mxu0
      %v1188 = vadd.f32 0.0, %v1187
      %1189 = vmatmul.bf16.gmra.mxu0 %v1053
      %v1190 = vpop.f32.mrf.mxu0
      %v1191 = vadd.f32 0.0, %v1190
      %v1192 = vpop.f32.mrf.mxu0
      %v1193 = vadd.f32 0.0, %v1192
      %1194 = vmatmul.bf16.gmra.mxu0 %v1054
      %v1195 = vpop.f32.mrf.mxu0
      %v1196 = vadd.f32 0.0, %v1195
      %v1197 = vpop.f32.mrf.mxu0
      %v1198 = vadd.f32 0.0, %v1197
      %1199 = vmatmul.bf16.gmra.mxu0 %v1055
      %v1200 = vpop.f32.mrf.mxu0
      %v1201 = vadd.f32 0.0, %v1200
      %v1202 = vpop.f32.mrf.mxu0
      %v1203 = vadd.f32 0.0, %v1202
      %1204 = vmatmul.bf16.gmra.mxu0 %v1056
      %v1205 = vpop.f32.mrf.mxu0
      %v1206 = vadd.f32 0.0, %v1205
      %v1207 = vpop.f32.mrf.mxu0
      %v1208 = vadd.f32 0.0, %v1207
      %1209 = vdwg.mxu0
      %v1210 = vadd.f32 %v896, %v1131
      %v1211 = vadd.f32 %v897, %v1133
      %v1212 = vadd.f32 %v898, %v1136
      %v1213 = vadd.f32 %v899, %v1138
      %v1214 = vadd.f32 %v900, %v1141
      %v1215 = vadd.f32 %v901, %v1143
      %v1216 = vadd.f32 %v902, %v1146
      %v1217 = vadd.f32 %v903, %v1148
      %v1218 = vadd.f32 %v904, %v1151
      %v1219 = vadd.f32 %v905, %v1153
      %v1220 = vadd.f32 %v906, %v1156
      %v1221 = vadd.f32 %v907, %v1158
      %v1222 = vadd.f32 %v908, %v1161
      %v1223 = vadd.f32 %v909, %v1163
      %v1224 = vadd.f32 %v910, %v1166
      %v1225 = vadd.f32 %v911, %v1168
      %v1226 = vadd.f32 %v912, %v1171
      %v1227 = vadd.f32 %v913, %v1173
      %v1228 = vadd.f32 %v914, %v1176
      %v1229 = vadd.f32 %v915, %v1178
      %v1230 = vadd.f32 %v916, %v1181
      %v1231 = vadd.f32 %v917, %v1183
      %v1232 = vadd.f32 %v918, %v1186
      %v1233 = vadd.f32 %v919, %v1188
      %v1234 = vadd.f32 %v920, %v1191
      %v1235 = vadd.f32 %v921, %v1193
      %v1236 = vadd.f32 %v922, %v1196
      %v1237 = vadd.f32 %v923, %v1198
      %v1238 = vadd.f32 %v924, %v1201
      %v1239 = vadd.f32 %v925, %v1203
      %v1240 = vadd.f32 %v926, %v1206
      %v1241 = vadd.f32 %v927, %v1208
      %v1242 = vld [vmem:[%s165 + $0x20] sm:$0xf]
      %v1243 = vld [vmem:[%s165 + $0x24] sm:$0xf]
      %v1244 = vld [vmem:[%s165 + $0x28] sm:$0xf]
      %v1245 = vld [vmem:[%s165 + $0x2c] sm:$0xf]
      %v1246 = vld [vmem:[%s165 + $0x30] sm:$0xf]
      %v1247 = vld [vmem:[%s165 + $0x34] sm:$0xf]
      %v1248 = vld [vmem:[%s165 + $0x38] sm:$0xf]
      %v1249 = vld [vmem:[%s165 + $0x3c] sm:$0xf]
      %v1250 = vld [vmem:[%s165 + $0x40] sm:$0xf]
      %v1251 = vld [vmem:[%s165 + $0x44] sm:$0xf]
      %v1252 = vld [vmem:[%s165 + $0x48] sm:$0xf]
      %v1253 = vld [vmem:[%s165 + $0x4c] sm:$0xf]
      %v1254 = vld [vmem:[%s165 + $0x50] sm:$0xf]
      %v1255 = vld [vmem:[%s165 + $0x54] sm:$0xf]
      %v1256 = vld [vmem:[%s165 + $0x58] sm:$0xf]
      %v1257 = vld [vmem:[%s165 + $0x5c] sm:$0xf]
      %v1258 = vld [vmem:[%s165 + $0x60] sm:$0xf]
      %v1259 = vld [vmem:[%s165 + $0x64] sm:$0xf]
      %v1260 = vld [vmem:[%s165 + $0x68] sm:$0xf]
      %v1261 = vld [vmem:[%s165 + $0x6c] sm:$0xf]
      %v1262 = vld [vmem:[%s165 + $0x70] sm:$0xf]
      %v1263 = vld [vmem:[%s165 + $0x74] sm:$0xf]
      %v1264 = vld [vmem:[%s165 + $0x78] sm:$0xf]
      %v1265 = vld [vmem:[%s165 + $0x7c] sm:$0xf]
      %v1266 = vld [vmem:[%s165 + $0x80] sm:$0xf]
      %v1267 = vld [vmem:[%s165 + $0x84] sm:$0xf]
      %v1268 = vld [vmem:[%s165 + $0x88] sm:$0xf]
      %v1269 = vld [vmem:[%s165 + $0x8c] sm:$0xf]
      %v1270 = vld [vmem:[%s165 + $0x90] sm:$0xf]
      %v1271 = vld [vmem:[%s165 + $0x94] sm:$0xf]
      %v1272 = vld [vmem:[%s165 + $0x98] sm:$0xf]
      %v1273 = vld [vmem:[%s165 + $0x9c] sm:$0xf]
      %s1274 = scalar_lea.vmem %s1, 256
      %v1275 = vld [vmem:[%s1274] sm:$0xf]
      %v1276 = vld [vmem:[%s1274 + $0x4] sm:$0xf]
      %v1277 = vld [vmem:[%s1274 + $0x8] sm:$0xf]
      %v1278 = vld [vmem:[%s1274 + $0xc] sm:$0xf]
      %v1279 = vld [vmem:[%s1274 + $0x10] sm:$0xf]
      %v1280 = vld [vmem:[%s1274 + $0x14] sm:$0xf]
      %v1281 = vld [vmem:[%s1274 + $0x18] sm:$0xf]
      %v1282 = vld [vmem:[%s1274 + $0x1c] sm:$0xf]
      %v1283 = vld [vmem:[%s1274 + $0x20] sm:$0xf]
      %v1284 = vld [vmem:[%s1274 + $0x24] sm:$0xf]
      %v1285 = vld [vmem:[%s1274 + $0x28] sm:$0xf]
      %v1286 = vld [vmem:[%s1274 + $0x2c] sm:$0xf]
      %v1287 = vld [vmem:[%s1274 + $0x30] sm:$0xf]
      %v1288 = vld [vmem:[%s1274 + $0x34] sm:$0xf]
      %v1289 = vld [vmem:[%s1274 + $0x38] sm:$0xf]
      %v1290 = vld [vmem:[%s1274 + $0x3c] sm:$0xf]
      %v1323 = vunpack.c.l.b16 %v1242
      %v1324 = vunpack.c.l.b16 %v1243
      %v1325 = vunpack.c.l.b16 %v1244
      %v1326 = vunpack.c.l.b16 %v1245
      %v1327 = vunpack.c.l.b16 %v1246
      %v1328 = vunpack.c.l.b16 %v1247
      %v1329 = vunpack.c.l.b16 %v1248
      %v1330 = vunpack.c.l.b16 %v1249
      %v1331 = vunpack.c.l.b16 %v1250
      %v1332 = vunpack.c.l.b16 %v1251
      %v1333 = vunpack.c.l.b16 %v1252
      %v1334 = vunpack.c.l.b16 %v1253
      %v1335 = vunpack.c.l.b16 %v1254
      %v1336 = vunpack.c.l.b16 %v1255
      %v1337 = vunpack.c.l.b16 %v1256
      %v1338 = vunpack.c.l.b16 %v1257
      %v1339 = vunpack.c.l.b16 %v1258
      %v1340 = vunpack.c.l.b16 %v1259
      %v1341 = vunpack.c.l.b16 %v1260
      %v1342 = vunpack.c.l.b16 %v1261
      %v1343 = vunpack.c.l.b16 %v1262
      %v1344 = vunpack.c.l.b16 %v1263
      %v1345 = vunpack.c.l.b16 %v1264
      %v1346 = vunpack.c.l.b16 %v1265
      %v1347 = vunpack.c.l.b16 %v1266
      %v1348 = vunpack.c.l.b16 %v1267
      %v1349 = vunpack.c.l.b16 %v1268
      %v1350 = vunpack.c.l.b16 %v1269
      %v1351 = vunpack.c.l.b16 %v1270
      %v1352 = vunpack.c.l.b16 %v1271
      %v1353 = vunpack.c.l.b16 %v1272
      %v1354 = vunpack.c.l.b16 %v1273
      %v1355 = vpack.c.b16 %v1324, %v1323
      %v1356 = vpack.c.b16 %v1326, %v1325
      %v1357 = vpack.c.b16 %v1328, %v1327
      %v1358 = vpack.c.b16 %v1330, %v1329
      %v1359 = vpack.c.b16 %v1332, %v1331
      %v1360 = vpack.c.b16 %v1334, %v1333
      %v1361 = vpack.c.b16 %v1336, %v1335
      %v1362 = vpack.c.b16 %v1338, %v1337
      %v1363 = vpack.c.b16 %v1340, %v1339
      %v1364 = vpack.c.b16 %v1342, %v1341
      %v1365 = vpack.c.b16 %v1344, %v1343
      %v1366 = vpack.c.b16 %v1346, %v1345
      %v1367 = vpack.c.b16 %v1348, %v1347
      %v1368 = vpack.c.b16 %v1350, %v1349
      %v1369 = vpack.c.b16 %v1352, %v1351
      %v1370 = vpack.c.b16 %v1354, %v1353
      %v1403 = vunpack.c.l.b16 %v1275
      %v1404 = vunpack.c.l.b16 %v1276
      %v1405 = vunpack.c.l.b16 %v1277
      %v1406 = vunpack.c.l.b16 %v1278
      %v1407 = vunpack.c.l.b16 %v1279
      %v1408 = vunpack.c.l.b16 %v1280
      %v1409 = vunpack.c.l.b16 %v1281
      %v1410 = vunpack.c.l.b16 %v1282
      %v1411 = vunpack.c.l.b16 %v1283
      %v1412 = vunpack.c.l.b16 %v1284
      %v1413 = vunpack.c.l.b16 %v1285
      %v1414 = vunpack.c.l.b16 %v1286
      %v1415 = vunpack.c.l.b16 %v1287
      %v1416 = vunpack.c.l.b16 %v1288
      %v1417 = vunpack.c.l.b16 %v1289
      %v1418 = vunpack.c.l.b16 %v1290
      %v1419 = vpack.c.b16 %v1404, %v1403
      %v1420 = vpack.c.b16 %v1406, %v1405
      %v1421 = vpack.c.b16 %v1408, %v1407
      %v1422 = vpack.c.b16 %v1410, %v1409
      %v1423 = vpack.c.b16 %v1412, %v1411
      %v1424 = vpack.c.b16 %v1414, %v1413
      %v1425 = vpack.c.b16 %v1416, %v1415
      %v1426 = vpack.c.b16 %v1418, %v1417
      %1435 = vmatpush.bf16.msra.mxu0 %v1426
      %1436 = vmatpush.bf16.msra.mxu0 %v1425
      %1437 = vmatpush.bf16.msra.mxu0 %v1424
      %1438 = vmatpush.bf16.msra.mxu0 %v1423
      %1439 = vmatpush.bf16.msra.mxu0 %v1422
      %1440 = vmatpush.bf16.msra.mxu0 %v1421
      %1441 = vmatpush.bf16.msra.mxu0 %v1420
      %1442 = vmatpush.bf16.msra.mxu0 %v1419
      %1443 = vmatmul.bf16.gmra.mxu0 %v1355
      %v1444 = vpop.f32.mrf.mxu0
      %v1445 = vadd.f32 0.0, %v1444
      %v1446 = vpop.f32.mrf.mxu0
      %v1447 = vadd.f32 0.0, %v1446
      %1448 = vmatmul.bf16.gmra.mxu0 %v1356
      %v1449 = vpop.f32.mrf.mxu0
      %v1450 = vadd.f32 0.0, %v1449
      %v1451 = vpop.f32.mrf.mxu0
      %v1452 = vadd.f32 0.0, %v1451
      %1453 = vmatmul.bf16.gmra.mxu0 %v1357
      %v1454 = vpop.f32.mrf.mxu0
      %v1455 = vadd.f32 0.0, %v1454
      %v1456 = vpop.f32.mrf.mxu0
      %v1457 = vadd.f32 0.0, %v1456
      %1458 = vmatmul.bf16.gmra.mxu0 %v1358
      %v1459 = vpop.f32.mrf.mxu0
      %v1460 = vadd.f32 0.0, %v1459
      %v1461 = vpop.f32.mrf.mxu0
      %v1462 = vadd.f32 0.0, %v1461
      %1463 = vmatmul.bf16.gmra.mxu0 %v1359
      %v1464 = vpop.f32.mrf.mxu0
      %v1465 = vadd.f32 0.0, %v1464
      %v1466 = vpop.f32.mrf.mxu0
      %v1467 = vadd.f32 0.0, %v1466
      %1468 = vmatmul.bf16.gmra.mxu0 %v1360
      %v1469 = vpop.f32.mrf.mxu0
      %v1470 = vadd.f32 0.0, %v1469
      %v1471 = vpop.f32.mrf.mxu0
      %v1472 = vadd.f32 0.0, %v1471
      %1473 = vmatmul.bf16.gmra.mxu0 %v1361
      %v1474 = vpop.f32.mrf.mxu0
      %v1475 = vadd.f32 0.0, %v1474
      %v1476 = vpop.f32.mrf.mxu0
      %v1477 = vadd.f32 0.0, %v1476
      %1478 = vmatmul.bf16.gmra.mxu0 %v1362
      %v1479 = vpop.f32.mrf.mxu0
      %v1480 = vadd.f32 0.0, %v1479
      %v1481 = vpop.f32.mrf.mxu0
      %v1482 = vadd.f32 0.0, %v1481
      %1483 = vmatmul.bf16.gmra.mxu0 %v1363
      %v1484 = vpop.f32.mrf.mxu0
      %v1485 = vadd.f32 0.0, %v1484
      %v1486 = vpop.f32.mrf.mxu0
      %v1487 = vadd.f32 0.0, %v1486
      %1488 = vmatmul.bf16.gmra.mxu0 %v1364
      %v1489 = vpop.f32.mrf.mxu0
      %v1490 = vadd.f32 0.0, %v1489
      %v1491 = vpop.f32.mrf.mxu0
      %v1492 = vadd.f32 0.0, %v1491
      %1493 = vmatmul.bf16.gmra.mxu0 %v1365
      %v1494 = vpop.f32.mrf.mxu0
      %v1495 = vadd.f32 0.0, %v1494
      %v1496 = vpop.f32.mrf.mxu0
      %v1497 = vadd.f32 0.0, %v1496
      %1498 = vmatmul.bf16.gmra.mxu0 %v1366
      %v1499 = vpop.f32.mrf.mxu0
      %v1500 = vadd.f32 0.0, %v1499
      %v1501 = vpop.f32.mrf.mxu0
      %v1502 = vadd.f32 0.0, %v1501
      %1503 = vmatmul.bf16.gmra.mxu0 %v1367
      %v1504 = vpop.f32.mrf.mxu0
      %v1505 = vadd.f32 0.0, %v1504
      %v1506 = vpop.f32.mrf.mxu0
      %v1507 = vadd.f32 0.0, %v1506
      %1508 = vmatmul.bf16.gmra.mxu0 %v1368
      %v1509 = vpop.f32.mrf.mxu0
      %v1510 = vadd.f32 0.0, %v1509
      %v1511 = vpop.f32.mrf.mxu0
      %v1512 = vadd.f32 0.0, %v1511
      %1513 = vmatmul.bf16.gmra.mxu0 %v1369
      %v1514 = vpop.f32.mrf.mxu0
      %v1515 = vadd.f32 0.0, %v1514
      %v1516 = vpop.f32.mrf.mxu0
      %v1517 = vadd.f32 0.0, %v1516
      %1518 = vmatmul.bf16.gmra.mxu0 %v1370
      %v1519 = vpop.f32.mrf.mxu0
      %v1520 = vadd.f32 0.0, %v1519
      %v1521 = vpop.f32.mrf.mxu0
      %v1522 = vadd.f32 0.0, %v1521
      %1523 = vdwg.mxu0
      %v1524 = vadd.f32 %v1210, %v1445
      %v1525 = vadd.f32 %v1211, %v1447
      %v1526 = vadd.f32 %v1212, %v1450
      %v1527 = vadd.f32 %v1213, %v1452
      %v1528 = vadd.f32 %v1214, %v1455
      %v1529 = vadd.f32 %v1215, %v1457
      %v1530 = vadd.f32 %v1216, %v1460
      %v1531 = vadd.f32 %v1217, %v1462
      %v1532 = vadd.f32 %v1218, %v1465
      %v1533 = vadd.f32 %v1219, %v1467
      %v1534 = vadd.f32 %v1220, %v1470
      %v1535 = vadd.f32 %v1221, %v1472
      %v1536 = vadd.f32 %v1222, %v1475
      %v1537 = vadd.f32 %v1223, %v1477
      %v1538 = vadd.f32 %v1224, %v1480
      %v1539 = vadd.f32 %v1225, %v1482
      %v1540 = vadd.f32 %v1226, %v1485
      %v1541 = vadd.f32 %v1227, %v1487
      %v1542 = vadd.f32 %v1228, %v1490
      %v1543 = vadd.f32 %v1229, %v1492
      %v1544 = vadd.f32 %v1230, %v1495
      %v1545 = vadd.f32 %v1231, %v1497
      %v1546 = vadd.f32 %v1232, %v1500
      %v1547 = vadd.f32 %v1233, %v1502
      %v1548 = vadd.f32 %v1234, %v1505
      %v1549 = vadd.f32 %v1235, %v1507
      %v1550 = vadd.f32 %v1236, %v1510
      %v1551 = vadd.f32 %v1237, %v1512
      %v1552 = vadd.f32 %v1238, %v1515
      %v1553 = vadd.f32 %v1239, %v1517
      %v1554 = vadd.f32 %v1240, %v1520
      %v1555 = vadd.f32 %v1241, %v1522
      %v1556 = vld [vmem:[%s165 + $0x28] sm:$0xf]
      %v1557 = vld [vmem:[%s165 + $0x2c] sm:$0xf]
      %v1558 = vld [vmem:[%s165 + $0x30] sm:$0xf]
      %v1559 = vld [vmem:[%s165 + $0x34] sm:$0xf]
      %v1560 = vld [vmem:[%s165 + $0x38] sm:$0xf]
      %v1561 = vld [vmem:[%s165 + $0x3c] sm:$0xf]
      %v1562 = vld [vmem:[%s165 + $0x40] sm:$0xf]
      %v1563 = vld [vmem:[%s165 + $0x44] sm:$0xf]
      %v1564 = vld [vmem:[%s165 + $0x48] sm:$0xf]
      %v1565 = vld [vmem:[%s165 + $0x4c] sm:$0xf]
      %v1566 = vld [vmem:[%s165 + $0x50] sm:$0xf]
      %v1567 = vld [vmem:[%s165 + $0x54] sm:$0xf]
      %v1568 = vld [vmem:[%s165 + $0x58] sm:$0xf]
      %v1569 = vld [vmem:[%s165 + $0x5c] sm:$0xf]
      %v1570 = vld [vmem:[%s165 + $0x60] sm:$0xf]
      %v1571 = vld [vmem:[%s165 + $0x64] sm:$0xf]
      %v1572 = vld [vmem:[%s165 + $0x68] sm:$0xf]
      %v1573 = vld [vmem:[%s165 + $0x6c] sm:$0xf]
      %v1574 = vld [vmem:[%s165 + $0x70] sm:$0xf]
      %v1575 = vld [vmem:[%s165 + $0x74] sm:$0xf]
      %v1576 = vld [vmem:[%s165 + $0x78] sm:$0xf]
      %v1577 = vld [vmem:[%s165 + $0x7c] sm:$0xf]
      %v1578 = vld [vmem:[%s165 + $0x80] sm:$0xf]
      %v1579 = vld [vmem:[%s165 + $0x84] sm:$0xf]
      %v1580 = vld [vmem:[%s165 + $0x88] sm:$0xf]
      %v1581 = vld [vmem:[%s165 + $0x8c] sm:$0xf]
      %v1582 = vld [vmem:[%s165 + $0x90] sm:$0xf]
      %v1583 = vld [vmem:[%s165 + $0x94] sm:$0xf]
      %v1584 = vld [vmem:[%s165 + $0x98] sm:$0xf]
      %v1585 = vld [vmem:[%s165 + $0x9c] sm:$0xf]
      %v1586 = vld [vmem:[%s165 + $0xa0] sm:$0xf]
      %v1587 = vld [vmem:[%s165 + $0xa4] sm:$0xf]
      %s1588 = scalar_lea.vmem %s1, 320
      %v1589 = vld [vmem:[%s1588] sm:$0xf]
      %v1590 = vld [vmem:[%s1588 + $0x4] sm:$0xf]
      %v1591 = vld [vmem:[%s1588 + $0x8] sm:$0xf]
      %v1592 = vld [vmem:[%s1588 + $0xc] sm:$0xf]
      %v1593 = vld [vmem:[%s1588 + $0x10] sm:$0xf]
      %v1594 = vld [vmem:[%s1588 + $0x14] sm:$0xf]
      %v1595 = vld [vmem:[%s1588 + $0x18] sm:$0xf]
      %v1596 = vld [vmem:[%s1588 + $0x1c] sm:$0xf]
      %v1597 = vld [vmem:[%s1588 + $0x20] sm:$0xf]
      %v1598 = vld [vmem:[%s1588 + $0x24] sm:$0xf]
      %v1599 = vld [vmem:[%s1588 + $0x28] sm:$0xf]
      %v1600 = vld [vmem:[%s1588 + $0x2c] sm:$0xf]
      %v1601 = vld [vmem:[%s1588 + $0x30] sm:$0xf]
      %v1602 = vld [vmem:[%s1588 + $0x34] sm:$0xf]
      %v1603 = vld [vmem:[%s1588 + $0x38] sm:$0xf]
      %v1604 = vld [vmem:[%s1588 + $0x3c] sm:$0xf]
      %v1637 = vunpack.c.l.b16 %v1556
      %v1638 = vunpack.c.l.b16 %v1557
      %v1639 = vunpack.c.l.b16 %v1558
      %v1640 = vunpack.c.l.b16 %v1559
      %v1641 = vunpack.c.l.b16 %v1560
      %v1642 = vunpack.c.l.b16 %v1561
      %v1643 = vunpack.c.l.b16 %v1562
      %v1644 = vunpack.c.l.b16 %v1563
      %v1645 = vunpack.c.l.b16 %v1564
      %v1646 = vunpack.c.l.b16 %v1565
      %v1647 = vunpack.c.l.b16 %v1566
      %v1648 = vunpack.c.l.b16 %v1567
      %v1649 = vunpack.c.l.b16 %v1568
      %v1650 = vunpack.c.l.b16 %v1569
      %v1651 = vunpack.c.l.b16 %v1570
      %v1652 = vunpack.c.l.b16 %v1571
      %v1653 = vunpack.c.l.b16 %v1572
      %v1654 = vunpack.c.l.b16 %v1573
      %v1655 = vunpack.c.l.b16 %v1574
      %v1656 = vunpack.c.l.b16 %v1575
      %v1657 = vunpack.c.l.b16 %v1576
      %v1658 = vunpack.c.l.b16 %v1577
      %v1659 = vunpack.c.l.b16 %v1578
      %v1660 = vunpack.c.l.b16 %v1579
      %v1661 = vunpack.c.l.b16 %v1580
      %v1662 = vunpack.c.l.b16 %v1581
      %v1663 = vunpack.c.l.b16 %v1582
      %v1664 = vunpack.c.l.b16 %v1583
      %v1665 = vunpack.c.l.b16 %v1584
      %v1666 = vunpack.c.l.b16 %v1585
      %v1667 = vunpack.c.l.b16 %v1586
      %v1668 = vunpack.c.l.b16 %v1587
      %v1669 = vpack.c.b16 %v1638, %v1637
      %v1670 = vpack.c.b16 %v1640, %v1639
      %v1671 = vpack.c.b16 %v1642, %v1641
      %v1672 = vpack.c.b16 %v1644, %v1643
      %v1673 = vpack.c.b16 %v1646, %v1645
      %v1674 = vpack.c.b16 %v1648, %v1647
      %v1675 = vpack.c.b16 %v1650, %v1649
      %v1676 = vpack.c.b16 %v1652, %v1651
      %v1677 = vpack.c.b16 %v1654, %v1653
      %v1678 = vpack.c.b16 %v1656, %v1655
      %v1679 = vpack.c.b16 %v1658, %v1657
      %v1680 = vpack.c.b16 %v1660, %v1659
      %v1681 = vpack.c.b16 %v1662, %v1661
      %v1682 = vpack.c.b16 %v1664, %v1663
      %v1683 = vpack.c.b16 %v1666, %v1665
      %v1684 = vpack.c.b16 %v1668, %v1667
      %v1717 = vunpack.c.l.b16 %v1589
      %v1718 = vunpack.c.l.b16 %v1590
      %v1719 = vunpack.c.l.b16 %v1591
      %v1720 = vunpack.c.l.b16 %v1592
      %v1721 = vunpack.c.l.b16 %v1593
      %v1722 = vunpack.c.l.b16 %v1594
      %v1723 = vunpack.c.l.b16 %v1595
      %v1724 = vunpack.c.l.b16 %v1596
      %v1725 = vunpack.c.l.b16 %v1597
      %v1726 = vunpack.c.l.b16 %v1598
      %v1727 = vunpack.c.l.b16 %v1599
      %v1728 = vunpack.c.l.b16 %v1600
      %v1729 = vunpack.c.l.b16 %v1601
      %v1730 = vunpack.c.l.b16 %v1602
      %v1731 = vunpack.c.l.b16 %v1603
      %v1732 = vunpack.c.l.b16 %v1604
      %v1733 = vpack.c.b16 %v1718, %v1717
      %v1734 = vpack.c.b16 %v1720, %v1719
      %v1735 = vpack.c.b16 %v1722, %v1721
      %v1736 = vpack.c.b16 %v1724, %v1723
      %v1737 = vpack.c.b16 %v1726, %v1725
      %v1738 = vpack.c.b16 %v1728, %v1727
      %v1739 = vpack.c.b16 %v1730, %v1729
      %v1740 = vpack.c.b16 %v1732, %v1731
      %1749 = vmatpush.bf16.msra.mxu0 %v1740
      %1750 = vmatpush.bf16.msra.mxu0 %v1739
      %1751 = vmatpush.bf16.msra.mxu0 %v1738
      %1752 = vmatpush.bf16.msra.mxu0 %v1737
      %1753 = vmatpush.bf16.msra.mxu0 %v1736
      %1754 = vmatpush.bf16.msra.mxu0 %v1735
      %1755 = vmatpush.bf16.msra.mxu0 %v1734
      %1756 = vmatpush.bf16.msra.mxu0 %v1733
      %1757 = vmatmul.bf16.gmra.mxu0 %v1669
      %v1758 = vpop.f32.mrf.mxu0
      %v1759 = vadd.f32 0.0, %v1758
      %v1760 = vpop.f32.mrf.mxu0
      %v1761 = vadd.f32 0.0, %v1760
      %1762 = vmatmul.bf16.gmra.mxu0 %v1670
      %v1763 = vpop.f32.mrf.mxu0
      %v1764 = vadd.f32 0.0, %v1763
      %v1765 = vpop.f32.mrf.mxu0
      %v1766 = vadd.f32 0.0, %v1765
      %1767 = vmatmul.bf16.gmra.mxu0 %v1671
      %v1768 = vpop.f32.mrf.mxu0
      %v1769 = vadd.f32 0.0, %v1768
      %v1770 = vpop.f32.mrf.mxu0
      %v1771 = vadd.f32 0.0, %v1770
      %1772 = vmatmul.bf16.gmra.mxu0 %v1672
      %v1773 = vpop.f32.mrf.mxu0
      %v1774 = vadd.f32 0.0, %v1773
      %v1775 = vpop.f32.mrf.mxu0
      %v1776 = vadd.f32 0.0, %v1775
      %1777 = vmatmul.bf16.gmra.mxu0 %v1673
      %v1778 = vpop.f32.mrf.mxu0
      %v1779 = vadd.f32 0.0, %v1778
      %v1780 = vpop.f32.mrf.mxu0
      %v1781 = vadd.f32 0.0, %v1780
      %1782 = vmatmul.bf16.gmra.mxu0 %v1674
      %v1783 = vpop.f32.mrf.mxu0
      %v1784 = vadd.f32 0.0, %v1783
      %v1785 = vpop.f32.mrf.mxu0
      %v1786 = vadd.f32 0.0, %v1785
      %1787 = vmatmul.bf16.gmra.mxu0 %v1675
      %v1788 = vpop.f32.mrf.mxu0
      %v1789 = vadd.f32 0.0, %v1788
      %v1790 = vpop.f32.mrf.mxu0
      %v1791 = vadd.f32 0.0, %v1790
      %1792 = vmatmul.bf16.gmra.mxu0 %v1676
      %v1793 = vpop.f32.mrf.mxu0
      %v1794 = vadd.f32 0.0, %v1793
      %v1795 = vpop.f32.mrf.mxu0
      %v1796 = vadd.f32 0.0, %v1795
      %1797 = vmatmul.bf16.gmra.mxu0 %v1677
      %v1798 = vpop.f32.mrf.mxu0
      %v1799 = vadd.f32 0.0, %v1798
      %v1800 = vpop.f32.mrf.mxu0
      %v1801 = vadd.f32 0.0, %v1800
      %1802 = vmatmul.bf16.gmra.mxu0 %v1678
      %v1803 = vpop.f32.mrf.mxu0
      %v1804 = vadd.f32 0.0, %v1803
      %v1805 = vpop.f32.mrf.mxu0
      %v1806 = vadd.f32 0.0, %v1805
      %1807 = vmatmul.bf16.gmra.mxu0 %v1679
      %v1808 = vpop.f32.mrf.mxu0
      %v1809 = vadd.f32 0.0, %v1808
      %v1810 = vpop.f32.mrf.mxu0
      %v1811 = vadd.f32 0.0, %v1810
      %1812 = vmatmul.bf16.gmra.mxu0 %v1680
      %v1813 = vpop.f32.mrf.mxu0
      %v1814 = vadd.f32 0.0, %v1813
      %v1815 = vpop.f32.mrf.mxu0
      %v1816 = vadd.f32 0.0, %v1815
      %1817 = vmatmul.bf16.gmra.mxu0 %v1681
      %v1818 = vpop.f32.mrf.mxu0
      %v1819 = vadd.f32 0.0, %v1818
      %v1820 = vpop.f32.mrf.mxu0
      %v1821 = vadd.f32 0.0, %v1820
      %1822 = vmatmul.bf16.gmra.mxu0 %v1682
      %v1823 = vpop.f32.mrf.mxu0
      %v1824 = vadd.f32 0.0, %v1823
      %v1825 = vpop.f32.mrf.mxu0
      %v1826 = vadd.f32 0.0, %v1825
      %1827 = vmatmul.bf16.gmra.mxu0 %v1683
      %v1828 = vpop.f32.mrf.mxu0
      %v1829 = vadd.f32 0.0, %v1828
      %v1830 = vpop.f32.mrf.mxu0
      %v1831 = vadd.f32 0.0, %v1830
      %1832 = vmatmul.bf16.gmra.mxu0 %v1684
      %v1833 = vpop.f32.mrf.mxu0
      %v1834 = vadd.f32 0.0, %v1833
      %v1835 = vpop.f32.mrf.mxu0
      %v1836 = vadd.f32 0.0, %v1835
      %1837 = vdwg.mxu0
      %v1838 = vadd.f32 %v1524, %v1759
      %v1839 = vadd.f32 %v1525, %v1761
      %v1840 = vadd.f32 %v1526, %v1764
      %v1841 = vadd.f32 %v1527, %v1766
      %v1842 = vadd.f32 %v1528, %v1769
      %v1843 = vadd.f32 %v1529, %v1771
      %v1844 = vadd.f32 %v1530, %v1774
      %v1845 = vadd.f32 %v1531, %v1776
      %v1846 = vadd.f32 %v1532, %v1779
      %v1847 = vadd.f32 %v1533, %v1781
      %v1848 = vadd.f32 %v1534, %v1784
      %v1849 = vadd.f32 %v1535, %v1786
      %v1850 = vadd.f32 %v1536, %v1789
      %v1851 = vadd.f32 %v1537, %v1791
      %v1852 = vadd.f32 %v1538, %v1794
      %v1853 = vadd.f32 %v1539, %v1796
      %v1854 = vadd.f32 %v1540, %v1799
      %v1855 = vadd.f32 %v1541, %v1801
      %v1856 = vadd.f32 %v1542, %v1804
      %v1857 = vadd.f32 %v1543, %v1806
      %v1858 = vadd.f32 %v1544, %v1809
      %v1859 = vadd.f32 %v1545, %v1811
      %v1860 = vadd.f32 %v1546, %v1814
      %v1861 = vadd.f32 %v1547, %v1816
      %v1862 = vadd.f32 %v1548, %v1819
      %v1863 = vadd.f32 %v1549, %v1821
      %v1864 = vadd.f32 %v1550, %v1824
      %v1865 = vadd.f32 %v1551, %v1826
      %v1866 = vadd.f32 %v1552, %v1829
      %v1867 = vadd.f32 %v1553, %v1831
      %v1868 = vadd.f32 %v1554, %v1834
      %v1869 = vadd.f32 %v1555, %v1836
      %v1870 = vld [vmem:[%s165 + $0x30] sm:$0xf]
      %v1871 = vld [vmem:[%s165 + $0x34] sm:$0xf]
      %v1872 = vld [vmem:[%s165 + $0x38] sm:$0xf]
      %v1873 = vld [vmem:[%s165 + $0x3c] sm:$0xf]
      %v1874 = vld [vmem:[%s165 + $0x40] sm:$0xf]
      %v1875 = vld [vmem:[%s165 + $0x44] sm:$0xf]
      %v1876 = vld [vmem:[%s165 + $0x48] sm:$0xf]
      %v1877 = vld [vmem:[%s165 + $0x4c] sm:$0xf]
      %v1878 = vld [vmem:[%s165 + $0x50] sm:$0xf]
      %v1879 = vld [vmem:[%s165 + $0x54] sm:$0xf]
      %v1880 = vld [vmem:[%s165 + $0x58] sm:$0xf]
      %v1881 = vld [vmem:[%s165 + $0x5c] sm:$0xf]
      %v1882 = vld [vmem:[%s165 + $0x60] sm:$0xf]
      %v1883 = vld [vmem:[%s165 + $0x64] sm:$0xf]
      %v1884 = vld [vmem:[%s165 + $0x68] sm:$0xf]
      %v1885 = vld [vmem:[%s165 + $0x6c] sm:$0xf]
      %v1886 = vld [vmem:[%s165 + $0x70] sm:$0xf]
      %v1887 = vld [vmem:[%s165 + $0x74] sm:$0xf]
      %v1888 = vld [vmem:[%s165 + $0x78] sm:$0xf]
      %v1889 = vld [vmem:[%s165 + $0x7c] sm:$0xf]
      %v1890 = vld [vmem:[%s165 + $0x80] sm:$0xf]
      %v1891 = vld [vmem:[%s165 + $0x84] sm:$0xf]
      %v1892 = vld [vmem:[%s165 + $0x88] sm:$0xf]
      %v1893 = vld [vmem:[%s165 + $0x8c] sm:$0xf]
      %v1894 = vld [vmem:[%s165 + $0x90] sm:$0xf]
      %v1895 = vld [vmem:[%s165 + $0x94] sm:$0xf]
      %v1896 = vld [vmem:[%s165 + $0x98] sm:$0xf]
      %v1897 = vld [vmem:[%s165 + $0x9c] sm:$0xf]
      %v1898 = vld [vmem:[%s165 + $0xa0] sm:$0xf]
      %v1899 = vld [vmem:[%s165 + $0xa4] sm:$0xf]
      %v1900 = vld [vmem:[%s165 + $0xa8] sm:$0xf]
      %v1901 = vld [vmem:[%s165 + $0xac] sm:$0xf]
      %s1902 = scalar_lea.vmem %s1, 384
      %v1903 = vld [vmem:[%s1902] sm:$0xf]
      %v1904 = vld [vmem:[%s1902 + $0x4] sm:$0xf]
      %v1905 = vld [vmem:[%s1902 + $0x8] sm:$0xf]
      %v1906 = vld [vmem:[%s1902 + $0xc] sm:$0xf]
      %v1907 = vld [vmem:[%s1902 + $0x10] sm:$0xf]
      %v1908 = vld [vmem:[%s1902 + $0x14] sm:$0xf]
      %v1909 = vld [vmem:[%s1902 + $0x18] sm:$0xf]
      %v1910 = vld [vmem:[%s1902 + $0x1c] sm:$0xf]
      %v1911 = vld [vmem:[%s1902 + $0x20] sm:$0xf]
      %v1912 = vld [vmem:[%s1902 + $0x24] sm:$0xf]
      %v1913 = vld [vmem:[%s1902 + $0x28] sm:$0xf]
      %v1914 = vld [vmem:[%s1902 + $0x2c] sm:$0xf]
      %v1915 = vld [vmem:[%s1902 + $0x30] sm:$0xf]
      %v1916 = vld [vmem:[%s1902 + $0x34] sm:$0xf]
      %v1917 = vld [vmem:[%s1902 + $0x38] sm:$0xf]
      %v1918 = vld [vmem:[%s1902 + $0x3c] sm:$0xf]
      %v1951 = vunpack.c.l.b16 %v1870
      %v1952 = vunpack.c.l.b16 %v1871
      %v1953 = vunpack.c.l.b16 %v1872
      %v1954 = vunpack.c.l.b16 %v1873
      %v1955 = vunpack.c.l.b16 %v1874
      %v1956 = vunpack.c.l.b16 %v1875
      %v1957 = vunpack.c.l.b16 %v1876
      %v1958 = vunpack.c.l.b16 %v1877
      %v1959 = vunpack.c.l.b16 %v1878
      %v1960 = vunpack.c.l.b16 %v1879
      %v1961 = vunpack.c.l.b16 %v1880
      %v1962 = vunpack.c.l.b16 %v1881
      %v1963 = vunpack.c.l.b16 %v1882
      %v1964 = vunpack.c.l.b16 %v1883
      %v1965 = vunpack.c.l.b16 %v1884
      %v1966 = vunpack.c.l.b16 %v1885
      %v1967 = vunpack.c.l.b16 %v1886
      %v1968 = vunpack.c.l.b16 %v1887
      %v1969 = vunpack.c.l.b16 %v1888
      %v1970 = vunpack.c.l.b16 %v1889
      %v1971 = vunpack.c.l.b16 %v1890
      %v1972 = vunpack.c.l.b16 %v1891
      %v1973 = vunpack.c.l.b16 %v1892
      %v1974 = vunpack.c.l.b16 %v1893
      %v1975 = vunpack.c.l.b16 %v1894
      %v1976 = vunpack.c.l.b16 %v1895
      %v1977 = vunpack.c.l.b16 %v1896
      %v1978 = vunpack.c.l.b16 %v1897
      %v1979 = vunpack.c.l.b16 %v1898
      %v1980 = vunpack.c.l.b16 %v1899
      %v1981 = vunpack.c.l.b16 %v1900
      %v1982 = vunpack.c.l.b16 %v1901
      %v1983 = vpack.c.b16 %v1952, %v1951
      %v1984 = vpack.c.b16 %v1954, %v1953
      %v1985 = vpack.c.b16 %v1956, %v1955
      %v1986 = vpack.c.b16 %v1958, %v1957
      %v1987 = vpack.c.b16 %v1960, %v1959
      %v1988 = vpack.c.b16 %v1962, %v1961
      %v1989 = vpack.c.b16 %v1964, %v1963
      %v1990 = vpack.c.b16 %v1966, %v1965
      %v1991 = vpack.c.b16 %v1968, %v1967
      %v1992 = vpack.c.b16 %v1970, %v1969
      %v1993 = vpack.c.b16 %v1972, %v1971
      %v1994 = vpack.c.b16 %v1974, %v1973
      %v1995 = vpack.c.b16 %v1976, %v1975
      %v1996 = vpack.c.b16 %v1978, %v1977
      %v1997 = vpack.c.b16 %v1980, %v1979
      %v1998 = vpack.c.b16 %v1982, %v1981
      %v2031 = vunpack.c.l.b16 %v1903
      %v2032 = vunpack.c.l.b16 %v1904
      %v2033 = vunpack.c.l.b16 %v1905
      %v2034 = vunpack.c.l.b16 %v1906
      %v2035 = vunpack.c.l.b16 %v1907
      %v2036 = vunpack.c.l.b16 %v1908
      %v2037 = vunpack.c.l.b16 %v1909
      %v2038 = vunpack.c.l.b16 %v1910
      %v2039 = vunpack.c.l.b16 %v1911
      %v2040 = vunpack.c.l.b16 %v1912
      %v2041 = vunpack.c.l.b16 %v1913
      %v2042 = vunpack.c.l.b16 %v1914
      %v2043 = vunpack.c.l.b16 %v1915
      %v2044 = vunpack.c.l.b16 %v1916
      %v2045 = vunpack.c.l.b16 %v1917
      %v2046 = vunpack.c.l.b16 %v1918
      %v2047 = vpack.c.b16 %v2032, %v2031
      %v2048 = vpack.c.b16 %v2034, %v2033
      %v2049 = vpack.c.b16 %v2036, %v2035
      %v2050 = vpack.c.b16 %v2038, %v2037
      %v2051 = vpack.c.b16 %v2040, %v2039
      %v2052 = vpack.c.b16 %v2042, %v2041
      %v2053 = vpack.c.b16 %v2044, %v2043
      %v2054 = vpack.c.b16 %v2046, %v2045
      %2063 = vmatpush.bf16.msra.mxu0 %v2054
      %2064 = vmatpush.bf16.msra.mxu0 %v2053
      %2065 = vmatpush.bf16.msra.mxu0 %v2052
      %2066 = vmatpush.bf16.msra.mxu0 %v2051
      %2067 = vmatpush.bf16.msra.mxu0 %v2050
      %2068 = vmatpush.bf16.msra.mxu0 %v2049
      %2069 = vmatpush.bf16.msra.mxu0 %v2048
      %2070 = vmatpush.bf16.msra.mxu0 %v2047
      %2071 = vmatmul.bf16.gmra.mxu0 %v1983
      %v2072 = vpop.f32.mrf.mxu0
      %v2073 = vadd.f32 0.0, %v2072
      %v2074 = vpop.f32.mrf.mxu0
      %v2075 = vadd.f32 0.0, %v2074
      %2076 = vmatmul.bf16.gmra.mxu0 %v1984
      %v2077 = vpop.f32.mrf.mxu0
      %v2078 = vadd.f32 0.0, %v2077
      %v2079 = vpop.f32.mrf.mxu0
      %v2080 = vadd.f32 0.0, %v2079
      %2081 = vmatmul.bf16.gmra.mxu0 %v1985
      %v2082 = vpop.f32.mrf.mxu0
      %v2083 = vadd.f32 0.0, %v2082
      %v2084 = vpop.f32.mrf.mxu0
      %v2085 = vadd.f32 0.0, %v2084
      %2086 = vmatmul.bf16.gmra.mxu0 %v1986
      %v2087 = vpop.f32.mrf.mxu0
      %v2088 = vadd.f32 0.0, %v2087
      %v2089 = vpop.f32.mrf.mxu0
      %v2090 = vadd.f32 0.0, %v2089
      %2091 = vmatmul.bf16.gmra.mxu0 %v1987
      %v2092 = vpop.f32.mrf.mxu0
      %v2093 = vadd.f32 0.0, %v2092
      %v2094 = vpop.f32.mrf.mxu0
      %v2095 = vadd.f32 0.0, %v2094
      %2096 = vmatmul.bf16.gmra.mxu0 %v1988
      %v2097 = vpop.f32.mrf.mxu0
      %v2098 = vadd.f32 0.0, %v2097
      %v2099 = vpop.f32.mrf.mxu0
      %v2100 = vadd.f32 0.0, %v2099
      %2101 = vmatmul.bf16.gmra.mxu0 %v1989
      %v2102 = vpop.f32.mrf.mxu0
      %v2103 = vadd.f32 0.0, %v2102
      %v2104 = vpop.f32.mrf.mxu0
      %v2105 = vadd.f32 0.0, %v2104
      %2106 = vmatmul.bf16.gmra.mxu0 %v1990
      %v2107 = vpop.f32.mrf.mxu0
      %v2108 = vadd.f32 0.0, %v2107
      %v2109 = vpop.f32.mrf.mxu0
      %v2110 = vadd.f32 0.0, %v2109
      %2111 = vmatmul.bf16.gmra.mxu0 %v1991
      %v2112 = vpop.f32.mrf.mxu0
      %v2113 = vadd.f32 0.0, %v2112
      %v2114 = vpop.f32.mrf.mxu0
      %v2115 = vadd.f32 0.0, %v2114
      %2116 = vmatmul.bf16.gmra.mxu0 %v1992
      %v2117 = vpop.f32.mrf.mxu0
      %v2118 = vadd.f32 0.0, %v2117
      %v2119 = vpop.f32.mrf.mxu0
      %v2120 = vadd.f32 0.0, %v2119
      %2121 = vmatmul.bf16.gmra.mxu0 %v1993
      %v2122 = vpop.f32.mrf.mxu0
      %v2123 = vadd.f32 0.0, %v2122
      %v2124 = vpop.f32.mrf.mxu0
      %v2125 = vadd.f32 0.0, %v2124
      %2126 = vmatmul.bf16.gmra.mxu0 %v1994
      %v2127 = vpop.f32.mrf.mxu0
      %v2128 = vadd.f32 0.0, %v2127
      %v2129 = vpop.f32.mrf.mxu0
      %v2130 = vadd.f32 0.0, %v2129
      %2131 = vmatmul.bf16.gmra.mxu0 %v1995
      %v2132 = vpop.f32.mrf.mxu0
      %v2133 = vadd.f32 0.0, %v2132
      %v2134 = vpop.f32.mrf.mxu0
      %v2135 = vadd.f32 0.0, %v2134
      %2136 = vmatmul.bf16.gmra.mxu0 %v1996
      %v2137 = vpop.f32.mrf.mxu0
      %v2138 = vadd.f32 0.0, %v2137
      %v2139 = vpop.f32.mrf.mxu0
      %v2140 = vadd.f32 0.0, %v2139
      %2141 = vmatmul.bf16.gmra.mxu0 %v1997
      %v2142 = vpop.f32.mrf.mxu0
      %v2143 = vadd.f32 0.0, %v2142
      %v2144 = vpop.f32.mrf.mxu0
      %v2145 = vadd.f32 0.0, %v2144
      %2146 = vmatmul.bf16.gmra.mxu0 %v1998
      %v2147 = vpop.f32.mrf.mxu0
      %v2148 = vadd.f32 0.0, %v2147
      %v2149 = vpop.f32.mrf.mxu0
      %v2150 = vadd.f32 0.0, %v2149
      %2151 = vdwg.mxu0
      %v2152 = vadd.f32 %v1838, %v2073
      %v2153 = vadd.f32 %v1839, %v2075
      %v2154 = vadd.f32 %v1840, %v2078
      %v2155 = vadd.f32 %v1841, %v2080
      %v2156 = vadd.f32 %v1842, %v2083
      %v2157 = vadd.f32 %v1843, %v2085
      %v2158 = vadd.f32 %v1844, %v2088
      %v2159 = vadd.f32 %v1845, %v2090
      %v2160 = vadd.f32 %v1846, %v2093
      %v2161 = vadd.f32 %v1847, %v2095
      %v2162 = vadd.f32 %v1848, %v2098
      %v2163 = vadd.f32 %v1849, %v2100
      %v2164 = vadd.f32 %v1850, %v2103
      %v2165 = vadd.f32 %v1851, %v2105
      %v2166 = vadd.f32 %v1852, %v2108
      %v2167 = vadd.f32 %v1853, %v2110
      %v2168 = vadd.f32 %v1854, %v2113
      %v2169 = vadd.f32 %v1855, %v2115
      %v2170 = vadd.f32 %v1856, %v2118
      %v2171 = vadd.f32 %v1857, %v2120
      %v2172 = vadd.f32 %v1858, %v2123
      %v2173 = vadd.f32 %v1859, %v2125
      %v2174 = vadd.f32 %v1860, %v2128
      %v2175 = vadd.f32 %v1861, %v2130
      %v2176 = vadd.f32 %v1862, %v2133
      %v2177 = vadd.f32 %v1863, %v2135
      %v2178 = vadd.f32 %v1864, %v2138
      %v2179 = vadd.f32 %v1865, %v2140
      %v2180 = vadd.f32 %v1866, %v2143
      %v2181 = vadd.f32 %v1867, %v2145
      %v2182 = vadd.f32 %v1868, %v2148
      %v2183 = vadd.f32 %v1869, %v2150
      %v2184 = vld [vmem:[%s2] sm:$0x1]
      %v2186 = vperm.slane %v2184, 0
      %v2188 = vadd.f32 %v2152, %v2186
      %v2189 = vadd.f32 %v2153, %v2186
      %v2190 = vadd.f32 %v2154, %v2186
      %v2191 = vadd.f32 %v2155, %v2186
      %v2192 = vadd.f32 %v2156, %v2186
      %v2193 = vadd.f32 %v2157, %v2186
      %v2194 = vadd.f32 %v2158, %v2186
      %v2195 = vadd.f32 %v2159, %v2186
      %v2196 = vadd.f32 %v2160, %v2186
      %v2197 = vadd.f32 %v2161, %v2186
      %v2198 = vadd.f32 %v2162, %v2186
      %v2199 = vadd.f32 %v2163, %v2186
      %v2200 = vadd.f32 %v2164, %v2186
      %v2201 = vadd.f32 %v2165, %v2186
      %v2202 = vadd.f32 %v2166, %v2186
      %v2203 = vadd.f32 %v2167, %v2186
      %v2204 = vadd.f32 %v2168, %v2186
      %v2205 = vadd.f32 %v2169, %v2186
      %v2206 = vadd.f32 %v2170, %v2186
      %v2207 = vadd.f32 %v2171, %v2186
      %v2208 = vadd.f32 %v2172, %v2186
      %v2209 = vadd.f32 %v2173, %v2186
      %v2210 = vadd.f32 %v2174, %v2186
      %v2211 = vadd.f32 %v2175, %v2186
      %v2212 = vadd.f32 %v2176, %v2186
      %v2213 = vadd.f32 %v2177, %v2186
      %v2214 = vadd.f32 %v2178, %v2186
      %v2215 = vadd.f32 %v2179, %v2186
      %v2216 = vadd.f32 %v2180, %v2186
      %v2217 = vadd.f32 %v2181, %v2186
      %v2218 = vadd.f32 %v2182, %v2186
      %v2219 = vadd.f32 %v2183, %v2186
      %v2220 = vmax.f32 %v2188, 0.0
      %v2221 = vmax.f32 %v2189, 0.0
      %v2222 = vmax.f32 %v2190, 0.0
      %v2223 = vmax.f32 %v2191, 0.0
      %v2224 = vmax.f32 %v2192, 0.0
      %v2225 = vmax.f32 %v2193, 0.0
      %v2226 = vmax.f32 %v2194, 0.0
      %v2227 = vmax.f32 %v2195, 0.0
      %v2228 = vmax.f32 %v2196, 0.0
      %v2229 = vmax.f32 %v2197, 0.0
      %v2230 = vmax.f32 %v2198, 0.0
      %v2231 = vmax.f32 %v2199, 0.0
      %v2232 = vmax.f32 %v2200, 0.0
      %v2233 = vmax.f32 %v2201, 0.0
      %v2234 = vmax.f32 %v2202, 0.0
      %v2235 = vmax.f32 %v2203, 0.0
      %v2236 = vmax.f32 %v2204, 0.0
      %v2237 = vmax.f32 %v2205, 0.0
      %v2238 = vmax.f32 %v2206, 0.0
      %v2239 = vmax.f32 %v2207, 0.0
      %v2240 = vmax.f32 %v2208, 0.0
      %v2241 = vmax.f32 %v2209, 0.0
      %v2242 = vmax.f32 %v2210, 0.0
      %v2243 = vmax.f32 %v2211, 0.0
      %v2244 = vmax.f32 %v2212, 0.0
      %v2245 = vmax.f32 %v2213, 0.0
      %v2246 = vmax.f32 %v2214, 0.0
      %v2247 = vmax.f32 %v2215, 0.0
      %v2248 = vmax.f32 %v2216, 0.0
      %v2249 = vmax.f32 %v2217, 0.0
      %v2250 = vmax.f32 %v2218, 0.0
      %v2251 = vmax.f32 %v2219, 0.0
      %2252 = vst [vmem:[%s170] sm:$0xff] %v2220
      %2253 = vst [vmem:[%s170 + $0x8] sm:$0xff] %v2221
      %2254 = vst [vmem:[%s170 + $0x10] sm:$0xff] %v2222
      %2255 = vst [vmem:[%s170 + $0x18] sm:$0xff] %v2223
      %2256 = vst [vmem:[%s170 + $0x20] sm:$0xff] %v2224
      %2257 = vst [vmem:[%s170 + $0x28] sm:$0xff] %v2225
      %2258 = vst [vmem:[%s170 + $0x30] sm:$0xff] %v2226
      %2259 = vst [vmem:[%s170 + $0x38] sm:$0xff] %v2227
      %2260 = vst [vmem:[%s170 + $0x40] sm:$0xff] %v2228
      %2261 = vst [vmem:[%s170 + $0x48] sm:$0xff] %v2229
      %2262 = vst [vmem:[%s170 + $0x50] sm:$0xff] %v2230
      %2263 = vst [vmem:[%s170 + $0x58] sm:$0xff] %v2231
      %2264 = vst [vmem:[%s170 + $0x60] sm:$0xff] %v2232
      %2265 = vst [vmem:[%s170 + $0x68] sm:$0xff] %v2233
      %2266 = vst [vmem:[%s170 + $0x70] sm:$0xff] %v2234
      %2267 = vst [vmem:[%s170 + $0x78] sm:$0xff] %v2235
      %2268 = vst [vmem:[%s170 + $0x80] sm:$0xff] %v2236
      %2269 = vst [vmem:[%s170 + $0x88] sm:$0xff] %v2237
      %2270 = vst [vmem:[%s170 + $0x90] sm:$0xff] %v2238
      %2271 = vst [vmem:[%s170 + $0x98] sm:$0xff] %v2239
      %2272 = vst [vmem:[%s170 + $0xa0] sm:$0xff] %v2240
      %2273 = vst [vmem:[%s170 + $0xa8] sm:$0xff] %v2241
      %2274 = vst [vmem:[%s170 + $0xb0] sm:$0xff] %v2242
      %2275 = vst [vmem:[%s170 + $0xb8] sm:$0xff] %v2243
      %2276 = vst [vmem:[%s170 + $0xc0] sm:$0xff] %v2244
      %2277 = vst [vmem:[%s170 + $0xc8] sm:$0xff] %v2245
      %2278 = vst [vmem:[%s170 + $0xd0] sm:$0xff] %v2246
      %2279 = vst [vmem:[%s170 + $0xd8] sm:$0xff] %v2247
      %2280 = vst [vmem:[%s170 + $0xe0] sm:$0xff] %v2248
      %2281 = vst [vmem:[%s170 + $0xe8] sm:$0xff] %v2249
      %2282 = vst [vmem:[%s170 + $0xf0] sm:$0xff] %v2250
      %2283 = vst [vmem:[%s170 + $0xf8] sm:$0xff] %v2251
      %p2284 = scmp.lt.s32.totalorder %s14, 1
      %s2285 = scalar_select %p2284, %s14, 1
      %s2286 = smul.addr %s2285, 32
      %s2287 = smul.addr %s2286, 8
      %s2288 = scalar_lea.vmem %s3, %s2287
      // Predicated region
      $region33: #{inception_b_forward.14} parent=31 // pred_check
        %p2289 = pneg %p100
      $region34: #{inception_b_forward.14} parent=31 // pred_check_branch
        %2291 = sbr.rel (%p2289) target = $region36
      $region35: #{inception_b_forward.14} parent=31 // pred_region
        _
      $region36: #{inception_b_forward.14} parent=31 // pred_fallthru
        _
    $region32: #{inception_b_forward.14} parent=5 // pred_fallthru
      _
    %p2292 = scmp.le.s32.totalorder 2, %s9
    // Predicated region
    $region37: #{inception_b_forward.14} parent=5 // pred_check
      %p2293 = pneg %p2292
    $region38: #{inception_b_forward.14} parent=5 // pred_check_branch
      %2295 = sbr.rel (%p2293) target = $region40
    $region39: #{inception_b_forward.14} parent=5 // pred_region
      %s2296 = ssub.s32 %s9, 2
      // Predicated region
      $region41: #{inception_b_forward.14} parent=39 // pred_check
        %p2297 = pneg %p106
      $region42: #{inception_b_forward.14} parent=39 // pred_check_branch
        %2299 = sbr.rel (%p2297) target = $region44
      $region43: #{inception_b_forward.14} parent=39 // pred_region
        %p2300 = scmp.lt.s32.totalorder %s15, 1
        %s2301 = scalar_select %p2300, %s15, 1
        %s2302 = smul.addr %s2301, 32
        %s2303 = smul.addr %s2302, 8
        %s2304 = scalar_lea.vmem %s3, %s2303
      $region44: #{inception_b_forward.14} parent=39 // pred_fallthru
        _
    $region40: #{inception_b_forward.14} parent=5 // pred_fallthru
      _
  $region6: #{inception_b_forward.14} parent=0 // loop_footer
    %s13 = sadd.s32 1, %s9
  $region7: #{inception_b_forward.14} parent=0 // loop_footer_branch
    %8 = sbr.rel target = $region3
  $region8: #{inception_b_forward.14} parent=0 // loop_exit
    _

// kernel: inception_b_forward.15
$region0: #{inception_b_forward.15}
  #allocation0 [shape = 'u32[]', space=smem, size = 0x4, offset = 0x4, fixed_abs, tag = 'smem constant byte address 0x4 - core index']
  #allocation1 [shape = 'u32[72,128]{1,0:T(1,128)}', space=vmem, size = 0x9000, scoped, tag = 'internal scratch']
  %s0 = inlined_call_operand.vmem [shape: bf16[512,4], index: 0, kind: input, shape index: {}]
  %s1 = inlined_call_operand.vmem [shape: bf16[4,128], index: 1, kind: input, shape index: {}]
  %s2 = inlined_call_operand.vmem [shape: f32[1,128], index: 2, kind: input, shape index: {}]
  %s3 = inlined_call_operand.vmem [shape: f32[512,128], index: 3, kind: output, shape index: {}]
  %s4 = sld [smem:[#allocation0]]
  $region45: #{inception_b_forward.15} parent=0
    _
  %s6 = ssub.s32 1, %s4
  %s7 = scalar_select 0, %s6, %s4
  loop: start=0, step=1, limit=4
  $region2: #{inception_b_forward.15} parent=0 // loop_pre_header
    _
  $region3: #{inception_b_forward.15} parent=0 // loop_header
    %s9 = sphi 0, %s13
    %p10 = scmp.ge.s32.totalorder %s9, 4
    %s19 = sphi 0, %s21
    %s22 = sphi 0, %s19
    %s23 = sphi 0, %s22
    %s39 = sphi 0, %s23
    %s43 = sphi 0, %s43
    %s45 = sphi 0, %s43
    %s46 = sphi 0, %s45
    %s60 = sphi 0, %s46
    %s64 = sphi 0, %s64
    %s66 = sphi 0, %s64
    %s67 = sphi 0, %s66
    %s81 = sphi 0, %s67
    %s87 = sphi 0, %s89
    %s90 = sphi 0, %s87
    %s91 = sphi 0, %s90
    %s107 = sphi 0, %s91
  $region4: #{inception_b_forward.15} parent=0 // loop_header_branch
    %12 = sbr.rel (%p10) target = $region8
  $region5: #{inception_b_forward.15} parent=0 // loop_body
    %s14 = ssub.s32 %s9, 1
    %s15 = ssub.s32 %s9, 2
    %s16 = sadd.s32 %s9, 1
    %s17 = ssub.s32 %s9, %s16
    %p18 = scmp.eq.s32.totalorder %s17, 0
    %s20 = sadd.s32 %s19, 1
    %s21 = scalar_select %p18, %s19, %s20
    %p24 = pneg %p18
    %p25 = scmp.eq.s32.totalorder %s9, 1
    %p26 = por %p24, %p25
    %p27 = scmp.ne.s32.totalorder %s19, %s22
    %p28 = scmp.eq.s32.totalorder %s9, 0
    %p29 = por %p27, %p28
    %p30 = scmp.ne.s32.totalorder %s19, %s22
    %p31 = scmp.eq.s32.totalorder %s14, 1
    %p32 = por %p30, %p31
    %p33 = scmp.ne.s32.totalorder %s22, %s23
    %p34 = scmp.eq.s32.totalorder %s14, 0
    %p35 = por %p33, %p34
    %p36 = scmp.ne.s32.totalorder %s22, %s23
    %p37 = scmp.eq.s32.totalorder %s15, 1
    %p38 = por %p36, %p37
    %p40 = scmp.ne.s32.totalorder %s23, %s39
    %p41 = scmp.eq.s32.totalorder %s15, 0
    %p42 = por %p40, %p41
    %s44 = sadd.s32 %s43, 1
    %p47 = scmp.eq.s32.totalorder %s9, 1
    %p48 = scmp.ne.s32.totalorder %s43, %s45
    %p49 = scmp.eq.s32.totalorder %s9, 0
    %p50 = por %p48, %p49
    %p51 = scmp.ne.s32.totalorder %s43, %s45
    %p52 = scmp.eq.s32.totalorder %s14, 1
    %p53 = por %p51, %p52
    %p54 = scmp.ne.s32.totalorder %s45, %s46
    %p55 = scmp.eq.s32.totalorder %s14, 0
    %p56 = por %p54, %p55
    %p57 = scmp.ne.s32.totalorder %s45, %s46
    %p58 = scmp.eq.s32.totalorder %s15, 1
    %p59 = por %p57, %p58
    %p61 = scmp.ne.s32.totalorder %s46, %s60
    %p62 = scmp.eq.s32.totalorder %s15, 0
    %p63 = por %p61, %p62
    %s65 = sadd.s32 %s64, 1
    %p68 = scmp.eq.s32.totalorder %s9, 1
    %p69 = scmp.ne.s32.totalorder %s64, %s66
    %p70 = scmp.eq.s32.totalorder %s9, 0
    %p71 = por %p69, %p70
    %p72 = scmp.ne.s32.totalorder %s64, %s66
    %p73 = scmp.eq.s32.totalorder %s14, 1
    %p74 = por %p72, %p73
    %p75 = scmp.ne.s32.totalorder %s66, %s67
    %p76 = scmp.eq.s32.totalorder %s14, 0
    %p77 = por %p75, %p76
    %p78 = scmp.ne.s32.totalorder %s66, %s67
    %p79 = scmp.eq.s32.totalorder %s15, 1
    %p80 = por %p78, %p79
    %p82 = scmp.ne.s32.totalorder %s67, %s81
    %p83 = scmp.eq.s32.totalorder %s15, 0
    %p84 = por %p82, %p83
    %s85 = ssub.s32 %s9, %s16
    %p86 = scmp.eq.s32.totalorder %s85, 0
    %s88 = sadd.s32 %s87, 1
    %s89 = scalar_select %p86, %s87, %s88
    %p92 = pneg %p86
    %p93 = scmp.eq.s32.totalorder %s9, 1
    %p94 = por %p92, %p93
    %p95 = scmp.ne.s32.totalorder %s87, %s90
    %p96 = scmp.eq.s32.totalorder %s9, 0
    %p97 = por %p95, %p96
    %p98 = scmp.ne.s32.totalorder %s87, %s90
    %p99 = scmp.eq.s32.totalorder %s14, 1
    %p100 = por %p98, %p99
    %p101 = scmp.ne.s32.totalorder %s90, %s91
    %p102 = scmp.eq.s32.totalorder %s14, 0
    %p103 = por %p101, %p102
    %p104 = scmp.ne.s32.totalorder %s90, %s91
    %p105 = scmp.eq.s32.totalorder %s15, 1
    %p106 = por %p104, %p105
    %p108 = scmp.ne.s32.totalorder %s91, %s107
    %p109 = scmp.eq.s32.totalorder %s15, 0
    %p110 = por %p108, %p109
    %p111 = scmp.le.s32.totalorder 1, %s9
    %p112 = scmp.lt.s32.totalorder %s9, 3
    %p113 = pnand %p111, %p112
    %p114 = pneg %p113
    // Predicated region
    $region9: #{inception_b_forward.15} parent=5 // pred_check
      _
    $region10: #{inception_b_forward.15} parent=5 // pred_check_branch
      %116 = sbr.rel (%p113) target = $region12
    $region11: #{inception_b_forward.15} parent=5 // pred_region
      %s117 = ssub.s32 %s9, 1
      // Predicated region
      $region13: #{inception_b_forward.15} parent=11 // pred_check
        %p118 = pneg %p56
      $region14: #{inception_b_forward.15} parent=11 // pred_check_branch
        %120 = sbr.rel (%p118) target = $region16
      $region15: #{inception_b_forward.15} parent=11 // pred_region
        _
      $region16: #{inception_b_forward.15} parent=11 // pred_fallthru
        _
      // Predicated region
      $region17: #{inception_b_forward.15} parent=11 // pred_check
        %p121 = pneg %p77
      $region18: #{inception_b_forward.15} parent=11 // pred_check_branch
        %123 = sbr.rel (%p121) target = $region20
      $region19: #{inception_b_forward.15} parent=11 // pred_region
        _
      $region20: #{inception_b_forward.15} parent=11 // pred_fallthru
        _
    $region12: #{inception_b_forward.15} parent=5 // pred_fallthru
      _
    %p124 = scmp.lt.s32.totalorder %s9, 2
    // Predicated region
    $region21: #{inception_b_forward.15} parent=5 // pred_check
      %p125 = pneg %p124
    $region22: #{inception_b_forward.15} parent=5 // pred_check_branch
      %127 = sbr.rel (%p125) target = $region24
    $region23: #{inception_b_forward.15} parent=5 // pred_region
      // Predicated region
      $region25: #{inception_b_forward.15} parent=23 // pred_check
        %p128 = pneg %p29
      $region26: #{inception_b_forward.15} parent=23 // pred_check_branch
        %130 = sbr.rel (%p128) target = $region28
      $region27: #{inception_b_forward.15} parent=23 // pred_region
        %s131 = smul.u32 32, %s9
        %p132 = scmp.lt.s32.totalorder %s131, 63
        %s133 = scalar_select %p132, %s131, 63
        %s134 = smul.addr %s133, 4
        %s135 = scalar_lea.vmem %s0, %s134
        %s136 = smul.u32 32, %s9
      $region28: #{inception_b_forward.15} parent=23 // pred_fallthru
        _
    $region24: #{inception_b_forward.15} parent=5 // pred_fallthru
      _
    %p137 = scmp.le.s32.totalorder 1, %s9
    %p138 = scmp.lt.s32.totalorder %s9, 3
    %p139 = pnand %p137, %p138
    %p140 = pneg %p139
    // Predicated region
    $region29: #{inception_b_forward.15} parent=5 // pred_check
      _
    $region30: #{inception_b_forward.15} parent=5 // pred_check_branch
      %142 = sbr.rel (%p139) target = $region32
    $region31: #{inception_b_forward.15} parent=5 // pred_region
      %s143 = ssub.s32 %s9, 1
      %s144 = smul.u32 32, %s14
      %p145 = scmp.lt.s32.totalorder %s144, 63
      %s146 = scalar_select %p145, %s144, 63
      %s147 = smul.addr %s146, 4
      %s148 = scalar_lea.vmem %s0, %s147
      %p149 = pneg %p35
      %p150 = pneg %p32
      %p151 = pneg %p56
      %p152 = pneg %p53
      %p153 = pneg %p77
      %p154 = pneg %p74
      %p155 = pneg %p103
      %p156 = pneg %p100
      %s157 = smul.u32 32, %s14
      %p158 = scmp.lt.s32.totalorder %s157, 63
      %s159 = scalar_select %p158, %s157, 63
      %s160 = smul.addr %s159, 8
      %s161 = scalar_lea.vmem %s3, %s160
      %s162 = smul.u32 32, %s14
      %p163 = scmp.lt.s32.totalorder %s162, 63
      %s164 = scalar_select %p163, %s162, 63
      %s165 = smul.addr %s164, 4
      %s166 = scalar_lea.vmem %s0, %s165
      %s167 = smul.u32 32, %s14
      %s168 = smul.u32 32, %s14
      %p169 = scmp.lt.s32.totalorder %s168, 63
      %s170 = scalar_select %p169, %s168, 63
      %s171 = smul.addr %s170, 8
      %s172 = scalar_lea.vmem %s3, %s171
      %s173 = smul.u32 32, %s14
      %v175 = vld [vmem:[%s166] sm:$0xf]
      %v176 = vld [vmem:[%s166 + $0x4] sm:$0xf]
      %v177 = vld [vmem:[%s166 + $0x8] sm:$0xf]
      %v178 = vld [vmem:[%s166 + $0xc] sm:$0xf]
      %v179 = vld [vmem:[%s166 + $0x10] sm:$0xf]
      %v180 = vld [vmem:[%s166 + $0x14] sm:$0xf]
      %v181 = vld [vmem:[%s166 + $0x18] sm:$0xf]
      %v182 = vld [vmem:[%s166 + $0x1c] sm:$0xf]
      %v183 = vld [vmem:[%s166 + $0x20] sm:$0xf]
      %v184 = vld [vmem:[%s166 + $0x24] sm:$0xf]
      %v185 = vld [vmem:[%s166 + $0x28] sm:$0xf]
      %v186 = vld [vmem:[%s166 + $0x2c] sm:$0xf]
      %v187 = vld [vmem:[%s166 + $0x30] sm:$0xf]
      %v188 = vld [vmem:[%s166 + $0x34] sm:$0xf]
      %v189 = vld [vmem:[%s166 + $0x38] sm:$0xf]
      %v190 = vld [vmem:[%s166 + $0x3c] sm:$0xf]
      %v191 = vld [vmem:[%s166 + $0x40] sm:$0xf]
      %v192 = vld [vmem:[%s166 + $0x44] sm:$0xf]
      %v193 = vld [vmem:[%s166 + $0x48] sm:$0xf]
      %v194 = vld [vmem:[%s166 + $0x4c] sm:$0xf]
      %v195 = vld [vmem:[%s166 + $0x50] sm:$0xf]
      %v196 = vld [vmem:[%s166 + $0x54] sm:$0xf]
      %v197 = vld [vmem:[%s166 + $0x58] sm:$0xf]
      %v198 = vld [vmem:[%s166 + $0x5c] sm:$0xf]
      %v199 = vld [vmem:[%s166 + $0x60] sm:$0xf]
      %v200 = vld [vmem:[%s166 + $0x64] sm:$0xf]
      %v201 = vld [vmem:[%s166 + $0x68] sm:$0xf]
      %v202 = vld [vmem:[%s166 + $0x6c] sm:$0xf]
      %v203 = vld [vmem:[%s166 + $0x70] sm:$0xf]
      %v204 = vld [vmem:[%s166 + $0x74] sm:$0xf]
      %v205 = vld [vmem:[%s166 + $0x78] sm:$0xf]
      %v206 = vld [vmem:[%s166 + $0x7c] sm:$0xf]
      %v207 = vld [vmem:[%s1] sm:$0x3]
      %v208 = vld [vmem:[%s2] sm:$0x1]
      %v210 = vperm.slane %v208, 0
      %v244 = vunpack.c.l.b16 %v175
      %v245 = vunpack.c.l.b16 %v176
      %v246 = vunpack.c.l.b16 %v177
      %v247 = vunpack.c.l.b16 %v178
      %v248 = vunpack.c.l.b16 %v179
      %v249 = vunpack.c.l.b16 %v180
      %v250 = vunpack.c.l.b16 %v181
      %v251 = vunpack.c.l.b16 %v182
      %v252 = vunpack.c.l.b16 %v183
      %v253 = vunpack.c.l.b16 %v184
      %v254 = vunpack.c.l.b16 %v185
      %v255 = vunpack.c.l.b16 %v186
      %v256 = vunpack.c.l.b16 %v187
      %v257 = vunpack.c.l.b16 %v188
      %v258 = vunpack.c.l.b16 %v189
      %v259 = vunpack.c.l.b16 %v190
      %v260 = vunpack.c.l.b16 %v191
      %v261 = vunpack.c.l.b16 %v192
      %v262 = vunpack.c.l.b16 %v193
      %v263 = vunpack.c.l.b16 %v194
      %v264 = vunpack.c.l.b16 %v195
      %v265 = vunpack.c.l.b16 %v196
      %v266 = vunpack.c.l.b16 %v197
      %v267 = vunpack.c.l.b16 %v198
      %v268 = vunpack.c.l.b16 %v199
      %v269 = vunpack.c.l.b16 %v200
      %v270 = vunpack.c.l.b16 %v201
      %v271 = vunpack.c.l.b16 %v202
      %v272 = vunpack.c.l.b16 %v203
      %v273 = vunpack.c.l.b16 %v204
      %v274 = vunpack.c.l.b16 %v205
      %v275 = vunpack.c.l.b16 %v206
      %v276 = vpack.c.b16 %v245, %v244
      %v277 = vpack.c.b16 %v247, %v246
      %v278 = vpack.c.b16 %v249, %v248
      %v279 = vpack.c.b16 %v251, %v250
      %v280 = vpack.c.b16 %v253, %v252
      %v281 = vpack.c.b16 %v255, %v254
      %v282 = vpack.c.b16 %v257, %v256
      %v283 = vpack.c.b16 %v259, %v258
      %v284 = vpack.c.b16 %v261, %v260
      %v285 = vpack.c.b16 %v263, %v262
      %v286 = vpack.c.b16 %v265, %v264
      %v287 = vpack.c.b16 %v267, %v266
      %v288 = vpack.c.b16 %v269, %v268
      %v289 = vpack.c.b16 %v271, %v270
      %v290 = vpack.c.b16 %v273, %v272
      %v291 = vpack.c.b16 %v275, %v274
      %vm292 = vcmask 31744
      %v294 = vsel %vm292, %v276, 0
      %v297 = vsel %vm292, %v277, 0
      %v300 = vsel %vm292, %v278, 0
      %v303 = vsel %vm292, %v279, 0
      %v306 = vsel %vm292, %v280, 0
      %v309 = vsel %vm292, %v281, 0
      %v312 = vsel %vm292, %v282, 0
      %v315 = vsel %vm292, %v283, 0
      %v318 = vsel %vm292, %v284, 0
      %v321 = vsel %vm292, %v285, 0
      %v324 = vsel %vm292, %v286, 0
      %v327 = vsel %vm292, %v287, 0
      %v330 = vsel %vm292, %v288, 0
      %v333 = vsel %vm292, %v289, 0
      %v336 = vsel %vm292, %v290, 0
      %v339 = vsel %vm292, %v291, 0
      %vm341 = vcmask 1041408
      %v343 = vsel %vm341, %v207, 0
      %345 = vmatpush.bf16.msra.mxu0 0
      %346 = vmatpush.bf16.msra.mxu0 0
      %347 = vmatpush.bf16.msra.mxu0 0
      %348 = vmatpush.bf16.msra.mxu0 0
      %349 = vmatpush.bf16.msra.mxu0 0
      %350 = vmatpush.bf16.msra.mxu0 0
      %351 = vmatpush.bf16.msra.mxu0 0
      %352 = vmatpush.bf16.msra.mxu0 %v343
      %353 = vmatmul.bf16.gmra.mxu0 %v294
      %v354 = vpop.f32.mrf.mxu0
      %v355 = vadd.f32 %v210, %v354
      %v356 = vpop.f32.mrf.mxu0
      %v357 = vadd.f32 %v210, %v356
      %358 = vmatmul.bf16.gmra.mxu0 %v297
      %v359 = vpop.f32.mrf.mxu0
      %v360 = vadd.f32 %v210, %v359
      %v361 = vpop.f32.mrf.mxu0
      %v362 = vadd.f32 %v210, %v361
      %363 = vmatmul.bf16.gmra.mxu0 %v300
      %v364 = vpop.f32.mrf.mxu0
      %v365 = vadd.f32 %v210, %v364
      %v366 = vpop.f32.mrf.mxu0
      %v367 = vadd.f32 %v210, %v366
      %368 = vmatmul.bf16.gmra.mxu0 %v303
      %v369 = vpop.f32.mrf.mxu0
      %v370 = vadd.f32 %v210, %v369
      %v371 = vpop.f32.mrf.mxu0
      %v372 = vadd.f32 %v210, %v371
      %373 = vmatmul.bf16.gmra.mxu0 %v306
      %v374 = vpop.f32.mrf.mxu0
      %v375 = vadd.f32 %v210, %v374
      %v376 = vpop.f32.mrf.mxu0
      %v377 = vadd.f32 %v210, %v376
      %378 = vmatmul.bf16.gmra.mxu0 %v309
      %v379 = vpop.f32.mrf.mxu0
      %v380 = vadd.f32 %v210, %v379
      %v381 = vpop.f32.mrf.mxu0
      %v382 = vadd.f32 %v210, %v381
      %383 = vmatmul.bf16.gmra.mxu0 %v312
      %v384 = vpop.f32.mrf.mxu0
      %v385 = vadd.f32 %v210, %v384
      %v386 = vpop.f32.mrf.mxu0
      %v387 = vadd.f32 %v210, %v386
      %388 = vmatmul.bf16.gmra.mxu0 %v315
      %v389 = vpop.f32.mrf.mxu0
      %v390 = vadd.f32 %v210, %v389
      %v391 = vpop.f32.mrf.mxu0
      %v392 = vadd.f32 %v210, %v391
      %393 = vmatmul.bf16.gmra.mxu0 %v318
      %v394 = vpop.f32.mrf.mxu0
      %v395 = vadd.f32 %v210, %v394
      %v396 = vpop.f32.mrf.mxu0
      %v397 = vadd.f32 %v210, %v396
      %398 = vmatmul.bf16.gmra.mxu0 %v321
      %v399 = vpop.f32.mrf.mxu0
      %v400 = vadd.f32 %v210, %v399
      %v401 = vpop.f32.mrf.mxu0
      %v402 = vadd.f32 %v210, %v401
      %403 = vmatmul.bf16.gmra.mxu0 %v324
      %v404 = vpop.f32.mrf.mxu0
      %v405 = vadd.f32 %v210, %v404
      %v406 = vpop.f32.mrf.mxu0
      %v407 = vadd.f32 %v210, %v406
      %408 = vmatmul.bf16.gmra.mxu0 %v327
      %v409 = vpop.f32.mrf.mxu0
      %v410 = vadd.f32 %v210, %v409
      %v411 = vpop.f32.mrf.mxu0
      %v412 = vadd.f32 %v210, %v411
      %413 = vmatmul.bf16.gmra.mxu0 %v330
      %v414 = vpop.f32.mrf.mxu0
      %v415 = vadd.f32 %v210, %v414
      %v416 = vpop.f32.mrf.mxu0
      %v417 = vadd.f32 %v210, %v416
      %418 = vmatmul.bf16.gmra.mxu0 %v333
      %v419 = vpop.f32.mrf.mxu0
      %v420 = vadd.f32 %v210, %v419
      %v421 = vpop.f32.mrf.mxu0
      %v422 = vadd.f32 %v210, %v421
      %423 = vmatmul.bf16.gmra.mxu0 %v336
      %v424 = vpop.f32.mrf.mxu0
      %v425 = vadd.f32 %v210, %v424
      %v426 = vpop.f32.mrf.mxu0
      %v427 = vadd.f32 %v210, %v426
      %428 = vmatmul.bf16.gmra.mxu0 %v339
      %v429 = vpop.f32.mrf.mxu0
      %v430 = vadd.f32 %v210, %v429
      %v431 = vpop.f32.mrf.mxu0
      %v432 = vadd.f32 %v210, %v431
      %433 = vdwg.mxu0
      %v434 = vmax.f32 %v355, 0.0
      %v435 = vmax.f32 %v357, 0.0
      %v436 = vmax.f32 %v360, 0.0
      %v437 = vmax.f32 %v362, 0.0
      %v438 = vmax.f32 %v365, 0.0
      %v439 = vmax.f32 %v367, 0.0
      %v440 = vmax.f32 %v370, 0.0
      %v441 = vmax.f32 %v372, 0.0
      %v442 = vmax.f32 %v375, 0.0
      %v443 = vmax.f32 %v377, 0.0
      %v444 = vmax.f32 %v380, 0.0
      %v445 = vmax.f32 %v382, 0.0
      %v446 = vmax.f32 %v385, 0.0
      %v447 = vmax.f32 %v387, 0.0
      %v448 = vmax.f32 %v390, 0.0
      %v449 = vmax.f32 %v392, 0.0
      %v450 = vmax.f32 %v395, 0.0
      %v451 = vmax.f32 %v397, 0.0
      %v452 = vmax.f32 %v400, 0.0
      %v453 = vmax.f32 %v402, 0.0
      %v454 = vmax.f32 %v405, 0.0
      %v455 = vmax.f32 %v407, 0.0
      %v456 = vmax.f32 %v410, 0.0
      %v457 = vmax.f32 %v412, 0.0
      %v458 = vmax.f32 %v415, 0.0
      %v459 = vmax.f32 %v417, 0.0
      %v460 = vmax.f32 %v420, 0.0
      %v461 = vmax.f32 %v422, 0.0
      %v462 = vmax.f32 %v425, 0.0
      %v463 = vmax.f32 %v427, 0.0
      %v464 = vmax.f32 %v430, 0.0
      %v465 = vmax.f32 %v432, 0.0
      %466 = vst [vmem:[%s172] sm:$0xff] %v434
      %467 = vst [vmem:[%s172 + $0x8] sm:$0xff] %v435
      %468 = vst [vmem:[%s172 + $0x10] sm:$0xff] %v436
      %469 = vst [vmem:[%s172 + $0x18] sm:$0xff] %v437
      %470 = vst [vmem:[%s172 + $0x20] sm:$0xff] %v438
      %471 = vst [vmem:[%s172 + $0x28] sm:$0xff] %v439
      %472 = vst [vmem:[%s172 + $0x30] sm:$0xff] %v440
      %473 = vst [vmem:[%s172 + $0x38] sm:$0xff] %v441
      %474 = vst [vmem:[%s172 + $0x40] sm:$0xff] %v442
      %475 = vst [vmem:[%s172 + $0x48] sm:$0xff] %v443
      %476 = vst [vmem:[%s172 + $0x50] sm:$0xff] %v444
      %477 = vst [vmem:[%s172 + $0x58] sm:$0xff] %v445
      %478 = vst [vmem:[%s172 + $0x60] sm:$0xff] %v446
      %479 = vst [vmem:[%s172 + $0x68] sm:$0xff] %v447
      %480 = vst [vmem:[%s172 + $0x70] sm:$0xff] %v448
      %481 = vst [vmem:[%s172 + $0x78] sm:$0xff] %v449
      %482 = vst [vmem:[%s172 + $0x80] sm:$0xff] %v450
      %483 = vst [vmem:[%s172 + $0x88] sm:$0xff] %v451
      %484 = vst [vmem:[%s172 + $0x90] sm:$0xff] %v452
      %485 = vst [vmem:[%s172 + $0x98] sm:$0xff] %v453
      %486 = vst [vmem:[%s172 + $0xa0] sm:$0xff] %v454
      %487 = vst [vmem:[%s172 + $0xa8] sm:$0xff] %v455
      %488 = vst [vmem:[%s172 + $0xb0] sm:$0xff] %v456
      %489 = vst [vmem:[%s172 + $0xb8] sm:$0xff] %v457
      %490 = vst [vmem:[%s172 + $0xc0] sm:$0xff] %v458
      %491 = vst [vmem:[%s172 + $0xc8] sm:$0xff] %v459
      %492 = vst [vmem:[%s172 + $0xd0] sm:$0xff] %v460
      %493 = vst [vmem:[%s172 + $0xd8] sm:$0xff] %v461
      %494 = vst [vmem:[%s172 + $0xe0] sm:$0xff] %v462
      %495 = vst [vmem:[%s172 + $0xe8] sm:$0xff] %v463
      %496 = vst [vmem:[%s172 + $0xf0] sm:$0xff] %v464
      %497 = vst [vmem:[%s172 + $0xf8] sm:$0xff] %v465
      %s498 = smul.u32 32, %s14
      %p499 = scmp.lt.s32.totalorder %s498, 63
      %s500 = scalar_select %p499, %s498, 63
      %s501 = smul.addr %s500, 8
      %s502 = scalar_lea.vmem %s3, %s501
      // Predicated region
      $region33: #{inception_b_forward.15} parent=31 // pred_check
        %p503 = pneg %p100
      $region34: #{inception_b_forward.15} parent=31 // pred_check_branch
        %505 = sbr.rel (%p503) target = $region36
      $region35: #{inception_b_forward.15} parent=31 // pred_region
        %s506 = smul.u32 32, %s14
      $region36: #{inception_b_forward.15} parent=31 // pred_fallthru
        _
    $region32: #{inception_b_forward.15} parent=5 // pred_fallthru
      _
    %p507 = scmp.le.s32.totalorder 2, %s9
    // Predicated region
    $region37: #{inception_b_forward.15} parent=5 // pred_check
      %p508 = pneg %p507
    $region38: #{inception_b_forward.15} parent=5 // pred_check_branch
      %510 = sbr.rel (%p508) target = $region40
    $region39: #{inception_b_forward.15} parent=5 // pred_region
      %s511 = ssub.s32 %s9, 2
      // Predicated region
      $region41: #{inception_b_forward.15} parent=39 // pred_check
        %p512 = pneg %p106
      $region42: #{inception_b_forward.15} parent=39 // pred_check_branch
        %514 = sbr.rel (%p512) target = $region44
      $region43: #{inception_b_forward.15} parent=39 // pred_region
        %s515 = smul.u32 32, %s15
        %p516 = scmp.lt.s32.totalorder %s515, 63
        %s517 = scalar_select %p516, %s515, 63
        %s518 = smul.addr %s517, 8
        %s519 = scalar_lea.vmem %s3, %s518
      $region44: #{inception_b_forward.15} parent=39 // pred_fallthru
        _
    $region40: #{inception_b_forward.15} parent=5 // pred_fallthru
      _
  $region6: #{inception_b_forward.15} parent=0 // loop_footer
    %s13 = sadd.s32 1, %s9
  $region7: #{inception_b_forward.15} parent=0 // loop_footer_branch
    %8 = sbr.rel target = $region3
  $region8: #{inception_b_forward.15} parent=0 // loop_exit
    _

</llo_original>
